<compile_context>
chip_gen: v6e
topology: v6e:2x2x1
jax: 0.10.0
libtpu: 0.0.40
codegen_flags: <defaults>
</compile_context>

<pallas_src>
import jax
import jax.numpy as jnp
from jax.experimental import pallas as pl
from jax.experimental.pallas import tpu as pltpu


# ------------------------------ fused kernel -------------------------------

def _draw_kernel(
    # inputs
    x_ref, noise_ref,
    w_enc_xsum_ref, w_enc_xhat_neg_ref, b_enc_ref,
    w_hdec_cat_ref,
    mu_whh_ref, lv_whh_ref,
    mu_fc_w_ref, mu_fc_b_ref, lv_fc_w_ref, lv_fc_b_ref,
    dec_wih_ref, dec_b_ref,
    wr_w_ref, wr_b_ref,
    # outputs
    out_img_ref, mu_ref, lv_ref,
    # scratch (persists across grid steps)
    xw_ref, c_ref, hmu_ref, cmu_ref, hlv_ref, clv_ref, hdec_ref, cdec_ref,
):
    t = pl.program_id(0)
    He = hmu_ref.shape[-1]
    Hd = hdec_ref.shape[-1]
    bf16 = jnp.bfloat16
    f32 = jnp.float32

    # ---- initialize recurrent state + loop-invariant input gates once ----
    @pl.when(t == 0)
    def _init():
        c_ref[...] = jnp.zeros_like(c_ref)
        hmu_ref[...] = jnp.zeros_like(hmu_ref)
        cmu_ref[...] = jnp.zeros_like(cmu_ref)
        hlv_ref[...] = jnp.zeros_like(hlv_ref)
        clv_ref[...] = jnp.zeros_like(clv_ref)
        hdec_ref[...] = jnp.zeros_like(hdec_ref)
        cdec_ref[...] = jnp.zeros_like(cdec_ref)
        # x @ (W_x + W_xhat) + (b_ih + b_hh), fused over both encoder branches.
        xw_ref[...] = (
            jnp.dot(x_ref[...].astype(bf16), w_enc_xsum_ref[...],
                    preferred_element_type=f32)
            + b_enc_ref[...])

    canvas = c_ref[...]                       # [B, 3*img*img], f32
    sb = jax.nn.sigmoid(canvas)               # the "read": sigmoid(c) (EUP)
    h_dec_prev = hdec_ref[...].astype(bf16)   # [B, Hd]

    # h_dec_prev -> encoder(mu) gates | encoder(logvar) gates | decoder hidden
    # gates, in ONE matmul against the concatenated weight slab.
    hdec_gates = jnp.dot(h_dec_prev, w_hdec_cat_ref[...],
                         preferred_element_type=f32)       # [B, 8He + 4Hd]

    # x@Wx + x_hat@Wxhat  ==  (hoisted xw)  +  sigmoid(c) @ (-Wxhat)
    enc_gates = (xw_ref[...]
                 + jnp.dot(sb.astype(bf16), w_enc_xhat_neg_ref[...],
                           preferred_element_type=f32)
                 + hdec_gates[:, :8 * He])                  # [B, 8He]

    def lstm_update(gates, h_ref, cstate_ref, H):
        """PyTorch nn.LSTMCell semantics; gates = W_ih@in + W_hh@h + biases."""
        i = jax.nn.sigmoid(gates[:, 0:H])
        f = jax.nn.sigmoid(gates[:, H:2 * H])
        g = jnp.tanh(gates[:, 2 * H:3 * H])
        o = jax.nn.sigmoid(gates[:, 3 * H:4 * H])
        c_new = f * cstate_ref[...] + i * g
        h_new = o * jnp.tanh(c_new)
        cstate_ref[...] = c_new
        h_ref[...] = h_new
        return h_new

    # encoder branches (shared input gates; separate hidden states)
    mu_gates = enc_gates[:, :4 * He] + jnp.dot(
        hmu_ref[...].astype(bf16), mu_whh_ref[...], preferred_element_type=f32)
    h_mu = lstm_update(mu_gates, hmu_ref, cmu_ref, He)

    lv_gates = enc_gates[:, 4 * He:] + jnp.dot(
        hlv_ref[...].astype(bf16), lv_whh_ref[...], preferred_element_type=f32)
    h_lv = lstm_update(lv_gates, hlv_ref, clv_ref, He)

    mu = jnp.maximum(
        jnp.dot(h_mu.astype(bf16), mu_fc_w_ref[...],
                preferred_element_type=f32) + mu_fc_b_ref[...], 0.0)
    logvar = jnp.maximum(
        jnp.dot(h_lv.astype(bf16), lv_fc_w_ref[...],
                preferred_element_type=f32) + lv_fc_b_ref[...], 0.0)
    mu_ref[0] = mu
    lv_ref[0] = logvar

    # reparameterization (noise precomputed outside, streamed per step)
    std = jnp.exp(0.5 * logvar)
    z = noise_ref[0] * std + mu

    # decoder LSTM (its hidden-gate term was already computed in hdec_gates)
    dec_gates = (jnp.dot(z.astype(bf16), dec_wih_ref[...],
                         preferred_element_type=f32)
                 + dec_b_ref[...]
                 + hdec_gates[:, 8 * He:])
    h_dec_new = lstm_update(dec_gates, hdec_ref, cdec_ref, Hd)

    # write + canvas update (canvas stays in VMEM scratch)
    canvas_new = (canvas
                  + jnp.dot(h_dec_new.astype(bf16), wr_w_ref[...],
                            preferred_element_type=f32)
                  + wr_b_ref[...])
    c_ref[...] = canvas_new

    # final sigmoid only at the last step; output block is grid-resident
    @pl.when(t == pl.num_programs(0) - 1)
    def _final():
        out_img_ref[...] = jax.nn.sigmoid(canvas_new)


# ------------------------------ DRAW wrapper --------------------------------

class DrawPallas:
    """Matches the torch `draw` module's forward pass (scaled-down dims)."""

    def __init__(self, key, img_size=16, enc_hidden=128, dec_hidden=256, nz=32):
        self.img_size = img_size
        self.X = 3 * img_size * img_size
        self.He = enc_hidden
        self.Hd = dec_hidden
        self.nz = nz

        def u(k, shape, scale=0.05):
            return jax.random.uniform(k, shape, jnp.float32, -scale, scale)

        bf = jnp.bfloat16
        X, He, Hd = self.X, enc_hidden, dec_hidden
        keys = jax.random.split(key, 20)

        # Encoder LSTMCell input weights split by input segment (x | x_hat | h_dec)
        # and fused across the mu / logvar branches along the gate (output) dim.
        mu_w_x, lv_w_x = u(keys[0], (X, 4 * He)), u(keys[1], (X, 4 * He))
        mu_w_xh, lv_w_xh = u(keys[2], (X, 4 * He)), u(keys[3], (X, 4 * He))
        mu_w_hd, lv_w_hd = u(keys[4], (Hd, 4 * He)), u(keys[5], (Hd, 4 * He))
        dec_whh = u(keys[6], (Hd, 4 * Hd))

        # x@Wx + (x - sigmoid(c))@Wxhat == x@(Wx+Wxhat) + sigmoid(c)@(-Wxhat):
        # the first term is loop-invariant (computed once at t==0 in-kernel).
        self.w_enc_xsum = jnp.concatenate(
            [mu_w_x + mu_w_xh, lv_w_x + lv_w_xh], axis=1).astype(bf)   # [X, 8He]
        self.w_enc_xhat_neg = jnp.concatenate(
            [-mu_w_xh, -lv_w_xh], axis=1).astype(bf)                   # [X, 8He]
        mu_b, lv_b = u(keys[7], (1, 4 * He)), u(keys[8], (1, 4 * He))
        self.b_enc = jnp.concatenate([mu_b, lv_b], axis=1)  # f32, b_ih+b_hh folded

        # h_dec_prev feeds both encoder branches AND the decoder hidden gates:
        # one fused [Hd, 8He + 4Hd] slab -> single per-step matmul.
        self.w_hdec_cat = jnp.concatenate(
            [mu_w_hd, lv_w_hd, dec_whh], axis=1).astype(bf)

        self.mu_whh = u(keys[9], (He, 4 * He)).astype(bf)
        self.lv_whh = u(keys[10], (He, 4 * He)).astype(bf)
        self.mu_fc_w = u(keys[11], (He, nz)).astype(bf)
        self.mu_fc_b = u(keys[12], (1, nz))
        self.lv_fc_w = u(keys[13], (He, nz)).astype(bf)
        self.lv_fc_b = u(keys[14], (1, nz))
        self.dec_wih = u(keys[15], (nz, 4 * Hd)).astype(bf)
        self.dec_b = u(keys[16], (1, 4 * Hd))                # f32, b_ih+b_hh folded
        self.wr_w = u(keys[17], (Hd, X)).astype(bf)
        self.wr_b = u(keys[18], (1, X))

    def forward(self, x, T, noise_key):
        B = x.shape[0]
        X, He, Hd, nz = self.X, self.He, self.Hd, self.nz
        x_flat = x.reshape(B, -1).astype(jnp.float32)        # [B, 3*img*img]
        # torch's per-step noise.normal_() -> all T draws up front, streamed in.
        noise = jax.random.normal(noise_key, (T, B, nz), jnp.float32)

        inv2 = lambda t: (0, 0)       # loop-invariant 2-D operands (fetched once)
        step3 = lambda t: (t, 0, 0)   # per-step 3-D operands

        def whole(arr):
            return pl.BlockSpec(arr.shape, inv2)

        in_specs = [
            whole(x_flat),
            pl.BlockSpec((1, B, nz), step3),
            whole(self.w_enc_xsum), whole(self.w_enc_xhat_neg), whole(self.b_enc),
            whole(self.w_hdec_cat),
            whole(self.mu_whh), whole(self.lv_whh),
            whole(self.mu_fc_w), whole(self.mu_fc_b),
            whole(self.lv_fc_w), whole(self.lv_fc_b),
            whole(self.dec_wih), whole(self.dec_b),
            whole(self.wr_w), whole(self.wr_b),
        ]
        out_specs = (
            pl.BlockSpec((B, X), inv2),          # final sigmoid(canvas)
            pl.BlockSpec((1, B, nz), step3),     # mu per step
            pl.BlockSpec((1, B, nz), step3),     # logvar per step
        )
        out_shape = (
            jax.ShapeDtypeStruct((B, X), jnp.float32),
            jax.ShapeDtypeStruct((T, B, nz), jnp.float32),
            jax.ShapeDtypeStruct((T, B, nz), jnp.float32),
        )
        scratch_shapes = [
            pltpu.VMEM((B, 8 * He), jnp.float32),              # hoisted x-gate slab
            pltpu.VMEM((B, X), jnp.float32),                   # canvas
            pltpu.VMEM((B, He), jnp.float32), pltpu.VMEM((B, He), jnp.float32),  # h_mu, c_mu
            pltpu.VMEM((B, He), jnp.float32), pltpu.VMEM((B, He), jnp.float32),  # h_lv, c_lv
            pltpu.VMEM((B, Hd), jnp.float32), pltpu.VMEM((B, Hd), jnp.float32),  # h_dec, c_dec
        ]

        out_img, mu_all, lv_all = pl.pallas_call(
            _draw_kernel,
            out_shape=out_shape,
            grid_spec=pltpu.PrefetchScalarGridSpec(
                num_scalar_prefetch=0,
                grid=(T,),
                in_specs=in_specs,
                out_specs=out_specs,
                scratch_shapes=scratch_shapes,
            ),
            compiler_params=pltpu.CompilerParams(
                dimension_semantics=("arbitrary",),   # sequential recurrence
                vmem_limit_bytes=32 * 1024 * 1024,    # bf16 weights + state fit easily
            ),
        )(x_flat, noise,
          self.w_enc_xsum, self.w_enc_xhat_neg, self.b_enc,
          self.w_hdec_cat,
          self.mu_whh, self.lv_whh,
          self.mu_fc_w, self.mu_fc_b, self.lv_fc_w, self.lv_fc_b,
          self.dec_wih, self.dec_b,
          self.wr_w, self.wr_b)

        out = out_img.reshape(B, 3, self.img_size, self.img_size)
        mu_t = [mu_all[t] for t in range(T)]
        logvar_t = [lv_all[t] for t in range(T)]
        return out, mu_t, logvar_t


# --------------------------------- main -------------------------------------

if __name__ == "__main__":
    key = jax.random.PRNGKey(0)
    k_param, k_x, k_noise = jax.random.split(key, 3)

    B, IMG, T = 2, 16, 4
    model = DrawPallas(k_param, img_size=IMG, enc_hidden=128,
                       dec_hidden=256, nz=32)

    # input image, NCHW like the torch module
    x = jax.random.uniform(k_x, (B, 3, IMG, IMG), jnp.float32)

    out, mu_t, logvar_t = model.forward(x, T, k_noise)
    out = jax.block_until_ready(out)
    mu_t = [jax.block_until_ready(m) for m in mu_t]
    logvar_t = [jax.block_until_ready(l) for l in logvar_t]

    assert out.shape == (B, 3, IMG, IMG)
    assert len(mu_t) == T and mu_t[0].shape == (B, model.nz)
    assert len(logvar_t) == T and logvar_t[0].shape == (B, model.nz)
    assert bool(jnp.all(jnp.isfinite(out)))
    assert all(bool(jnp.all(jnp.isfinite(m))) for m in mu_t)
    assert all(bool(jnp.all(jnp.isfinite(l))) for l in logvar_t)
    print("KERNEL_OK")
</pallas_src>

<mosaic_0001>
module attributes {stable_mosaic.version = 11 : i64} {
  func.func @_draw_kernel(%arg0: i32, %arg1: memref<2x768xf32, #tpu.memory_space<vmem>>, %arg2: memref<1x2x32xf32, #tpu.memory_space<vmem>>, %arg3: memref<768x1024xbf16, #tpu.memory_space<vmem>>, %arg4: memref<768x1024xbf16, #tpu.memory_space<vmem>>, %arg5: memref<1x1024xf32, #tpu.memory_space<vmem>>, %arg6: memref<256x2048xbf16, #tpu.memory_space<vmem>>, %arg7: memref<128x512xbf16, #tpu.memory_space<vmem>>, %arg8: memref<128x512xbf16, #tpu.memory_space<vmem>>, %arg9: memref<128x32xbf16, #tpu.memory_space<vmem>>, %arg10: memref<1x32xf32, #tpu.memory_space<vmem>>, %arg11: memref<128x32xbf16, #tpu.memory_space<vmem>>, %arg12: memref<1x32xf32, #tpu.memory_space<vmem>>, %arg13: memref<32x1024xbf16, #tpu.memory_space<vmem>>, %arg14: memref<1x1024xf32, #tpu.memory_space<vmem>>, %arg15: memref<256x768xbf16, #tpu.memory_space<vmem>>, %arg16: memref<1x768xf32, #tpu.memory_space<vmem>>, %arg17: memref<2x768xf32, #tpu.memory_space<vmem>>, %arg18: memref<1x2x32xf32, #tpu.memory_space<vmem>>, %arg19: memref<1x2x32xf32, #tpu.memory_space<vmem>>, %arg20: memref<2x1024xf32, #tpu.memory_space<vmem>>, %arg21: memref<2x768xf32, #tpu.memory_space<vmem>>, %arg22: memref<2x128xf32, #tpu.memory_space<vmem>>, %arg23: memref<2x128xf32, #tpu.memory_space<vmem>>, %arg24: memref<2x128xf32, #tpu.memory_space<vmem>>, %arg25: memref<2x128xf32, #tpu.memory_space<vmem>>, %arg26: memref<2x256xf32, #tpu.memory_space<vmem>>, %arg27: memref<2x256xf32, #tpu.memory_space<vmem>>) attributes {dimension_semantics = [#tpu.dimension_semantics<arbitrary>], iteration_bounds = array<i64: 4>, scalar_prefetch = 0 : i64, scratch_operands = 8 : i64, tpu.core_type = #tpu.core_type<tc>, window_params = [{pipeline_mode = #tpu.pipeline_mode<synchronous>, transform_indices = @transform_0, window_bounds = array<i64: 2, 768>}, {transform_indices = @transform_1, window_bounds = array<i64: 1, 2, 32>}, {pipeline_mode = #tpu.pipeline_mode<synchronous>, transform_indices = @transform_2, window_bounds = array<i64: 768, 1024>}, {pipeline_mode = #tpu.pipeline_mode<synchronous>, transform_indices = @transform_3, window_bounds = array<i64: 768, 1024>}, {pipeline_mode = #tpu.pipeline_mode<synchronous>, transform_indices = @transform_4, window_bounds = array<i64: 1, 1024>}, {pipeline_mode = #tpu.pipeline_mode<synchronous>, transform_indices = @transform_5, window_bounds = array<i64: 256, 2048>}, {pipeline_mode = #tpu.pipeline_mode<synchronous>, transform_indices = @transform_6, window_bounds = array<i64: 128, 512>}, {pipeline_mode = #tpu.pipeline_mode<synchronous>, transform_indices = @transform_7, window_bounds = array<i64: 128, 512>}, {pipeline_mode = #tpu.pipeline_mode<synchronous>, transform_indices = @transform_8, window_bounds = array<i64: 128, 32>}, {pipeline_mode = #tpu.pipeline_mode<synchronous>, transform_indices = @transform_9, window_bounds = array<i64: 1, 32>}, {pipeline_mode = #tpu.pipeline_mode<synchronous>, transform_indices = @transform_10, window_bounds = array<i64: 128, 32>}, {pipeline_mode = #tpu.pipeline_mode<synchronous>, transform_indices = @transform_11, window_bounds = array<i64: 1, 32>}, {pipeline_mode = #tpu.pipeline_mode<synchronous>, transform_indices = @transform_12, window_bounds = array<i64: 32, 1024>}, {pipeline_mode = #tpu.pipeline_mode<synchronous>, transform_indices = @transform_13, window_bounds = array<i64: 1, 1024>}, {pipeline_mode = #tpu.pipeline_mode<synchronous>, transform_indices = @transform_14, window_bounds = array<i64: 256, 768>}, {pipeline_mode = #tpu.pipeline_mode<synchronous>, transform_indices = @transform_15, window_bounds = array<i64: 1, 768>}, {pipeline_mode = #tpu.pipeline_mode<synchronous>, transform_indices = @transform_16, window_bounds = array<i64: 2, 768>}, {transform_indices = @transform_17, window_bounds = array<i64: 1, 2, 32>}, {transform_indices = @transform_18, window_bounds = array<i64: 1, 2, 32>}]} {
    %c0_i32 = arith.constant 0 : i32
    %0 = arith.cmpi eq, %arg0, %c0_i32 : i32
    %1 = arith.extui %0 : i1 to i32
    %c0_i32_0 = arith.constant 0 : i32
    %2 = arith.cmpi ne, %1, %c0_i32_0 : i32
    scf.if %2 {
      %cst_84 = arith.constant 0.000000e+00 : f32
      %164 = vector.broadcast %cst_84 : f32 to vector<2x768xf32>
      %c0_85 = arith.constant 0 : index
      %c0_86 = arith.constant 0 : index
      %165 = vector.load %arg21[%c0_85, %c0_86] : memref<2x768xf32, #tpu.memory_space<vmem>>, vector<2x768xf32>
      tpu.vector_store %arg21[%c0_85, %c0_86], %164 {strides = array<i32>} : memref<2x768xf32, #tpu.memory_space<vmem>>, vector<2x768xf32>,
      %cst_87 = arith.constant 0.000000e+00 : f32
      %166 = vector.broadcast %cst_87 : f32 to vector<2x128xf32>
      %c0_88 = arith.constant 0 : index
      %c0_89 = arith.constant 0 : index
      %167 = vector.load %arg22[%c0_88, %c0_89] : memref<2x128xf32, #tpu.memory_space<vmem>>, vector<2x128xf32>
      tpu.vector_store %arg22[%c0_88, %c0_89], %166 {strides = array<i32>} : memref<2x128xf32, #tpu.memory_space<vmem>>, vector<2x128xf32>,
      %cst_90 = arith.constant 0.000000e+00 : f32
      %168 = vector.broadcast %cst_90 : f32 to vector<2x128xf32>
      %c0_91 = arith.constant 0 : index
      %c0_92 = arith.constant 0 : index
      %169 = vector.load %arg23[%c0_91, %c0_92] : memref<2x128xf32, #tpu.memory_space<vmem>>, vector<2x128xf32>
      tpu.vector_store %arg23[%c0_91, %c0_92], %168 {strides = array<i32>} : memref<2x128xf32, #tpu.memory_space<vmem>>, vector<2x128xf32>,
      %cst_93 = arith.constant 0.000000e+00 : f32
      %170 = vector.broadcast %cst_93 : f32 to vector<2x128xf32>
      %c0_94 = arith.constant 0 : index
      %c0_95 = arith.constant 0 : index
      %171 = vector.load %arg24[%c0_94, %c0_95] : memref<2x128xf32, #tpu.memory_space<vmem>>, vector<2x128xf32>
      tpu.vector_store %arg24[%c0_94, %c0_95], %170 {strides = array<i32>} : memref<2x128xf32, #tpu.memory_space<vmem>>, vector<2x128xf32>,
      %cst_96 = arith.constant 0.000000e+00 : f32
      %172 = vector.broadcast %cst_96 : f32 to vector<2x128xf32>
      %c0_97 = arith.constant 0 : index
      %c0_98 = arith.constant 0 : index
      %173 = vector.load %arg25[%c0_97, %c0_98] : memref<2x128xf32, #tpu.memory_space<vmem>>, vector<2x128xf32>
      tpu.vector_store %arg25[%c0_97, %c0_98], %172 {strides = array<i32>} : memref<2x128xf32, #tpu.memory_space<vmem>>, vector<2x128xf32>,
      %cst_99 = arith.constant 0.000000e+00 : f32
      %174 = vector.broadcast %cst_99 : f32 to vector<2x256xf32>
      %c0_100 = arith.constant 0 : index
      %c0_101 = arith.constant 0 : index
      %175 = vector.load %arg26[%c0_100, %c0_101] : memref<2x256xf32, #tpu.memory_space<vmem>>, vector<2x256xf32>
      tpu.vector_store %arg26[%c0_100, %c0_101], %174 {strides = array<i32>} : memref<2x256xf32, #tpu.memory_space<vmem>>, vector<2x256xf32>,
      %cst_102 = arith.constant 0.000000e+00 : f32
      %176 = vector.broadcast %cst_102 : f32 to vector<2x256xf32>
      %c0_103 = arith.constant 0 : index
      %c0_104 = arith.constant 0 : index
      %177 = vector.load %arg27[%c0_103, %c0_104] : memref<2x256xf32, #tpu.memory_space<vmem>>, vector<2x256xf32>
      tpu.vector_store %arg27[%c0_103, %c0_104], %176 {strides = array<i32>} : memref<2x256xf32, #tpu.memory_space<vmem>>, vector<2x256xf32>,
      %c0_105 = arith.constant 0 : index
      %c0_106 = arith.constant 0 : index
      %178 = vector.load %arg1[%c0_105, %c0_106] : memref<2x768xf32, #tpu.memory_space<vmem>>, vector<2x768xf32>
      %179 = arith.truncf %178 : vector<2x768xf32> to vector<2x768xbf16>
      %c0_107 = arith.constant 0 : index
      %c0_108 = arith.constant 0 : index
      %180 = vector.load %arg3[%c0_107, %c0_108] : memref<768x1024xbf16, #tpu.memory_space<vmem>>, vector<768x1024xbf16>
      %cst_109 = arith.constant dense<0.000000e+00> : vector<2x1024xf32>
      %181 = tpu.matmul %179, %180, %cst_109 {dimension_numbers = #tpu.dot_dimension_numbers<[1], [0], [0], [1], [0, 0, 1, 1], [], []>} : vector<2x768xbf16>, vector<768x1024xbf16>, vector<2x1024xf32> -> vector<2x1024xf32>
      %c0_110 = arith.constant 0 : index
      %c0_111 = arith.constant 0 : index
      %182 = vector.load %arg5[%c0_110, %c0_111] : memref<1x1024xf32, #tpu.memory_space<vmem>>, vector<1x1024xf32>
      %183 = vector.broadcast %182 : vector<1x1024xf32> to vector<2x1024xf32>
      %184 = arith.addf %181, %183 : vector<2x1024xf32>
      %c0_112 = arith.constant 0 : index
      %c0_113 = arith.constant 0 : index
      %185 = vector.load %arg20[%c0_112, %c0_113] : memref<2x1024xf32, #tpu.memory_space<vmem>>, vector<2x1024xf32>
      tpu.vector_store %arg20[%c0_112, %c0_113], %184 {strides = array<i32>} : memref<2x1024xf32, #tpu.memory_space<vmem>>, vector<2x1024xf32>,
    } else {
    }
    %c0 = arith.constant 0 : index
    %c0_1 = arith.constant 0 : index
    %3 = vector.load %arg21[%c0, %c0_1] : memref<2x768xf32, #tpu.memory_space<vmem>>, vector<2x768xf32>
    %4 = arith.negf %3 : vector<2x768xf32>
    %5 = math.exp %4 : vector<2x768xf32>
    %cst = arith.constant 1.000000e+00 : f32
    %6 = vector.broadcast %cst : f32 to vector<2x768xf32>
    %7 = arith.addf %6, %5 : vector<2x768xf32>
    %8 = arith.divf %6, %7 : vector<2x768xf32>
    %c0_2 = arith.constant 0 : index
    %c0_3 = arith.constant 0 : index
    %9 = vector.load %arg26[%c0_2, %c0_3] : memref<2x256xf32, #tpu.memory_space<vmem>>, vector<2x256xf32>
    %10 = arith.truncf %9 : vector<2x256xf32> to vector<2x256xbf16>
    %c0_4 = arith.constant 0 : index
    %c0_5 = arith.constant 0 : index
    %11 = vector.load %arg6[%c0_4, %c0_5] : memref<256x2048xbf16, #tpu.memory_space<vmem>>, vector<256x2048xbf16>
    %cst_6 = arith.constant dense<0.000000e+00> : vector<2x2048xf32>
    %12 = tpu.matmul %10, %11, %cst_6 {dimension_numbers = #tpu.dot_dimension_numbers<[1], [0], [0], [1], [0, 0, 1, 1], [], []>} : vector<2x256xbf16>, vector<256x2048xbf16>, vector<2x2048xf32> -> vector<2x2048xf32>
    %c0_7 = arith.constant 0 : index
    %c0_8 = arith.constant 0 : index
    %13 = vector.load %arg20[%c0_7, %c0_8] : memref<2x1024xf32, #tpu.memory_space<vmem>>, vector<2x1024xf32>
    %14 = arith.truncf %8 : vector<2x768xf32> to vector<2x768xbf16>
    %c0_9 = arith.constant 0 : index
    %c0_10 = arith.constant 0 : index
    %15 = vector.load %arg4[%c0_9, %c0_10] : memref<768x1024xbf16, #tpu.memory_space<vmem>>, vector<768x1024xbf16>
    %cst_11 = arith.constant dense<0.000000e+00> : vector<2x1024xf32>
    %16 = tpu.matmul %14, %15, %cst_11 {dimension_numbers = #tpu.dot_dimension_numbers<[1], [0], [0], [1], [0, 0, 1, 1], [], []>} : vector<2x768xbf16>, vector<768x1024xbf16>, vector<2x1024xf32> -> vector<2x1024xf32>
    %17 = arith.addf %13, %16 : vector<2x1024xf32>
    %18 = vector.extract_strided_slice %12 {offsets = [0, 0], sizes = [2, 1024], strides = [1, 1]} : vector<2x2048xf32> to vector<2x1024xf32>
    %19 = arith.addf %17, %18 : vector<2x1024xf32>
    %20 = vector.extract_strided_slice %19 {offsets = [0, 0], sizes = [2, 512], strides = [1, 1]} : vector<2x1024xf32> to vector<2x512xf32>
    %c0_12 = arith.constant 0 : index
    %c0_13 = arith.constant 0 : index
    %21 = vector.load %arg22[%c0_12, %c0_13] : memref<2x128xf32, #tpu.memory_space<vmem>>, vector<2x128xf32>
    %22 = arith.truncf %21 : vector<2x128xf32> to vector<2x128xbf16>
    %c0_14 = arith.constant 0 : index
    %c0_15 = arith.constant 0 : index
    %23 = vector.load %arg7[%c0_14, %c0_15] : memref<128x512xbf16, #tpu.memory_space<vmem>>, vector<128x512xbf16>
    %cst_16 = arith.constant dense<0.000000e+00> : vector<2x512xf32>
    %24 = tpu.matmul %22, %23, %cst_16 {dimension_numbers = #tpu.dot_dimension_numbers<[1], [0], [0], [1], [0, 0, 1, 1], [], []>} : vector<2x128xbf16>, vector<128x512xbf16>, vector<2x512xf32> -> vector<2x512xf32>
    %25 = arith.addf %20, %24 : vector<2x512xf32>
    %26 = vector.extract_strided_slice %25 {offsets = [0, 0], sizes = [2, 128], strides = [1, 1]} : vector<2x512xf32> to vector<2x128xf32>
    %27 = arith.negf %26 : vector<2x128xf32>
    %28 = math.exp %27 : vector<2x128xf32>
    %cst_17 = arith.constant 1.000000e+00 : f32
    %29 = vector.broadcast %cst_17 : f32 to vector<2x128xf32>
    %30 = arith.addf %29, %28 : vector<2x128xf32>
    %31 = arith.divf %29, %30 : vector<2x128xf32>
    %32 = vector.extract_strided_slice %25 {offsets = [0, 128], sizes = [2, 128], strides = [1, 1]} : vector<2x512xf32> to vector<2x128xf32>
    %33 = arith.negf %32 : vector<2x128xf32>
    %34 = math.exp %33 : vector<2x128xf32>
    %cst_18 = arith.constant 1.000000e+00 : f32
    %35 = vector.broadcast %cst_18 : f32 to vector<2x128xf32>
    %36 = arith.addf %35, %34 : vector<2x128xf32>
    %37 = arith.divf %35, %36 : vector<2x128xf32>
    %38 = vector.extract_strided_slice %25 {offsets = [0, 256], sizes = [2, 128], strides = [1, 1]} : vector<2x512xf32> to vector<2x128xf32>
    %39 = math.tanh %38 : vector<2x128xf32>
    %40 = vector.extract_strided_slice %25 {offsets = [0, 384], sizes = [2, 128], strides = [1, 1]} : vector<2x512xf32> to vector<2x128xf32>
    %41 = arith.negf %40 : vector<2x128xf32>
    %42 = math.exp %41 : vector<2x128xf32>
    %cst_19 = arith.constant 1.000000e+00 : f32
    %43 = vector.broadcast %cst_19 : f32 to vector<2x128xf32>
    %44 = arith.addf %43, %42 : vector<2x128xf32>
    %45 = arith.divf %43, %44 : vector<2x128xf32>
    %c0_20 = arith.constant 0 : index
    %c0_21 = arith.constant 0 : index
    %46 = vector.load %arg23[%c0_20, %c0_21] : memref<2x128xf32, #tpu.memory_space<vmem>>, vector<2x128xf32>
    %47 = arith.mulf %37, %46 : vector<2x128xf32>
    %48 = arith.mulf %31, %39 : vector<2x128xf32>
    %49 = arith.addf %47, %48 : vector<2x128xf32>
    %50 = math.tanh %49 : vector<2x128xf32>
    %51 = arith.mulf %45, %50 : vector<2x128xf32>
    %c0_22 = arith.constant 0 : index
    %c0_23 = arith.constant 0 : index
    %52 = vector.load %arg23[%c0_22, %c0_23] : memref<2x128xf32, #tpu.memory_space<vmem>>, vector<2x128xf32>
    tpu.vector_store %arg23[%c0_22, %c0_23], %49 {strides = array<i32>} : memref<2x128xf32, #tpu.memory_space<vmem>>, vector<2x128xf32>,
    %c0_24 = arith.constant 0 : index
    %c0_25 = arith.constant 0 : index
    %53 = vector.load %arg22[%c0_24, %c0_25] : memref<2x128xf32, #tpu.memory_space<vmem>>, vector<2x128xf32>
    tpu.vector_store %arg22[%c0_24, %c0_25], %51 {strides = array<i32>} : memref<2x128xf32, #tpu.memory_space<vmem>>, vector<2x128xf32>,
    %54 = vector.extract_strided_slice %19 {offsets = [0, 512], sizes = [2, 512], strides = [1, 1]} : vector<2x1024xf32> to vector<2x512xf32>
    %c0_26 = arith.constant 0 : index
    %c0_27 = arith.constant 0 : index
    %55 = vector.load %arg24[%c0_26, %c0_27] : memref<2x128xf32, #tpu.memory_space<vmem>>, vector<2x128xf32>
    %56 = arith.truncf %55 : vector<2x128xf32> to vector<2x128xbf16>
    %c0_28 = arith.constant 0 : index
    %c0_29 = arith.constant 0 : index
    %57 = vector.load %arg8[%c0_28, %c0_29] : memref<128x512xbf16, #tpu.memory_space<vmem>>, vector<128x512xbf16>
    %cst_30 = arith.constant dense<0.000000e+00> : vector<2x512xf32>
    %58 = tpu.matmul %56, %57, %cst_30 {dimension_numbers = #tpu.dot_dimension_numbers<[1], [0], [0], [1], [0, 0, 1, 1], [], []>} : vector<2x128xbf16>, vector<128x512xbf16>, vector<2x512xf32> -> vector<2x512xf32>
    %59 = arith.addf %54, %58 : vector<2x512xf32>
    %60 = vector.extract_strided_slice %59 {offsets = [0, 0], sizes = [2, 128], strides = [1, 1]} : vector<2x512xf32> to vector<2x128xf32>
    %61 = arith.negf %60 : vector<2x128xf32>
    %62 = math.exp %61 : vector<2x128xf32>
    %cst_31 = arith.constant 1.000000e+00 : f32
    %63 = vector.broadcast %cst_31 : f32 to vector<2x128xf32>
    %64 = arith.addf %63, %62 : vector<2x128xf32>
    %65 = arith.divf %63, %64 : vector<2x128xf32>
    %66 = vector.extract_strided_slice %59 {offsets = [0, 128], sizes = [2, 128], strides = [1, 1]} : vector<2x512xf32> to vector<2x128xf32>
    %67 = arith.negf %66 : vector<2x128xf32>
    %68 = math.exp %67 : vector<2x128xf32>
    %cst_32 = arith.constant 1.000000e+00 : f32
    %69 = vector.broadcast %cst_32 : f32 to vector<2x128xf32>
    %70 = arith.addf %69, %68 : vector<2x128xf32>
    %71 = arith.divf %69, %70 : vector<2x128xf32>
    %72 = vector.extract_strided_slice %59 {offsets = [0, 256], sizes = [2, 128], strides = [1, 1]} : vector<2x512xf32> to vector<2x128xf32>
    %73 = math.tanh %72 : vector<2x128xf32>
    %74 = vector.extract_strided_slice %59 {offsets = [0, 384], sizes = [2, 128], strides = [1, 1]} : vector<2x512xf32> to vector<2x128xf32>
    %75 = arith.negf %74 : vector<2x128xf32>
    %76 = math.exp %75 : vector<2x128xf32>
    %cst_33 = arith.constant 1.000000e+00 : f32
    %77 = vector.broadcast %cst_33 : f32 to vector<2x128xf32>
    %78 = arith.addf %77, %76 : vector<2x128xf32>
    %79 = arith.divf %77, %78 : vector<2x128xf32>
    %c0_34 = arith.constant 0 : index
    %c0_35 = arith.constant 0 : index
    %80 = vector.load %arg25[%c0_34, %c0_35] : memref<2x128xf32, #tpu.memory_space<vmem>>, vector<2x128xf32>
    %81 = arith.mulf %71, %80 : vector<2x128xf32>
    %82 = arith.mulf %65, %73 : vector<2x128xf32>
    %83 = arith.addf %81, %82 : vector<2x128xf32>
    %84 = math.tanh %83 : vector<2x128xf32>
    %85 = arith.mulf %79, %84 : vector<2x128xf32>
    %c0_36 = arith.constant 0 : index
    %c0_37 = arith.constant 0 : index
    %86 = vector.load %arg25[%c0_36, %c0_37] : memref<2x128xf32, #tpu.memory_space<vmem>>, vector<2x128xf32>
    tpu.vector_store %arg25[%c0_36, %c0_37], %83 {strides = array<i32>} : memref<2x128xf32, #tpu.memory_space<vmem>>, vector<2x128xf32>,
    %c0_38 = arith.constant 0 : index
    %c0_39 = arith.constant 0 : index
    %87 = vector.load %arg24[%c0_38, %c0_39] : memref<2x128xf32, #tpu.memory_space<vmem>>, vector<2x128xf32>
    tpu.vector_store %arg24[%c0_38, %c0_39], %85 {strides = array<i32>} : memref<2x128xf32, #tpu.memory_space<vmem>>, vector<2x128xf32>,
    %88 = arith.truncf %51 : vector<2x128xf32> to vector<2x128xbf16>
    %c0_40 = arith.constant 0 : index
    %c0_41 = arith.constant 0 : index
    %89 = vector.load %arg9[%c0_40, %c0_41] : memref<128x32xbf16, #tpu.memory_space<vmem>>, vector<128x32xbf16>
    %cst_42 = arith.constant dense<0.000000e+00> : vector<2x32xf32>
    %90 = tpu.matmul %88, %89, %cst_42 {dimension_numbers = #tpu.dot_dimension_numbers<[1], [0], [0], [1], [0, 0, 1, 1], [], []>} : vector<2x128xbf16>, vector<128x32xbf16>, vector<2x32xf32> -> vector<2x32xf32>
    %c0_43 = arith.constant 0 : index
    %c0_44 = arith.constant 0 : index
    %91 = vector.load %arg10[%c0_43, %c0_44] : memref<1x32xf32, #tpu.memory_space<vmem>>, vector<1x32xf32>
    %92 = vector.broadcast %91 : vector<1x32xf32> to vector<2x32xf32>
    %93 = arith.addf %90, %92 : vector<2x32xf32>
    %cst_45 = arith.constant 0.000000e+00 : f32
    %94 = vector.broadcast %cst_45 : f32 to vector<2x32xf32>
    %95 = arith.maximumf %93, %94 : vector<2x32xf32>
    %96 = arith.truncf %85 : vector<2x128xf32> to vector<2x128xbf16>
    %c0_46 = arith.constant 0 : index
    %c0_47 = arith.constant 0 : index
    %97 = vector.load %arg11[%c0_46, %c0_47] : memref<128x32xbf16, #tpu.memory_space<vmem>>, vector<128x32xbf16>
    %cst_48 = arith.constant dense<0.000000e+00> : vector<2x32xf32>
    %98 = tpu.matmul %96, %97, %cst_48 {dimension_numbers = #tpu.dot_dimension_numbers<[1], [0], [0], [1], [0, 0, 1, 1], [], []>} : vector<2x128xbf16>, vector<128x32xbf16>, vector<2x32xf32> -> vector<2x32xf32>
    %c0_49 = arith.constant 0 : index
    %c0_50 = arith.constant 0 : index
    %99 = vector.load %arg12[%c0_49, %c0_50] : memref<1x32xf32, #tpu.memory_space<vmem>>, vector<1x32xf32>
    %100 = vector.broadcast %99 : vector<1x32xf32> to vector<2x32xf32>
    %101 = arith.addf %98, %100 : vector<2x32xf32>
    %cst_51 = arith.constant 0.000000e+00 : f32
    %102 = vector.broadcast %cst_51 : f32 to vector<2x32xf32>
    %103 = arith.maximumf %101, %102 : vector<2x32xf32>
    %c0_52 = arith.constant 0 : index
    %c0_53 = arith.constant 0 : index
    %c0_54 = arith.constant 0 : index
    %104 = vector.load %arg18[%c0_52, %c0_53, %c0_54] : memref<1x2x32xf32, #tpu.memory_space<vmem>>, vector<1x2x32xf32>
    %105 = vector.shape_cast %104 : vector<1x2x32xf32> to vector<2x32xf32>
    %106 = vector.shape_cast %95 : vector<2x32xf32> to vector<1x2x32xf32>
    tpu.vector_store %arg18[%c0_52, %c0_53, %c0_54], %106 {strides = array<i32>} : memref<1x2x32xf32, #tpu.memory_space<vmem>>, vector<1x2x32xf32>,
    %c0_55 = arith.constant 0 : index
    %c0_56 = arith.constant 0 : index
    %c0_57 = arith.constant 0 : index
    %107 = vector.load %arg19[%c0_55, %c0_56, %c0_57] : memref<1x2x32xf32, #tpu.memory_space<vmem>>, vector<1x2x32xf32>
    %108 = vector.shape_cast %107 : vector<1x2x32xf32> to vector<2x32xf32>
    %109 = vector.shape_cast %103 : vector<2x32xf32> to vector<1x2x32xf32>
    tpu.vector_store %arg19[%c0_55, %c0_56, %c0_57], %109 {strides = array<i32>} : memref<1x2x32xf32, #tpu.memory_space<vmem>>, vector<1x2x32xf32>,
    %cst_58 = arith.constant 5.000000e-01 : f32
    %110 = vector.broadcast %cst_58 : f32 to vector<2x32xf32>
    %111 = arith.mulf %110, %103 : vector<2x32xf32>
    %112 = math.exp %111 : vector<2x32xf32>
    %c0_59 = arith.constant 0 : index
    %c0_60 = arith.constant 0 : index
    %c0_61 = arith.constant 0 : index
    %113 = vector.load %arg2[%c0_59, %c0_60, %c0_61] : memref<1x2x32xf32, #tpu.memory_space<vmem>>, vector<1x2x32xf32>
    %114 = vector.shape_cast %113 : vector<1x2x32xf32> to vector<2x32xf32>
    %115 = arith.mulf %114, %112 : vector<2x32xf32>
    %116 = arith.addf %115, %95 : vector<2x32xf32>
    %117 = arith.truncf %116 : vector<2x32xf32> to vector<2x32xbf16>
    %c0_62 = arith.constant 0 : index
    %c0_63 = arith.constant 0 : index
    %118 = vector.load %arg13[%c0_62, %c0_63] : memref<32x1024xbf16, #tpu.memory_space<vmem>>, vector<32x1024xbf16>
    %cst_64 = arith.constant dense<0.000000e+00> : vector<2x1024xf32>
    %119 = tpu.matmul %117, %118, %cst_64 {dimension_numbers = #tpu.dot_dimension_numbers<[1], [0], [0], [1], [0, 0, 1, 1], [], []>} : vector<2x32xbf16>, vector<32x1024xbf16>, vector<2x1024xf32> -> vector<2x1024xf32>
    %c0_65 = arith.constant 0 : index
    %c0_66 = arith.constant 0 : index
    %120 = vector.load %arg14[%c0_65, %c0_66] : memref<1x1024xf32, #tpu.memory_space<vmem>>, vector<1x1024xf32>
    %121 = vector.broadcast %120 : vector<1x1024xf32> to vector<2x1024xf32>
    %122 = arith.addf %119, %121 : vector<2x1024xf32>
    %123 = vector.extract_strided_slice %12 {offsets = [0, 1024], sizes = [2, 1024], strides = [1, 1]} : vector<2x2048xf32> to vector<2x1024xf32>
    %124 = arith.addf %122, %123 : vector<2x1024xf32>
    %125 = vector.extract_strided_slice %124 {offsets = [0, 0], sizes = [2, 256], strides = [1, 1]} : vector<2x1024xf32> to vector<2x256xf32>
    %126 = arith.negf %125 : vector<2x256xf32>
    %127 = math.exp %126 : vector<2x256xf32>
    %cst_67 = arith.constant 1.000000e+00 : f32
    %128 = vector.broadcast %cst_67 : f32 to vector<2x256xf32>
    %129 = arith.addf %128, %127 : vector<2x256xf32>
    %130 = arith.divf %128, %129 : vector<2x256xf32>
    %131 = vector.extract_strided_slice %124 {offsets = [0, 256], sizes = [2, 256], strides = [1, 1]} : vector<2x1024xf32> to vector<2x256xf32>
    %132 = arith.negf %131 : vector<2x256xf32>
    %133 = math.exp %132 : vector<2x256xf32>
    %cst_68 = arith.constant 1.000000e+00 : f32
    %134 = vector.broadcast %cst_68 : f32 to vector<2x256xf32>
    %135 = arith.addf %134, %133 : vector<2x256xf32>
    %136 = arith.divf %134, %135 : vector<2x256xf32>
    %137 = vector.extract_strided_slice %124 {offsets = [0, 512], sizes = [2, 256], strides = [1, 1]} : vector<2x1024xf32> to vector<2x256xf32>
    %138 = math.tanh %137 : vector<2x256xf32>
    %139 = vector.extract_strided_slice %124 {offsets = [0, 768], sizes = [2, 256], strides = [1, 1]} : vector<2x1024xf32> to vector<2x256xf32>
    %140 = arith.negf %139 : vector<2x256xf32>
    %141 = math.exp %140 : vector<2x256xf32>
    %cst_69 = arith.constant 1.000000e+00 : f32
    %142 = vector.broadcast %cst_69 : f32 to vector<2x256xf32>
    %143 = arith.addf %142, %141 : vector<2x256xf32>
    %144 = arith.divf %142, %143 : vector<2x256xf32>
    %c0_70 = arith.constant 0 : index
    %c0_71 = arith.constant 0 : index
    %145 = vector.load %arg27[%c0_70, %c0_71] : memref<2x256xf32, #tpu.memory_space<vmem>>, vector<2x256xf32>
    %146 = arith.mulf %136, %145 : vector<2x256xf32>
    %147 = arith.mulf %130, %138 : vector<2x256xf32>
    %148 = arith.addf %146, %147 : vector<2x256xf32>
    %149 = math.tanh %148 : vector<2x256xf32>
    %150 = arith.mulf %144, %149 : vector<2x256xf32>
    %c0_72 = arith.constant 0 : index
    %c0_73 = arith.constant 0 : index
    %151 = vector.load %arg27[%c0_72, %c0_73] : memref<2x256xf32, #tpu.memory_space<vmem>>, vector<2x256xf32>
    tpu.vector_store %arg27[%c0_72, %c0_73], %148 {strides = array<i32>} : memref<2x256xf32, #tpu.memory_space<vmem>>, vector<2x256xf32>,
    %c0_74 = arith.constant 0 : index
    %c0_75 = arith.constant 0 : index
    %152 = vector.load %arg26[%c0_74, %c0_75] : memref<2x256xf32, #tpu.memory_space<vmem>>, vector<2x256xf32>
    tpu.vector_store %arg26[%c0_74, %c0_75], %150 {strides = array<i32>} : memref<2x256xf32, #tpu.memory_space<vmem>>, vector<2x256xf32>,
    %153 = arith.truncf %150 : vector<2x256xf32> to vector<2x256xbf16>
    %c0_76 = arith.constant 0 : index
    %c0_77 = arith.constant 0 : index
    %154 = vector.load %arg15[%c0_76, %c0_77] : memref<256x768xbf16, #tpu.memory_space<vmem>>, vector<256x768xbf16>
    %cst_78 = arith.constant dense<0.000000e+00> : vector<2x768xf32>
    %155 = tpu.matmul %153, %154, %cst_78 {dimension_numbers = #tpu.dot_dimension_numbers<[1], [0], [0], [1], [0, 0, 1, 1], [], []>} : vector<2x256xbf16>, vector<256x768xbf16>, vector<2x768xf32> -> vector<2x768xf32>
    %156 = arith.addf %3, %155 : vector<2x768xf32>
    %c0_79 = arith.constant 0 : index
    %c0_80 = arith.constant 0 : index
    %157 = vector.load %arg16[%c0_79, %c0_80] : memref<1x768xf32, #tpu.memory_space<vmem>>, vector<1x768xf32>
    %158 = vector.broadcast %157 : vector<1x768xf32> to vector<2x768xf32>
    %159 = arith.addf %156, %158 : vector<2x768xf32>
    %c0_81 = arith.constant 0 : index
    %c0_82 = arith.constant 0 : index
    %160 = vector.load %arg21[%c0_81, %c0_82] : memref<2x768xf32, #tpu.memory_space<vmem>>, vector<2x768xf32>
    tpu.vector_store %arg21[%c0_81, %c0_82], %159 {strides = array<i32>} : memref<2x768xf32, #tpu.memory_space<vmem>>, vector<2x768xf32>,
    %c3_i32 = arith.constant 3 : i32
    %161 = arith.cmpi eq, %arg0, %c3_i32 : i32
    %162 = arith.extui %161 : i1 to i32
    %c0_i32_83 = arith.constant 0 : i32
    %163 = arith.cmpi ne, %162, %c0_i32_83 : i32
    scf.if %163 {
      %164 = arith.negf %159 : vector<2x768xf32>
      %165 = math.exp %164 : vector<2x768xf32>
      %cst_84 = arith.constant 1.000000e+00 : f32
      %166 = vector.broadcast %cst_84 : f32 to vector<2x768xf32>
      %167 = arith.addf %166, %165 : vector<2x768xf32>
      %168 = arith.divf %166, %167 : vector<2x768xf32>
      %c0_85 = arith.constant 0 : index
      %c0_86 = arith.constant 0 : index
      %169 = vector.load %arg17[%c0_85, %c0_86] : memref<2x768xf32, #tpu.memory_space<vmem>>, vector<2x768xf32>
      tpu.vector_store %arg17[%c0_85, %c0_86], %168 {strides = array<i32>} : memref<2x768xf32, #tpu.memory_space<vmem>>, vector<2x768xf32>,
    } else {
    }
    return
  }
  func.func @transform_0(%arg0: i32) -> (i32, i32) {
    %c0_i32 = arith.constant 0 : i32
    %c0_i32_0 = arith.constant 0 : i32
    %c0_i32_1 = arith.constant 0 : i32
    return %c0_i32, %c0_i32_0 : i32, i32
  }
  func.func @transform_1(%arg0: i32) -> (i32, i32, i32) {
    %c0_i32 = arith.constant 0 : i32
    %c0_i32_0 = arith.constant 0 : i32
    %c0_i32_1 = arith.constant 0 : i32
    return %arg0, %c0_i32, %c0_i32_0 : i32, i32, i32
  }
  func.func @transform_2(%arg0: i32) -> (i32, i32) {
    %c0_i32 = arith.constant 0 : i32
    %c0_i32_0 = arith.constant 0 : i32
    %c0_i32_1 = arith.constant 0 : i32
    return %c0_i32, %c0_i32_0 : i32, i32
  }
  func.func @transform_3(%arg0: i32) -> (i32, i32) {
    %c0_i32 = arith.constant 0 : i32
    %c0_i32_0 = arith.constant 0 : i32
    %c0_i32_1 = arith.constant 0 : i32
    return %c0_i32, %c0_i32_0 : i32, i32
  }
  func.func @transform_4(%arg0: i32) -> (i32, i32) {
    %c0_i32 = arith.constant 0 : i32
    %c0_i32_0 = arith.constant 0 : i32
    %c0_i32_1 = arith.constant 0 : i32
    return %c0_i32, %c0_i32_0 : i32, i32
  }
  func.func @transform_5(%arg0: i32) -> (i32, i32) {
    %c0_i32 = arith.constant 0 : i32
    %c0_i32_0 = arith.constant 0 : i32
    %c0_i32_1 = arith.constant 0 : i32
    return %c0_i32, %c0_i32_0 : i32, i32
  }
  func.func @transform_6(%arg0: i32) -> (i32, i32) {
    %c0_i32 = arith.constant 0 : i32
    %c0_i32_0 = arith.constant 0 : i32
    %c0_i32_1 = arith.constant 0 : i32
    return %c0_i32, %c0_i32_0 : i32, i32
  }
  func.func @transform_7(%arg0: i32) -> (i32, i32) {
    %c0_i32 = arith.constant 0 : i32
    %c0_i32_0 = arith.constant 0 : i32
    %c0_i32_1 = arith.constant 0 : i32
    return %c0_i32, %c0_i32_0 : i32, i32
  }
  func.func @transform_8(%arg0: i32) -> (i32, i32) {
    %c0_i32 = arith.constant 0 : i32
    %c0_i32_0 = arith.constant 0 : i32
    %c0_i32_1 = arith.constant 0 : i32
    return %c0_i32, %c0_i32_0 : i32, i32
  }
  func.func @transform_9(%arg0: i32) -> (i32, i32) {
    %c0_i32 = arith.constant 0 : i32
    %c0_i32_0 = arith.constant 0 : i32
    %c0_i32_1 = arith.constant 0 : i32
    return %c0_i32, %c0_i32_0 : i32, i32
  }
  func.func @transform_10(%arg0: i32) -> (i32, i32) {
    %c0_i32 = arith.constant 0 : i32
    %c0_i32_0 = arith.constant 0 : i32
    %c0_i32_1 = arith.constant 0 : i32
    return %c0_i32, %c0_i32_0 : i32, i32
  }
  func.func @transform_11(%arg0: i32) -> (i32, i32) {
    %c0_i32 = arith.constant 0 : i32
    %c0_i32_0 = arith.constant 0 : i32
    %c0_i32_1 = arith.constant 0 : i32
    return %c0_i32, %c0_i32_0 : i32, i32
  }
  func.func @transform_12(%arg0: i32) -> (i32, i32) {
    %c0_i32 = arith.constant 0 : i32
    %c0_i32_0 = arith.constant 0 : i32
    %c0_i32_1 = arith.constant 0 : i32
    return %c0_i32, %c0_i32_0 : i32, i32
  }
  func.func @transform_13(%arg0: i32) -> (i32, i32) {
    %c0_i32 = arith.constant 0 : i32
    %c0_i32_0 = arith.constant 0 : i32
    %c0_i32_1 = arith.constant 0 : i32
    return %c0_i32, %c0_i32_0 : i32, i32
  }
  func.func @transform_14(%arg0: i32) -> (i32, i32) {
    %c0_i32 = arith.constant 0 : i32
    %c0_i32_0 = arith.constant 0 : i32
    %c0_i32_1 = arith.constant 0 : i32
    return %c0_i32, %c0_i32_0 : i32, i32
  }
  func.func @transform_15(%arg0: i32) -> (i32, i32) {
    %c0_i32 = arith.constant 0 : i32
    %c0_i32_0 = arith.constant 0 : i32
    %c0_i32_1 = arith.constant 0 : i32
    return %c0_i32, %c0_i32_0 : i32, i32
  }
  func.func @transform_16(%arg0: i32) -> (i32, i32) {
    %c0_i32 = arith.constant 0 : i32
    %c0_i32_0 = arith.constant 0 : i32
    %c0_i32_1 = arith.constant 0 : i32
    return %c0_i32, %c0_i32_0 : i32, i32
  }
  func.func @transform_17(%arg0: i32) -> (i32, i32, i32) {
    %c0_i32 = arith.constant 0 : i32
    %c0_i32_0 = arith.constant 0 : i32
    %c0_i32_1 = arith.constant 0 : i32
    return %arg0, %c0_i32, %c0_i32_0 : i32, i32, i32
  }
  func.func @transform_18(%arg0: i32) -> (i32, i32, i32) {
    %c0_i32 = arith.constant 0 : i32
    %c0_i32_0 = arith.constant 0 : i32
    %c0_i32_1 = arith.constant 0 : i32
    return %arg0, %c0_i32, %c0_i32_0 : i32, i32, i32
  }
}

</mosaic_0001>

<llo_original>
// kernel: tpu_custom_call.1
$region0: #{tpu_custom_call.1}
  #allocation0 [shape = 'u32[]', space=smem, size = 0x4, offset = 0x4, fixed_abs, tag = 'smem constant byte address 0x4 - core index']
  #allocation1 [shape = 'u32[144,128]{1,0:T(1,128)}', space=vmem, size = 0x12000, scoped, tag = 'internal scratch']
  #allocation2 [shape = 'f32[2,1024]{1,0:T(2,128)}', space=vmem, size = 0x2000, scoped, tag = 'scratch operand']
  #allocation3 [shape = 'f32[2,768]{1,0:T(2,128)}', space=vmem, size = 0x1800, scoped, tag = 'scratch operand']
  #allocation4 [shape = 'f32[2,128]{1,0:T(2,128)}', space=vmem, size = 0x400, scoped, tag = 'scratch operand']
  #allocation5 [shape = 'f32[2,128]{1,0:T(2,128)}', space=vmem, size = 0x400, scoped, tag = 'scratch operand']
  #allocation6 [shape = 'f32[2,128]{1,0:T(2,128)}', space=vmem, size = 0x400, scoped, tag = 'scratch operand']
  #allocation7 [shape = 'f32[2,128]{1,0:T(2,128)}', space=vmem, size = 0x400, scoped, tag = 'scratch operand']
  #allocation8 [shape = 'f32[2,256]{1,0:T(2,128)}', space=vmem, size = 0x800, scoped, tag = 'scratch operand']
  #allocation9 [shape = 'f32[2,256]{1,0:T(2,128)}', space=vmem, size = 0x800, scoped, tag = 'scratch operand']
  %s0 = inlined_call_operand.hbm [shape: f32[2,768], index: 0, kind: input, shape index: {}]
  %s1 = inlined_call_operand.hbm [shape: f32[4,2,32], index: 1, kind: input, shape index: {}]
  %s2 = inlined_call_operand.hbm [shape: bf16[768,1024], index: 2, kind: input, shape index: {}]
  %s3 = inlined_call_operand.hbm [shape: bf16[768,1024], index: 3, kind: input, shape index: {}]
  %s4 = inlined_call_operand.hbm [shape: f32[1,1024], index: 4, kind: input, shape index: {}]
  %s5 = inlined_call_operand.hbm [shape: bf16[256,2048], index: 5, kind: input, shape index: {}]
  %s6 = inlined_call_operand.hbm [shape: bf16[128,512], index: 6, kind: input, shape index: {}]
  %s7 = inlined_call_operand.hbm [shape: bf16[128,512], index: 7, kind: input, shape index: {}]
  %s8 = inlined_call_operand.vmem [shape: bf16[128,32], index: 8, kind: input, shape index: {}]
  %s9 = inlined_call_operand.hbm [shape: f32[1,32], index: 9, kind: input, shape index: {}]
  %s10 = inlined_call_operand.vmem [shape: bf16[128,32], index: 10, kind: input, shape index: {}]
  %s11 = inlined_call_operand.hbm [shape: f32[1,32], index: 11, kind: input, shape index: {}]
  %s12 = inlined_call_operand.hbm [shape: bf16[32,1024], index: 12, kind: input, shape index: {}]
  %s13 = inlined_call_operand.hbm [shape: f32[1,1024], index: 13, kind: input, shape index: {}]
  %s14 = inlined_call_operand.hbm [shape: bf16[256,768], index: 14, kind: input, shape index: {}]
  %s15 = inlined_call_operand.hbm [shape: f32[1,768], index: 15, kind: input, shape index: {}]
  %s16 = inlined_call_operand.hbm [shape: f32[2,768], index: 16, kind: output, shape index: {0}]
  %s17 = inlined_call_operand.hbm [shape: f32[4,2,32], index: 17, kind: output, shape index: {1}]
  %s18 = inlined_call_operand.hbm [shape: f32[4,2,32], index: 18, kind: output, shape index: {2}]
  %19 = xla_tuple %s16, %s17, %s18
  %s20 = sld [smem:[#allocation0]]
  $region177: #{tpu_custom_call.1} parent=0
    _
  %s22 = ssub.s32 1, %s20
  %s23 = scalar_select 0, %s22, %s20
  $region1: #{tpu_custom_call.1} parent=0
    #allocation10 [shape = 'u8[6144]{0}', space=vmem, size = 0x1800, scoped, tag = 'input window, operand 0, single buffered']
    #allocation11 [shape = 's32[2]{0}', space=sflag, size = 0x8, scoped, tag = 'scoped memory for tpu_custom_call.1']
    #allocation12 [shape = 's32[2]{0}', space=sflag, size = 0x8, scoped, tag = 'scoped memory for tpu_custom_call.1']
    #allocation13 [shape = 'u8[2048]{0}', space=vmem, size = 0x800, scoped, tag = 'input window, operand 1']
    #allocation14 [shape = 's32[2]{0}', space=sflag, size = 0x8, scoped, tag = 'scoped memory for tpu_custom_call.1']
    #allocation15 [shape = 'u8[1572864]{0}', space=vmem, size = 0x180000, scoped, tag = 'input window, operand 2, single buffered']
    #allocation16 [shape = 'u8[1572864]{0}', space=vmem, size = 0x180000, scoped, tag = 'input window, operand 3, single buffered']
    #allocation17 [shape = 's32[1]{0}', space=sflag, size = 0x4, scoped, tag = 'scoped memory for tpu_custom_call.1']
    #allocation18 [shape = 'u8[4096]{0}', space=vmem, size = 0x1000, scoped, tag = 'input window, operand 4, single buffered']
    #allocation19 [shape = 'u8[1048576]{0}', space=vmem, size = 0x100000, scoped, tag = 'input window, operand 5, single buffered']
    #allocation20 [shape = 's32[1]{0}', space=sflag, size = 0x4, scoped, tag = 'scoped memory for tpu_custom_call.1']
    #allocation21 [shape = 'u8[131072]{0}', space=vmem, size = 0x20000, scoped, tag = 'input window, operand 6, single buffered']
    #allocation22 [shape = 'u8[131072]{0}', space=vmem, size = 0x20000, scoped, tag = 'input window, operand 7, single buffered']
    #allocation23 [shape = 's32[1]{0}', space=sflag, size = 0x4, scoped, tag = 'scoped memory for tpu_custom_call.1']
    #allocation24 [shape = 'u8[512]{0}', space=vmem, size = 0x400, scoped, tag = 'input window, operand 9, single buffered']
    #allocation25 [shape = 'u8[512]{0}', space=vmem, size = 0x400, scoped, tag = 'input window, operand 11, single buffered']
    #allocation26 [shape = 's32[1]{0}', space=sflag, size = 0x4, scoped, tag = 'scoped memory for tpu_custom_call.1']
    #allocation27 [shape = 'u8[65536]{0}', space=vmem, size = 0x10000, scoped, tag = 'input window, operand 12, single buffered']
    #allocation28 [shape = 'u8[4096]{0}', space=vmem, size = 0x1000, scoped, tag = 'input window, operand 13, single buffered']
    #allocation29 [shape = 's32[1]{0}', space=sflag, size = 0x4, scoped, tag = 'scoped memory for tpu_custom_call.1']
    #allocation30 [shape = 'u8[393216]{0}', space=vmem, size = 0x60000, scoped, tag = 'input window, operand 14, single buffered']
    #allocation31 [shape = 'u8[3072]{0}', space=vmem, size = 0xc00, scoped, tag = 'input window, operand 15, single buffered']
    #allocation32 [shape = 's32[1]{0}', space=sflag, size = 0x4, scoped, tag = 'scoped memory for tpu_custom_call.1']
    #allocation33 [shape = 'u8[6144]{0}', space=vmem, size = 0x1800, scoped, tag = 'output window, operand 0, single buffered']
    #allocation34 [shape = 'u8[2048]{0}', space=vmem, size = 0x800, scoped, tag = 'output window, operand 1']
    #allocation35 [shape = 's32[2]{0}', space=sflag, size = 0x8, scoped, tag = 'scoped memory for tpu_custom_call.1']
    #allocation36 [shape = 'u8[2048]{0}', space=vmem, size = 0x800, scoped, tag = 'output window, operand 2']
    %24 = vsyncpa [#allocation11], 0
    %25 = vsyncpa [#allocation14], 0
    %s26 = scalar_lea.sflag [#allocation14], 1
    %27 = vsyncpa %s26, 0
    %28 = vsyncpa [#allocation17], 0
    %29 = vsyncpa [#allocation20], 0
    %30 = vsyncpa [#allocation23], 0
    %31 = vsyncpa [#allocation26], 0
    %32 = vsyncpa [#allocation29], 0
    %33 = vsyncpa [#allocation32], 0
    %34 = vsyncpa [#allocation12], 0
    %35 = vsyncpa [#allocation35], 0
    %s36 = scalar_lea.sflag [#allocation35], 1
    %37 = vsyncpa %s36, 0
    loop: start=0, step=1, limit=6
    $region2: #{tpu_custom_call.1} parent=1 // loop_pre_header
      _
    $region3: #{tpu_custom_call.1} parent=1 // loop_header
      %s39 = sphi 0, %s43
      %p40 = scmp.ge.s32.totalorder %s39, 6
      %s47 = sphi 0, %s47
      %s49 = sphi 0, %s47
      %s50 = sphi 0, %s49
      %s64 = sphi 0, %s50
      %s70 = sphi 0, %s72
      %s73 = sphi 0, %s70
      %s74 = sphi 0, %s73
      %s90 = sphi 0, %s74
      %s94 = sphi 0, %s94
      %s96 = sphi 0, %s94
      %s97 = sphi 0, %s96
      %s111 = sphi 0, %s97
      %s115 = sphi 0, %s115
      %s117 = sphi 0, %s115
      %s118 = sphi 0, %s117
      %s132 = sphi 0, %s118
      %s136 = sphi 0, %s136
      %s138 = sphi 0, %s136
      %s139 = sphi 0, %s138
      %s153 = sphi 0, %s139
      %s157 = sphi 0, %s157
      %s159 = sphi 0, %s157
      %s160 = sphi 0, %s159
      %s174 = sphi 0, %s160
      %s178 = sphi 0, %s178
      %s180 = sphi 0, %s178
      %s181 = sphi 0, %s180
      %s195 = sphi 0, %s181
      %s199 = sphi 0, %s199
      %s201 = sphi 0, %s199
      %s202 = sphi 0, %s201
      %s216 = sphi 0, %s202
      %s220 = sphi 0, %s220
      %s222 = sphi 0, %s220
      %s223 = sphi 0, %s222
      %s237 = sphi 0, %s223
      %s241 = sphi 0, %s241
      %s243 = sphi 0, %s241
      %s244 = sphi 0, %s243
      %s258 = sphi 0, %s244
      %s262 = sphi 0, %s262
      %s264 = sphi 0, %s262
      %s265 = sphi 0, %s264
      %s279 = sphi 0, %s265
      %s283 = sphi 0, %s283
      %s285 = sphi 0, %s283
      %s286 = sphi 0, %s285
      %s300 = sphi 0, %s286
      %s304 = sphi 0, %s304
      %s306 = sphi 0, %s304
      %s307 = sphi 0, %s306
      %s321 = sphi 0, %s307
      %s325 = sphi 0, %s325
      %s327 = sphi 0, %s325
      %s328 = sphi 0, %s327
      %s342 = sphi 0, %s328
      %s346 = sphi 0, %s346
      %s348 = sphi 0, %s346
      %s349 = sphi 0, %s348
      %s363 = sphi 0, %s349
      %s367 = sphi 0, %s367
      %s369 = sphi 0, %s367
      %s370 = sphi 0, %s369
      %s384 = sphi 0, %s370
      %s388 = sphi 0, %s388
      %s390 = sphi 0, %s388
      %s391 = sphi 0, %s390
      %s405 = sphi 0, %s391
      %s411 = sphi 0, %s413
      %s414 = sphi 0, %s411
      %s415 = sphi 0, %s414
      %s431 = sphi 0, %s415
      %s437 = sphi 0, %s439
      %s440 = sphi 0, %s437
      %s441 = sphi 0, %s440
      %s457 = sphi 0, %s441
    $region4: #{tpu_custom_call.1} parent=1 // loop_header_branch
      %42 = sbr.rel (%p40) target = $region8
    $region5: #{tpu_custom_call.1} parent=1 // loop_body
      %s44 = ssub.s32 %s39, 1
      %s45 = ssub.s32 %s39, 2
      %s46 = sadd.s32 %s39, 1
      %s48 = sadd.s32 %s47, 1
      %p51 = scmp.eq.s32.totalorder %s39, 3
      %p52 = scmp.ne.s32.totalorder %s47, %s49
      %p53 = scmp.eq.s32.totalorder %s39, 0
      %p54 = por %p52, %p53
      %p55 = scmp.ne.s32.totalorder %s47, %s49
      %p56 = scmp.eq.s32.totalorder %s44, 3
      %p57 = por %p55, %p56
      %p58 = scmp.ne.s32.totalorder %s49, %s50
      %p59 = scmp.eq.s32.totalorder %s44, 0
      %p60 = por %p58, %p59
      %p61 = scmp.ne.s32.totalorder %s49, %s50
      %p62 = scmp.eq.s32.totalorder %s45, 3
      %p63 = por %p61, %p62
      %p65 = scmp.ne.s32.totalorder %s50, %s64
      %p66 = scmp.eq.s32.totalorder %s45, 0
      %p67 = por %p65, %p66
      %s68 = ssub.s32 %s39, %s46
      %p69 = scmp.eq.s32.totalorder %s68, 0
      %s71 = sadd.s32 %s70, 1
      %s72 = scalar_select %p69, %s70, %s71
      %p75 = pneg %p69
      %p76 = scmp.eq.s32.totalorder %s39, 3
      %p77 = por %p75, %p76
      %p78 = scmp.ne.s32.totalorder %s70, %s73
      %p79 = scmp.eq.s32.totalorder %s39, 0
      %p80 = por %p78, %p79
      %p81 = scmp.ne.s32.totalorder %s70, %s73
      %p82 = scmp.eq.s32.totalorder %s44, 3
      %p83 = por %p81, %p82
      %p84 = scmp.ne.s32.totalorder %s73, %s74
      %p85 = scmp.eq.s32.totalorder %s44, 0
      %p86 = por %p84, %p85
      %p87 = scmp.ne.s32.totalorder %s73, %s74
      %p88 = scmp.eq.s32.totalorder %s45, 3
      %p89 = por %p87, %p88
      %p91 = scmp.ne.s32.totalorder %s74, %s90
      %p92 = scmp.eq.s32.totalorder %s45, 0
      %p93 = por %p91, %p92
      %s95 = sadd.s32 %s94, 1
      %p98 = scmp.eq.s32.totalorder %s39, 3
      %p99 = scmp.ne.s32.totalorder %s94, %s96
      %p100 = scmp.eq.s32.totalorder %s39, 0
      %p101 = por %p99, %p100
      %p102 = scmp.ne.s32.totalorder %s94, %s96
      %p103 = scmp.eq.s32.totalorder %s44, 3
      %p104 = por %p102, %p103
      %p105 = scmp.ne.s32.totalorder %s96, %s97
      %p106 = scmp.eq.s32.totalorder %s44, 0
      %p107 = por %p105, %p106
      %p108 = scmp.ne.s32.totalorder %s96, %s97
      %p109 = scmp.eq.s32.totalorder %s45, 3
      %p110 = por %p108, %p109
      %p112 = scmp.ne.s32.totalorder %s97, %s111
      %p113 = scmp.eq.s32.totalorder %s45, 0
      %p114 = por %p112, %p113
      %s116 = sadd.s32 %s115, 1
      %p119 = scmp.eq.s32.totalorder %s39, 3
      %p120 = scmp.ne.s32.totalorder %s115, %s117
      %p121 = scmp.eq.s32.totalorder %s39, 0
      %p122 = por %p120, %p121
      %p123 = scmp.ne.s32.totalorder %s115, %s117
      %p124 = scmp.eq.s32.totalorder %s44, 3
      %p125 = por %p123, %p124
      %p126 = scmp.ne.s32.totalorder %s117, %s118
      %p127 = scmp.eq.s32.totalorder %s44, 0
      %p128 = por %p126, %p127
      %p129 = scmp.ne.s32.totalorder %s117, %s118
      %p130 = scmp.eq.s32.totalorder %s45, 3
      %p131 = por %p129, %p130
      %p133 = scmp.ne.s32.totalorder %s118, %s132
      %p134 = scmp.eq.s32.totalorder %s45, 0
      %p135 = por %p133, %p134
      %s137 = sadd.s32 %s136, 1
      %p140 = scmp.eq.s32.totalorder %s39, 3
      %p141 = scmp.ne.s32.totalorder %s136, %s138
      %p142 = scmp.eq.s32.totalorder %s39, 0
      %p143 = por %p141, %p142
      %p144 = scmp.ne.s32.totalorder %s136, %s138
      %p145 = scmp.eq.s32.totalorder %s44, 3
      %p146 = por %p144, %p145
      %p147 = scmp.ne.s32.totalorder %s138, %s139
      %p148 = scmp.eq.s32.totalorder %s44, 0
      %p149 = por %p147, %p148
      %p150 = scmp.ne.s32.totalorder %s138, %s139
      %p151 = scmp.eq.s32.totalorder %s45, 3
      %p152 = por %p150, %p151
      %p154 = scmp.ne.s32.totalorder %s139, %s153
      %p155 = scmp.eq.s32.totalorder %s45, 0
      %p156 = por %p154, %p155
      %s158 = sadd.s32 %s157, 1
      %p161 = scmp.eq.s32.totalorder %s39, 3
      %p162 = scmp.ne.s32.totalorder %s157, %s159
      %p163 = scmp.eq.s32.totalorder %s39, 0
      %p164 = por %p162, %p163
      %p165 = scmp.ne.s32.totalorder %s157, %s159
      %p166 = scmp.eq.s32.totalorder %s44, 3
      %p167 = por %p165, %p166
      %p168 = scmp.ne.s32.totalorder %s159, %s160
      %p169 = scmp.eq.s32.totalorder %s44, 0
      %p170 = por %p168, %p169
      %p171 = scmp.ne.s32.totalorder %s159, %s160
      %p172 = scmp.eq.s32.totalorder %s45, 3
      %p173 = por %p171, %p172
      %p175 = scmp.ne.s32.totalorder %s160, %s174
      %p176 = scmp.eq.s32.totalorder %s45, 0
      %p177 = por %p175, %p176
      %s179 = sadd.s32 %s178, 1
      %p182 = scmp.eq.s32.totalorder %s39, 3
      %p183 = scmp.ne.s32.totalorder %s178, %s180
      %p184 = scmp.eq.s32.totalorder %s39, 0
      %p185 = por %p183, %p184
      %p186 = scmp.ne.s32.totalorder %s178, %s180
      %p187 = scmp.eq.s32.totalorder %s44, 3
      %p188 = por %p186, %p187
      %p189 = scmp.ne.s32.totalorder %s180, %s181
      %p190 = scmp.eq.s32.totalorder %s44, 0
      %p191 = por %p189, %p190
      %p192 = scmp.ne.s32.totalorder %s180, %s181
      %p193 = scmp.eq.s32.totalorder %s45, 3
      %p194 = por %p192, %p193
      %p196 = scmp.ne.s32.totalorder %s181, %s195
      %p197 = scmp.eq.s32.totalorder %s45, 0
      %p198 = por %p196, %p197
      %s200 = sadd.s32 %s199, 1
      %p203 = scmp.eq.s32.totalorder %s39, 3
      %p204 = scmp.ne.s32.totalorder %s199, %s201
      %p205 = scmp.eq.s32.totalorder %s39, 0
      %p206 = por %p204, %p205
      %p207 = scmp.ne.s32.totalorder %s199, %s201
      %p208 = scmp.eq.s32.totalorder %s44, 3
      %p209 = por %p207, %p208
      %p210 = scmp.ne.s32.totalorder %s201, %s202
      %p211 = scmp.eq.s32.totalorder %s44, 0
      %p212 = por %p210, %p211
      %p213 = scmp.ne.s32.totalorder %s201, %s202
      %p214 = scmp.eq.s32.totalorder %s45, 3
      %p215 = por %p213, %p214
      %p217 = scmp.ne.s32.totalorder %s202, %s216
      %p218 = scmp.eq.s32.totalorder %s45, 0
      %p219 = por %p217, %p218
      %s221 = sadd.s32 %s220, 1
      %p224 = scmp.eq.s32.totalorder %s39, 3
      %p225 = scmp.ne.s32.totalorder %s220, %s222
      %p226 = scmp.eq.s32.totalorder %s39, 0
      %p227 = por %p225, %p226
      %p228 = scmp.ne.s32.totalorder %s220, %s222
      %p229 = scmp.eq.s32.totalorder %s44, 3
      %p230 = por %p228, %p229
      %p231 = scmp.ne.s32.totalorder %s222, %s223
      %p232 = scmp.eq.s32.totalorder %s44, 0
      %p233 = por %p231, %p232
      %p234 = scmp.ne.s32.totalorder %s222, %s223
      %p235 = scmp.eq.s32.totalorder %s45, 3
      %p236 = por %p234, %p235
      %p238 = scmp.ne.s32.totalorder %s223, %s237
      %p239 = scmp.eq.s32.totalorder %s45, 0
      %p240 = por %p238, %p239
      %s242 = sadd.s32 %s241, 1
      %p245 = scmp.eq.s32.totalorder %s39, 3
      %p246 = scmp.ne.s32.totalorder %s241, %s243
      %p247 = scmp.eq.s32.totalorder %s39, 0
      %p248 = por %p246, %p247
      %p249 = scmp.ne.s32.totalorder %s241, %s243
      %p250 = scmp.eq.s32.totalorder %s44, 3
      %p251 = por %p249, %p250
      %p252 = scmp.ne.s32.totalorder %s243, %s244
      %p253 = scmp.eq.s32.totalorder %s44, 0
      %p254 = por %p252, %p253
      %p255 = scmp.ne.s32.totalorder %s243, %s244
      %p256 = scmp.eq.s32.totalorder %s45, 3
      %p257 = por %p255, %p256
      %p259 = scmp.ne.s32.totalorder %s244, %s258
      %p260 = scmp.eq.s32.totalorder %s45, 0
      %p261 = por %p259, %p260
      %s263 = sadd.s32 %s262, 1
      %p266 = scmp.eq.s32.totalorder %s39, 3
      %p267 = scmp.ne.s32.totalorder %s262, %s264
      %p268 = scmp.eq.s32.totalorder %s39, 0
      %p269 = por %p267, %p268
      %p270 = scmp.ne.s32.totalorder %s262, %s264
      %p271 = scmp.eq.s32.totalorder %s44, 3
      %p272 = por %p270, %p271
      %p273 = scmp.ne.s32.totalorder %s264, %s265
      %p274 = scmp.eq.s32.totalorder %s44, 0
      %p275 = por %p273, %p274
      %p276 = scmp.ne.s32.totalorder %s264, %s265
      %p277 = scmp.eq.s32.totalorder %s45, 3
      %p278 = por %p276, %p277
      %p280 = scmp.ne.s32.totalorder %s265, %s279
      %p281 = scmp.eq.s32.totalorder %s45, 0
      %p282 = por %p280, %p281
      %s284 = sadd.s32 %s283, 1
      %p287 = scmp.eq.s32.totalorder %s39, 3
      %p288 = scmp.ne.s32.totalorder %s283, %s285
      %p289 = scmp.eq.s32.totalorder %s39, 0
      %p290 = por %p288, %p289
      %p291 = scmp.ne.s32.totalorder %s283, %s285
      %p292 = scmp.eq.s32.totalorder %s44, 3
      %p293 = por %p291, %p292
      %p294 = scmp.ne.s32.totalorder %s285, %s286
      %p295 = scmp.eq.s32.totalorder %s44, 0
      %p296 = por %p294, %p295
      %p297 = scmp.ne.s32.totalorder %s285, %s286
      %p298 = scmp.eq.s32.totalorder %s45, 3
      %p299 = por %p297, %p298
      %p301 = scmp.ne.s32.totalorder %s286, %s300
      %p302 = scmp.eq.s32.totalorder %s45, 0
      %p303 = por %p301, %p302
      %s305 = sadd.s32 %s304, 1
      %p308 = scmp.eq.s32.totalorder %s39, 3
      %p309 = scmp.ne.s32.totalorder %s304, %s306
      %p310 = scmp.eq.s32.totalorder %s39, 0
      %p311 = por %p309, %p310
      %p312 = scmp.ne.s32.totalorder %s304, %s306
      %p313 = scmp.eq.s32.totalorder %s44, 3
      %p314 = por %p312, %p313
      %p315 = scmp.ne.s32.totalorder %s306, %s307
      %p316 = scmp.eq.s32.totalorder %s44, 0
      %p317 = por %p315, %p316
      %p318 = scmp.ne.s32.totalorder %s306, %s307
      %p319 = scmp.eq.s32.totalorder %s45, 3
      %p320 = por %p318, %p319
      %p322 = scmp.ne.s32.totalorder %s307, %s321
      %p323 = scmp.eq.s32.totalorder %s45, 0
      %p324 = por %p322, %p323
      %s326 = sadd.s32 %s325, 1
      %p329 = scmp.eq.s32.totalorder %s39, 3
      %p330 = scmp.ne.s32.totalorder %s325, %s327
      %p331 = scmp.eq.s32.totalorder %s39, 0
      %p332 = por %p330, %p331
      %p333 = scmp.ne.s32.totalorder %s325, %s327
      %p334 = scmp.eq.s32.totalorder %s44, 3
      %p335 = por %p333, %p334
      %p336 = scmp.ne.s32.totalorder %s327, %s328
      %p337 = scmp.eq.s32.totalorder %s44, 0
      %p338 = por %p336, %p337
      %p339 = scmp.ne.s32.totalorder %s327, %s328
      %p340 = scmp.eq.s32.totalorder %s45, 3
      %p341 = por %p339, %p340
      %p343 = scmp.ne.s32.totalorder %s328, %s342
      %p344 = scmp.eq.s32.totalorder %s45, 0
      %p345 = por %p343, %p344
      %s347 = sadd.s32 %s346, 1
      %p350 = scmp.eq.s32.totalorder %s39, 3
      %p351 = scmp.ne.s32.totalorder %s346, %s348
      %p352 = scmp.eq.s32.totalorder %s39, 0
      %p353 = por %p351, %p352
      %p354 = scmp.ne.s32.totalorder %s346, %s348
      %p355 = scmp.eq.s32.totalorder %s44, 3
      %p356 = por %p354, %p355
      %p357 = scmp.ne.s32.totalorder %s348, %s349
      %p358 = scmp.eq.s32.totalorder %s44, 0
      %p359 = por %p357, %p358
      %p360 = scmp.ne.s32.totalorder %s348, %s349
      %p361 = scmp.eq.s32.totalorder %s45, 3
      %p362 = por %p360, %p361
      %p364 = scmp.ne.s32.totalorder %s349, %s363
      %p365 = scmp.eq.s32.totalorder %s45, 0
      %p366 = por %p364, %p365
      %s368 = sadd.s32 %s367, 1
      %p371 = scmp.eq.s32.totalorder %s39, 3
      %p372 = scmp.ne.s32.totalorder %s367, %s369
      %p373 = scmp.eq.s32.totalorder %s39, 0
      %p374 = por %p372, %p373
      %p375 = scmp.ne.s32.totalorder %s367, %s369
      %p376 = scmp.eq.s32.totalorder %s44, 3
      %p377 = por %p375, %p376
      %p378 = scmp.ne.s32.totalorder %s369, %s370
      %p379 = scmp.eq.s32.totalorder %s44, 0
      %p380 = por %p378, %p379
      %p381 = scmp.ne.s32.totalorder %s369, %s370
      %p382 = scmp.eq.s32.totalorder %s45, 3
      %p383 = por %p381, %p382
      %p385 = scmp.ne.s32.totalorder %s370, %s384
      %p386 = scmp.eq.s32.totalorder %s45, 0
      %p387 = por %p385, %p386
      %s389 = sadd.s32 %s388, 1
      %p392 = scmp.eq.s32.totalorder %s39, 3
      %p393 = scmp.ne.s32.totalorder %s388, %s390
      %p394 = scmp.eq.s32.totalorder %s39, 0
      %p395 = por %p393, %p394
      %p396 = scmp.ne.s32.totalorder %s388, %s390
      %p397 = scmp.eq.s32.totalorder %s44, 3
      %p398 = por %p396, %p397
      %p399 = scmp.ne.s32.totalorder %s390, %s391
      %p400 = scmp.eq.s32.totalorder %s44, 0
      %p401 = por %p399, %p400
      %p402 = scmp.ne.s32.totalorder %s390, %s391
      %p403 = scmp.eq.s32.totalorder %s45, 3
      %p404 = por %p402, %p403
      %p406 = scmp.ne.s32.totalorder %s391, %s405
      %p407 = scmp.eq.s32.totalorder %s45, 0
      %p408 = por %p406, %p407
      %s409 = ssub.s32 %s39, %s46
      %p410 = scmp.eq.s32.totalorder %s409, 0
      %s412 = sadd.s32 %s411, 1
      %s413 = scalar_select %p410, %s411, %s412
      %p416 = pneg %p410
      %p417 = scmp.eq.s32.totalorder %s39, 3
      %p418 = por %p416, %p417
      %p419 = scmp.ne.s32.totalorder %s411, %s414
      %p420 = scmp.eq.s32.totalorder %s39, 0
      %p421 = por %p419, %p420
      %p422 = scmp.ne.s32.totalorder %s411, %s414
      %p423 = scmp.eq.s32.totalorder %s44, 3
      %p424 = por %p422, %p423
      %p425 = scmp.ne.s32.totalorder %s414, %s415
      %p426 = scmp.eq.s32.totalorder %s44, 0
      %p427 = por %p425, %p426
      %p428 = scmp.ne.s32.totalorder %s414, %s415
      %p429 = scmp.eq.s32.totalorder %s45, 3
      %p430 = por %p428, %p429
      %p432 = scmp.ne.s32.totalorder %s415, %s431
      %p433 = scmp.eq.s32.totalorder %s45, 0
      %p434 = por %p432, %p433
      %s435 = ssub.s32 %s39, %s46
      %p436 = scmp.eq.s32.totalorder %s435, 0
      %s438 = sadd.s32 %s437, 1
      %s439 = scalar_select %p436, %s437, %s438
      %p442 = pneg %p436
      %p443 = scmp.eq.s32.totalorder %s39, 3
      %p444 = por %p442, %p443
      %p445 = scmp.ne.s32.totalorder %s437, %s440
      %p446 = scmp.eq.s32.totalorder %s39, 0
      %p447 = por %p445, %p446
      %p448 = scmp.ne.s32.totalorder %s437, %s440
      %p449 = scmp.eq.s32.totalorder %s44, 3
      %p450 = por %p448, %p449
      %p451 = scmp.ne.s32.totalorder %s440, %s441
      %p452 = scmp.eq.s32.totalorder %s44, 0
      %p453 = por %p451, %p452
      %p454 = scmp.ne.s32.totalorder %s440, %s441
      %p455 = scmp.eq.s32.totalorder %s45, 3
      %p456 = por %p454, %p455
      %p458 = scmp.ne.s32.totalorder %s441, %s457
      %p459 = scmp.eq.s32.totalorder %s45, 0
      %p460 = por %p458, %p459
      %p461 = scmp.le.s32.totalorder 1, %s39
      %p462 = scmp.lt.s32.totalorder %s39, 5
      %p463 = pnand %p461, %p462
      %p464 = pneg %p463
      // Predicated region
      $region9: #{tpu_custom_call.1} parent=5 // pred_check
        _
      $region10: #{tpu_custom_call.1} parent=5 // pred_check_branch
        %466 = sbr.rel (%p463) target = $region12
      $region11: #{tpu_custom_call.1} parent=5 // pred_region
        %s467 = ssub.s32 %s39, 1
        // Predicated region
        $region13: #{tpu_custom_call.1} parent=11 // pred_check
          %p468 = pneg %p60
        $region14: #{tpu_custom_call.1} parent=11 // pred_check_branch
          %470 = sbr.rel (%p468) target = $region16
        $region15: #{tpu_custom_call.1} parent=11 // pred_region
          %s472 = ssub.s32 192, 192
          %473 = vsyncadd [#allocation11], %s472
          %s475 = sshll.u32 [#allocation10], 4
          %s476 = int_to_ptr.vmem [resolvable:$true] %s475
          %478 = dma.hbm_to_vmem [thread:$0]  %s0, 192, %s476, [#allocation11]
        $region16: #{tpu_custom_call.1} parent=11 // pred_fallthru
          _
        // Predicated region
        $region17: #{tpu_custom_call.1} parent=11 // pred_check
          %p479 = pneg %p107
        $region18: #{tpu_custom_call.1} parent=11 // pred_check_branch
          %481 = sbr.rel (%p479) target = $region20
        $region19: #{tpu_custom_call.1} parent=11 // pred_region
          %s483 = ssub.s32 49152, 49152
          %484 = vsyncadd [#allocation14], %s483
          %s485 = sshll.u32 [#allocation15], 4
          %s486 = int_to_ptr.vmem [resolvable:$true] %s485
          %491 = dma.hbm_to_vmem [thread:$0]  %s2, 49152, %s486, [#allocation14], 512, 512, 32
        $region20: #{tpu_custom_call.1} parent=11 // pred_fallthru
          _
        // Predicated region
        $region21: #{tpu_custom_call.1} parent=11 // pred_check
          %p492 = pneg %p128
        $region22: #{tpu_custom_call.1} parent=11 // pred_check_branch
          %494 = sbr.rel (%p492) target = $region24
        $region23: #{tpu_custom_call.1} parent=11 // pred_region
          %s496 = ssub.s32 49152, 49152
          %497 = vsyncadd [#allocation17], %s496
          %s498 = sshll.u32 [#allocation16], 4
          %s499 = int_to_ptr.vmem [resolvable:$true] %s498
          %504 = dma.hbm_to_vmem [thread:$0]  %s3, 49152, %s499, [#allocation17], 512, 512, 32
        $region24: #{tpu_custom_call.1} parent=11 // pred_fallthru
          _
        // Predicated region
        $region25: #{tpu_custom_call.1} parent=11 // pred_check
          %p505 = pneg %p149
        $region26: #{tpu_custom_call.1} parent=11 // pred_check_branch
          %507 = sbr.rel (%p505) target = $region28
        $region27: #{tpu_custom_call.1} parent=11 // pred_region
          %s509 = ssub.s32 128, 128
          %510 = vsyncadd [#allocation17], %s509
          %s512 = sshll.u32 [#allocation18], 4
          %s513 = int_to_ptr.vmem [resolvable:$true] %s512
          %515 = dma.hbm_to_vmem [thread:$0]  %s4, 128, %s513, [#allocation17]
        $region28: #{tpu_custom_call.1} parent=11 // pred_fallthru
          _
        // Predicated region
        $region29: #{tpu_custom_call.1} parent=11 // pred_check
          %p516 = pneg %p170
        $region30: #{tpu_custom_call.1} parent=11 // pred_check_branch
          %518 = sbr.rel (%p516) target = $region32
        $region31: #{tpu_custom_call.1} parent=11 // pred_region
          %s520 = ssub.s32 32768, 32768
          %521 = vsyncadd [#allocation20], %s520
          %s522 = sshll.u32 [#allocation19], 4
          %s523 = int_to_ptr.vmem [resolvable:$true] %s522
          %528 = dma.hbm_to_vmem [thread:$0]  %s5, 32768, %s523, [#allocation20], 1024, 1024, 64
        $region32: #{tpu_custom_call.1} parent=11 // pred_fallthru
          _
        // Predicated region
        $region33: #{tpu_custom_call.1} parent=11 // pred_check
          %p529 = pneg %p191
        $region34: #{tpu_custom_call.1} parent=11 // pred_check_branch
          %531 = sbr.rel (%p529) target = $region36
        $region35: #{tpu_custom_call.1} parent=11 // pred_region
          %s533 = ssub.s32 4096, 4096
          %534 = vsyncadd [#allocation20], %s533
          %s535 = sshll.u32 [#allocation21], 4
          %s536 = int_to_ptr.vmem [resolvable:$true] %s535
          %541 = dma.hbm_to_vmem [thread:$0]  %s6, 4096, %s536, [#allocation20], 256, 256, 16
        $region36: #{tpu_custom_call.1} parent=11 // pred_fallthru
          _
        // Predicated region
        $region37: #{tpu_custom_call.1} parent=11 // pred_check
          %p542 = pneg %p212
        $region38: #{tpu_custom_call.1} parent=11 // pred_check_branch
          %544 = sbr.rel (%p542) target = $region40
        $region39: #{tpu_custom_call.1} parent=11 // pred_region
          %s546 = ssub.s32 4096, 4096
          %547 = vsyncadd [#allocation23], %s546
          %s548 = sshll.u32 [#allocation22], 4
          %s549 = int_to_ptr.vmem [resolvable:$true] %s548
          %554 = dma.hbm_to_vmem [thread:$0]  %s7, 4096, %s549, [#allocation23], 256, 256, 16
        $region40: #{tpu_custom_call.1} parent=11 // pred_fallthru
          _
        // Predicated region
        $region41: #{tpu_custom_call.1} parent=11 // pred_check
          %p555 = pneg %p233
        $region42: #{tpu_custom_call.1} parent=11 // pred_check_branch
          %557 = sbr.rel (%p555) target = $region44
        $region43: #{tpu_custom_call.1} parent=11 // pred_region
          _
        $region44: #{tpu_custom_call.1} parent=11 // pred_fallthru
          _
        // Predicated region
        $region45: #{tpu_custom_call.1} parent=11 // pred_check
          %p558 = pneg %p254
        $region46: #{tpu_custom_call.1} parent=11 // pred_check_branch
          %560 = sbr.rel (%p558) target = $region48
        $region47: #{tpu_custom_call.1} parent=11 // pred_region
          %s562 = ssub.s32 16, 16
          %563 = vsyncadd [#allocation23], %s562
          %s565 = sshll.u32 [#allocation24], 4
          %s566 = int_to_ptr.vmem [resolvable:$true] %s565
          %568 = dma.hbm_to_vmem [thread:$0]  %s9, 16, %s566, [#allocation23]
        $region48: #{tpu_custom_call.1} parent=11 // pred_fallthru
          _
        // Predicated region
        $region49: #{tpu_custom_call.1} parent=11 // pred_check
          %p569 = pneg %p275
        $region50: #{tpu_custom_call.1} parent=11 // pred_check_branch
          %571 = sbr.rel (%p569) target = $region52
        $region51: #{tpu_custom_call.1} parent=11 // pred_region
          _
        $region52: #{tpu_custom_call.1} parent=11 // pred_fallthru
          _
        // Predicated region
        $region53: #{tpu_custom_call.1} parent=11 // pred_check
          %p572 = pneg %p296
        $region54: #{tpu_custom_call.1} parent=11 // pred_check_branch
          %574 = sbr.rel (%p572) target = $region56
        $region55: #{tpu_custom_call.1} parent=11 // pred_region
          %s576 = ssub.s32 16, 16
          %577 = vsyncadd [#allocation26], %s576
          %s579 = sshll.u32 [#allocation25], 4
          %s580 = int_to_ptr.vmem [resolvable:$true] %s579
          %582 = dma.hbm_to_vmem [thread:$0]  %s11, 16, %s580, [#allocation26]
        $region56: #{tpu_custom_call.1} parent=11 // pred_fallthru
          _
        // Predicated region
        $region57: #{tpu_custom_call.1} parent=11 // pred_check
          %p583 = pneg %p317
        $region58: #{tpu_custom_call.1} parent=11 // pred_check_branch
          %585 = sbr.rel (%p583) target = $region60
        $region59: #{tpu_custom_call.1} parent=11 // pred_region
          %s587 = ssub.s32 2048, 2048
          %588 = vsyncadd [#allocation26], %s587
          %s589 = sshll.u32 [#allocation27], 4
          %s590 = int_to_ptr.vmem [resolvable:$true] %s589
          %595 = dma.hbm_to_vmem [thread:$0]  %s12, 2048, %s590, [#allocation26], 512, 512, 32
        $region60: #{tpu_custom_call.1} parent=11 // pred_fallthru
          _
        // Predicated region
        $region61: #{tpu_custom_call.1} parent=11 // pred_check
          %p596 = pneg %p338
        $region62: #{tpu_custom_call.1} parent=11 // pred_check_branch
          %598 = sbr.rel (%p596) target = $region64
        $region63: #{tpu_custom_call.1} parent=11 // pred_region
          %s600 = ssub.s32 128, 128
          %601 = vsyncadd [#allocation29], %s600
          %s603 = sshll.u32 [#allocation28], 4
          %s604 = int_to_ptr.vmem [resolvable:$true] %s603
          %606 = dma.hbm_to_vmem [thread:$0]  %s13, 128, %s604, [#allocation29]
        $region64: #{tpu_custom_call.1} parent=11 // pred_fallthru
          _
        // Predicated region
        $region65: #{tpu_custom_call.1} parent=11 // pred_check
          %p607 = pneg %p359
        $region66: #{tpu_custom_call.1} parent=11 // pred_check_branch
          %609 = sbr.rel (%p607) target = $region68
        $region67: #{tpu_custom_call.1} parent=11 // pred_region
          %s611 = ssub.s32 12288, 12288
          %612 = vsyncadd [#allocation29], %s611
          %s613 = sshll.u32 [#allocation30], 4
          %s614 = int_to_ptr.vmem [resolvable:$true] %s613
          %619 = dma.hbm_to_vmem [thread:$0]  %s14, 12288, %s614, [#allocation29], 384, 384, 24
        $region68: #{tpu_custom_call.1} parent=11 // pred_fallthru
          _
        // Predicated region
        $region69: #{tpu_custom_call.1} parent=11 // pred_check
          %p620 = pneg %p380
        $region70: #{tpu_custom_call.1} parent=11 // pred_check_branch
          %622 = sbr.rel (%p620) target = $region72
        $region71: #{tpu_custom_call.1} parent=11 // pred_region
          %s624 = ssub.s32 96, 96
          %625 = vsyncadd [#allocation32], %s624
          %s627 = sshll.u32 [#allocation31], 4
          %s628 = int_to_ptr.vmem [resolvable:$true] %s627
          %630 = dma.hbm_to_vmem [thread:$0]  %s15, 96, %s628, [#allocation32]
        $region72: #{tpu_custom_call.1} parent=11 // pred_fallthru
          _
      $region12: #{tpu_custom_call.1} parent=5 // pred_fallthru
        _
      %p631 = scmp.lt.s32.totalorder %s39, 4
      // Predicated region
      $region73: #{tpu_custom_call.1} parent=5 // pred_check
        %p632 = pneg %p631
      $region74: #{tpu_custom_call.1} parent=5 // pred_check_branch
        %634 = sbr.rel (%p632) target = $region76
      $region75: #{tpu_custom_call.1} parent=5 // pred_region
        // Predicated region
        $region77: #{tpu_custom_call.1} parent=75 // pred_check
          %p635 = pneg %p80
        $region78: #{tpu_custom_call.1} parent=75 // pred_check_branch
          %637 = sbr.rel (%p635) target = $region80
        $region79: #{tpu_custom_call.1} parent=75 // pred_region
          %s638 = sand.u32 %s39, 1
          %s639 = scalar_lea.sflag [#allocation14], %s638
          %s640 = sand.u32 %s70, 1
          %s641 = smul.addr %s640, 2
          %s642 = scalar_lea.vmem [#allocation13], %s641
          %s644 = ssub.s32 32, 32
          %645 = vsyncadd %s639, %s644
          %s646 = smul.addr %s39, 32
          %s647 = scalar_lea.hbm %s1, %s646
          %s649 = sshll.u32 %s642, 4
          %s650 = int_to_ptr.vmem [resolvable:$true] %s649
          %652 = dma.hbm_to_vmem [thread:$0]  %s647, 32, %s650, %s639
        $region80: #{tpu_custom_call.1} parent=75 // pred_fallthru
          _
      $region76: #{tpu_custom_call.1} parent=5 // pred_fallthru
        _
      %p653 = scmp.le.s32.totalorder 1, %s39
      %p654 = scmp.lt.s32.totalorder %s39, 5
      %p655 = pnand %p653, %p654
      %p656 = pneg %p655
      // Predicated region
      $region81: #{tpu_custom_call.1} parent=5 // pred_check
        _
      $region82: #{tpu_custom_call.1} parent=5 // pred_check_branch
        %658 = sbr.rel (%p655) target = $region84
      $region83: #{tpu_custom_call.1} parent=5 // pred_region
        %s659 = ssub.s32 %s39, 1
        // Predicated region
        $region85: #{tpu_custom_call.1} parent=83 // pred_check
          %p660 = pneg %p60
        $region86: #{tpu_custom_call.1} parent=83 // pred_check_branch
          %662 = sbr.rel (%p660) target = $region88
        $region87: #{tpu_custom_call.1} parent=83 // pred_region
          %663 = dma.done [#allocation11], 192
        $region88: #{tpu_custom_call.1} parent=83 // pred_fallthru
          _
        %s664 = sand.u32 %s44, 1
        %s665 = scalar_lea.sflag [#allocation14], %s664
        %s666 = sand.u32 %s73, 1
        %s667 = smul.addr %s666, 2
        %s668 = scalar_lea.vmem [#allocation13], %s667
        // Predicated region
        $region89: #{tpu_custom_call.1} parent=83 // pred_check
          %p669 = pneg %p86
        $region90: #{tpu_custom_call.1} parent=83 // pred_check_branch
          %671 = sbr.rel (%p669) target = $region92
        $region91: #{tpu_custom_call.1} parent=83 // pred_region
          %672 = dma.done %s665, 32
        $region92: #{tpu_custom_call.1} parent=83 // pred_fallthru
          _
        // Predicated region
        $region93: #{tpu_custom_call.1} parent=83 // pred_check
          %p673 = pneg %p107
        $region94: #{tpu_custom_call.1} parent=83 // pred_check_branch
          %675 = sbr.rel (%p673) target = $region96
        $region95: #{tpu_custom_call.1} parent=83 // pred_region
          %676 = dma.done [#allocation14], 49152
        $region96: #{tpu_custom_call.1} parent=83 // pred_fallthru
          _
        // Predicated region
        $region97: #{tpu_custom_call.1} parent=83 // pred_check
          %p677 = pneg %p128
        $region98: #{tpu_custom_call.1} parent=83 // pred_check_branch
          %679 = sbr.rel (%p677) target = $region100
        $region99: #{tpu_custom_call.1} parent=83 // pred_region
          %680 = dma.done [#allocation17], 49152
        $region100: #{tpu_custom_call.1} parent=83 // pred_fallthru
          _
        // Predicated region
        $region101: #{tpu_custom_call.1} parent=83 // pred_check
          %p681 = pneg %p149
        $region102: #{tpu_custom_call.1} parent=83 // pred_check_branch
          %683 = sbr.rel (%p681) target = $region104
        $region103: #{tpu_custom_call.1} parent=83 // pred_region
          %684 = dma.done [#allocation17], 128
        $region104: #{tpu_custom_call.1} parent=83 // pred_fallthru
          _
        // Predicated region
        $region105: #{tpu_custom_call.1} parent=83 // pred_check
          %p685 = pneg %p170
        $region106: #{tpu_custom_call.1} parent=83 // pred_check_branch
          %687 = sbr.rel (%p685) target = $region108
        $region107: #{tpu_custom_call.1} parent=83 // pred_region
          %688 = dma.done [#allocation20], 32768
        $region108: #{tpu_custom_call.1} parent=83 // pred_fallthru
          _
        // Predicated region
        $region109: #{tpu_custom_call.1} parent=83 // pred_check
          %p689 = pneg %p191
        $region110: #{tpu_custom_call.1} parent=83 // pred_check_branch
          %691 = sbr.rel (%p689) target = $region112
        $region111: #{tpu_custom_call.1} parent=83 // pred_region
          %692 = dma.done [#allocation20], 4096
        $region112: #{tpu_custom_call.1} parent=83 // pred_fallthru
          _
        // Predicated region
        $region113: #{tpu_custom_call.1} parent=83 // pred_check
          %p693 = pneg %p212
        $region114: #{tpu_custom_call.1} parent=83 // pred_check_branch
          %695 = sbr.rel (%p693) target = $region116
        $region115: #{tpu_custom_call.1} parent=83 // pred_region
          %696 = dma.done [#allocation23], 4096
        $region116: #{tpu_custom_call.1} parent=83 // pred_fallthru
          _
        // Predicated region
        $region117: #{tpu_custom_call.1} parent=83 // pred_check
          %p697 = pneg %p254
        $region118: #{tpu_custom_call.1} parent=83 // pred_check_branch
          %699 = sbr.rel (%p697) target = $region120
        $region119: #{tpu_custom_call.1} parent=83 // pred_region
          %700 = dma.done [#allocation23], 16
        $region120: #{tpu_custom_call.1} parent=83 // pred_fallthru
          _
        // Predicated region
        $region121: #{tpu_custom_call.1} parent=83 // pred_check
          %p701 = pneg %p296
        $region122: #{tpu_custom_call.1} parent=83 // pred_check_branch
          %703 = sbr.rel (%p701) target = $region124
        $region123: #{tpu_custom_call.1} parent=83 // pred_region
          %704 = dma.done [#allocation26], 16
        $region124: #{tpu_custom_call.1} parent=83 // pred_fallthru
          _
        // Predicated region
        $region125: #{tpu_custom_call.1} parent=83 // pred_check
          %p705 = pneg %p317
        $region126: #{tpu_custom_call.1} parent=83 // pred_check_branch
          %707 = sbr.rel (%p705) target = $region128
        $region127: #{tpu_custom_call.1} parent=83 // pred_region
          %708 = dma.done [#allocation26], 2048
        $region128: #{tpu_custom_call.1} parent=83 // pred_fallthru
          _
        // Predicated region
        $region129: #{tpu_custom_call.1} parent=83 // pred_check
          %p709 = pneg %p338
        $region130: #{tpu_custom_call.1} parent=83 // pred_check_branch
          %711 = sbr.rel (%p709) target = $region132
        $region131: #{tpu_custom_call.1} parent=83 // pred_region
          %712 = dma.done [#allocation29], 128
        $region132: #{tpu_custom_call.1} parent=83 // pred_fallthru
          _
        // Predicated region
        $region133: #{tpu_custom_call.1} parent=83 // pred_check
          %p713 = pneg %p359
        $region134: #{tpu_custom_call.1} parent=83 // pred_check_branch
          %715 = sbr.rel (%p713) target = $region136
        $region135: #{tpu_custom_call.1} parent=83 // pred_region
          %716 = dma.done [#allocation29], 12288
        $region136: #{tpu_custom_call.1} parent=83 // pred_fallthru
          _
        // Predicated region
        $region137: #{tpu_custom_call.1} parent=83 // pred_check
          %p717 = pneg %p380
        $region138: #{tpu_custom_call.1} parent=83 // pred_check_branch
          %719 = sbr.rel (%p717) target = $region140
        $region139: #{tpu_custom_call.1} parent=83 // pred_region
          %720 = dma.done [#allocation32], 96
        $region140: #{tpu_custom_call.1} parent=83 // pred_fallthru
          _
        %p721 = pneg %p60
        %p722 = pneg %p57
        %s723 = sand.u32 %s44, 1
        %s724 = scalar_lea.sflag [#allocation14], %s723
        %s725 = sand.u32 %s73, 1
        %s726 = smul.addr %s725, 2
        %s727 = scalar_lea.vmem [#allocation13], %s726
        %p728 = pneg %p86
        %p729 = pneg %p83
        %p730 = pneg %p107
        %p731 = pneg %p104
        %p732 = pneg %p128
        %p733 = pneg %p125
        %p734 = pneg %p149
        %p735 = pneg %p146
        %p736 = pneg %p170
        %p737 = pneg %p167
        %p738 = pneg %p191
        %p739 = pneg %p188
        %p740 = pneg %p212
        %p741 = pneg %p209
        %p742 = pneg %p233
        %p743 = pneg %p230
        %p744 = pneg %p254
        %p745 = pneg %p251
        %p746 = pneg %p275
        %p747 = pneg %p272
        %p748 = pneg %p296
        %p749 = pneg %p293
        %p750 = pneg %p317
        %p751 = pneg %p314
        %p752 = pneg %p338
        %p753 = pneg %p335
        %p754 = pneg %p359
        %p755 = pneg %p356
        %p756 = pneg %p380
        %p757 = pneg %p377
        %p758 = pneg %p401
        %p759 = pneg %p398
        %p760 = pneg %p427
        %p761 = pneg %p424
        %s762 = sand.u32 %s44, 1
        %s763 = scalar_lea.sflag [#allocation35], %s762
        %s764 = sand.u32 %s414, 1
        %s765 = smul.addr %s764, 2
        %s766 = scalar_lea.vmem [#allocation34], %s765
        %p767 = pneg %p453
        %p768 = pneg %p450
        %s769 = sand.u32 %s44, 1
        %s770 = scalar_lea.sflag [#allocation35], %s769
        %s771 = sand.u32 %s440, 1
        %s772 = smul.addr %s771, 2
        %s773 = scalar_lea.vmem [#allocation36], %s772
        %p775 = scmp.eq.s32.totalorder %s44, 0
        // Predicated region
        $region141: #{tpu_custom_call.1} parent=83 // pred_check
          %p776 = pneg %p775
        $region142: #{tpu_custom_call.1} parent=83 // pred_check_branch
          %778 = sbr.rel (%p776) target = $region144
        $region143: #{tpu_custom_call.1} parent=83 // pred_region
          %779 = vst [vmem:[#allocation3] sm:$0xff] 0.0
          %780 = vst [vmem:[#allocation3 + $0x8] sm:$0xf] 0.0
          %781 = vst [vmem:[#allocation4] sm:$0x3] 0.0
          %782 = vst [vmem:[#allocation5] sm:$0x3] 0.0
          %783 = vst [vmem:[#allocation6] sm:$0x3] 0.0
          %784 = vst [vmem:[#allocation7] sm:$0x3] 0.0
          %785 = vst [vmem:[#allocation8] sm:$0xf] 0.0
          %786 = vst [vmem:[#allocation9] sm:$0xf] 0.0
          %v787 = vld [vmem:[#allocation10] sm:$0xff]
          %v788 = vld [vmem:[#allocation10 + $0x8] sm:$0xf]
          %v791 = vcombine.high %v787, %v787
          %v793 = vunpack.c.l.s4 1983009808
          %v794 = vunpack.c.0.s8 %v793
          %v795 = vlaneseq
          %v796 = vshrl.u32 %v795, 7
          %v797 = vsub.s32 %v794, %v796
          %v798 = vrot.slane %v787, %v797
          %v800 = vunpack.c.l.s4 1983009808
          %v801 = vunpack.c.0.s8 %v800
          %v802 = vlaneseq
          %v803 = vshrl.u32 %v802, 7
          %v804 = vsub.s32 %v801, %v803
          %v805 = vrot.slane %v791, %v804
          %v806 = vcombine.high %v798, %v798
          %v807 = vcombine.high %v805, %v805
          %v809 = vunpack.c.l.s4 1983009808
          %v810 = vunpack.c.0.s8 %v809
          %v811 = vlaneseq
          %v812 = vshrl.u32 %v811, 7
          %v813 = vsub.s32 %v810, %v812
          %v814 = vrot.slane %v788, %v813
          %v815 = vcombine.high %v814, %v814
          %v822 = vpack.c.bf16 %v798, %v798
          %v823 = vpack.c.bf16 %v806, %v806
          %v824 = vpack.c.bf16 %v805, %v805
          %v825 = vpack.c.bf16 %v807, %v807
          %v826 = vpack.c.bf16 %v814, %v814
          %v827 = vpack.c.bf16 %v815, %v815
          %v828 = vld [vmem:[#allocation15] sm:$0xff]
          %v829 = vld [vmem:[#allocation15 + $0x8] sm:$0xff]
          %v830 = vld [vmem:[#allocation15 + $0x10] sm:$0xff]
          %v831 = vld [vmem:[#allocation15 + $0x18] sm:$0xff]
          %v832 = vld [vmem:[#allocation15 + $0x20] sm:$0xff]
          %v833 = vld [vmem:[#allocation15 + $0x28] sm:$0xff]
          %v834 = vld [vmem:[#allocation15 + $0x30] sm:$0xff]
          %v835 = vld [vmem:[#allocation15 + $0x38] sm:$0xff]
          %v836 = vld [vmem:[#allocation15 + $0x40] sm:$0xff]
          %v837 = vld [vmem:[#allocation15 + $0x48] sm:$0xff]
          %v838 = vld [vmem:[#allocation15 + $0x50] sm:$0xff]
          %v839 = vld [vmem:[#allocation15 + $0x58] sm:$0xff]
          %v840 = vld [vmem:[#allocation15 + $0x60] sm:$0xff]
          %v841 = vld [vmem:[#allocation15 + $0x68] sm:$0xff]
          %v842 = vld [vmem:[#allocation15 + $0x70] sm:$0xff]
          %v843 = vld [vmem:[#allocation15 + $0x78] sm:$0xff]
          %v844 = vld [vmem:[#allocation15 + $0x80] sm:$0xff]
          %v845 = vld [vmem:[#allocation15 + $0x88] sm:$0xff]
          %v846 = vld [vmem:[#allocation15 + $0x90] sm:$0xff]
          %v847 = vld [vmem:[#allocation15 + $0x98] sm:$0xff]
          %v848 = vld [vmem:[#allocation15 + $0xa0] sm:$0xff]
          %v849 = vld [vmem:[#allocation15 + $0xa8] sm:$0xff]
          %v850 = vld [vmem:[#allocation15 + $0xb0] sm:$0xff]
          %v851 = vld [vmem:[#allocation15 + $0xb8] sm:$0xff]
          %v852 = vld [vmem:[#allocation15 + $0xc0] sm:$0xff]
          %v853 = vld [vmem:[#allocation15 + $0xc8] sm:$0xff]
          %v854 = vld [vmem:[#allocation15 + $0xd0] sm:$0xff]
          %v855 = vld [vmem:[#allocation15 + $0xd8] sm:$0xff]
          %v856 = vld [vmem:[#allocation15 + $0xe0] sm:$0xff]
          %v857 = vld [vmem:[#allocation15 + $0xe8] sm:$0xff]
          %v858 = vld [vmem:[#allocation15 + $0xf0] sm:$0xff]
          %v859 = vld [vmem:[#allocation15 + $0xf8] sm:$0xff]
          %v860 = vld [vmem:[#allocation15 + $0x100] sm:$0xff]
          %v861 = vld [vmem:[#allocation15 + $0x108] sm:$0xff]
          %v862 = vld [vmem:[#allocation15 + $0x110] sm:$0xff]
          %v863 = vld [vmem:[#allocation15 + $0x118] sm:$0xff]
          %v864 = vld [vmem:[#allocation15 + $0x120] sm:$0xff]
          %v865 = vld [vmem:[#allocation15 + $0x128] sm:$0xff]
          %v866 = vld [vmem:[#allocation15 + $0x130] sm:$0xff]
          %v867 = vld [vmem:[#allocation15 + $0x138] sm:$0xff]
          %v868 = vld [vmem:[#allocation15 + $0x140] sm:$0xff]
          %v869 = vld [vmem:[#allocation15 + $0x148] sm:$0xff]
          %v870 = vld [vmem:[#allocation15 + $0x150] sm:$0xff]
          %v871 = vld [vmem:[#allocation15 + $0x158] sm:$0xff]
          %v872 = vld [vmem:[#allocation15 + $0x160] sm:$0xff]
          %v873 = vld [vmem:[#allocation15 + $0x168] sm:$0xff]
          %v874 = vld [vmem:[#allocation15 + $0x170] sm:$0xff]
          %v875 = vld [vmem:[#allocation15 + $0x178] sm:$0xff]
          %v876 = vld [vmem:[#allocation15 + $0x180] sm:$0xff]
          %v877 = vld [vmem:[#allocation15 + $0x188] sm:$0xff]
          %v878 = vld [vmem:[#allocation15 + $0x190] sm:$0xff]
          %v879 = vld [vmem:[#allocation15 + $0x198] sm:$0xff]
          %v880 = vld [vmem:[#allocation15 + $0x1a0] sm:$0xff]
          %v881 = vld [vmem:[#allocation15 + $0x1a8] sm:$0xff]
          %v882 = vld [vmem:[#allocation15 + $0x1b0] sm:$0xff]
          %v883 = vld [vmem:[#allocation15 + $0x1b8] sm:$0xff]
          %v884 = vld [vmem:[#allocation15 + $0x1c0] sm:$0xff]
          %v885 = vld [vmem:[#allocation15 + $0x1c8] sm:$0xff]
          %v886 = vld [vmem:[#allocation15 + $0x1d0] sm:$0xff]
          %v887 = vld [vmem:[#allocation15 + $0x1d8] sm:$0xff]
          %v888 = vld [vmem:[#allocation15 + $0x1e0] sm:$0xff]
          %v889 = vld [vmem:[#allocation15 + $0x1e8] sm:$0xff]
          %v890 = vld [vmem:[#allocation15 + $0x1f0] sm:$0xff]
          %v891 = vld [vmem:[#allocation15 + $0x1f8] sm:$0xff]
          %v892 = vld [vmem:[#allocation15 + $0x200] sm:$0xff]
          %v893 = vld [vmem:[#allocation15 + $0x208] sm:$0xff]
          %v894 = vld [vmem:[#allocation15 + $0x210] sm:$0xff]
          %v895 = vld [vmem:[#allocation15 + $0x218] sm:$0xff]
          %v896 = vld [vmem:[#allocation15 + $0x220] sm:$0xff]
          %v897 = vld [vmem:[#allocation15 + $0x228] sm:$0xff]
          %v898 = vld [vmem:[#allocation15 + $0x230] sm:$0xff]
          %v899 = vld [vmem:[#allocation15 + $0x238] sm:$0xff]
          %v900 = vld [vmem:[#allocation15 + $0x240] sm:$0xff]
          %v901 = vld [vmem:[#allocation15 + $0x248] sm:$0xff]
          %v902 = vld [vmem:[#allocation15 + $0x250] sm:$0xff]
          %v903 = vld [vmem:[#allocation15 + $0x258] sm:$0xff]
          %v904 = vld [vmem:[#allocation15 + $0x260] sm:$0xff]
          %v905 = vld [vmem:[#allocation15 + $0x268] sm:$0xff]
          %v906 = vld [vmem:[#allocation15 + $0x270] sm:$0xff]
          %v907 = vld [vmem:[#allocation15 + $0x278] sm:$0xff]
          %v908 = vld [vmem:[#allocation15 + $0x280] sm:$0xff]
          %v909 = vld [vmem:[#allocation15 + $0x288] sm:$0xff]
          %v910 = vld [vmem:[#allocation15 + $0x290] sm:$0xff]
          %v911 = vld [vmem:[#allocation15 + $0x298] sm:$0xff]
          %v912 = vld [vmem:[#allocation15 + $0x2a0] sm:$0xff]
          %v913 = vld [vmem:[#allocation15 + $0x2a8] sm:$0xff]
          %v914 = vld [vmem:[#allocation15 + $0x2b0] sm:$0xff]
          %v915 = vld [vmem:[#allocation15 + $0x2b8] sm:$0xff]
          %v916 = vld [vmem:[#allocation15 + $0x2c0] sm:$0xff]
          %v917 = vld [vmem:[#allocation15 + $0x2c8] sm:$0xff]
          %v918 = vld [vmem:[#allocation15 + $0x2d0] sm:$0xff]
          %v919 = vld [vmem:[#allocation15 + $0x2d8] sm:$0xff]
          %v920 = vld [vmem:[#allocation15 + $0x2e0] sm:$0xff]
          %v921 = vld [vmem:[#allocation15 + $0x2e8] sm:$0xff]
          %v922 = vld [vmem:[#allocation15 + $0x2f0] sm:$0xff]
          %v923 = vld [vmem:[#allocation15 + $0x2f8] sm:$0xff]
          %v924 = vld [vmem:[#allocation15 + $0x300] sm:$0xff]
          %v925 = vld [vmem:[#allocation15 + $0x308] sm:$0xff]
          %v926 = vld [vmem:[#allocation15 + $0x310] sm:$0xff]
          %v927 = vld [vmem:[#allocation15 + $0x318] sm:$0xff]
          %v928 = vld [vmem:[#allocation15 + $0x320] sm:$0xff]
          %v929 = vld [vmem:[#allocation15 + $0x328] sm:$0xff]
          %v930 = vld [vmem:[#allocation15 + $0x330] sm:$0xff]
          %v931 = vld [vmem:[#allocation15 + $0x338] sm:$0xff]
          %v932 = vld [vmem:[#allocation15 + $0x340] sm:$0xff]
          %v933 = vld [vmem:[#allocation15 + $0x348] sm:$0xff]
          %v934 = vld [vmem:[#allocation15 + $0x350] sm:$0xff]
          %v935 = vld [vmem:[#allocation15 + $0x358] sm:$0xff]
          %v936 = vld [vmem:[#allocation15 + $0x360] sm:$0xff]
          %v937 = vld [vmem:[#allocation15 + $0x368] sm:$0xff]
          %v938 = vld [vmem:[#allocation15 + $0x370] sm:$0xff]
          %v939 = vld [vmem:[#allocation15 + $0x378] sm:$0xff]
          %v940 = vld [vmem:[#allocation15 + $0x380] sm:$0xff]
          %v941 = vld [vmem:[#allocation15 + $0x388] sm:$0xff]
          %v942 = vld [vmem:[#allocation15 + $0x390] sm:$0xff]
          %v943 = vld [vmem:[#allocation15 + $0x398] sm:$0xff]
          %v944 = vld [vmem:[#allocation15 + $0x3a0] sm:$0xff]
          %v945 = vld [vmem:[#allocation15 + $0x3a8] sm:$0xff]
          %v946 = vld [vmem:[#allocation15 + $0x3b0] sm:$0xff]
          %v947 = vld [vmem:[#allocation15 + $0x3b8] sm:$0xff]
          %v948 = vld [vmem:[#allocation15 + $0x3c0] sm:$0xff]
          %v949 = vld [vmem:[#allocation15 + $0x3c8] sm:$0xff]
          %v950 = vld [vmem:[#allocation15 + $0x3d0] sm:$0xff]
          %v951 = vld [vmem:[#allocation15 + $0x3d8] sm:$0xff]
          %v952 = vld [vmem:[#allocation15 + $0x3e0] sm:$0xff]
          %v953 = vld [vmem:[#allocation15 + $0x3e8] sm:$0xff]
          %v954 = vld [vmem:[#allocation15 + $0x3f0] sm:$0xff]
          %v955 = vld [vmem:[#allocation15 + $0x3f8] sm:$0xff]
          %v956 = vld [vmem:[#allocation15 + $0x400] sm:$0xff]
          %v957 = vld [vmem:[#allocation15 + $0x408] sm:$0xff]
          %v958 = vld [vmem:[#allocation15 + $0x410] sm:$0xff]
          %v959 = vld [vmem:[#allocation15 + $0x418] sm:$0xff]
          %v960 = vld [vmem:[#allocation15 + $0x420] sm:$0xff]
          %v961 = vld [vmem:[#allocation15 + $0x428] sm:$0xff]
          %v962 = vld [vmem:[#allocation15 + $0x430] sm:$0xff]
          %v963 = vld [vmem:[#allocation15 + $0x438] sm:$0xff]
          %v964 = vld [vmem:[#allocation15 + $0x440] sm:$0xff]
          %v965 = vld [vmem:[#allocation15 + $0x448] sm:$0xff]
          %v966 = vld [vmem:[#allocation15 + $0x450] sm:$0xff]
          %v967 = vld [vmem:[#allocation15 + $0x458] sm:$0xff]
          %v968 = vld [vmem:[#allocation15 + $0x460] sm:$0xff]
          %v969 = vld [vmem:[#allocation15 + $0x468] sm:$0xff]
          %v970 = vld [vmem:[#allocation15 + $0x470] sm:$0xff]
          %v971 = vld [vmem:[#allocation15 + $0x478] sm:$0xff]
          %v972 = vld [vmem:[#allocation15 + $0x480] sm:$0xff]
          %v973 = vld [vmem:[#allocation15 + $0x488] sm:$0xff]
          %v974 = vld [vmem:[#allocation15 + $0x490] sm:$0xff]
          %v975 = vld [vmem:[#allocation15 + $0x498] sm:$0xff]
          %v976 = vld [vmem:[#allocation15 + $0x4a0] sm:$0xff]
          %v977 = vld [vmem:[#allocation15 + $0x4a8] sm:$0xff]
          %v978 = vld [vmem:[#allocation15 + $0x4b0] sm:$0xff]
          %v979 = vld [vmem:[#allocation15 + $0x4b8] sm:$0xff]
          %v980 = vld [vmem:[#allocation15 + $0x4c0] sm:$0xff]
          %v981 = vld [vmem:[#allocation15 + $0x4c8] sm:$0xff]
          %v982 = vld [vmem:[#allocation15 + $0x4d0] sm:$0xff]
          %v983 = vld [vmem:[#allocation15 + $0x4d8] sm:$0xff]
          %v984 = vld [vmem:[#allocation15 + $0x4e0] sm:$0xff]
          %v985 = vld [vmem:[#allocation15 + $0x4e8] sm:$0xff]
          %v986 = vld [vmem:[#allocation15 + $0x4f0] sm:$0xff]
          %v987 = vld [vmem:[#allocation15 + $0x4f8] sm:$0xff]
          %v988 = vld [vmem:[#allocation15 + $0x500] sm:$0xff]
          %v989 = vld [vmem:[#allocation15 + $0x508] sm:$0xff]
          %v990 = vld [vmem:[#allocation15 + $0x510] sm:$0xff]
          %v991 = vld [vmem:[#allocation15 + $0x518] sm:$0xff]
          %v992 = vld [vmem:[#allocation15 + $0x520] sm:$0xff]
          %v993 = vld [vmem:[#allocation15 + $0x528] sm:$0xff]
          %v994 = vld [vmem:[#allocation15 + $0x530] sm:$0xff]
          %v995 = vld [vmem:[#allocation15 + $0x538] sm:$0xff]
          %v996 = vld [vmem:[#allocation15 + $0x540] sm:$0xff]
          %v997 = vld [vmem:[#allocation15 + $0x548] sm:$0xff]
          %v998 = vld [vmem:[#allocation15 + $0x550] sm:$0xff]
          %v999 = vld [vmem:[#allocation15 + $0x558] sm:$0xff]
          %v1000 = vld [vmem:[#allocation15 + $0x560] sm:$0xff]
          %v1001 = vld [vmem:[#allocation15 + $0x568] sm:$0xff]
          %v1002 = vld [vmem:[#allocation15 + $0x570] sm:$0xff]
          %v1003 = vld [vmem:[#allocation15 + $0x578] sm:$0xff]
          %v1004 = vld [vmem:[#allocation15 + $0x580] sm:$0xff]
          %v1005 = vld [vmem:[#allocation15 + $0x588] sm:$0xff]
          %v1006 = vld [vmem:[#allocation15 + $0x590] sm:$0xff]
          %v1007 = vld [vmem:[#allocation15 + $0x598] sm:$0xff]
          %v1008 = vld [vmem:[#allocation15 + $0x5a0] sm:$0xff]
          %v1009 = vld [vmem:[#allocation15 + $0x5a8] sm:$0xff]
          %v1010 = vld [vmem:[#allocation15 + $0x5b0] sm:$0xff]
          %v1011 = vld [vmem:[#allocation15 + $0x5b8] sm:$0xff]
          %v1012 = vld [vmem:[#allocation15 + $0x5c0] sm:$0xff]
          %v1013 = vld [vmem:[#allocation15 + $0x5c8] sm:$0xff]
          %v1014 = vld [vmem:[#allocation15 + $0x5d0] sm:$0xff]
          %v1015 = vld [vmem:[#allocation15 + $0x5d8] sm:$0xff]
          %v1016 = vld [vmem:[#allocation15 + $0x5e0] sm:$0xff]
          %v1017 = vld [vmem:[#allocation15 + $0x5e8] sm:$0xff]
          %v1018 = vld [vmem:[#allocation15 + $0x5f0] sm:$0xff]
          %v1019 = vld [vmem:[#allocation15 + $0x5f8] sm:$0xff]
          %v1020 = vld [vmem:[#allocation15 + $0x600] sm:$0xff]
          %v1021 = vld [vmem:[#allocation15 + $0x608] sm:$0xff]
          %v1022 = vld [vmem:[#allocation15 + $0x610] sm:$0xff]
          %v1023 = vld [vmem:[#allocation15 + $0x618] sm:$0xff]
          %v1024 = vld [vmem:[#allocation15 + $0x620] sm:$0xff]
          %v1025 = vld [vmem:[#allocation15 + $0x628] sm:$0xff]
          %v1026 = vld [vmem:[#allocation15 + $0x630] sm:$0xff]
          %v1027 = vld [vmem:[#allocation15 + $0x638] sm:$0xff]
          %v1028 = vld [vmem:[#allocation15 + $0x640] sm:$0xff]
          %v1029 = vld [vmem:[#allocation15 + $0x648] sm:$0xff]
          %v1030 = vld [vmem:[#allocation15 + $0x650] sm:$0xff]
          %v1031 = vld [vmem:[#allocation15 + $0x658] sm:$0xff]
          %v1032 = vld [vmem:[#allocation15 + $0x660] sm:$0xff]
          %v1033 = vld [vmem:[#allocation15 + $0x668] sm:$0xff]
          %v1034 = vld [vmem:[#allocation15 + $0x670] sm:$0xff]
          %v1035 = vld [vmem:[#allocation15 + $0x678] sm:$0xff]
          %v1036 = vld [vmem:[#allocation15 + $0x680] sm:$0xff]
          %v1037 = vld [vmem:[#allocation15 + $0x688] sm:$0xff]
          %v1038 = vld [vmem:[#allocation15 + $0x690] sm:$0xff]
          %v1039 = vld [vmem:[#allocation15 + $0x698] sm:$0xff]
          %v1040 = vld [vmem:[#allocation15 + $0x6a0] sm:$0xff]
          %v1041 = vld [vmem:[#allocation15 + $0x6a8] sm:$0xff]
          %v1042 = vld [vmem:[#allocation15 + $0x6b0] sm:$0xff]
          %v1043 = vld [vmem:[#allocation15 + $0x6b8] sm:$0xff]
          %v1044 = vld [vmem:[#allocation15 + $0x6c0] sm:$0xff]
          %v1045 = vld [vmem:[#allocation15 + $0x6c8] sm:$0xff]
          %v1046 = vld [vmem:[#allocation15 + $0x6d0] sm:$0xff]
          %v1047 = vld [vmem:[#allocation15 + $0x6d8] sm:$0xff]
          %v1048 = vld [vmem:[#allocation15 + $0x6e0] sm:$0xff]
          %v1049 = vld [vmem:[#allocation15 + $0x6e8] sm:$0xff]
          %v1050 = vld [vmem:[#allocation15 + $0x6f0] sm:$0xff]
          %v1051 = vld [vmem:[#allocation15 + $0x6f8] sm:$0xff]
          %v1052 = vld [vmem:[#allocation15 + $0x700] sm:$0xff]
          %v1053 = vld [vmem:[#allocation15 + $0x708] sm:$0xff]
          %v1054 = vld [vmem:[#allocation15 + $0x710] sm:$0xff]
          %v1055 = vld [vmem:[#allocation15 + $0x718] sm:$0xff]
          %v1056 = vld [vmem:[#allocation15 + $0x720] sm:$0xff]
          %v1057 = vld [vmem:[#allocation15 + $0x728] sm:$0xff]
          %v1058 = vld [vmem:[#allocation15 + $0x730] sm:$0xff]
          %v1059 = vld [vmem:[#allocation15 + $0x738] sm:$0xff]
          %v1060 = vld [vmem:[#allocation15 + $0x740] sm:$0xff]
          %v1061 = vld [vmem:[#allocation15 + $0x748] sm:$0xff]
          %v1062 = vld [vmem:[#allocation15 + $0x750] sm:$0xff]
          %v1063 = vld [vmem:[#allocation15 + $0x758] sm:$0xff]
          %v1064 = vld [vmem:[#allocation15 + $0x760] sm:$0xff]
          %v1065 = vld [vmem:[#allocation15 + $0x768] sm:$0xff]
          %v1066 = vld [vmem:[#allocation15 + $0x770] sm:$0xff]
          %v1067 = vld [vmem:[#allocation15 + $0x778] sm:$0xff]
          %v1068 = vld [vmem:[#allocation15 + $0x780] sm:$0xff]
          %v1069 = vld [vmem:[#allocation15 + $0x788] sm:$0xff]
          %v1070 = vld [vmem:[#allocation15 + $0x790] sm:$0xff]
          %v1071 = vld [vmem:[#allocation15 + $0x798] sm:$0xff]
          %v1072 = vld [vmem:[#allocation15 + $0x7a0] sm:$0xff]
          %v1073 = vld [vmem:[#allocation15 + $0x7a8] sm:$0xff]
          %v1074 = vld [vmem:[#allocation15 + $0x7b0] sm:$0xff]
          %v1075 = vld [vmem:[#allocation15 + $0x7b8] sm:$0xff]
          %v1076 = vld [vmem:[#allocation15 + $0x7c0] sm:$0xff]
          %v1077 = vld [vmem:[#allocation15 + $0x7c8] sm:$0xff]
          %v1078 = vld [vmem:[#allocation15 + $0x7d0] sm:$0xff]
          %v1079 = vld [vmem:[#allocation15 + $0x7d8] sm:$0xff]
          %v1080 = vld [vmem:[#allocation15 + $0x7e0] sm:$0xff]
          %v1081 = vld [vmem:[#allocation15 + $0x7e8] sm:$0xff]
          %v1082 = vld [vmem:[#allocation15 + $0x7f0] sm:$0xff]
          %v1083 = vld [vmem:[#allocation15 + $0x7f8] sm:$0xff]
          %v1084 = vld [vmem:[#allocation15 + $0x800] sm:$0xff]
          %v1085 = vld [vmem:[#allocation15 + $0x808] sm:$0xff]
          %v1086 = vld [vmem:[#allocation15 + $0x810] sm:$0xff]
          %v1087 = vld [vmem:[#allocation15 + $0x818] sm:$0xff]
          %v1088 = vld [vmem:[#allocation15 + $0x820] sm:$0xff]
          %v1089 = vld [vmem:[#allocation15 + $0x828] sm:$0xff]
          %v1090 = vld [vmem:[#allocation15 + $0x830] sm:$0xff]
          %v1091 = vld [vmem:[#allocation15 + $0x838] sm:$0xff]
          %v1092 = vld [vmem:[#allocation15 + $0x840] sm:$0xff]
          %v1093 = vld [vmem:[#allocation15 + $0x848] sm:$0xff]
          %v1094 = vld [vmem:[#allocation15 + $0x850] sm:$0xff]
          %v1095 = vld [vmem:[#allocation15 + $0x858] sm:$0xff]
          %v1096 = vld [vmem:[#allocation15 + $0x860] sm:$0xff]
          %v1097 = vld [vmem:[#allocation15 + $0x868] sm:$0xff]
          %v1098 = vld [vmem:[#allocation15 + $0x870] sm:$0xff]
          %v1099 = vld [vmem:[#allocation15 + $0x878] sm:$0xff]
          %v1100 = vld [vmem:[#allocation15 + $0x880] sm:$0xff]
          %v1101 = vld [vmem:[#allocation15 + $0x888] sm:$0xff]
          %v1102 = vld [vmem:[#allocation15 + $0x890] sm:$0xff]
          %v1103 = vld [vmem:[#allocation15 + $0x898] sm:$0xff]
          %v1104 = vld [vmem:[#allocation15 + $0x8a0] sm:$0xff]
          %v1105 = vld [vmem:[#allocation15 + $0x8a8] sm:$0xff]
          %v1106 = vld [vmem:[#allocation15 + $0x8b0] sm:$0xff]
          %v1107 = vld [vmem:[#allocation15 + $0x8b8] sm:$0xff]
          %v1108 = vld [vmem:[#allocation15 + $0x8c0] sm:$0xff]
          %v1109 = vld [vmem:[#allocation15 + $0x8c8] sm:$0xff]
          %v1110 = vld [vmem:[#allocation15 + $0x8d0] sm:$0xff]
          %v1111 = vld [vmem:[#allocation15 + $0x8d8] sm:$0xff]
          %v1112 = vld [vmem:[#allocation15 + $0x8e0] sm:$0xff]
          %v1113 = vld [vmem:[#allocation15 + $0x8e8] sm:$0xff]
          %v1114 = vld [vmem:[#allocation15 + $0x8f0] sm:$0xff]
          %v1115 = vld [vmem:[#allocation15 + $0x8f8] sm:$0xff]
          %v1116 = vld [vmem:[#allocation15 + $0x900] sm:$0xff]
          %v1117 = vld [vmem:[#allocation15 + $0x908] sm:$0xff]
          %v1118 = vld [vmem:[#allocation15 + $0x910] sm:$0xff]
          %v1119 = vld [vmem:[#allocation15 + $0x918] sm:$0xff]
          %v1120 = vld [vmem:[#allocation15 + $0x920] sm:$0xff]
          %v1121 = vld [vmem:[#allocation15 + $0x928] sm:$0xff]
          %v1122 = vld [vmem:[#allocation15 + $0x930] sm:$0xff]
          %v1123 = vld [vmem:[#allocation15 + $0x938] sm:$0xff]
          %v1124 = vld [vmem:[#allocation15 + $0x940] sm:$0xff]
          %v1125 = vld [vmem:[#allocation15 + $0x948] sm:$0xff]
          %v1126 = vld [vmem:[#allocation15 + $0x950] sm:$0xff]
          %v1127 = vld [vmem:[#allocation15 + $0x958] sm:$0xff]
          %v1128 = vld [vmem:[#allocation15 + $0x960] sm:$0xff]
          %v1129 = vld [vmem:[#allocation15 + $0x968] sm:$0xff]
          %v1130 = vld [vmem:[#allocation15 + $0x970] sm:$0xff]
          %v1131 = vld [vmem:[#allocation15 + $0x978] sm:$0xff]
          %v1132 = vld [vmem:[#allocation15 + $0x980] sm:$0xff]
          %v1133 = vld [vmem:[#allocation15 + $0x988] sm:$0xff]
          %v1134 = vld [vmem:[#allocation15 + $0x990] sm:$0xff]
          %v1135 = vld [vmem:[#allocation15 + $0x998] sm:$0xff]
          %v1136 = vld [vmem:[#allocation15 + $0x9a0] sm:$0xff]
          %v1137 = vld [vmem:[#allocation15 + $0x9a8] sm:$0xff]
          %v1138 = vld [vmem:[#allocation15 + $0x9b0] sm:$0xff]
          %v1139 = vld [vmem:[#allocation15 + $0x9b8] sm:$0xff]
          %v1140 = vld [vmem:[#allocation15 + $0x9c0] sm:$0xff]
          %v1141 = vld [vmem:[#allocation15 + $0x9c8] sm:$0xff]
          %v1142 = vld [vmem:[#allocation15 + $0x9d0] sm:$0xff]
          %v1143 = vld [vmem:[#allocation15 + $0x9d8] sm:$0xff]
          %v1144 = vld [vmem:[#allocation15 + $0x9e0] sm:$0xff]
          %v1145 = vld [vmem:[#allocation15 + $0x9e8] sm:$0xff]
          %v1146 = vld [vmem:[#allocation15 + $0x9f0] sm:$0xff]
          %v1147 = vld [vmem:[#allocation15 + $0x9f8] sm:$0xff]
          %v1148 = vld [vmem:[#allocation15 + $0xa00] sm:$0xff]
          %v1149 = vld [vmem:[#allocation15 + $0xa08] sm:$0xff]
          %v1150 = vld [vmem:[#allocation15 + $0xa10] sm:$0xff]
          %v1151 = vld [vmem:[#allocation15 + $0xa18] sm:$0xff]
          %v1152 = vld [vmem:[#allocation15 + $0xa20] sm:$0xff]
          %v1153 = vld [vmem:[#allocation15 + $0xa28] sm:$0xff]
          %v1154 = vld [vmem:[#allocation15 + $0xa30] sm:$0xff]
          %v1155 = vld [vmem:[#allocation15 + $0xa38] sm:$0xff]
          %v1156 = vld [vmem:[#allocation15 + $0xa40] sm:$0xff]
          %v1157 = vld [vmem:[#allocation15 + $0xa48] sm:$0xff]
          %v1158 = vld [vmem:[#allocation15 + $0xa50] sm:$0xff]
          %v1159 = vld [vmem:[#allocation15 + $0xa58] sm:$0xff]
          %v1160 = vld [vmem:[#allocation15 + $0xa60] sm:$0xff]
          %v1161 = vld [vmem:[#allocation15 + $0xa68] sm:$0xff]
          %v1162 = vld [vmem:[#allocation15 + $0xa70] sm:$0xff]
          %v1163 = vld [vmem:[#allocation15 + $0xa78] sm:$0xff]
          %v1164 = vld [vmem:[#allocation15 + $0xa80] sm:$0xff]
          %v1165 = vld [vmem:[#allocation15 + $0xa88] sm:$0xff]
          %v1166 = vld [vmem:[#allocation15 + $0xa90] sm:$0xff]
          %v1167 = vld [vmem:[#allocation15 + $0xa98] sm:$0xff]
          %v1168 = vld [vmem:[#allocation15 + $0xaa0] sm:$0xff]
          %v1169 = vld [vmem:[#allocation15 + $0xaa8] sm:$0xff]
          %v1170 = vld [vmem:[#allocation15 + $0xab0] sm:$0xff]
          %v1171 = vld [vmem:[#allocation15 + $0xab8] sm:$0xff]
          %v1172 = vld [vmem:[#allocation15 + $0xac0] sm:$0xff]
          %v1173 = vld [vmem:[#allocation15 + $0xac8] sm:$0xff]
          %v1174 = vld [vmem:[#allocation15 + $0xad0] sm:$0xff]
          %v1175 = vld [vmem:[#allocation15 + $0xad8] sm:$0xff]
          %v1176 = vld [vmem:[#allocation15 + $0xae0] sm:$0xff]
          %v1177 = vld [vmem:[#allocation15 + $0xae8] sm:$0xff]
          %v1178 = vld [vmem:[#allocation15 + $0xaf0] sm:$0xff]
          %v1179 = vld [vmem:[#allocation15 + $0xaf8] sm:$0xff]
          %v1180 = vld [vmem:[#allocation15 + $0xb00] sm:$0xff]
          %v1181 = vld [vmem:[#allocation15 + $0xb08] sm:$0xff]
          %v1182 = vld [vmem:[#allocation15 + $0xb10] sm:$0xff]
          %v1183 = vld [vmem:[#allocation15 + $0xb18] sm:$0xff]
          %v1184 = vld [vmem:[#allocation15 + $0xb20] sm:$0xff]
          %v1185 = vld [vmem:[#allocation15 + $0xb28] sm:$0xff]
          %v1186 = vld [vmem:[#allocation15 + $0xb30] sm:$0xff]
          %v1187 = vld [vmem:[#allocation15 + $0xb38] sm:$0xff]
          %v1188 = vld [vmem:[#allocation15 + $0xb40] sm:$0xff]
          %v1189 = vld [vmem:[#allocation15 + $0xb48] sm:$0xff]
          %v1190 = vld [vmem:[#allocation15 + $0xb50] sm:$0xff]
          %v1191 = vld [vmem:[#allocation15 + $0xb58] sm:$0xff]
          %v1192 = vld [vmem:[#allocation15 + $0xb60] sm:$0xff]
          %v1193 = vld [vmem:[#allocation15 + $0xb68] sm:$0xff]
          %v1194 = vld [vmem:[#allocation15 + $0xb70] sm:$0xff]
          %v1195 = vld [vmem:[#allocation15 + $0xb78] sm:$0xff]
          %v1196 = vld [vmem:[#allocation15 + $0xb80] sm:$0xff]
          %v1197 = vld [vmem:[#allocation15 + $0xb88] sm:$0xff]
          %v1198 = vld [vmem:[#allocation15 + $0xb90] sm:$0xff]
          %v1199 = vld [vmem:[#allocation15 + $0xb98] sm:$0xff]
          %v1200 = vld [vmem:[#allocation15 + $0xba0] sm:$0xff]
          %v1201 = vld [vmem:[#allocation15 + $0xba8] sm:$0xff]
          %v1202 = vld [vmem:[#allocation15 + $0xbb0] sm:$0xff]
          %v1203 = vld [vmem:[#allocation15 + $0xbb8] sm:$0xff]
          %v1204 = vld [vmem:[#allocation15 + $0xbc0] sm:$0xff]
          %v1205 = vld [vmem:[#allocation15 + $0xbc8] sm:$0xff]
          %v1206 = vld [vmem:[#allocation15 + $0xbd0] sm:$0xff]
          %v1207 = vld [vmem:[#allocation15 + $0xbd8] sm:$0xff]
          %v1208 = vld [vmem:[#allocation15 + $0xbe0] sm:$0xff]
          %v1209 = vld [vmem:[#allocation15 + $0xbe8] sm:$0xff]
          %v1210 = vld [vmem:[#allocation15 + $0xbf0] sm:$0xff]
          %v1211 = vld [vmem:[#allocation15 + $0xbf8] sm:$0xff]
          %v1212 = vld [vmem:[#allocation18] sm:$0xff]
          %v1214 = vlaneseq
          %v1215 = vshrl.u32 %v1214, 7
          %v1216 = vsub.s32 0, %v1215
          %v1217 = vrot.slane %v1212, %v1216
          %v1218 = vlaneseq
          %v1219 = vshrl.u32 %v1218, 7
          %v1220 = vsub.s32 1, %v1219
          %v1221 = vrot.slane %v1212, %v1220
          %v1222 = vlaneseq
          %v1223 = vshrl.u32 %v1222, 7
          %v1224 = vsub.s32 2, %v1223
          %v1225 = vrot.slane %v1212, %v1224
          %v1226 = vlaneseq
          %v1227 = vshrl.u32 %v1226, 7
          %v1228 = vsub.s32 3, %v1227
          %v1229 = vrot.slane %v1212, %v1228
          %v1230 = vlaneseq
          %v1231 = vshrl.u32 %v1230, 7
          %v1232 = vsub.s32 4, %v1231
          %v1233 = vrot.slane %v1212, %v1232
          %v1234 = vlaneseq
          %v1235 = vshrl.u32 %v1234, 7
          %v1236 = vsub.s32 5, %v1235
          %v1237 = vrot.slane %v1212, %v1236
          %v1238 = vlaneseq
          %v1239 = vshrl.u32 %v1238, 7
          %v1240 = vsub.s32 6, %v1239
          %v1241 = vrot.slane %v1212, %v1240
          %v1242 = vlaneseq
          %v1243 = vshrl.u32 %v1242, 7
          %v1244 = vsub.s32 7, %v1243
          %v1245 = vrot.slane %v1212, %v1244
          %v1638 = vunpack.c.l.b16 %v828
          %v1639 = vunpack.c.h.b16 %v828
          %v1640 = vunpack.c.l.b16 %v829
          %v1641 = vunpack.c.h.b16 %v829
          %v1642 = vunpack.c.l.b16 %v830
          %v1643 = vunpack.c.h.b16 %v830
          %v1644 = vunpack.c.l.b16 %v831
          %v1645 = vunpack.c.h.b16 %v831
          %v1646 = vunpack.c.l.b16 %v832
          %v1647 = vunpack.c.h.b16 %v832
          %v1648 = vunpack.c.l.b16 %v833
          %v1649 = vunpack.c.h.b16 %v833
          %v1650 = vunpack.c.l.b16 %v834
          %v1651 = vunpack.c.h.b16 %v834
          %v1652 = vunpack.c.l.b16 %v835
          %v1653 = vunpack.c.h.b16 %v835
          %v1654 = vunpack.c.l.b16 %v836
          %v1655 = vunpack.c.h.b16 %v836
          %v1656 = vunpack.c.l.b16 %v837
          %v1657 = vunpack.c.h.b16 %v837
          %v1658 = vunpack.c.l.b16 %v838
          %v1659 = vunpack.c.h.b16 %v838
          %v1660 = vunpack.c.l.b16 %v839
          %v1661 = vunpack.c.h.b16 %v839
          %v1662 = vunpack.c.l.b16 %v840
          %v1663 = vunpack.c.h.b16 %v840
          %v1664 = vunpack.c.l.b16 %v841
          %v1665 = vunpack.c.h.b16 %v841
          %v1666 = vunpack.c.l.b16 %v842
          %v1667 = vunpack.c.h.b16 %v842
          %v1668 = vunpack.c.l.b16 %v843
          %v1669 = vunpack.c.h.b16 %v843
          %v1670 = vunpack.c.l.b16 %v844
          %v1671 = vunpack.c.h.b16 %v844
          %v1672 = vunpack.c.l.b16 %v845
          %v1673 = vunpack.c.h.b16 %v845
          %v1674 = vunpack.c.l.b16 %v846
          %v1675 = vunpack.c.h.b16 %v846
          %v1676 = vunpack.c.l.b16 %v847
          %v1677 = vunpack.c.h.b16 %v847
          %v1678 = vunpack.c.l.b16 %v848
          %v1679 = vunpack.c.h.b16 %v848
          %v1680 = vunpack.c.l.b16 %v849
          %v1681 = vunpack.c.h.b16 %v849
          %v1682 = vunpack.c.l.b16 %v850
          %v1683 = vunpack.c.h.b16 %v850
          %v1684 = vunpack.c.l.b16 %v851
          %v1685 = vunpack.c.h.b16 %v851
          %v1686 = vunpack.c.l.b16 %v852
          %v1687 = vunpack.c.h.b16 %v852
          %v1688 = vunpack.c.l.b16 %v853
          %v1689 = vunpack.c.h.b16 %v853
          %v1690 = vunpack.c.l.b16 %v854
          %v1691 = vunpack.c.h.b16 %v854
          %v1692 = vunpack.c.l.b16 %v855
          %v1693 = vunpack.c.h.b16 %v855
          %v1694 = vunpack.c.l.b16 %v856
          %v1695 = vunpack.c.h.b16 %v856
          %v1696 = vunpack.c.l.b16 %v857
          %v1697 = vunpack.c.h.b16 %v857
          %v1698 = vunpack.c.l.b16 %v858
          %v1699 = vunpack.c.h.b16 %v858
          %v1700 = vunpack.c.l.b16 %v859
          %v1701 = vunpack.c.h.b16 %v859
          %v1702 = vunpack.c.l.b16 %v860
          %v1703 = vunpack.c.h.b16 %v860
          %v1704 = vunpack.c.l.b16 %v861
          %v1705 = vunpack.c.h.b16 %v861
          %v1706 = vunpack.c.l.b16 %v862
          %v1707 = vunpack.c.h.b16 %v862
          %v1708 = vunpack.c.l.b16 %v863
          %v1709 = vunpack.c.h.b16 %v863
          %v1710 = vunpack.c.l.b16 %v864
          %v1711 = vunpack.c.h.b16 %v864
          %v1712 = vunpack.c.l.b16 %v865
          %v1713 = vunpack.c.h.b16 %v865
          %v1714 = vunpack.c.l.b16 %v866
          %v1715 = vunpack.c.h.b16 %v866
          %v1716 = vunpack.c.l.b16 %v867
          %v1717 = vunpack.c.h.b16 %v867
          %v1718 = vunpack.c.l.b16 %v868
          %v1719 = vunpack.c.h.b16 %v868
          %v1720 = vunpack.c.l.b16 %v869
          %v1721 = vunpack.c.h.b16 %v869
          %v1722 = vunpack.c.l.b16 %v870
          %v1723 = vunpack.c.h.b16 %v870
          %v1724 = vunpack.c.l.b16 %v871
          %v1725 = vunpack.c.h.b16 %v871
          %v1726 = vunpack.c.l.b16 %v872
          %v1727 = vunpack.c.h.b16 %v872
          %v1728 = vunpack.c.l.b16 %v873
          %v1729 = vunpack.c.h.b16 %v873
          %v1730 = vunpack.c.l.b16 %v874
          %v1731 = vunpack.c.h.b16 %v874
          %v1732 = vunpack.c.l.b16 %v875
          %v1733 = vunpack.c.h.b16 %v875
          %v1734 = vunpack.c.l.b16 %v876
          %v1735 = vunpack.c.h.b16 %v876
          %v1736 = vunpack.c.l.b16 %v877
          %v1737 = vunpack.c.h.b16 %v877
          %v1738 = vunpack.c.l.b16 %v878
          %v1739 = vunpack.c.h.b16 %v878
          %v1740 = vunpack.c.l.b16 %v879
          %v1741 = vunpack.c.h.b16 %v879
          %v1742 = vunpack.c.l.b16 %v880
          %v1743 = vunpack.c.h.b16 %v880
          %v1744 = vunpack.c.l.b16 %v881
          %v1745 = vunpack.c.h.b16 %v881
          %v1746 = vunpack.c.l.b16 %v882
          %v1747 = vunpack.c.h.b16 %v882
          %v1748 = vunpack.c.l.b16 %v883
          %v1749 = vunpack.c.h.b16 %v883
          %v1750 = vunpack.c.l.b16 %v884
          %v1751 = vunpack.c.h.b16 %v884
          %v1752 = vunpack.c.l.b16 %v885
          %v1753 = vunpack.c.h.b16 %v885
          %v1754 = vunpack.c.l.b16 %v886
          %v1755 = vunpack.c.h.b16 %v886
          %v1756 = vunpack.c.l.b16 %v887
          %v1757 = vunpack.c.h.b16 %v887
          %v1758 = vunpack.c.l.b16 %v888
          %v1759 = vunpack.c.h.b16 %v888
          %v1760 = vunpack.c.l.b16 %v889
          %v1761 = vunpack.c.h.b16 %v889
          %v1762 = vunpack.c.l.b16 %v890
          %v1763 = vunpack.c.h.b16 %v890
          %v1764 = vunpack.c.l.b16 %v891
          %v1765 = vunpack.c.h.b16 %v891
          %v1766 = vunpack.c.l.b16 %v892
          %v1767 = vunpack.c.h.b16 %v892
          %v1768 = vunpack.c.l.b16 %v893
          %v1769 = vunpack.c.h.b16 %v893
          %v1770 = vunpack.c.l.b16 %v894
          %v1771 = vunpack.c.h.b16 %v894
          %v1772 = vunpack.c.l.b16 %v895
          %v1773 = vunpack.c.h.b16 %v895
          %v1774 = vunpack.c.l.b16 %v896
          %v1775 = vunpack.c.h.b16 %v896
          %v1776 = vunpack.c.l.b16 %v897
          %v1777 = vunpack.c.h.b16 %v897
          %v1778 = vunpack.c.l.b16 %v898
          %v1779 = vunpack.c.h.b16 %v898
          %v1780 = vunpack.c.l.b16 %v899
          %v1781 = vunpack.c.h.b16 %v899
          %v1782 = vunpack.c.l.b16 %v900
          %v1783 = vunpack.c.h.b16 %v900
          %v1784 = vunpack.c.l.b16 %v901
          %v1785 = vunpack.c.h.b16 %v901
          %v1786 = vunpack.c.l.b16 %v902
          %v1787 = vunpack.c.h.b16 %v902
          %v1788 = vunpack.c.l.b16 %v903
          %v1789 = vunpack.c.h.b16 %v903
          %v1790 = vunpack.c.l.b16 %v904
          %v1791 = vunpack.c.h.b16 %v904
          %v1792 = vunpack.c.l.b16 %v905
          %v1793 = vunpack.c.h.b16 %v905
          %v1794 = vunpack.c.l.b16 %v906
          %v1795 = vunpack.c.h.b16 %v906
          %v1796 = vunpack.c.l.b16 %v907
          %v1797 = vunpack.c.h.b16 %v907
          %v1798 = vunpack.c.l.b16 %v908
          %v1799 = vunpack.c.h.b16 %v908
          %v1800 = vunpack.c.l.b16 %v909
          %v1801 = vunpack.c.h.b16 %v909
          %v1802 = vunpack.c.l.b16 %v910
          %v1803 = vunpack.c.h.b16 %v910
          %v1804 = vunpack.c.l.b16 %v911
          %v1805 = vunpack.c.h.b16 %v911
          %v1806 = vunpack.c.l.b16 %v912
          %v1807 = vunpack.c.h.b16 %v912
          %v1808 = vunpack.c.l.b16 %v913
          %v1809 = vunpack.c.h.b16 %v913
          %v1810 = vunpack.c.l.b16 %v914
          %v1811 = vunpack.c.h.b16 %v914
          %v1812 = vunpack.c.l.b16 %v915
          %v1813 = vunpack.c.h.b16 %v915
          %v1814 = vunpack.c.l.b16 %v916
          %v1815 = vunpack.c.h.b16 %v916
          %v1816 = vunpack.c.l.b16 %v917
          %v1817 = vunpack.c.h.b16 %v917
          %v1818 = vunpack.c.l.b16 %v918
          %v1819 = vunpack.c.h.b16 %v918
          %v1820 = vunpack.c.l.b16 %v919
          %v1821 = vunpack.c.h.b16 %v919
          %v1822 = vunpack.c.l.b16 %v920
          %v1823 = vunpack.c.h.b16 %v920
          %v1824 = vunpack.c.l.b16 %v921
          %v1825 = vunpack.c.h.b16 %v921
          %v1826 = vunpack.c.l.b16 %v922
          %v1827 = vunpack.c.h.b16 %v922
          %v1828 = vunpack.c.l.b16 %v923
          %v1829 = vunpack.c.h.b16 %v923
          %v1830 = vunpack.c.l.b16 %v924
          %v1831 = vunpack.c.h.b16 %v924
          %v1832 = vunpack.c.l.b16 %v925
          %v1833 = vunpack.c.h.b16 %v925
          %v1834 = vunpack.c.l.b16 %v926
          %v1835 = vunpack.c.h.b16 %v926
          %v1836 = vunpack.c.l.b16 %v927
          %v1837 = vunpack.c.h.b16 %v927
          %v1838 = vunpack.c.l.b16 %v928
          %v1839 = vunpack.c.h.b16 %v928
          %v1840 = vunpack.c.l.b16 %v929
          %v1841 = vunpack.c.h.b16 %v929
          %v1842 = vunpack.c.l.b16 %v930
          %v1843 = vunpack.c.h.b16 %v930
          %v1844 = vunpack.c.l.b16 %v931
          %v1845 = vunpack.c.h.b16 %v931
          %v1846 = vunpack.c.l.b16 %v932
          %v1847 = vunpack.c.h.b16 %v932
          %v1848 = vunpack.c.l.b16 %v933
          %v1849 = vunpack.c.h.b16 %v933
          %v1850 = vunpack.c.l.b16 %v934
          %v1851 = vunpack.c.h.b16 %v934
          %v1852 = vunpack.c.l.b16 %v935
          %v1853 = vunpack.c.h.b16 %v935
          %v1854 = vunpack.c.l.b16 %v936
          %v1855 = vunpack.c.h.b16 %v936
          %v1856 = vunpack.c.l.b16 %v937
          %v1857 = vunpack.c.h.b16 %v937
          %v1858 = vunpack.c.l.b16 %v938
          %v1859 = vunpack.c.h.b16 %v938
          %v1860 = vunpack.c.l.b16 %v939
          %v1861 = vunpack.c.h.b16 %v939
          %v1862 = vunpack.c.l.b16 %v940
          %v1863 = vunpack.c.h.b16 %v940
          %v1864 = vunpack.c.l.b16 %v941
          %v1865 = vunpack.c.h.b16 %v941
          %v1866 = vunpack.c.l.b16 %v942
          %v1867 = vunpack.c.h.b16 %v942
          %v1868 = vunpack.c.l.b16 %v943
          %v1869 = vunpack.c.h.b16 %v943
          %v1870 = vunpack.c.l.b16 %v944
          %v1871 = vunpack.c.h.b16 %v944
          %v1872 = vunpack.c.l.b16 %v945
          %v1873 = vunpack.c.h.b16 %v945
          %v1874 = vunpack.c.l.b16 %v946
          %v1875 = vunpack.c.h.b16 %v946
          %v1876 = vunpack.c.l.b16 %v947
          %v1877 = vunpack.c.h.b16 %v947
          %v1878 = vunpack.c.l.b16 %v948
          %v1879 = vunpack.c.h.b16 %v948
          %v1880 = vunpack.c.l.b16 %v949
          %v1881 = vunpack.c.h.b16 %v949
          %v1882 = vunpack.c.l.b16 %v950
          %v1883 = vunpack.c.h.b16 %v950
          %v1884 = vunpack.c.l.b16 %v951
          %v1885 = vunpack.c.h.b16 %v951
          %v1886 = vunpack.c.l.b16 %v952
          %v1887 = vunpack.c.h.b16 %v952
          %v1888 = vunpack.c.l.b16 %v953
          %v1889 = vunpack.c.h.b16 %v953
          %v1890 = vunpack.c.l.b16 %v954
          %v1891 = vunpack.c.h.b16 %v954
          %v1892 = vunpack.c.l.b16 %v955
          %v1893 = vunpack.c.h.b16 %v955
          %v1894 = vunpack.c.l.b16 %v956
          %v1895 = vunpack.c.h.b16 %v956
          %v1896 = vunpack.c.l.b16 %v957
          %v1897 = vunpack.c.h.b16 %v957
          %v1898 = vunpack.c.l.b16 %v958
          %v1899 = vunpack.c.h.b16 %v958
          %v1900 = vunpack.c.l.b16 %v959
          %v1901 = vunpack.c.h.b16 %v959
          %v1902 = vunpack.c.l.b16 %v960
          %v1903 = vunpack.c.h.b16 %v960
          %v1904 = vunpack.c.l.b16 %v961
          %v1905 = vunpack.c.h.b16 %v961
          %v1906 = vunpack.c.l.b16 %v962
          %v1907 = vunpack.c.h.b16 %v962
          %v1908 = vunpack.c.l.b16 %v963
          %v1909 = vunpack.c.h.b16 %v963
          %v1910 = vunpack.c.l.b16 %v964
          %v1911 = vunpack.c.h.b16 %v964
          %v1912 = vunpack.c.l.b16 %v965
          %v1913 = vunpack.c.h.b16 %v965
          %v1914 = vunpack.c.l.b16 %v966
          %v1915 = vunpack.c.h.b16 %v966
          %v1916 = vunpack.c.l.b16 %v967
          %v1917 = vunpack.c.h.b16 %v967
          %v1918 = vunpack.c.l.b16 %v968
          %v1919 = vunpack.c.h.b16 %v968
          %v1920 = vunpack.c.l.b16 %v969
          %v1921 = vunpack.c.h.b16 %v969
          %v1922 = vunpack.c.l.b16 %v970
          %v1923 = vunpack.c.h.b16 %v970
          %v1924 = vunpack.c.l.b16 %v971
          %v1925 = vunpack.c.h.b16 %v971
          %v1926 = vunpack.c.l.b16 %v972
          %v1927 = vunpack.c.h.b16 %v972
          %v1928 = vunpack.c.l.b16 %v973
          %v1929 = vunpack.c.h.b16 %v973
          %v1930 = vunpack.c.l.b16 %v974
          %v1931 = vunpack.c.h.b16 %v974
          %v1932 = vunpack.c.l.b16 %v975
          %v1933 = vunpack.c.h.b16 %v975
          %v1934 = vunpack.c.l.b16 %v976
          %v1935 = vunpack.c.h.b16 %v976
          %v1936 = vunpack.c.l.b16 %v977
          %v1937 = vunpack.c.h.b16 %v977
          %v1938 = vunpack.c.l.b16 %v978
          %v1939 = vunpack.c.h.b16 %v978
          %v1940 = vunpack.c.l.b16 %v979
          %v1941 = vunpack.c.h.b16 %v979
          %v1942 = vunpack.c.l.b16 %v980
          %v1943 = vunpack.c.h.b16 %v980
          %v1944 = vunpack.c.l.b16 %v981
          %v1945 = vunpack.c.h.b16 %v981
          %v1946 = vunpack.c.l.b16 %v982
          %v1947 = vunpack.c.h.b16 %v982
          %v1948 = vunpack.c.l.b16 %v983
          %v1949 = vunpack.c.h.b16 %v983
          %v1950 = vunpack.c.l.b16 %v984
          %v1951 = vunpack.c.h.b16 %v984
          %v1952 = vunpack.c.l.b16 %v985
          %v1953 = vunpack.c.h.b16 %v985
          %v1954 = vunpack.c.l.b16 %v986
          %v1955 = vunpack.c.h.b16 %v986
          %v1956 = vunpack.c.l.b16 %v987
          %v1957 = vunpack.c.h.b16 %v987
          %v1958 = vunpack.c.l.b16 %v988
          %v1959 = vunpack.c.h.b16 %v988
          %v1960 = vunpack.c.l.b16 %v989
          %v1961 = vunpack.c.h.b16 %v989
          %v1962 = vunpack.c.l.b16 %v990
          %v1963 = vunpack.c.h.b16 %v990
          %v1964 = vunpack.c.l.b16 %v991
          %v1965 = vunpack.c.h.b16 %v991
          %v1966 = vunpack.c.l.b16 %v992
          %v1967 = vunpack.c.h.b16 %v992
          %v1968 = vunpack.c.l.b16 %v993
          %v1969 = vunpack.c.h.b16 %v993
          %v1970 = vunpack.c.l.b16 %v994
          %v1971 = vunpack.c.h.b16 %v994
          %v1972 = vunpack.c.l.b16 %v995
          %v1973 = vunpack.c.h.b16 %v995
          %v1974 = vunpack.c.l.b16 %v996
          %v1975 = vunpack.c.h.b16 %v996
          %v1976 = vunpack.c.l.b16 %v997
          %v1977 = vunpack.c.h.b16 %v997
          %v1978 = vunpack.c.l.b16 %v998
          %v1979 = vunpack.c.h.b16 %v998
          %v1980 = vunpack.c.l.b16 %v999
          %v1981 = vunpack.c.h.b16 %v999
          %v1982 = vunpack.c.l.b16 %v1000
          %v1983 = vunpack.c.h.b16 %v1000
          %v1984 = vunpack.c.l.b16 %v1001
          %v1985 = vunpack.c.h.b16 %v1001
          %v1986 = vunpack.c.l.b16 %v1002
          %v1987 = vunpack.c.h.b16 %v1002
          %v1988 = vunpack.c.l.b16 %v1003
          %v1989 = vunpack.c.h.b16 %v1003
          %v1990 = vunpack.c.l.b16 %v1004
          %v1991 = vunpack.c.h.b16 %v1004
          %v1992 = vunpack.c.l.b16 %v1005
          %v1993 = vunpack.c.h.b16 %v1005
          %v1994 = vunpack.c.l.b16 %v1006
          %v1995 = vunpack.c.h.b16 %v1006
          %v1996 = vunpack.c.l.b16 %v1007
          %v1997 = vunpack.c.h.b16 %v1007
          %v1998 = vunpack.c.l.b16 %v1008
          %v1999 = vunpack.c.h.b16 %v1008
          %v2000 = vunpack.c.l.b16 %v1009
          %v2001 = vunpack.c.h.b16 %v1009
          %v2002 = vunpack.c.l.b16 %v1010
          %v2003 = vunpack.c.h.b16 %v1010
          %v2004 = vunpack.c.l.b16 %v1011
          %v2005 = vunpack.c.h.b16 %v1011
          %v2006 = vunpack.c.l.b16 %v1012
          %v2007 = vunpack.c.h.b16 %v1012
          %v2008 = vunpack.c.l.b16 %v1013
          %v2009 = vunpack.c.h.b16 %v1013
          %v2010 = vunpack.c.l.b16 %v1014
          %v2011 = vunpack.c.h.b16 %v1014
          %v2012 = vunpack.c.l.b16 %v1015
          %v2013 = vunpack.c.h.b16 %v1015
          %v2014 = vunpack.c.l.b16 %v1016
          %v2015 = vunpack.c.h.b16 %v1016
          %v2016 = vunpack.c.l.b16 %v1017
          %v2017 = vunpack.c.h.b16 %v1017
          %v2018 = vunpack.c.l.b16 %v1018
          %v2019 = vunpack.c.h.b16 %v1018
          %v2020 = vunpack.c.l.b16 %v1019
          %v2021 = vunpack.c.h.b16 %v1019
          %v2022 = vunpack.c.l.b16 %v1020
          %v2023 = vunpack.c.h.b16 %v1020
          %v2024 = vunpack.c.l.b16 %v1021
          %v2025 = vunpack.c.h.b16 %v1021
          %v2026 = vunpack.c.l.b16 %v1022
          %v2027 = vunpack.c.h.b16 %v1022
          %v2028 = vunpack.c.l.b16 %v1023
          %v2029 = vunpack.c.h.b16 %v1023
          %v2030 = vunpack.c.l.b16 %v1024
          %v2031 = vunpack.c.h.b16 %v1024
          %v2032 = vunpack.c.l.b16 %v1025
          %v2033 = vunpack.c.h.b16 %v1025
          %v2034 = vunpack.c.l.b16 %v1026
          %v2035 = vunpack.c.h.b16 %v1026
          %v2036 = vunpack.c.l.b16 %v1027
          %v2037 = vunpack.c.h.b16 %v1027
          %v2038 = vunpack.c.l.b16 %v1028
          %v2039 = vunpack.c.h.b16 %v1028
          %v2040 = vunpack.c.l.b16 %v1029
          %v2041 = vunpack.c.h.b16 %v1029
          %v2042 = vunpack.c.l.b16 %v1030
          %v2043 = vunpack.c.h.b16 %v1030
          %v2044 = vunpack.c.l.b16 %v1031
          %v2045 = vunpack.c.h.b16 %v1031
          %v2046 = vunpack.c.l.b16 %v1032
          %v2047 = vunpack.c.h.b16 %v1032
          %v2048 = vunpack.c.l.b16 %v1033
          %v2049 = vunpack.c.h.b16 %v1033
          %v2050 = vunpack.c.l.b16 %v1034
          %v2051 = vunpack.c.h.b16 %v1034
          %v2052 = vunpack.c.l.b16 %v1035
          %v2053 = vunpack.c.h.b16 %v1035
          %v2054 = vunpack.c.l.b16 %v1036
          %v2055 = vunpack.c.h.b16 %v1036
          %v2056 = vunpack.c.l.b16 %v1037
          %v2057 = vunpack.c.h.b16 %v1037
          %v2058 = vunpack.c.l.b16 %v1038
          %v2059 = vunpack.c.h.b16 %v1038
          %v2060 = vunpack.c.l.b16 %v1039
          %v2061 = vunpack.c.h.b16 %v1039
          %v2062 = vunpack.c.l.b16 %v1040
          %v2063 = vunpack.c.h.b16 %v1040
          %v2064 = vunpack.c.l.b16 %v1041
          %v2065 = vunpack.c.h.b16 %v1041
          %v2066 = vunpack.c.l.b16 %v1042
          %v2067 = vunpack.c.h.b16 %v1042
          %v2068 = vunpack.c.l.b16 %v1043
          %v2069 = vunpack.c.h.b16 %v1043
          %v2070 = vunpack.c.l.b16 %v1044
          %v2071 = vunpack.c.h.b16 %v1044
          %v2072 = vunpack.c.l.b16 %v1045
          %v2073 = vunpack.c.h.b16 %v1045
          %v2074 = vunpack.c.l.b16 %v1046
          %v2075 = vunpack.c.h.b16 %v1046
          %v2076 = vunpack.c.l.b16 %v1047
          %v2077 = vunpack.c.h.b16 %v1047
          %v2078 = vunpack.c.l.b16 %v1048
          %v2079 = vunpack.c.h.b16 %v1048
          %v2080 = vunpack.c.l.b16 %v1049
          %v2081 = vunpack.c.h.b16 %v1049
          %v2082 = vunpack.c.l.b16 %v1050
          %v2083 = vunpack.c.h.b16 %v1050
          %v2084 = vunpack.c.l.b16 %v1051
          %v2085 = vunpack.c.h.b16 %v1051
          %v2086 = vunpack.c.l.b16 %v1052
          %v2087 = vunpack.c.h.b16 %v1052
          %v2088 = vunpack.c.l.b16 %v1053
          %v2089 = vunpack.c.h.b16 %v1053
          %v2090 = vunpack.c.l.b16 %v1054
          %v2091 = vunpack.c.h.b16 %v1054
          %v2092 = vunpack.c.l.b16 %v1055
          %v2093 = vunpack.c.h.b16 %v1055
          %v2094 = vunpack.c.l.b16 %v1056
          %v2095 = vunpack.c.h.b16 %v1056
          %v2096 = vunpack.c.l.b16 %v1057
          %v2097 = vunpack.c.h.b16 %v1057
          %v2098 = vunpack.c.l.b16 %v1058
          %v2099 = vunpack.c.h.b16 %v1058
          %v2100 = vunpack.c.l.b16 %v1059
          %v2101 = vunpack.c.h.b16 %v1059
          %v2102 = vunpack.c.l.b16 %v1060
          %v2103 = vunpack.c.h.b16 %v1060
          %v2104 = vunpack.c.l.b16 %v1061
          %v2105 = vunpack.c.h.b16 %v1061
          %v2106 = vunpack.c.l.b16 %v1062
          %v2107 = vunpack.c.h.b16 %v1062
          %v2108 = vunpack.c.l.b16 %v1063
          %v2109 = vunpack.c.h.b16 %v1063
          %v2110 = vunpack.c.l.b16 %v1064
          %v2111 = vunpack.c.h.b16 %v1064
          %v2112 = vunpack.c.l.b16 %v1065
          %v2113 = vunpack.c.h.b16 %v1065
          %v2114 = vunpack.c.l.b16 %v1066
          %v2115 = vunpack.c.h.b16 %v1066
          %v2116 = vunpack.c.l.b16 %v1067
          %v2117 = vunpack.c.h.b16 %v1067
          %v2118 = vunpack.c.l.b16 %v1068
          %v2119 = vunpack.c.h.b16 %v1068
          %v2120 = vunpack.c.l.b16 %v1069
          %v2121 = vunpack.c.h.b16 %v1069
          %v2122 = vunpack.c.l.b16 %v1070
          %v2123 = vunpack.c.h.b16 %v1070
          %v2124 = vunpack.c.l.b16 %v1071
          %v2125 = vunpack.c.h.b16 %v1071
          %v2126 = vunpack.c.l.b16 %v1072
          %v2127 = vunpack.c.h.b16 %v1072
          %v2128 = vunpack.c.l.b16 %v1073
          %v2129 = vunpack.c.h.b16 %v1073
          %v2130 = vunpack.c.l.b16 %v1074
          %v2131 = vunpack.c.h.b16 %v1074
          %v2132 = vunpack.c.l.b16 %v1075
          %v2133 = vunpack.c.h.b16 %v1075
          %v2134 = vunpack.c.l.b16 %v1076
          %v2135 = vunpack.c.h.b16 %v1076
          %v2136 = vunpack.c.l.b16 %v1077
          %v2137 = vunpack.c.h.b16 %v1077
          %v2138 = vunpack.c.l.b16 %v1078
          %v2139 = vunpack.c.h.b16 %v1078
          %v2140 = vunpack.c.l.b16 %v1079
          %v2141 = vunpack.c.h.b16 %v1079
          %v2142 = vunpack.c.l.b16 %v1080
          %v2143 = vunpack.c.h.b16 %v1080
          %v2144 = vunpack.c.l.b16 %v1081
          %v2145 = vunpack.c.h.b16 %v1081
          %v2146 = vunpack.c.l.b16 %v1082
          %v2147 = vunpack.c.h.b16 %v1082
          %v2148 = vunpack.c.l.b16 %v1083
          %v2149 = vunpack.c.h.b16 %v1083
          %v2150 = vunpack.c.l.b16 %v1084
          %v2151 = vunpack.c.h.b16 %v1084
          %v2152 = vunpack.c.l.b16 %v1085
          %v2153 = vunpack.c.h.b16 %v1085
          %v2154 = vunpack.c.l.b16 %v1086
          %v2155 = vunpack.c.h.b16 %v1086
          %v2156 = vunpack.c.l.b16 %v1087
          %v2157 = vunpack.c.h.b16 %v1087
          %v2158 = vunpack.c.l.b16 %v1088
          %v2159 = vunpack.c.h.b16 %v1088
          %v2160 = vunpack.c.l.b16 %v1089
          %v2161 = vunpack.c.h.b16 %v1089
          %v2162 = vunpack.c.l.b16 %v1090
          %v2163 = vunpack.c.h.b16 %v1090
          %v2164 = vunpack.c.l.b16 %v1091
          %v2165 = vunpack.c.h.b16 %v1091
          %v2166 = vunpack.c.l.b16 %v1092
          %v2167 = vunpack.c.h.b16 %v1092
          %v2168 = vunpack.c.l.b16 %v1093
          %v2169 = vunpack.c.h.b16 %v1093
          %v2170 = vunpack.c.l.b16 %v1094
          %v2171 = vunpack.c.h.b16 %v1094
          %v2172 = vunpack.c.l.b16 %v1095
          %v2173 = vunpack.c.h.b16 %v1095
          %v2174 = vunpack.c.l.b16 %v1096
          %v2175 = vunpack.c.h.b16 %v1096
          %v2176 = vunpack.c.l.b16 %v1097
          %v2177 = vunpack.c.h.b16 %v1097
          %v2178 = vunpack.c.l.b16 %v1098
          %v2179 = vunpack.c.h.b16 %v1098
          %v2180 = vunpack.c.l.b16 %v1099
          %v2181 = vunpack.c.h.b16 %v1099
          %v2182 = vunpack.c.l.b16 %v1100
          %v2183 = vunpack.c.h.b16 %v1100
          %v2184 = vunpack.c.l.b16 %v1101
          %v2185 = vunpack.c.h.b16 %v1101
          %v2186 = vunpack.c.l.b16 %v1102
          %v2187 = vunpack.c.h.b16 %v1102
          %v2188 = vunpack.c.l.b16 %v1103
          %v2189 = vunpack.c.h.b16 %v1103
          %v2190 = vunpack.c.l.b16 %v1104
          %v2191 = vunpack.c.h.b16 %v1104
          %v2192 = vunpack.c.l.b16 %v1105
          %v2193 = vunpack.c.h.b16 %v1105
          %v2194 = vunpack.c.l.b16 %v1106
          %v2195 = vunpack.c.h.b16 %v1106
          %v2196 = vunpack.c.l.b16 %v1107
          %v2197 = vunpack.c.h.b16 %v1107
          %v2198 = vunpack.c.l.b16 %v1108
          %v2199 = vunpack.c.h.b16 %v1108
          %v2200 = vunpack.c.l.b16 %v1109
          %v2201 = vunpack.c.h.b16 %v1109
          %v2202 = vunpack.c.l.b16 %v1110
          %v2203 = vunpack.c.h.b16 %v1110
          %v2204 = vunpack.c.l.b16 %v1111
          %v2205 = vunpack.c.h.b16 %v1111
          %v2206 = vunpack.c.l.b16 %v1112
          %v2207 = vunpack.c.h.b16 %v1112
          %v2208 = vunpack.c.l.b16 %v1113
          %v2209 = vunpack.c.h.b16 %v1113
          %v2210 = vunpack.c.l.b16 %v1114
          %v2211 = vunpack.c.h.b16 %v1114
          %v2212 = vunpack.c.l.b16 %v1115
          %v2213 = vunpack.c.h.b16 %v1115
          %v2214 = vunpack.c.l.b16 %v1116
          %v2215 = vunpack.c.h.b16 %v1116
          %v2216 = vunpack.c.l.b16 %v1117
          %v2217 = vunpack.c.h.b16 %v1117
          %v2218 = vunpack.c.l.b16 %v1118
          %v2219 = vunpack.c.h.b16 %v1118
          %v2220 = vunpack.c.l.b16 %v1119
          %v2221 = vunpack.c.h.b16 %v1119
          %v2222 = vunpack.c.l.b16 %v1120
          %v2223 = vunpack.c.h.b16 %v1120
          %v2224 = vunpack.c.l.b16 %v1121
          %v2225 = vunpack.c.h.b16 %v1121
          %v2226 = vunpack.c.l.b16 %v1122
          %v2227 = vunpack.c.h.b16 %v1122
          %v2228 = vunpack.c.l.b16 %v1123
          %v2229 = vunpack.c.h.b16 %v1123
          %v2230 = vunpack.c.l.b16 %v1124
          %v2231 = vunpack.c.h.b16 %v1124
          %v2232 = vunpack.c.l.b16 %v1125
          %v2233 = vunpack.c.h.b16 %v1125
          %v2234 = vunpack.c.l.b16 %v1126
          %v2235 = vunpack.c.h.b16 %v1126
          %v2236 = vunpack.c.l.b16 %v1127
          %v2237 = vunpack.c.h.b16 %v1127
          %v2238 = vunpack.c.l.b16 %v1128
          %v2239 = vunpack.c.h.b16 %v1128
          %v2240 = vunpack.c.l.b16 %v1129
          %v2241 = vunpack.c.h.b16 %v1129
          %v2242 = vunpack.c.l.b16 %v1130
          %v2243 = vunpack.c.h.b16 %v1130
          %v2244 = vunpack.c.l.b16 %v1131
          %v2245 = vunpack.c.h.b16 %v1131
          %v2246 = vunpack.c.l.b16 %v1132
          %v2247 = vunpack.c.h.b16 %v1132
          %v2248 = vunpack.c.l.b16 %v1133
          %v2249 = vunpack.c.h.b16 %v1133
          %v2250 = vunpack.c.l.b16 %v1134
          %v2251 = vunpack.c.h.b16 %v1134
          %v2252 = vunpack.c.l.b16 %v1135
          %v2253 = vunpack.c.h.b16 %v1135
          %v2254 = vunpack.c.l.b16 %v1136
          %v2255 = vunpack.c.h.b16 %v1136
          %v2256 = vunpack.c.l.b16 %v1137
          %v2257 = vunpack.c.h.b16 %v1137
          %v2258 = vunpack.c.l.b16 %v1138
          %v2259 = vunpack.c.h.b16 %v1138
          %v2260 = vunpack.c.l.b16 %v1139
          %v2261 = vunpack.c.h.b16 %v1139
          %v2262 = vunpack.c.l.b16 %v1140
          %v2263 = vunpack.c.h.b16 %v1140
          %v2264 = vunpack.c.l.b16 %v1141
          %v2265 = vunpack.c.h.b16 %v1141
          %v2266 = vunpack.c.l.b16 %v1142
          %v2267 = vunpack.c.h.b16 %v1142
          %v2268 = vunpack.c.l.b16 %v1143
          %v2269 = vunpack.c.h.b16 %v1143
          %v2270 = vunpack.c.l.b16 %v1144
          %v2271 = vunpack.c.h.b16 %v1144
          %v2272 = vunpack.c.l.b16 %v1145
          %v2273 = vunpack.c.h.b16 %v1145
          %v2274 = vunpack.c.l.b16 %v1146
          %v2275 = vunpack.c.h.b16 %v1146
          %v2276 = vunpack.c.l.b16 %v1147
          %v2277 = vunpack.c.h.b16 %v1147
          %v2278 = vunpack.c.l.b16 %v1148
          %v2279 = vunpack.c.h.b16 %v1148
          %v2280 = vunpack.c.l.b16 %v1149
          %v2281 = vunpack.c.h.b16 %v1149
          %v2282 = vunpack.c.l.b16 %v1150
          %v2283 = vunpack.c.h.b16 %v1150
          %v2284 = vunpack.c.l.b16 %v1151
          %v2285 = vunpack.c.h.b16 %v1151
          %v2286 = vunpack.c.l.b16 %v1152
          %v2287 = vunpack.c.h.b16 %v1152
          %v2288 = vunpack.c.l.b16 %v1153
          %v2289 = vunpack.c.h.b16 %v1153
          %v2290 = vunpack.c.l.b16 %v1154
          %v2291 = vunpack.c.h.b16 %v1154
          %v2292 = vunpack.c.l.b16 %v1155
          %v2293 = vunpack.c.h.b16 %v1155
          %v2294 = vunpack.c.l.b16 %v1156
          %v2295 = vunpack.c.h.b16 %v1156
          %v2296 = vunpack.c.l.b16 %v1157
          %v2297 = vunpack.c.h.b16 %v1157
          %v2298 = vunpack.c.l.b16 %v1158
          %v2299 = vunpack.c.h.b16 %v1158
          %v2300 = vunpack.c.l.b16 %v1159
          %v2301 = vunpack.c.h.b16 %v1159
          %v2302 = vunpack.c.l.b16 %v1160
          %v2303 = vunpack.c.h.b16 %v1160
          %v2304 = vunpack.c.l.b16 %v1161
          %v2305 = vunpack.c.h.b16 %v1161
          %v2306 = vunpack.c.l.b16 %v1162
          %v2307 = vunpack.c.h.b16 %v1162
          %v2308 = vunpack.c.l.b16 %v1163
          %v2309 = vunpack.c.h.b16 %v1163
          %v2310 = vunpack.c.l.b16 %v1164
          %v2311 = vunpack.c.h.b16 %v1164
          %v2312 = vunpack.c.l.b16 %v1165
          %v2313 = vunpack.c.h.b16 %v1165
          %v2314 = vunpack.c.l.b16 %v1166
          %v2315 = vunpack.c.h.b16 %v1166
          %v2316 = vunpack.c.l.b16 %v1167
          %v2317 = vunpack.c.h.b16 %v1167
          %v2318 = vunpack.c.l.b16 %v1168
          %v2319 = vunpack.c.h.b16 %v1168
          %v2320 = vunpack.c.l.b16 %v1169
          %v2321 = vunpack.c.h.b16 %v1169
          %v2322 = vunpack.c.l.b16 %v1170
          %v2323 = vunpack.c.h.b16 %v1170
          %v2324 = vunpack.c.l.b16 %v1171
          %v2325 = vunpack.c.h.b16 %v1171
          %v2326 = vunpack.c.l.b16 %v1172
          %v2327 = vunpack.c.h.b16 %v1172
          %v2328 = vunpack.c.l.b16 %v1173
          %v2329 = vunpack.c.h.b16 %v1173
          %v2330 = vunpack.c.l.b16 %v1174
          %v2331 = vunpack.c.h.b16 %v1174
          %v2332 = vunpack.c.l.b16 %v1175
          %v2333 = vunpack.c.h.b16 %v1175
          %v2334 = vunpack.c.l.b16 %v1176
          %v2335 = vunpack.c.h.b16 %v1176
          %v2336 = vunpack.c.l.b16 %v1177
          %v2337 = vunpack.c.h.b16 %v1177
          %v2338 = vunpack.c.l.b16 %v1178
          %v2339 = vunpack.c.h.b16 %v1178
          %v2340 = vunpack.c.l.b16 %v1179
          %v2341 = vunpack.c.h.b16 %v1179
          %v2342 = vunpack.c.l.b16 %v1180
          %v2343 = vunpack.c.h.b16 %v1180
          %v2344 = vunpack.c.l.b16 %v1181
          %v2345 = vunpack.c.h.b16 %v1181
          %v2346 = vunpack.c.l.b16 %v1182
          %v2347 = vunpack.c.h.b16 %v1182
          %v2348 = vunpack.c.l.b16 %v1183
          %v2349 = vunpack.c.h.b16 %v1183
          %v2350 = vunpack.c.l.b16 %v1184
          %v2351 = vunpack.c.h.b16 %v1184
          %v2352 = vunpack.c.l.b16 %v1185
          %v2353 = vunpack.c.h.b16 %v1185
          %v2354 = vunpack.c.l.b16 %v1186
          %v2355 = vunpack.c.h.b16 %v1186
          %v2356 = vunpack.c.l.b16 %v1187
          %v2357 = vunpack.c.h.b16 %v1187
          %v2358 = vunpack.c.l.b16 %v1188
          %v2359 = vunpack.c.h.b16 %v1188
          %v2360 = vunpack.c.l.b16 %v1189
          %v2361 = vunpack.c.h.b16 %v1189
          %v2362 = vunpack.c.l.b16 %v1190
          %v2363 = vunpack.c.h.b16 %v1190
          %v2364 = vunpack.c.l.b16 %v1191
          %v2365 = vunpack.c.h.b16 %v1191
          %v2366 = vunpack.c.l.b16 %v1192
          %v2367 = vunpack.c.h.b16 %v1192
          %v2368 = vunpack.c.l.b16 %v1193
          %v2369 = vunpack.c.h.b16 %v1193
          %v2370 = vunpack.c.l.b16 %v1194
          %v2371 = vunpack.c.h.b16 %v1194
          %v2372 = vunpack.c.l.b16 %v1195
          %v2373 = vunpack.c.h.b16 %v1195
          %v2374 = vunpack.c.l.b16 %v1196
          %v2375 = vunpack.c.h.b16 %v1196
          %v2376 = vunpack.c.l.b16 %v1197
          %v2377 = vunpack.c.h.b16 %v1197
          %v2378 = vunpack.c.l.b16 %v1198
          %v2379 = vunpack.c.h.b16 %v1198
          %v2380 = vunpack.c.l.b16 %v1199
          %v2381 = vunpack.c.h.b16 %v1199
          %v2382 = vunpack.c.l.b16 %v1200
          %v2383 = vunpack.c.h.b16 %v1200
          %v2384 = vunpack.c.l.b16 %v1201
          %v2385 = vunpack.c.h.b16 %v1201
          %v2386 = vunpack.c.l.b16 %v1202
          %v2387 = vunpack.c.h.b16 %v1202
          %v2388 = vunpack.c.l.b16 %v1203
          %v2389 = vunpack.c.h.b16 %v1203
          %v2390 = vunpack.c.l.b16 %v1204
          %v2391 = vunpack.c.h.b16 %v1204
          %v2392 = vunpack.c.l.b16 %v1205
          %v2393 = vunpack.c.h.b16 %v1205
          %v2394 = vunpack.c.l.b16 %v1206
          %v2395 = vunpack.c.h.b16 %v1206
          %v2396 = vunpack.c.l.b16 %v1207
          %v2397 = vunpack.c.h.b16 %v1207
          %v2398 = vunpack.c.l.b16 %v1208
          %v2399 = vunpack.c.h.b16 %v1208
          %v2400 = vunpack.c.l.b16 %v1209
          %v2401 = vunpack.c.h.b16 %v1209
          %v2402 = vunpack.c.l.b16 %v1210
          %v2403 = vunpack.c.h.b16 %v1210
          %v2404 = vunpack.c.l.b16 %v1211
          %v2405 = vunpack.c.h.b16 %v1211
          %v2406 = vpack.c.b16 %v1646, %v1638
          %v2407 = vpack.c.b16 %v1647, %v1639
          %v2408 = vpack.c.b16 %v1648, %v1640
          %v2409 = vpack.c.b16 %v1649, %v1641
          %v2410 = vpack.c.b16 %v1650, %v1642
          %v2411 = vpack.c.b16 %v1651, %v1643
          %v2412 = vpack.c.b16 %v1652, %v1644
          %v2413 = vpack.c.b16 %v1653, %v1645
          %v2414 = vpack.c.b16 %v1662, %v1654
          %v2415 = vpack.c.b16 %v1663, %v1655
          %v2416 = vpack.c.b16 %v1664, %v1656
          %v2417 = vpack.c.b16 %v1665, %v1657
          %v2418 = vpack.c.b16 %v1666, %v1658
          %v2419 = vpack.c.b16 %v1667, %v1659
          %v2420 = vpack.c.b16 %v1668, %v1660
          %v2421 = vpack.c.b16 %v1669, %v1661
          %v2422 = vpack.c.b16 %v1678, %v1670
          %v2423 = vpack.c.b16 %v1679, %v1671
          %v2424 = vpack.c.b16 %v1680, %v1672
          %v2425 = vpack.c.b16 %v1681, %v1673
          %v2426 = vpack.c.b16 %v1682, %v1674
          %v2427 = vpack.c.b16 %v1683, %v1675
          %v2428 = vpack.c.b16 %v1684, %v1676
          %v2429 = vpack.c.b16 %v1685, %v1677
          %v2430 = vpack.c.b16 %v1694, %v1686
          %v2431 = vpack.c.b16 %v1695, %v1687
          %v2432 = vpack.c.b16 %v1696, %v1688
          %v2433 = vpack.c.b16 %v1697, %v1689
          %v2434 = vpack.c.b16 %v1698, %v1690
          %v2435 = vpack.c.b16 %v1699, %v1691
          %v2436 = vpack.c.b16 %v1700, %v1692
          %v2437 = vpack.c.b16 %v1701, %v1693
          %v2438 = vpack.c.b16 %v1710, %v1702
          %v2439 = vpack.c.b16 %v1711, %v1703
          %v2440 = vpack.c.b16 %v1712, %v1704
          %v2441 = vpack.c.b16 %v1713, %v1705
          %v2442 = vpack.c.b16 %v1714, %v1706
          %v2443 = vpack.c.b16 %v1715, %v1707
          %v2444 = vpack.c.b16 %v1716, %v1708
          %v2445 = vpack.c.b16 %v1717, %v1709
          %v2446 = vpack.c.b16 %v1726, %v1718
          %v2447 = vpack.c.b16 %v1727, %v1719
          %v2448 = vpack.c.b16 %v1728, %v1720
          %v2449 = vpack.c.b16 %v1729, %v1721
          %v2450 = vpack.c.b16 %v1730, %v1722
          %v2451 = vpack.c.b16 %v1731, %v1723
          %v2452 = vpack.c.b16 %v1732, %v1724
          %v2453 = vpack.c.b16 %v1733, %v1725
          %v2454 = vpack.c.b16 %v1742, %v1734
          %v2455 = vpack.c.b16 %v1743, %v1735
          %v2456 = vpack.c.b16 %v1744, %v1736
          %v2457 = vpack.c.b16 %v1745, %v1737
          %v2458 = vpack.c.b16 %v1746, %v1738
          %v2459 = vpack.c.b16 %v1747, %v1739
          %v2460 = vpack.c.b16 %v1748, %v1740
          %v2461 = vpack.c.b16 %v1749, %v1741
          %v2462 = vpack.c.b16 %v1758, %v1750
          %v2463 = vpack.c.b16 %v1759, %v1751
          %v2464 = vpack.c.b16 %v1760, %v1752
          %v2465 = vpack.c.b16 %v1761, %v1753
          %v2466 = vpack.c.b16 %v1762, %v1754
          %v2467 = vpack.c.b16 %v1763, %v1755
          %v2468 = vpack.c.b16 %v1764, %v1756
          %v2469 = vpack.c.b16 %v1765, %v1757
          %v2470 = vpack.c.b16 %v1774, %v1766
          %v2471 = vpack.c.b16 %v1775, %v1767
          %v2472 = vpack.c.b16 %v1776, %v1768
          %v2473 = vpack.c.b16 %v1777, %v1769
          %v2474 = vpack.c.b16 %v1778, %v1770
          %v2475 = vpack.c.b16 %v1779, %v1771
          %v2476 = vpack.c.b16 %v1780, %v1772
          %v2477 = vpack.c.b16 %v1781, %v1773
          %v2478 = vpack.c.b16 %v1790, %v1782
          %v2479 = vpack.c.b16 %v1791, %v1783
          %v2480 = vpack.c.b16 %v1792, %v1784
          %v2481 = vpack.c.b16 %v1793, %v1785
          %v2482 = vpack.c.b16 %v1794, %v1786
          %v2483 = vpack.c.b16 %v1795, %v1787
          %v2484 = vpack.c.b16 %v1796, %v1788
          %v2485 = vpack.c.b16 %v1797, %v1789
          %v2486 = vpack.c.b16 %v1806, %v1798
          %v2487 = vpack.c.b16 %v1807, %v1799
          %v2488 = vpack.c.b16 %v1808, %v1800
          %v2489 = vpack.c.b16 %v1809, %v1801
          %v2490 = vpack.c.b16 %v1810, %v1802
          %v2491 = vpack.c.b16 %v1811, %v1803
          %v2492 = vpack.c.b16 %v1812, %v1804
          %v2493 = vpack.c.b16 %v1813, %v1805
          %v2494 = vpack.c.b16 %v1822, %v1814
          %v2495 = vpack.c.b16 %v1823, %v1815
          %v2496 = vpack.c.b16 %v1824, %v1816
          %v2497 = vpack.c.b16 %v1825, %v1817
          %v2498 = vpack.c.b16 %v1826, %v1818
          %v2499 = vpack.c.b16 %v1827, %v1819
          %v2500 = vpack.c.b16 %v1828, %v1820
          %v2501 = vpack.c.b16 %v1829, %v1821
          %v2502 = vpack.c.b16 %v1838, %v1830
          %v2503 = vpack.c.b16 %v1839, %v1831
          %v2504 = vpack.c.b16 %v1840, %v1832
          %v2505 = vpack.c.b16 %v1841, %v1833
          %v2506 = vpack.c.b16 %v1842, %v1834
          %v2507 = vpack.c.b16 %v1843, %v1835
          %v2508 = vpack.c.b16 %v1844, %v1836
          %v2509 = vpack.c.b16 %v1845, %v1837
          %v2510 = vpack.c.b16 %v1854, %v1846
          %v2511 = vpack.c.b16 %v1855, %v1847
          %v2512 = vpack.c.b16 %v1856, %v1848
          %v2513 = vpack.c.b16 %v1857, %v1849
          %v2514 = vpack.c.b16 %v1858, %v1850
          %v2515 = vpack.c.b16 %v1859, %v1851
          %v2516 = vpack.c.b16 %v1860, %v1852
          %v2517 = vpack.c.b16 %v1861, %v1853
          %v2518 = vpack.c.b16 %v1870, %v1862
          %v2519 = vpack.c.b16 %v1871, %v1863
          %v2520 = vpack.c.b16 %v1872, %v1864
          %v2521 = vpack.c.b16 %v1873, %v1865
          %v2522 = vpack.c.b16 %v1874, %v1866
          %v2523 = vpack.c.b16 %v1875, %v1867
          %v2524 = vpack.c.b16 %v1876, %v1868
          %v2525 = vpack.c.b16 %v1877, %v1869
          %v2526 = vpack.c.b16 %v1886, %v1878
          %v2527 = vpack.c.b16 %v1887, %v1879
          %v2528 = vpack.c.b16 %v1888, %v1880
          %v2529 = vpack.c.b16 %v1889, %v1881
          %v2530 = vpack.c.b16 %v1890, %v1882
          %v2531 = vpack.c.b16 %v1891, %v1883
          %v2532 = vpack.c.b16 %v1892, %v1884
          %v2533 = vpack.c.b16 %v1893, %v1885
          %v2534 = vpack.c.b16 %v1902, %v1894
          %v2535 = vpack.c.b16 %v1903, %v1895
          %v2536 = vpack.c.b16 %v1904, %v1896
          %v2537 = vpack.c.b16 %v1905, %v1897
          %v2538 = vpack.c.b16 %v1906, %v1898
          %v2539 = vpack.c.b16 %v1907, %v1899
          %v2540 = vpack.c.b16 %v1908, %v1900
          %v2541 = vpack.c.b16 %v1909, %v1901
          %v2542 = vpack.c.b16 %v1918, %v1910
          %v2543 = vpack.c.b16 %v1919, %v1911
          %v2544 = vpack.c.b16 %v1920, %v1912
          %v2545 = vpack.c.b16 %v1921, %v1913
          %v2546 = vpack.c.b16 %v1922, %v1914
          %v2547 = vpack.c.b16 %v1923, %v1915
          %v2548 = vpack.c.b16 %v1924, %v1916
          %v2549 = vpack.c.b16 %v1925, %v1917
          %v2550 = vpack.c.b16 %v1934, %v1926
          %v2551 = vpack.c.b16 %v1935, %v1927
          %v2552 = vpack.c.b16 %v1936, %v1928
          %v2553 = vpack.c.b16 %v1937, %v1929
          %v2554 = vpack.c.b16 %v1938, %v1930
          %v2555 = vpack.c.b16 %v1939, %v1931
          %v2556 = vpack.c.b16 %v1940, %v1932
          %v2557 = vpack.c.b16 %v1941, %v1933
          %v2558 = vpack.c.b16 %v1950, %v1942
          %v2559 = vpack.c.b16 %v1951, %v1943
          %v2560 = vpack.c.b16 %v1952, %v1944
          %v2561 = vpack.c.b16 %v1953, %v1945
          %v2562 = vpack.c.b16 %v1954, %v1946
          %v2563 = vpack.c.b16 %v1955, %v1947
          %v2564 = vpack.c.b16 %v1956, %v1948
          %v2565 = vpack.c.b16 %v1957, %v1949
          %v2566 = vpack.c.b16 %v1966, %v1958
          %v2567 = vpack.c.b16 %v1967, %v1959
          %v2568 = vpack.c.b16 %v1968, %v1960
          %v2569 = vpack.c.b16 %v1969, %v1961
          %v2570 = vpack.c.b16 %v1970, %v1962
          %v2571 = vpack.c.b16 %v1971, %v1963
          %v2572 = vpack.c.b16 %v1972, %v1964
          %v2573 = vpack.c.b16 %v1973, %v1965
          %v2574 = vpack.c.b16 %v1982, %v1974
          %v2575 = vpack.c.b16 %v1983, %v1975
          %v2576 = vpack.c.b16 %v1984, %v1976
          %v2577 = vpack.c.b16 %v1985, %v1977
          %v2578 = vpack.c.b16 %v1986, %v1978
          %v2579 = vpack.c.b16 %v1987, %v1979
          %v2580 = vpack.c.b16 %v1988, %v1980
          %v2581 = vpack.c.b16 %v1989, %v1981
          %v2582 = vpack.c.b16 %v1998, %v1990
          %v2583 = vpack.c.b16 %v1999, %v1991
          %v2584 = vpack.c.b16 %v2000, %v1992
          %v2585 = vpack.c.b16 %v2001, %v1993
          %v2586 = vpack.c.b16 %v2002, %v1994
          %v2587 = vpack.c.b16 %v2003, %v1995
          %v2588 = vpack.c.b16 %v2004, %v1996
          %v2589 = vpack.c.b16 %v2005, %v1997
          %v2590 = vpack.c.b16 %v2014, %v2006
          %v2591 = vpack.c.b16 %v2015, %v2007
          %v2592 = vpack.c.b16 %v2016, %v2008
          %v2593 = vpack.c.b16 %v2017, %v2009
          %v2594 = vpack.c.b16 %v2018, %v2010
          %v2595 = vpack.c.b16 %v2019, %v2011
          %v2596 = vpack.c.b16 %v2020, %v2012
          %v2597 = vpack.c.b16 %v2021, %v2013
          %v2598 = vpack.c.b16 %v2030, %v2022
          %v2599 = vpack.c.b16 %v2031, %v2023
          %v2600 = vpack.c.b16 %v2032, %v2024
          %v2601 = vpack.c.b16 %v2033, %v2025
          %v2602 = vpack.c.b16 %v2034, %v2026
          %v2603 = vpack.c.b16 %v2035, %v2027
          %v2604 = vpack.c.b16 %v2036, %v2028
          %v2605 = vpack.c.b16 %v2037, %v2029
          %v2606 = vpack.c.b16 %v2046, %v2038
          %v2607 = vpack.c.b16 %v2047, %v2039
          %v2608 = vpack.c.b16 %v2048, %v2040
          %v2609 = vpack.c.b16 %v2049, %v2041
          %v2610 = vpack.c.b16 %v2050, %v2042
          %v2611 = vpack.c.b16 %v2051, %v2043
          %v2612 = vpack.c.b16 %v2052, %v2044
          %v2613 = vpack.c.b16 %v2053, %v2045
          %v2614 = vpack.c.b16 %v2062, %v2054
          %v2615 = vpack.c.b16 %v2063, %v2055
          %v2616 = vpack.c.b16 %v2064, %v2056
          %v2617 = vpack.c.b16 %v2065, %v2057
          %v2618 = vpack.c.b16 %v2066, %v2058
          %v2619 = vpack.c.b16 %v2067, %v2059
          %v2620 = vpack.c.b16 %v2068, %v2060
          %v2621 = vpack.c.b16 %v2069, %v2061
          %v2622 = vpack.c.b16 %v2078, %v2070
          %v2623 = vpack.c.b16 %v2079, %v2071
          %v2624 = vpack.c.b16 %v2080, %v2072
          %v2625 = vpack.c.b16 %v2081, %v2073
          %v2626 = vpack.c.b16 %v2082, %v2074
          %v2627 = vpack.c.b16 %v2083, %v2075
          %v2628 = vpack.c.b16 %v2084, %v2076
          %v2629 = vpack.c.b16 %v2085, %v2077
          %v2630 = vpack.c.b16 %v2094, %v2086
          %v2631 = vpack.c.b16 %v2095, %v2087
          %v2632 = vpack.c.b16 %v2096, %v2088
          %v2633 = vpack.c.b16 %v2097, %v2089
          %v2634 = vpack.c.b16 %v2098, %v2090
          %v2635 = vpack.c.b16 %v2099, %v2091
          %v2636 = vpack.c.b16 %v2100, %v2092
          %v2637 = vpack.c.b16 %v2101, %v2093
          %v2638 = vpack.c.b16 %v2110, %v2102
          %v2639 = vpack.c.b16 %v2111, %v2103
          %v2640 = vpack.c.b16 %v2112, %v2104
          %v2641 = vpack.c.b16 %v2113, %v2105
          %v2642 = vpack.c.b16 %v2114, %v2106
          %v2643 = vpack.c.b16 %v2115, %v2107
          %v2644 = vpack.c.b16 %v2116, %v2108
          %v2645 = vpack.c.b16 %v2117, %v2109
          %v2646 = vpack.c.b16 %v2126, %v2118
          %v2647 = vpack.c.b16 %v2127, %v2119
          %v2648 = vpack.c.b16 %v2128, %v2120
          %v2649 = vpack.c.b16 %v2129, %v2121
          %v2650 = vpack.c.b16 %v2130, %v2122
          %v2651 = vpack.c.b16 %v2131, %v2123
          %v2652 = vpack.c.b16 %v2132, %v2124
          %v2653 = vpack.c.b16 %v2133, %v2125
          %v2654 = vpack.c.b16 %v2142, %v2134
          %v2655 = vpack.c.b16 %v2143, %v2135
          %v2656 = vpack.c.b16 %v2144, %v2136
          %v2657 = vpack.c.b16 %v2145, %v2137
          %v2658 = vpack.c.b16 %v2146, %v2138
          %v2659 = vpack.c.b16 %v2147, %v2139
          %v2660 = vpack.c.b16 %v2148, %v2140
          %v2661 = vpack.c.b16 %v2149, %v2141
          %v2662 = vpack.c.b16 %v2158, %v2150
          %v2663 = vpack.c.b16 %v2159, %v2151
          %v2664 = vpack.c.b16 %v2160, %v2152
          %v2665 = vpack.c.b16 %v2161, %v2153
          %v2666 = vpack.c.b16 %v2162, %v2154
          %v2667 = vpack.c.b16 %v2163, %v2155
          %v2668 = vpack.c.b16 %v2164, %v2156
          %v2669 = vpack.c.b16 %v2165, %v2157
          %v2670 = vpack.c.b16 %v2174, %v2166
          %v2671 = vpack.c.b16 %v2175, %v2167
          %v2672 = vpack.c.b16 %v2176, %v2168
          %v2673 = vpack.c.b16 %v2177, %v2169
          %v2674 = vpack.c.b16 %v2178, %v2170
          %v2675 = vpack.c.b16 %v2179, %v2171
          %v2676 = vpack.c.b16 %v2180, %v2172
          %v2677 = vpack.c.b16 %v2181, %v2173
          %v2678 = vpack.c.b16 %v2190, %v2182
          %v2679 = vpack.c.b16 %v2191, %v2183
          %v2680 = vpack.c.b16 %v2192, %v2184
          %v2681 = vpack.c.b16 %v2193, %v2185
          %v2682 = vpack.c.b16 %v2194, %v2186
          %v2683 = vpack.c.b16 %v2195, %v2187
          %v2684 = vpack.c.b16 %v2196, %v2188
          %v2685 = vpack.c.b16 %v2197, %v2189
          %v2686 = vpack.c.b16 %v2206, %v2198
          %v2687 = vpack.c.b16 %v2207, %v2199
          %v2688 = vpack.c.b16 %v2208, %v2200
          %v2689 = vpack.c.b16 %v2209, %v2201
          %v2690 = vpack.c.b16 %v2210, %v2202
          %v2691 = vpack.c.b16 %v2211, %v2203
          %v2692 = vpack.c.b16 %v2212, %v2204
          %v2693 = vpack.c.b16 %v2213, %v2205
          %v2694 = vpack.c.b16 %v2222, %v2214
          %v2695 = vpack.c.b16 %v2223, %v2215
          %v2696 = vpack.c.b16 %v2224, %v2216
          %v2697 = vpack.c.b16 %v2225, %v2217
          %v2698 = vpack.c.b16 %v2226, %v2218
          %v2699 = vpack.c.b16 %v2227, %v2219
          %v2700 = vpack.c.b16 %v2228, %v2220
          %v2701 = vpack.c.b16 %v2229, %v2221
          %v2702 = vpack.c.b16 %v2238, %v2230
          %v2703 = vpack.c.b16 %v2239, %v2231
          %v2704 = vpack.c.b16 %v2240, %v2232
          %v2705 = vpack.c.b16 %v2241, %v2233
          %v2706 = vpack.c.b16 %v2242, %v2234
          %v2707 = vpack.c.b16 %v2243, %v2235
          %v2708 = vpack.c.b16 %v2244, %v2236
          %v2709 = vpack.c.b16 %v2245, %v2237
          %v2710 = vpack.c.b16 %v2254, %v2246
          %v2711 = vpack.c.b16 %v2255, %v2247
          %v2712 = vpack.c.b16 %v2256, %v2248
          %v2713 = vpack.c.b16 %v2257, %v2249
          %v2714 = vpack.c.b16 %v2258, %v2250
          %v2715 = vpack.c.b16 %v2259, %v2251
          %v2716 = vpack.c.b16 %v2260, %v2252
          %v2717 = vpack.c.b16 %v2261, %v2253
          %v2718 = vpack.c.b16 %v2270, %v2262
          %v2719 = vpack.c.b16 %v2271, %v2263
          %v2720 = vpack.c.b16 %v2272, %v2264
          %v2721 = vpack.c.b16 %v2273, %v2265
          %v2722 = vpack.c.b16 %v2274, %v2266
          %v2723 = vpack.c.b16 %v2275, %v2267
          %v2724 = vpack.c.b16 %v2276, %v2268
          %v2725 = vpack.c.b16 %v2277, %v2269
          %v2726 = vpack.c.b16 %v2286, %v2278
          %v2727 = vpack.c.b16 %v2287, %v2279
          %v2728 = vpack.c.b16 %v2288, %v2280
          %v2729 = vpack.c.b16 %v2289, %v2281
          %v2730 = vpack.c.b16 %v2290, %v2282
          %v2731 = vpack.c.b16 %v2291, %v2283
          %v2732 = vpack.c.b16 %v2292, %v2284
          %v2733 = vpack.c.b16 %v2293, %v2285
          %v2734 = vpack.c.b16 %v2302, %v2294
          %v2735 = vpack.c.b16 %v2303, %v2295
          %v2736 = vpack.c.b16 %v2304, %v2296
          %v2737 = vpack.c.b16 %v2305, %v2297
          %v2738 = vpack.c.b16 %v2306, %v2298
          %v2739 = vpack.c.b16 %v2307, %v2299
          %v2740 = vpack.c.b16 %v2308, %v2300
          %v2741 = vpack.c.b16 %v2309, %v2301
          %v2742 = vpack.c.b16 %v2318, %v2310
          %v2743 = vpack.c.b16 %v2319, %v2311
          %v2744 = vpack.c.b16 %v2320, %v2312
          %v2745 = vpack.c.b16 %v2321, %v2313
          %v2746 = vpack.c.b16 %v2322, %v2314
          %v2747 = vpack.c.b16 %v2323, %v2315
          %v2748 = vpack.c.b16 %v2324, %v2316
          %v2749 = vpack.c.b16 %v2325, %v2317
          %v2750 = vpack.c.b16 %v2334, %v2326
          %v2751 = vpack.c.b16 %v2335, %v2327
          %v2752 = vpack.c.b16 %v2336, %v2328
          %v2753 = vpack.c.b16 %v2337, %v2329
          %v2754 = vpack.c.b16 %v2338, %v2330
          %v2755 = vpack.c.b16 %v2339, %v2331
          %v2756 = vpack.c.b16 %v2340, %v2332
          %v2757 = vpack.c.b16 %v2341, %v2333
          %v2758 = vpack.c.b16 %v2350, %v2342
          %v2759 = vpack.c.b16 %v2351, %v2343
          %v2760 = vpack.c.b16 %v2352, %v2344
          %v2761 = vpack.c.b16 %v2353, %v2345
          %v2762 = vpack.c.b16 %v2354, %v2346
          %v2763 = vpack.c.b16 %v2355, %v2347
          %v2764 = vpack.c.b16 %v2356, %v2348
          %v2765 = vpack.c.b16 %v2357, %v2349
          %v2766 = vpack.c.b16 %v2366, %v2358
          %v2767 = vpack.c.b16 %v2367, %v2359
          %v2768 = vpack.c.b16 %v2368, %v2360
          %v2769 = vpack.c.b16 %v2369, %v2361
          %v2770 = vpack.c.b16 %v2370, %v2362
          %v2771 = vpack.c.b16 %v2371, %v2363
          %v2772 = vpack.c.b16 %v2372, %v2364
          %v2773 = vpack.c.b16 %v2373, %v2365
          %v2774 = vpack.c.b16 %v2382, %v2374
          %v2775 = vpack.c.b16 %v2383, %v2375
          %v2776 = vpack.c.b16 %v2384, %v2376
          %v2777 = vpack.c.b16 %v2385, %v2377
          %v2778 = vpack.c.b16 %v2386, %v2378
          %v2779 = vpack.c.b16 %v2387, %v2379
          %v2780 = vpack.c.b16 %v2388, %v2380
          %v2781 = vpack.c.b16 %v2389, %v2381
          %v2782 = vpack.c.b16 %v2398, %v2390
          %v2783 = vpack.c.b16 %v2399, %v2391
          %v2784 = vpack.c.b16 %v2400, %v2392
          %v2785 = vpack.c.b16 %v2401, %v2393
          %v2786 = vpack.c.b16 %v2402, %v2394
          %v2787 = vpack.c.b16 %v2403, %v2395
          %v2788 = vpack.c.b16 %v2404, %v2396
          %v2789 = vpack.c.b16 %v2405, %v2397
          %3174 = vmatprep.subr.bf16.mxu0 %v2463
          %3175 = vmatpush1.bf16.msra.mxu0 %v2462
          %3176 = vmatprep.subr.bf16.mxu0 %v2455
          %3177 = vmatpush1.bf16.msra.mxu0 %v2454
          %3178 = vmatprep.subr.bf16.mxu0 %v2447
          %3179 = vmatpush1.bf16.msra.mxu0 %v2446
          %3180 = vmatprep.subr.bf16.mxu0 %v2439
          %3181 = vmatpush1.bf16.msra.mxu0 %v2438
          %3182 = vmatprep.subr.bf16.mxu0 %v2431
          %3183 = vmatpush1.bf16.msra.mxu0 %v2430
          %3184 = vmatprep.subr.bf16.mxu0 %v2423
          %3185 = vmatpush1.bf16.msra.mxu0 %v2422
          %3186 = vmatprep.subr.bf16.mxu0 %v2415
          %3187 = vmatpush1.bf16.msra.mxu0 %v2414
          %3188 = vmatprep.subr.bf16.mxu0 %v2407
          %3189 = vmatpush1.bf16.msra.mxu0 %v2406
          %3190 = vmatprep.subr.bf16.mxu0 %v2527
          %3191 = vmatpush2.bf16.msra.mxu0 %v2526
          %3192 = vmatprep.subr.bf16.mxu0 %v2519
          %3193 = vmatpush2.bf16.msra.mxu0 %v2518
          %3194 = vmatprep.subr.bf16.mxu0 %v2511
          %3195 = vmatpush2.bf16.msra.mxu0 %v2510
          %3196 = vmatprep.subr.bf16.mxu0 %v2503
          %3197 = vmatpush2.bf16.msra.mxu0 %v2502
          %3198 = vmatprep.subr.bf16.mxu0 %v2495
          %3199 = vmatpush2.bf16.msra.mxu0 %v2494
          %3200 = vmatprep.subr.bf16.mxu0 %v2487
          %3201 = vmatpush2.bf16.msra.mxu0 %v2486
          %3202 = vmatprep.subr.bf16.mxu0 %v2479
          %3203 = vmatpush2.bf16.msra.mxu0 %v2478
          %3204 = vmatprep.subr.bf16.mxu0 %v2471
          %3205 = vmatpush2.bf16.msra.mxu0 %v2470
          %3206 = vmatprep.mubr.bf16.mxu0 %v823
          %3207 = vmatmul.mubr.bf16.gmra.mxu0 %v822
          %v3208 = vpop.f32.mrf.mxu0
          %v3209 = vadd.f32 %v1217, %v3208
          %v3210 = vpop.f32.mrf.mxu0
          %v3211 = vadd.f32 %v1221, %v3210
          %v3212 = vpop.f32.mrf.mxu0
          %v3213 = vpop.f32.mrf.mxu0
          %3214 = vdwg.mxu0
          %3215 = vmatprep.subr.bf16.mxu0 %v2591
          %3216 = vmatpush1.bf16.msra.mxu0 %v2590
          %3217 = vmatprep.subr.bf16.mxu0 %v2583
          %3218 = vmatpush1.bf16.msra.mxu0 %v2582
          %3219 = vmatprep.subr.bf16.mxu0 %v2575
          %3220 = vmatpush1.bf16.msra.mxu0 %v2574
          %3221 = vmatprep.subr.bf16.mxu0 %v2567
          %3222 = vmatpush1.bf16.msra.mxu0 %v2566
          %3223 = vmatprep.subr.bf16.mxu0 %v2559
          %3224 = vmatpush1.bf16.msra.mxu0 %v2558
          %3225 = vmatprep.subr.bf16.mxu0 %v2551
          %3226 = vmatpush1.bf16.msra.mxu0 %v2550
          %3227 = vmatprep.subr.bf16.mxu0 %v2543
          %3228 = vmatpush1.bf16.msra.mxu0 %v2542
          %3229 = vmatprep.subr.bf16.mxu0 %v2535
          %3230 = vmatpush1.bf16.msra.mxu0 %v2534
          %3231 = vmatprep.subr.bf16.mxu0 %v2655
          %3232 = vmatpush2.bf16.msra.mxu0 %v2654
          %3233 = vmatprep.subr.bf16.mxu0 %v2647
          %3234 = vmatpush2.bf16.msra.mxu0 %v2646
          %3235 = vmatprep.subr.bf16.mxu0 %v2639
          %3236 = vmatpush2.bf16.msra.mxu0 %v2638
          %3237 = vmatprep.subr.bf16.mxu0 %v2631
          %3238 = vmatpush2.bf16.msra.mxu0 %v2630
          %3239 = vmatprep.subr.bf16.mxu0 %v2623
          %3240 = vmatpush2.bf16.msra.mxu0 %v2622
          %3241 = vmatprep.subr.bf16.mxu0 %v2615
          %3242 = vmatpush2.bf16.msra.mxu0 %v2614
          %3243 = vmatprep.subr.bf16.mxu0 %v2607
          %3244 = vmatpush2.bf16.msra.mxu0 %v2606
          %3245 = vmatprep.subr.bf16.mxu0 %v2599
          %3246 = vmatpush2.bf16.msra.mxu0 %v2598
          %3247 = vmatprep.mubr.bf16.mxu0 %v825
          %3248 = vmatmul.mubr.bf16.gmra.mxu0 %v824
          %v3249 = vpop.f32.mrf.mxu0
          %v3250 = vadd.f32 %v3209, %v3249
          %v3251 = vpop.f32.mrf.mxu0
          %v3252 = vadd.f32 %v3211, %v3251
          %v3253 = vpop.f32.mrf.mxu0
          %v3254 = vpop.f32.mrf.mxu0
          %3255 = vdwg.mxu0
          %3256 = vmatprep.subr.bf16.mxu0 %v2719
          %3257 = vmatpush1.bf16.msra.mxu0 %v2718
          %3258 = vmatprep.subr.bf16.mxu0 %v2711
          %3259 = vmatpush1.bf16.msra.mxu0 %v2710
          %3260 = vmatprep.subr.bf16.mxu0 %v2703
          %3261 = vmatpush1.bf16.msra.mxu0 %v2702
          %3262 = vmatprep.subr.bf16.mxu0 %v2695
          %3263 = vmatpush1.bf16.msra.mxu0 %v2694
          %3264 = vmatprep.subr.bf16.mxu0 %v2687
          %3265 = vmatpush1.bf16.msra.mxu0 %v2686
          %3266 = vmatprep.subr.bf16.mxu0 %v2679
          %3267 = vmatpush1.bf16.msra.mxu0 %v2678
          %3268 = vmatprep.subr.bf16.mxu0 %v2671
          %3269 = vmatpush1.bf16.msra.mxu0 %v2670
          %3270 = vmatprep.subr.bf16.mxu0 %v2663
          %3271 = vmatpush1.bf16.msra.mxu0 %v2662
          %3272 = vmatprep.subr.bf16.mxu0 %v2783
          %3273 = vmatpush2.bf16.msra.mxu0 %v2782
          %3274 = vmatprep.subr.bf16.mxu0 %v2775
          %3275 = vmatpush2.bf16.msra.mxu0 %v2774
          %3276 = vmatprep.subr.bf16.mxu0 %v2767
          %3277 = vmatpush2.bf16.msra.mxu0 %v2766
          %3278 = vmatprep.subr.bf16.mxu0 %v2759
          %3279 = vmatpush2.bf16.msra.mxu0 %v2758
          %3280 = vmatprep.subr.bf16.mxu0 %v2751
          %3281 = vmatpush2.bf16.msra.mxu0 %v2750
          %3282 = vmatprep.subr.bf16.mxu0 %v2743
          %3283 = vmatpush2.bf16.msra.mxu0 %v2742
          %3284 = vmatprep.subr.bf16.mxu0 %v2735
          %3285 = vmatpush2.bf16.msra.mxu0 %v2734
          %3286 = vmatprep.subr.bf16.mxu0 %v2727
          %3287 = vmatpush2.bf16.msra.mxu0 %v2726
          %3288 = vmatprep.mubr.bf16.mxu0 %v827
          %3289 = vmatmul.mubr.bf16.gmra.mxu0 %v826
          %v3290 = vpop.f32.mrf.mxu0
          %v3291 = vadd.f32 %v3250, %v3290
          %v3292 = vpop.f32.mrf.mxu0
          %v3293 = vadd.f32 %v3252, %v3292
          %v3294 = vpop.f32.mrf.mxu0
          %v3295 = vpop.f32.mrf.mxu0
          %3296 = vdwg.mxu0
          %3297 = vmatprep.subr.bf16.mxu0 %v2465
          %3298 = vmatpush1.bf16.msra.mxu0 %v2464
          %3299 = vmatprep.subr.bf16.mxu0 %v2457
          %3300 = vmatpush1.bf16.msra.mxu0 %v2456
          %3301 = vmatprep.subr.bf16.mxu0 %v2449
          %3302 = vmatpush1.bf16.msra.mxu0 %v2448
          %3303 = vmatprep.subr.bf16.mxu0 %v2441
          %3304 = vmatpush1.bf16.msra.mxu0 %v2440
          %3305 = vmatprep.subr.bf16.mxu0 %v2433
          %3306 = vmatpush1.bf16.msra.mxu0 %v2432
          %3307 = vmatprep.subr.bf16.mxu0 %v2425
          %3308 = vmatpush1.bf16.msra.mxu0 %v2424
          %3309 = vmatprep.subr.bf16.mxu0 %v2417
          %3310 = vmatpush1.bf16.msra.mxu0 %v2416
          %3311 = vmatprep.subr.bf16.mxu0 %v2409
          %3312 = vmatpush1.bf16.msra.mxu0 %v2408
          %3313 = vmatprep.subr.bf16.mxu0 %v2529
          %3314 = vmatpush2.bf16.msra.mxu0 %v2528
          %3315 = vmatprep.subr.bf16.mxu0 %v2521
          %3316 = vmatpush2.bf16.msra.mxu0 %v2520
          %3317 = vmatprep.subr.bf16.mxu0 %v2513
          %3318 = vmatpush2.bf16.msra.mxu0 %v2512
          %3319 = vmatprep.subr.bf16.mxu0 %v2505
          %3320 = vmatpush2.bf16.msra.mxu0 %v2504
          %3321 = vmatprep.subr.bf16.mxu0 %v2497
          %3322 = vmatpush2.bf16.msra.mxu0 %v2496
          %3323 = vmatprep.subr.bf16.mxu0 %v2489
          %3324 = vmatpush2.bf16.msra.mxu0 %v2488
          %3325 = vmatprep.subr.bf16.mxu0 %v2481
          %3326 = vmatpush2.bf16.msra.mxu0 %v2480
          %3327 = vmatprep.subr.bf16.mxu0 %v2473
          %3328 = vmatpush2.bf16.msra.mxu0 %v2472
          %3329 = vmatprep.mubr.bf16.mxu0 %v823
          %3330 = vmatmul.mubr.bf16.gmra.mxu0 %v822
          %v3331 = vpop.f32.mrf.mxu0
          %v3332 = vadd.f32 %v1225, %v3331
          %v3333 = vpop.f32.mrf.mxu0
          %v3334 = vadd.f32 %v1229, %v3333
          %v3335 = vpop.f32.mrf.mxu0
          %v3336 = vpop.f32.mrf.mxu0
          %3337 = vdwg.mxu0
          %3338 = vmatprep.subr.bf16.mxu0 %v2593
          %3339 = vmatpush1.bf16.msra.mxu0 %v2592
          %3340 = vmatprep.subr.bf16.mxu0 %v2585
          %3341 = vmatpush1.bf16.msra.mxu0 %v2584
          %3342 = vmatprep.subr.bf16.mxu0 %v2577
          %3343 = vmatpush1.bf16.msra.mxu0 %v2576
          %3344 = vmatprep.subr.bf16.mxu0 %v2569
          %3345 = vmatpush1.bf16.msra.mxu0 %v2568
          %3346 = vmatprep.subr.bf16.mxu0 %v2561
          %3347 = vmatpush1.bf16.msra.mxu0 %v2560
          %3348 = vmatprep.subr.bf16.mxu0 %v2553
          %3349 = vmatpush1.bf16.msra.mxu0 %v2552
          %3350 = vmatprep.subr.bf16.mxu0 %v2545
          %3351 = vmatpush1.bf16.msra.mxu0 %v2544
          %3352 = vmatprep.subr.bf16.mxu0 %v2537
          %3353 = vmatpush1.bf16.msra.mxu0 %v2536
          %3354 = vmatprep.subr.bf16.mxu0 %v2657
          %3355 = vmatpush2.bf16.msra.mxu0 %v2656
          %3356 = vmatprep.subr.bf16.mxu0 %v2649
          %3357 = vmatpush2.bf16.msra.mxu0 %v2648
          %3358 = vmatprep.subr.bf16.mxu0 %v2641
          %3359 = vmatpush2.bf16.msra.mxu0 %v2640
          %3360 = vmatprep.subr.bf16.mxu0 %v2633
          %3361 = vmatpush2.bf16.msra.mxu0 %v2632
          %3362 = vmatprep.subr.bf16.mxu0 %v2625
          %3363 = vmatpush2.bf16.msra.mxu0 %v2624
          %3364 = vmatprep.subr.bf16.mxu0 %v2617
          %3365 = vmatpush2.bf16.msra.mxu0 %v2616
          %3366 = vmatprep.subr.bf16.mxu0 %v2609
          %3367 = vmatpush2.bf16.msra.mxu0 %v2608
          %3368 = vmatprep.subr.bf16.mxu0 %v2601
          %3369 = vmatpush2.bf16.msra.mxu0 %v2600
          %3370 = vmatprep.mubr.bf16.mxu0 %v825
          %3371 = vmatmul.mubr.bf16.gmra.mxu0 %v824
          %v3372 = vpop.f32.mrf.mxu0
          %v3373 = vadd.f32 %v3332, %v3372
          %v3374 = vpop.f32.mrf.mxu0
          %v3375 = vadd.f32 %v3334, %v3374
          %v3376 = vpop.f32.mrf.mxu0
          %v3377 = vpop.f32.mrf.mxu0
          %3378 = vdwg.mxu0
          %3379 = vmatprep.subr.bf16.mxu0 %v2721
          %3380 = vmatpush1.bf16.msra.mxu0 %v2720
          %3381 = vmatprep.subr.bf16.mxu0 %v2713
          %3382 = vmatpush1.bf16.msra.mxu0 %v2712
          %3383 = vmatprep.subr.bf16.mxu0 %v2705
          %3384 = vmatpush1.bf16.msra.mxu0 %v2704
          %3385 = vmatprep.subr.bf16.mxu0 %v2697
          %3386 = vmatpush1.bf16.msra.mxu0 %v2696
          %3387 = vmatprep.subr.bf16.mxu0 %v2689
          %3388 = vmatpush1.bf16.msra.mxu0 %v2688
          %3389 = vmatprep.subr.bf16.mxu0 %v2681
          %3390 = vmatpush1.bf16.msra.mxu0 %v2680
          %3391 = vmatprep.subr.bf16.mxu0 %v2673
          %3392 = vmatpush1.bf16.msra.mxu0 %v2672
          %3393 = vmatprep.subr.bf16.mxu0 %v2665
          %3394 = vmatpush1.bf16.msra.mxu0 %v2664
          %3395 = vmatprep.subr.bf16.mxu0 %v2785
          %3396 = vmatpush2.bf16.msra.mxu0 %v2784
          %3397 = vmatprep.subr.bf16.mxu0 %v2777
          %3398 = vmatpush2.bf16.msra.mxu0 %v2776
          %3399 = vmatprep.subr.bf16.mxu0 %v2769
          %3400 = vmatpush2.bf16.msra.mxu0 %v2768
          %3401 = vmatprep.subr.bf16.mxu0 %v2761
          %3402 = vmatpush2.bf16.msra.mxu0 %v2760
          %3403 = vmatprep.subr.bf16.mxu0 %v2753
          %3404 = vmatpush2.bf16.msra.mxu0 %v2752
          %3405 = vmatprep.subr.bf16.mxu0 %v2745
          %3406 = vmatpush2.bf16.msra.mxu0 %v2744
          %3407 = vmatprep.subr.bf16.mxu0 %v2737
          %3408 = vmatpush2.bf16.msra.mxu0 %v2736
          %3409 = vmatprep.subr.bf16.mxu0 %v2729
          %3410 = vmatpush2.bf16.msra.mxu0 %v2728
          %3411 = vmatprep.mubr.bf16.mxu0 %v827
          %3412 = vmatmul.mubr.bf16.gmra.mxu0 %v826
          %v3413 = vpop.f32.mrf.mxu0
          %v3414 = vadd.f32 %v3373, %v3413
          %v3415 = vpop.f32.mrf.mxu0
          %v3416 = vadd.f32 %v3375, %v3415
          %v3417 = vpop.f32.mrf.mxu0
          %v3418 = vpop.f32.mrf.mxu0
          %3419 = vdwg.mxu0
          %3420 = vmatprep.subr.bf16.mxu0 %v2467
          %3421 = vmatpush1.bf16.msra.mxu0 %v2466
          %3422 = vmatprep.subr.bf16.mxu0 %v2459
          %3423 = vmatpush1.bf16.msra.mxu0 %v2458
          %3424 = vmatprep.subr.bf16.mxu0 %v2451
          %3425 = vmatpush1.bf16.msra.mxu0 %v2450
          %3426 = vmatprep.subr.bf16.mxu0 %v2443
          %3427 = vmatpush1.bf16.msra.mxu0 %v2442
          %3428 = vmatprep.subr.bf16.mxu0 %v2435
          %3429 = vmatpush1.bf16.msra.mxu0 %v2434
          %3430 = vmatprep.subr.bf16.mxu0 %v2427
          %3431 = vmatpush1.bf16.msra.mxu0 %v2426
          %3432 = vmatprep.subr.bf16.mxu0 %v2419
          %3433 = vmatpush1.bf16.msra.mxu0 %v2418
          %3434 = vmatprep.subr.bf16.mxu0 %v2411
          %3435 = vmatpush1.bf16.msra.mxu0 %v2410
          %3436 = vmatprep.subr.bf16.mxu0 %v2531
          %3437 = vmatpush2.bf16.msra.mxu0 %v2530
          %3438 = vmatprep.subr.bf16.mxu0 %v2523
          %3439 = vmatpush2.bf16.msra.mxu0 %v2522
          %3440 = vmatprep.subr.bf16.mxu0 %v2515
          %3441 = vmatpush2.bf16.msra.mxu0 %v2514
          %3442 = vmatprep.subr.bf16.mxu0 %v2507
          %3443 = vmatpush2.bf16.msra.mxu0 %v2506
          %3444 = vmatprep.subr.bf16.mxu0 %v2499
          %3445 = vmatpush2.bf16.msra.mxu0 %v2498
          %3446 = vmatprep.subr.bf16.mxu0 %v2491
          %3447 = vmatpush2.bf16.msra.mxu0 %v2490
          %3448 = vmatprep.subr.bf16.mxu0 %v2483
          %3449 = vmatpush2.bf16.msra.mxu0 %v2482
          %3450 = vmatprep.subr.bf16.mxu0 %v2475
          %3451 = vmatpush2.bf16.msra.mxu0 %v2474
          %3452 = vmatprep.mubr.bf16.mxu0 %v823
          %3453 = vmatmul.mubr.bf16.gmra.mxu0 %v822
          %v3454 = vpop.f32.mrf.mxu0
          %v3455 = vadd.f32 %v1233, %v3454
          %v3456 = vpop.f32.mrf.mxu0
          %v3457 = vadd.f32 %v1237, %v3456
          %v3458 = vpop.f32.mrf.mxu0
          %v3459 = vpop.f32.mrf.mxu0
          %3460 = vdwg.mxu0
          %3461 = vmatprep.subr.bf16.mxu0 %v2595
          %3462 = vmatpush1.bf16.msra.mxu0 %v2594
          %3463 = vmatprep.subr.bf16.mxu0 %v2587
          %3464 = vmatpush1.bf16.msra.mxu0 %v2586
          %3465 = vmatprep.subr.bf16.mxu0 %v2579
          %3466 = vmatpush1.bf16.msra.mxu0 %v2578
          %3467 = vmatprep.subr.bf16.mxu0 %v2571
          %3468 = vmatpush1.bf16.msra.mxu0 %v2570
          %3469 = vmatprep.subr.bf16.mxu0 %v2563
          %3470 = vmatpush1.bf16.msra.mxu0 %v2562
          %3471 = vmatprep.subr.bf16.mxu0 %v2555
          %3472 = vmatpush1.bf16.msra.mxu0 %v2554
          %3473 = vmatprep.subr.bf16.mxu0 %v2547
          %3474 = vmatpush1.bf16.msra.mxu0 %v2546
          %3475 = vmatprep.subr.bf16.mxu0 %v2539
          %3476 = vmatpush1.bf16.msra.mxu0 %v2538
          %3477 = vmatprep.subr.bf16.mxu0 %v2659
          %3478 = vmatpush2.bf16.msra.mxu0 %v2658
          %3479 = vmatprep.subr.bf16.mxu0 %v2651
          %3480 = vmatpush2.bf16.msra.mxu0 %v2650
          %3481 = vmatprep.subr.bf16.mxu0 %v2643
          %3482 = vmatpush2.bf16.msra.mxu0 %v2642
          %3483 = vmatprep.subr.bf16.mxu0 %v2635
          %3484 = vmatpush2.bf16.msra.mxu0 %v2634
          %3485 = vmatprep.subr.bf16.mxu0 %v2627
          %3486 = vmatpush2.bf16.msra.mxu0 %v2626
          %3487 = vmatprep.subr.bf16.mxu0 %v2619
          %3488 = vmatpush2.bf16.msra.mxu0 %v2618
          %3489 = vmatprep.subr.bf16.mxu0 %v2611
          %3490 = vmatpush2.bf16.msra.mxu0 %v2610
          %3491 = vmatprep.subr.bf16.mxu0 %v2603
          %3492 = vmatpush2.bf16.msra.mxu0 %v2602
          %3493 = vmatprep.mubr.bf16.mxu0 %v825
          %3494 = vmatmul.mubr.bf16.gmra.mxu0 %v824
          %v3495 = vpop.f32.mrf.mxu0
          %v3496 = vadd.f32 %v3455, %v3495
          %v3497 = vpop.f32.mrf.mxu0
          %v3498 = vadd.f32 %v3457, %v3497
          %v3499 = vpop.f32.mrf.mxu0
          %v3500 = vpop.f32.mrf.mxu0
          %3501 = vdwg.mxu0
          %3502 = vmatprep.subr.bf16.mxu0 %v2723
          %3503 = vmatpush1.bf16.msra.mxu0 %v2722
          %3504 = vmatprep.subr.bf16.mxu0 %v2715
          %3505 = vmatpush1.bf16.msra.mxu0 %v2714
          %3506 = vmatprep.subr.bf16.mxu0 %v2707
          %3507 = vmatpush1.bf16.msra.mxu0 %v2706
          %3508 = vmatprep.subr.bf16.mxu0 %v2699
          %3509 = vmatpush1.bf16.msra.mxu0 %v2698
          %3510 = vmatprep.subr.bf16.mxu0 %v2691
          %3511 = vmatpush1.bf16.msra.mxu0 %v2690
          %3512 = vmatprep.subr.bf16.mxu0 %v2683
          %3513 = vmatpush1.bf16.msra.mxu0 %v2682
          %3514 = vmatprep.subr.bf16.mxu0 %v2675
          %3515 = vmatpush1.bf16.msra.mxu0 %v2674
          %3516 = vmatprep.subr.bf16.mxu0 %v2667
          %3517 = vmatpush1.bf16.msra.mxu0 %v2666
          %3518 = vmatprep.subr.bf16.mxu0 %v2787
          %3519 = vmatpush2.bf16.msra.mxu0 %v2786
          %3520 = vmatprep.subr.bf16.mxu0 %v2779
          %3521 = vmatpush2.bf16.msra.mxu0 %v2778
          %3522 = vmatprep.subr.bf16.mxu0 %v2771
          %3523 = vmatpush2.bf16.msra.mxu0 %v2770
          %3524 = vmatprep.subr.bf16.mxu0 %v2763
          %3525 = vmatpush2.bf16.msra.mxu0 %v2762
          %3526 = vmatprep.subr.bf16.mxu0 %v2755
          %3527 = vmatpush2.bf16.msra.mxu0 %v2754
          %3528 = vmatprep.subr.bf16.mxu0 %v2747
          %3529 = vmatpush2.bf16.msra.mxu0 %v2746
          %3530 = vmatprep.subr.bf16.mxu0 %v2739
          %3531 = vmatpush2.bf16.msra.mxu0 %v2738
          %3532 = vmatprep.subr.bf16.mxu0 %v2731
          %3533 = vmatpush2.bf16.msra.mxu0 %v2730
          %3534 = vmatprep.mubr.bf16.mxu0 %v827
          %3535 = vmatmul.mubr.bf16.gmra.mxu0 %v826
          %v3536 = vpop.f32.mrf.mxu0
          %v3537 = vadd.f32 %v3496, %v3536
          %v3538 = vpop.f32.mrf.mxu0
          %v3539 = vadd.f32 %v3498, %v3538
          %v3540 = vpop.f32.mrf.mxu0
          %v3541 = vpop.f32.mrf.mxu0
          %3542 = vdwg.mxu0
          %3543 = vmatprep.subr.bf16.mxu0 %v2469
          %3544 = vmatpush1.bf16.msra.mxu0 %v2468
          %3545 = vmatprep.subr.bf16.mxu0 %v2461
          %3546 = vmatpush1.bf16.msra.mxu0 %v2460
          %3547 = vmatprep.subr.bf16.mxu0 %v2453
          %3548 = vmatpush1.bf16.msra.mxu0 %v2452
          %3549 = vmatprep.subr.bf16.mxu0 %v2445
          %3550 = vmatpush1.bf16.msra.mxu0 %v2444
          %3551 = vmatprep.subr.bf16.mxu0 %v2437
          %3552 = vmatpush1.bf16.msra.mxu0 %v2436
          %3553 = vmatprep.subr.bf16.mxu0 %v2429
          %3554 = vmatpush1.bf16.msra.mxu0 %v2428
          %3555 = vmatprep.subr.bf16.mxu0 %v2421
          %3556 = vmatpush1.bf16.msra.mxu0 %v2420
          %3557 = vmatprep.subr.bf16.mxu0 %v2413
          %3558 = vmatpush1.bf16.msra.mxu0 %v2412
          %3559 = vmatprep.subr.bf16.mxu0 %v2533
          %3560 = vmatpush2.bf16.msra.mxu0 %v2532
          %3561 = vmatprep.subr.bf16.mxu0 %v2525
          %3562 = vmatpush2.bf16.msra.mxu0 %v2524
          %3563 = vmatprep.subr.bf16.mxu0 %v2517
          %3564 = vmatpush2.bf16.msra.mxu0 %v2516
          %3565 = vmatprep.subr.bf16.mxu0 %v2509
          %3566 = vmatpush2.bf16.msra.mxu0 %v2508
          %3567 = vmatprep.subr.bf16.mxu0 %v2501
          %3568 = vmatpush2.bf16.msra.mxu0 %v2500
          %3569 = vmatprep.subr.bf16.mxu0 %v2493
          %3570 = vmatpush2.bf16.msra.mxu0 %v2492
          %3571 = vmatprep.subr.bf16.mxu0 %v2485
          %3572 = vmatpush2.bf16.msra.mxu0 %v2484
          %3573 = vmatprep.subr.bf16.mxu0 %v2477
          %3574 = vmatpush2.bf16.msra.mxu0 %v2476
          %3575 = vmatprep.mubr.bf16.mxu0 %v823
          %3576 = vmatmul.mubr.bf16.gmra.mxu0 %v822
          %v3577 = vpop.f32.mrf.mxu0
          %v3578 = vadd.f32 %v1241, %v3577
          %v3579 = vpop.f32.mrf.mxu0
          %v3580 = vadd.f32 %v1245, %v3579
          %v3581 = vpop.f32.mrf.mxu0
          %v3582 = vpop.f32.mrf.mxu0
          %3583 = vdwg.mxu0
          %3584 = vmatprep.subr.bf16.mxu0 %v2597
          %3585 = vmatpush1.bf16.msra.mxu0 %v2596
          %3586 = vmatprep.subr.bf16.mxu0 %v2589
          %3587 = vmatpush1.bf16.msra.mxu0 %v2588
          %3588 = vmatprep.subr.bf16.mxu0 %v2581
          %3589 = vmatpush1.bf16.msra.mxu0 %v2580
          %3590 = vmatprep.subr.bf16.mxu0 %v2573
          %3591 = vmatpush1.bf16.msra.mxu0 %v2572
          %3592 = vmatprep.subr.bf16.mxu0 %v2565
          %3593 = vmatpush1.bf16.msra.mxu0 %v2564
          %3594 = vmatprep.subr.bf16.mxu0 %v2557
          %3595 = vmatpush1.bf16.msra.mxu0 %v2556
          %3596 = vmatprep.subr.bf16.mxu0 %v2549
          %3597 = vmatpush1.bf16.msra.mxu0 %v2548
          %3598 = vmatprep.subr.bf16.mxu0 %v2541
          %3599 = vmatpush1.bf16.msra.mxu0 %v2540
          %3600 = vmatprep.subr.bf16.mxu0 %v2661
          %3601 = vmatpush2.bf16.msra.mxu0 %v2660
          %3602 = vmatprep.subr.bf16.mxu0 %v2653
          %3603 = vmatpush2.bf16.msra.mxu0 %v2652
          %3604 = vmatprep.subr.bf16.mxu0 %v2645
          %3605 = vmatpush2.bf16.msra.mxu0 %v2644
          %3606 = vmatprep.subr.bf16.mxu0 %v2637
          %3607 = vmatpush2.bf16.msra.mxu0 %v2636
          %3608 = vmatprep.subr.bf16.mxu0 %v2629
          %3609 = vmatpush2.bf16.msra.mxu0 %v2628
          %3610 = vmatprep.subr.bf16.mxu0 %v2621
          %3611 = vmatpush2.bf16.msra.mxu0 %v2620
          %3612 = vmatprep.subr.bf16.mxu0 %v2613
          %3613 = vmatpush2.bf16.msra.mxu0 %v2612
          %3614 = vmatprep.subr.bf16.mxu0 %v2605
          %3615 = vmatpush2.bf16.msra.mxu0 %v2604
          %3616 = vmatprep.mubr.bf16.mxu0 %v825
          %3617 = vmatmul.mubr.bf16.gmra.mxu0 %v824
          %v3618 = vpop.f32.mrf.mxu0
          %v3619 = vadd.f32 %v3578, %v3618
          %v3620 = vpop.f32.mrf.mxu0
          %v3621 = vadd.f32 %v3580, %v3620
          %v3622 = vpop.f32.mrf.mxu0
          %v3623 = vpop.f32.mrf.mxu0
          %3624 = vdwg.mxu0
          %3625 = vmatprep.subr.bf16.mxu0 %v2725
          %3626 = vmatpush1.bf16.msra.mxu0 %v2724
          %3627 = vmatprep.subr.bf16.mxu0 %v2717
          %3628 = vmatpush1.bf16.msra.mxu0 %v2716
          %3629 = vmatprep.subr.bf16.mxu0 %v2709
          %3630 = vmatpush1.bf16.msra.mxu0 %v2708
          %3631 = vmatprep.subr.bf16.mxu0 %v2701
          %3632 = vmatpush1.bf16.msra.mxu0 %v2700
          %3633 = vmatprep.subr.bf16.mxu0 %v2693
          %3634 = vmatpush1.bf16.msra.mxu0 %v2692
          %3635 = vmatprep.subr.bf16.mxu0 %v2685
          %3636 = vmatpush1.bf16.msra.mxu0 %v2684
          %3637 = vmatprep.subr.bf16.mxu0 %v2677
          %3638 = vmatpush1.bf16.msra.mxu0 %v2676
          %3639 = vmatprep.subr.bf16.mxu0 %v2669
          %3640 = vmatpush1.bf16.msra.mxu0 %v2668
          %3641 = vmatprep.subr.bf16.mxu0 %v2789
          %3642 = vmatpush2.bf16.msra.mxu0 %v2788
          %3643 = vmatprep.subr.bf16.mxu0 %v2781
          %3644 = vmatpush2.bf16.msra.mxu0 %v2780
          %3645 = vmatprep.subr.bf16.mxu0 %v2773
          %3646 = vmatpush2.bf16.msra.mxu0 %v2772
          %3647 = vmatprep.subr.bf16.mxu0 %v2765
          %3648 = vmatpush2.bf16.msra.mxu0 %v2764
          %3649 = vmatprep.subr.bf16.mxu0 %v2757
          %3650 = vmatpush2.bf16.msra.mxu0 %v2756
          %3651 = vmatprep.subr.bf16.mxu0 %v2749
          %3652 = vmatpush2.bf16.msra.mxu0 %v2748
          %3653 = vmatprep.subr.bf16.mxu0 %v2741
          %3654 = vmatpush2.bf16.msra.mxu0 %v2740
          %3655 = vmatprep.subr.bf16.mxu0 %v2733
          %3656 = vmatpush2.bf16.msra.mxu0 %v2732
          %3657 = vmatprep.mubr.bf16.mxu0 %v827
          %3658 = vmatmul.mubr.bf16.gmra.mxu0 %v826
          %v3659 = vpop.f32.mrf.mxu0
          %v3660 = vadd.f32 %v3619, %v3659
          %v3661 = vpop.f32.mrf.mxu0
          %v3662 = vadd.f32 %v3621, %v3661
          %v3663 = vpop.f32.mrf.mxu0
          %v3664 = vpop.f32.mrf.mxu0
          %3665 = vdwg.mxu0
          %v3674 = vcombine.low %v3291, %v3293
          %v3675 = vcombine.low %v3414, %v3416
          %v3677 = vunpack.c.l.s4 1983009808
          %v3678 = vunpack.c.0.s8 %v3677
          %v3679 = vlaneseq
          %v3680 = vshrl.u32 %v3679, 7
          %v3681 = vsub.s32 %v3678, %v3680
          %v3682 = vrot.slane %v3674, %v3681
          %v3684 = vunpack.c.l.s4 1983009808
          %v3685 = vunpack.c.0.s8 %v3684
          %v3686 = vlaneseq
          %v3687 = vshrl.u32 %v3686, 7
          %v3688 = vsub.s32 %v3685, %v3687
          %v3689 = vrot.slane %v3675, %v3688
          %v3690 = vcombine.low %v3682, %v3689
          %v3691 = vcombine.low %v3537, %v3539
          %v3692 = vcombine.low %v3660, %v3662
          %v3694 = vunpack.c.l.s4 1983009808
          %v3695 = vunpack.c.0.s8 %v3694
          %v3696 = vlaneseq
          %v3697 = vshrl.u32 %v3696, 7
          %v3698 = vsub.s32 %v3695, %v3697
          %v3699 = vrot.slane %v3691, %v3698
          %v3701 = vunpack.c.l.s4 1983009808
          %v3702 = vunpack.c.0.s8 %v3701
          %v3703 = vlaneseq
          %v3704 = vshrl.u32 %v3703, 7
          %v3705 = vsub.s32 %v3702, %v3704
          %v3706 = vrot.slane %v3692, %v3705
          %v3707 = vcombine.low %v3699, %v3706
          %3710 = vst [vmem:[#allocation2] sm:$0xff] %v3690
          %3711 = vst [vmem:[#allocation2 + $0x8] sm:$0xff] %v3707
        $region144: #{tpu_custom_call.1} parent=83 // pred_fallthru
          _
        %v3712 = vld [vmem:[#allocation3] sm:$0xff]
        %v3713 = vld [vmem:[#allocation3 + $0x8] sm:$0xf]
        %v3714 = vxor.u32 %v3712, 2147483648
        %v3715 = vxor.u32 %v3713, 2147483648
        %v3716 = vmul.f32 %v3714, 1.442695
        %v3717 = vpow.pop %v3716
        %v3718 = vmul.f32 %v3715, 1.442695
        %v3719 = vpow.pop %v3718
        %v3720 = vadd.f32 %v3717, 1.0
        %v3721 = vadd.f32 %v3719, 1.0
        %v3722 = vrcp.pop %v3720
        %v3723 = vmul.f32 1.0, %v3722
        %v3724 = vrcp.pop %v3721
        %v3725 = vmul.f32 1.0, %v3724
        %v3726 = vld [vmem:[#allocation8] sm:$0xf]
        %v3729 = vunpack.c.l.s4 1983009808
        %v3730 = vunpack.c.0.s8 %v3729
        %v3731 = vlaneseq
        %v3732 = vshrl.u32 %v3731, 7
        %v3733 = vsub.s32 %v3730, %v3732
        %v3734 = vrot.slane %v3726, %v3733
        %v3735 = vcombine.high %v3734, %v3734
        %v3738 = vpack.c.bf16 %v3734, %v3734
        %v3739 = vpack.c.bf16 %v3735, %v3735
        %v3740 = vld [vmem:[#allocation19] sm:$0xff]
        %v3741 = vld [vmem:[#allocation19 + $0x8] sm:$0xff]
        %v3742 = vld [vmem:[#allocation19 + $0x10] sm:$0xff]
        %v3743 = vld [vmem:[#allocation19 + $0x18] sm:$0xff]
        %v3744 = vld [vmem:[#allocation19 + $0x20] sm:$0xff]
        %v3745 = vld [vmem:[#allocation19 + $0x28] sm:$0xff]
        %v3746 = vld [vmem:[#allocation19 + $0x30] sm:$0xff]
        %v3747 = vld [vmem:[#allocation19 + $0x38] sm:$0xff]
        %v3748 = vld [vmem:[#allocation19 + $0x40] sm:$0xff]
        %v3749 = vld [vmem:[#allocation19 + $0x48] sm:$0xff]
        %v3750 = vld [vmem:[#allocation19 + $0x50] sm:$0xff]
        %v3751 = vld [vmem:[#allocation19 + $0x58] sm:$0xff]
        %v3752 = vld [vmem:[#allocation19 + $0x60] sm:$0xff]
        %v3753 = vld [vmem:[#allocation19 + $0x68] sm:$0xff]
        %v3754 = vld [vmem:[#allocation19 + $0x70] sm:$0xff]
        %v3755 = vld [vmem:[#allocation19 + $0x78] sm:$0xff]
        %v3756 = vld [vmem:[#allocation19 + $0x80] sm:$0xff]
        %v3757 = vld [vmem:[#allocation19 + $0x88] sm:$0xff]
        %v3758 = vld [vmem:[#allocation19 + $0x90] sm:$0xff]
        %v3759 = vld [vmem:[#allocation19 + $0x98] sm:$0xff]
        %v3760 = vld [vmem:[#allocation19 + $0xa0] sm:$0xff]
        %v3761 = vld [vmem:[#allocation19 + $0xa8] sm:$0xff]
        %v3762 = vld [vmem:[#allocation19 + $0xb0] sm:$0xff]
        %v3763 = vld [vmem:[#allocation19 + $0xb8] sm:$0xff]
        %v3764 = vld [vmem:[#allocation19 + $0xc0] sm:$0xff]
        %v3765 = vld [vmem:[#allocation19 + $0xc8] sm:$0xff]
        %v3766 = vld [vmem:[#allocation19 + $0xd0] sm:$0xff]
        %v3767 = vld [vmem:[#allocation19 + $0xd8] sm:$0xff]
        %v3768 = vld [vmem:[#allocation19 + $0xe0] sm:$0xff]
        %v3769 = vld [vmem:[#allocation19 + $0xe8] sm:$0xff]
        %v3770 = vld [vmem:[#allocation19 + $0xf0] sm:$0xff]
        %v3771 = vld [vmem:[#allocation19 + $0xf8] sm:$0xff]
        %v3772 = vld [vmem:[#allocation19 + $0x100] sm:$0xff]
        %v3773 = vld [vmem:[#allocation19 + $0x108] sm:$0xff]
        %v3774 = vld [vmem:[#allocation19 + $0x110] sm:$0xff]
        %v3775 = vld [vmem:[#allocation19 + $0x118] sm:$0xff]
        %v3776 = vld [vmem:[#allocation19 + $0x120] sm:$0xff]
        %v3777 = vld [vmem:[#allocation19 + $0x128] sm:$0xff]
        %v3778 = vld [vmem:[#allocation19 + $0x130] sm:$0xff]
        %v3779 = vld [vmem:[#allocation19 + $0x138] sm:$0xff]
        %v3780 = vld [vmem:[#allocation19 + $0x140] sm:$0xff]
        %v3781 = vld [vmem:[#allocation19 + $0x148] sm:$0xff]
        %v3782 = vld [vmem:[#allocation19 + $0x150] sm:$0xff]
        %v3783 = vld [vmem:[#allocation19 + $0x158] sm:$0xff]
        %v3784 = vld [vmem:[#allocation19 + $0x160] sm:$0xff]
        %v3785 = vld [vmem:[#allocation19 + $0x168] sm:$0xff]
        %v3786 = vld [vmem:[#allocation19 + $0x170] sm:$0xff]
        %v3787 = vld [vmem:[#allocation19 + $0x178] sm:$0xff]
        %v3788 = vld [vmem:[#allocation19 + $0x180] sm:$0xff]
        %v3789 = vld [vmem:[#allocation19 + $0x188] sm:$0xff]
        %v3790 = vld [vmem:[#allocation19 + $0x190] sm:$0xff]
        %v3791 = vld [vmem:[#allocation19 + $0x198] sm:$0xff]
        %v3792 = vld [vmem:[#allocation19 + $0x1a0] sm:$0xff]
        %v3793 = vld [vmem:[#allocation19 + $0x1a8] sm:$0xff]
        %v3794 = vld [vmem:[#allocation19 + $0x1b0] sm:$0xff]
        %v3795 = vld [vmem:[#allocation19 + $0x1b8] sm:$0xff]
        %v3796 = vld [vmem:[#allocation19 + $0x1c0] sm:$0xff]
        %v3797 = vld [vmem:[#allocation19 + $0x1c8] sm:$0xff]
        %v3798 = vld [vmem:[#allocation19 + $0x1d0] sm:$0xff]
        %v3799 = vld [vmem:[#allocation19 + $0x1d8] sm:$0xff]
        %v3800 = vld [vmem:[#allocation19 + $0x1e0] sm:$0xff]
        %v3801 = vld [vmem:[#allocation19 + $0x1e8] sm:$0xff]
        %v3802 = vld [vmem:[#allocation19 + $0x1f0] sm:$0xff]
        %v3803 = vld [vmem:[#allocation19 + $0x1f8] sm:$0xff]
        %v3804 = vld [vmem:[#allocation19 + $0x200] sm:$0xff]
        %v3805 = vld [vmem:[#allocation19 + $0x208] sm:$0xff]
        %v3806 = vld [vmem:[#allocation19 + $0x210] sm:$0xff]
        %v3807 = vld [vmem:[#allocation19 + $0x218] sm:$0xff]
        %v3808 = vld [vmem:[#allocation19 + $0x220] sm:$0xff]
        %v3809 = vld [vmem:[#allocation19 + $0x228] sm:$0xff]
        %v3810 = vld [vmem:[#allocation19 + $0x230] sm:$0xff]
        %v3811 = vld [vmem:[#allocation19 + $0x238] sm:$0xff]
        %v3812 = vld [vmem:[#allocation19 + $0x240] sm:$0xff]
        %v3813 = vld [vmem:[#allocation19 + $0x248] sm:$0xff]
        %v3814 = vld [vmem:[#allocation19 + $0x250] sm:$0xff]
        %v3815 = vld [vmem:[#allocation19 + $0x258] sm:$0xff]
        %v3816 = vld [vmem:[#allocation19 + $0x260] sm:$0xff]
        %v3817 = vld [vmem:[#allocation19 + $0x268] sm:$0xff]
        %v3818 = vld [vmem:[#allocation19 + $0x270] sm:$0xff]
        %v3819 = vld [vmem:[#allocation19 + $0x278] sm:$0xff]
        %v3820 = vld [vmem:[#allocation19 + $0x280] sm:$0xff]
        %v3821 = vld [vmem:[#allocation19 + $0x288] sm:$0xff]
        %v3822 = vld [vmem:[#allocation19 + $0x290] sm:$0xff]
        %v3823 = vld [vmem:[#allocation19 + $0x298] sm:$0xff]
        %v3824 = vld [vmem:[#allocation19 + $0x2a0] sm:$0xff]
        %v3825 = vld [vmem:[#allocation19 + $0x2a8] sm:$0xff]
        %v3826 = vld [vmem:[#allocation19 + $0x2b0] sm:$0xff]
        %v3827 = vld [vmem:[#allocation19 + $0x2b8] sm:$0xff]
        %v3828 = vld [vmem:[#allocation19 + $0x2c0] sm:$0xff]
        %v3829 = vld [vmem:[#allocation19 + $0x2c8] sm:$0xff]
        %v3830 = vld [vmem:[#allocation19 + $0x2d0] sm:$0xff]
        %v3831 = vld [vmem:[#allocation19 + $0x2d8] sm:$0xff]
        %v3832 = vld [vmem:[#allocation19 + $0x2e0] sm:$0xff]
        %v3833 = vld [vmem:[#allocation19 + $0x2e8] sm:$0xff]
        %v3834 = vld [vmem:[#allocation19 + $0x2f0] sm:$0xff]
        %v3835 = vld [vmem:[#allocation19 + $0x2f8] sm:$0xff]
        %v3836 = vld [vmem:[#allocation19 + $0x300] sm:$0xff]
        %v3837 = vld [vmem:[#allocation19 + $0x308] sm:$0xff]
        %v3838 = vld [vmem:[#allocation19 + $0x310] sm:$0xff]
        %v3839 = vld [vmem:[#allocation19 + $0x318] sm:$0xff]
        %v3840 = vld [vmem:[#allocation19 + $0x320] sm:$0xff]
        %v3841 = vld [vmem:[#allocation19 + $0x328] sm:$0xff]
        %v3842 = vld [vmem:[#allocation19 + $0x330] sm:$0xff]
        %v3843 = vld [vmem:[#allocation19 + $0x338] sm:$0xff]
        %v3844 = vld [vmem:[#allocation19 + $0x340] sm:$0xff]
        %v3845 = vld [vmem:[#allocation19 + $0x348] sm:$0xff]
        %v3846 = vld [vmem:[#allocation19 + $0x350] sm:$0xff]
        %v3847 = vld [vmem:[#allocation19 + $0x358] sm:$0xff]
        %v3848 = vld [vmem:[#allocation19 + $0x360] sm:$0xff]
        %v3849 = vld [vmem:[#allocation19 + $0x368] sm:$0xff]
        %v3850 = vld [vmem:[#allocation19 + $0x370] sm:$0xff]
        %v3851 = vld [vmem:[#allocation19 + $0x378] sm:$0xff]
        %v3852 = vld [vmem:[#allocation19 + $0x380] sm:$0xff]
        %v3853 = vld [vmem:[#allocation19 + $0x388] sm:$0xff]
        %v3854 = vld [vmem:[#allocation19 + $0x390] sm:$0xff]
        %v3855 = vld [vmem:[#allocation19 + $0x398] sm:$0xff]
        %v3856 = vld [vmem:[#allocation19 + $0x3a0] sm:$0xff]
        %v3857 = vld [vmem:[#allocation19 + $0x3a8] sm:$0xff]
        %v3858 = vld [vmem:[#allocation19 + $0x3b0] sm:$0xff]
        %v3859 = vld [vmem:[#allocation19 + $0x3b8] sm:$0xff]
        %v3860 = vld [vmem:[#allocation19 + $0x3c0] sm:$0xff]
        %v3861 = vld [vmem:[#allocation19 + $0x3c8] sm:$0xff]
        %v3862 = vld [vmem:[#allocation19 + $0x3d0] sm:$0xff]
        %v3863 = vld [vmem:[#allocation19 + $0x3d8] sm:$0xff]
        %v3864 = vld [vmem:[#allocation19 + $0x3e0] sm:$0xff]
        %v3865 = vld [vmem:[#allocation19 + $0x3e8] sm:$0xff]
        %v3866 = vld [vmem:[#allocation19 + $0x3f0] sm:$0xff]
        %v3867 = vld [vmem:[#allocation19 + $0x3f8] sm:$0xff]
        %v3868 = vld [vmem:[#allocation19 + $0x400] sm:$0xff]
        %v3869 = vld [vmem:[#allocation19 + $0x408] sm:$0xff]
        %v3870 = vld [vmem:[#allocation19 + $0x410] sm:$0xff]
        %v3871 = vld [vmem:[#allocation19 + $0x418] sm:$0xff]
        %v3872 = vld [vmem:[#allocation19 + $0x420] sm:$0xff]
        %v3873 = vld [vmem:[#allocation19 + $0x428] sm:$0xff]
        %v3874 = vld [vmem:[#allocation19 + $0x430] sm:$0xff]
        %v3875 = vld [vmem:[#allocation19 + $0x438] sm:$0xff]
        %v3876 = vld [vmem:[#allocation19 + $0x440] sm:$0xff]
        %v3877 = vld [vmem:[#allocation19 + $0x448] sm:$0xff]
        %v3878 = vld [vmem:[#allocation19 + $0x450] sm:$0xff]
        %v3879 = vld [vmem:[#allocation19 + $0x458] sm:$0xff]
        %v3880 = vld [vmem:[#allocation19 + $0x460] sm:$0xff]
        %v3881 = vld [vmem:[#allocation19 + $0x468] sm:$0xff]
        %v3882 = vld [vmem:[#allocation19 + $0x470] sm:$0xff]
        %v3883 = vld [vmem:[#allocation19 + $0x478] sm:$0xff]
        %v3884 = vld [vmem:[#allocation19 + $0x480] sm:$0xff]
        %v3885 = vld [vmem:[#allocation19 + $0x488] sm:$0xff]
        %v3886 = vld [vmem:[#allocation19 + $0x490] sm:$0xff]
        %v3887 = vld [vmem:[#allocation19 + $0x498] sm:$0xff]
        %v3888 = vld [vmem:[#allocation19 + $0x4a0] sm:$0xff]
        %v3889 = vld [vmem:[#allocation19 + $0x4a8] sm:$0xff]
        %v3890 = vld [vmem:[#allocation19 + $0x4b0] sm:$0xff]
        %v3891 = vld [vmem:[#allocation19 + $0x4b8] sm:$0xff]
        %v3892 = vld [vmem:[#allocation19 + $0x4c0] sm:$0xff]
        %v3893 = vld [vmem:[#allocation19 + $0x4c8] sm:$0xff]
        %v3894 = vld [vmem:[#allocation19 + $0x4d0] sm:$0xff]
        %v3895 = vld [vmem:[#allocation19 + $0x4d8] sm:$0xff]
        %v3896 = vld [vmem:[#allocation19 + $0x4e0] sm:$0xff]
        %v3897 = vld [vmem:[#allocation19 + $0x4e8] sm:$0xff]
        %v3898 = vld [vmem:[#allocation19 + $0x4f0] sm:$0xff]
        %v3899 = vld [vmem:[#allocation19 + $0x4f8] sm:$0xff]
        %v3900 = vld [vmem:[#allocation19 + $0x500] sm:$0xff]
        %v3901 = vld [vmem:[#allocation19 + $0x508] sm:$0xff]
        %v3902 = vld [vmem:[#allocation19 + $0x510] sm:$0xff]
        %v3903 = vld [vmem:[#allocation19 + $0x518] sm:$0xff]
        %v3904 = vld [vmem:[#allocation19 + $0x520] sm:$0xff]
        %v3905 = vld [vmem:[#allocation19 + $0x528] sm:$0xff]
        %v3906 = vld [vmem:[#allocation19 + $0x530] sm:$0xff]
        %v3907 = vld [vmem:[#allocation19 + $0x538] sm:$0xff]
        %v3908 = vld [vmem:[#allocation19 + $0x540] sm:$0xff]
        %v3909 = vld [vmem:[#allocation19 + $0x548] sm:$0xff]
        %v3910 = vld [vmem:[#allocation19 + $0x550] sm:$0xff]
        %v3911 = vld [vmem:[#allocation19 + $0x558] sm:$0xff]
        %v3912 = vld [vmem:[#allocation19 + $0x560] sm:$0xff]
        %v3913 = vld [vmem:[#allocation19 + $0x568] sm:$0xff]
        %v3914 = vld [vmem:[#allocation19 + $0x570] sm:$0xff]
        %v3915 = vld [vmem:[#allocation19 + $0x578] sm:$0xff]
        %v3916 = vld [vmem:[#allocation19 + $0x580] sm:$0xff]
        %v3917 = vld [vmem:[#allocation19 + $0x588] sm:$0xff]
        %v3918 = vld [vmem:[#allocation19 + $0x590] sm:$0xff]
        %v3919 = vld [vmem:[#allocation19 + $0x598] sm:$0xff]
        %v3920 = vld [vmem:[#allocation19 + $0x5a0] sm:$0xff]
        %v3921 = vld [vmem:[#allocation19 + $0x5a8] sm:$0xff]
        %v3922 = vld [vmem:[#allocation19 + $0x5b0] sm:$0xff]
        %v3923 = vld [vmem:[#allocation19 + $0x5b8] sm:$0xff]
        %v3924 = vld [vmem:[#allocation19 + $0x5c0] sm:$0xff]
        %v3925 = vld [vmem:[#allocation19 + $0x5c8] sm:$0xff]
        %v3926 = vld [vmem:[#allocation19 + $0x5d0] sm:$0xff]
        %v3927 = vld [vmem:[#allocation19 + $0x5d8] sm:$0xff]
        %v3928 = vld [vmem:[#allocation19 + $0x5e0] sm:$0xff]
        %v3929 = vld [vmem:[#allocation19 + $0x5e8] sm:$0xff]
        %v3930 = vld [vmem:[#allocation19 + $0x5f0] sm:$0xff]
        %v3931 = vld [vmem:[#allocation19 + $0x5f8] sm:$0xff]
        %v3932 = vld [vmem:[#allocation19 + $0x600] sm:$0xff]
        %v3933 = vld [vmem:[#allocation19 + $0x608] sm:$0xff]
        %v3934 = vld [vmem:[#allocation19 + $0x610] sm:$0xff]
        %v3935 = vld [vmem:[#allocation19 + $0x618] sm:$0xff]
        %v3936 = vld [vmem:[#allocation19 + $0x620] sm:$0xff]
        %v3937 = vld [vmem:[#allocation19 + $0x628] sm:$0xff]
        %v3938 = vld [vmem:[#allocation19 + $0x630] sm:$0xff]
        %v3939 = vld [vmem:[#allocation19 + $0x638] sm:$0xff]
        %v3940 = vld [vmem:[#allocation19 + $0x640] sm:$0xff]
        %v3941 = vld [vmem:[#allocation19 + $0x648] sm:$0xff]
        %v3942 = vld [vmem:[#allocation19 + $0x650] sm:$0xff]
        %v3943 = vld [vmem:[#allocation19 + $0x658] sm:$0xff]
        %v3944 = vld [vmem:[#allocation19 + $0x660] sm:$0xff]
        %v3945 = vld [vmem:[#allocation19 + $0x668] sm:$0xff]
        %v3946 = vld [vmem:[#allocation19 + $0x670] sm:$0xff]
        %v3947 = vld [vmem:[#allocation19 + $0x678] sm:$0xff]
        %v3948 = vld [vmem:[#allocation19 + $0x680] sm:$0xff]
        %v3949 = vld [vmem:[#allocation19 + $0x688] sm:$0xff]
        %v3950 = vld [vmem:[#allocation19 + $0x690] sm:$0xff]
        %v3951 = vld [vmem:[#allocation19 + $0x698] sm:$0xff]
        %v3952 = vld [vmem:[#allocation19 + $0x6a0] sm:$0xff]
        %v3953 = vld [vmem:[#allocation19 + $0x6a8] sm:$0xff]
        %v3954 = vld [vmem:[#allocation19 + $0x6b0] sm:$0xff]
        %v3955 = vld [vmem:[#allocation19 + $0x6b8] sm:$0xff]
        %v3956 = vld [vmem:[#allocation19 + $0x6c0] sm:$0xff]
        %v3957 = vld [vmem:[#allocation19 + $0x6c8] sm:$0xff]
        %v3958 = vld [vmem:[#allocation19 + $0x6d0] sm:$0xff]
        %v3959 = vld [vmem:[#allocation19 + $0x6d8] sm:$0xff]
        %v3960 = vld [vmem:[#allocation19 + $0x6e0] sm:$0xff]
        %v3961 = vld [vmem:[#allocation19 + $0x6e8] sm:$0xff]
        %v3962 = vld [vmem:[#allocation19 + $0x6f0] sm:$0xff]
        %v3963 = vld [vmem:[#allocation19 + $0x6f8] sm:$0xff]
        %v3964 = vld [vmem:[#allocation19 + $0x700] sm:$0xff]
        %v3965 = vld [vmem:[#allocation19 + $0x708] sm:$0xff]
        %v3966 = vld [vmem:[#allocation19 + $0x710] sm:$0xff]
        %v3967 = vld [vmem:[#allocation19 + $0x718] sm:$0xff]
        %v3968 = vld [vmem:[#allocation19 + $0x720] sm:$0xff]
        %v3969 = vld [vmem:[#allocation19 + $0x728] sm:$0xff]
        %v3970 = vld [vmem:[#allocation19 + $0x730] sm:$0xff]
        %v3971 = vld [vmem:[#allocation19 + $0x738] sm:$0xff]
        %v3972 = vld [vmem:[#allocation19 + $0x740] sm:$0xff]
        %v3973 = vld [vmem:[#allocation19 + $0x748] sm:$0xff]
        %v3974 = vld [vmem:[#allocation19 + $0x750] sm:$0xff]
        %v3975 = vld [vmem:[#allocation19 + $0x758] sm:$0xff]
        %v3976 = vld [vmem:[#allocation19 + $0x760] sm:$0xff]
        %v3977 = vld [vmem:[#allocation19 + $0x768] sm:$0xff]
        %v3978 = vld [vmem:[#allocation19 + $0x770] sm:$0xff]
        %v3979 = vld [vmem:[#allocation19 + $0x778] sm:$0xff]
        %v3980 = vld [vmem:[#allocation19 + $0x780] sm:$0xff]
        %v3981 = vld [vmem:[#allocation19 + $0x788] sm:$0xff]
        %v3982 = vld [vmem:[#allocation19 + $0x790] sm:$0xff]
        %v3983 = vld [vmem:[#allocation19 + $0x798] sm:$0xff]
        %v3984 = vld [vmem:[#allocation19 + $0x7a0] sm:$0xff]
        %v3985 = vld [vmem:[#allocation19 + $0x7a8] sm:$0xff]
        %v3986 = vld [vmem:[#allocation19 + $0x7b0] sm:$0xff]
        %v3987 = vld [vmem:[#allocation19 + $0x7b8] sm:$0xff]
        %v3988 = vld [vmem:[#allocation19 + $0x7c0] sm:$0xff]
        %v3989 = vld [vmem:[#allocation19 + $0x7c8] sm:$0xff]
        %v3990 = vld [vmem:[#allocation19 + $0x7d0] sm:$0xff]
        %v3991 = vld [vmem:[#allocation19 + $0x7d8] sm:$0xff]
        %v3992 = vld [vmem:[#allocation19 + $0x7e0] sm:$0xff]
        %v3993 = vld [vmem:[#allocation19 + $0x7e8] sm:$0xff]
        %v3994 = vld [vmem:[#allocation19 + $0x7f0] sm:$0xff]
        %v3995 = vld [vmem:[#allocation19 + $0x7f8] sm:$0xff]
        %v4252 = vunpack.c.l.b16 %v3740
        %v4253 = vunpack.c.h.b16 %v3740
        %v4254 = vunpack.c.l.b16 %v3741
        %v4255 = vunpack.c.h.b16 %v3741
        %v4256 = vunpack.c.l.b16 %v3742
        %v4257 = vunpack.c.h.b16 %v3742
        %v4258 = vunpack.c.l.b16 %v3743
        %v4259 = vunpack.c.h.b16 %v3743
        %v4260 = vunpack.c.l.b16 %v3744
        %v4261 = vunpack.c.h.b16 %v3744
        %v4262 = vunpack.c.l.b16 %v3745
        %v4263 = vunpack.c.h.b16 %v3745
        %v4264 = vunpack.c.l.b16 %v3746
        %v4265 = vunpack.c.h.b16 %v3746
        %v4266 = vunpack.c.l.b16 %v3747
        %v4267 = vunpack.c.h.b16 %v3747
        %v4268 = vunpack.c.l.b16 %v3748
        %v4269 = vunpack.c.h.b16 %v3748
        %v4270 = vunpack.c.l.b16 %v3749
        %v4271 = vunpack.c.h.b16 %v3749
        %v4272 = vunpack.c.l.b16 %v3750
        %v4273 = vunpack.c.h.b16 %v3750
        %v4274 = vunpack.c.l.b16 %v3751
        %v4275 = vunpack.c.h.b16 %v3751
        %v4276 = vunpack.c.l.b16 %v3752
        %v4277 = vunpack.c.h.b16 %v3752
        %v4278 = vunpack.c.l.b16 %v3753
        %v4279 = vunpack.c.h.b16 %v3753
        %v4280 = vunpack.c.l.b16 %v3754
        %v4281 = vunpack.c.h.b16 %v3754
        %v4282 = vunpack.c.l.b16 %v3755
        %v4283 = vunpack.c.h.b16 %v3755
        %v4284 = vunpack.c.l.b16 %v3756
        %v4285 = vunpack.c.h.b16 %v3756
        %v4286 = vunpack.c.l.b16 %v3757
        %v4287 = vunpack.c.h.b16 %v3757
        %v4288 = vunpack.c.l.b16 %v3758
        %v4289 = vunpack.c.h.b16 %v3758
        %v4290 = vunpack.c.l.b16 %v3759
        %v4291 = vunpack.c.h.b16 %v3759
        %v4292 = vunpack.c.l.b16 %v3760
        %v4293 = vunpack.c.h.b16 %v3760
        %v4294 = vunpack.c.l.b16 %v3761
        %v4295 = vunpack.c.h.b16 %v3761
        %v4296 = vunpack.c.l.b16 %v3762
        %v4297 = vunpack.c.h.b16 %v3762
        %v4298 = vunpack.c.l.b16 %v3763
        %v4299 = vunpack.c.h.b16 %v3763
        %v4300 = vunpack.c.l.b16 %v3764
        %v4301 = vunpack.c.h.b16 %v3764
        %v4302 = vunpack.c.l.b16 %v3765
        %v4303 = vunpack.c.h.b16 %v3765
        %v4304 = vunpack.c.l.b16 %v3766
        %v4305 = vunpack.c.h.b16 %v3766
        %v4306 = vunpack.c.l.b16 %v3767
        %v4307 = vunpack.c.h.b16 %v3767
        %v4308 = vunpack.c.l.b16 %v3768
        %v4309 = vunpack.c.h.b16 %v3768
        %v4310 = vunpack.c.l.b16 %v3769
        %v4311 = vunpack.c.h.b16 %v3769
        %v4312 = vunpack.c.l.b16 %v3770
        %v4313 = vunpack.c.h.b16 %v3770
        %v4314 = vunpack.c.l.b16 %v3771
        %v4315 = vunpack.c.h.b16 %v3771
        %v4316 = vunpack.c.l.b16 %v3772
        %v4317 = vunpack.c.h.b16 %v3772
        %v4318 = vunpack.c.l.b16 %v3773
        %v4319 = vunpack.c.h.b16 %v3773
        %v4320 = vunpack.c.l.b16 %v3774
        %v4321 = vunpack.c.h.b16 %v3774
        %v4322 = vunpack.c.l.b16 %v3775
        %v4323 = vunpack.c.h.b16 %v3775
        %v4324 = vunpack.c.l.b16 %v3776
        %v4325 = vunpack.c.h.b16 %v3776
        %v4326 = vunpack.c.l.b16 %v3777
        %v4327 = vunpack.c.h.b16 %v3777
        %v4328 = vunpack.c.l.b16 %v3778
        %v4329 = vunpack.c.h.b16 %v3778
        %v4330 = vunpack.c.l.b16 %v3779
        %v4331 = vunpack.c.h.b16 %v3779
        %v4332 = vunpack.c.l.b16 %v3780
        %v4333 = vunpack.c.h.b16 %v3780
        %v4334 = vunpack.c.l.b16 %v3781
        %v4335 = vunpack.c.h.b16 %v3781
        %v4336 = vunpack.c.l.b16 %v3782
        %v4337 = vunpack.c.h.b16 %v3782
        %v4338 = vunpack.c.l.b16 %v3783
        %v4339 = vunpack.c.h.b16 %v3783
        %v4340 = vunpack.c.l.b16 %v3784
        %v4341 = vunpack.c.h.b16 %v3784
        %v4342 = vunpack.c.l.b16 %v3785
        %v4343 = vunpack.c.h.b16 %v3785
        %v4344 = vunpack.c.l.b16 %v3786
        %v4345 = vunpack.c.h.b16 %v3786
        %v4346 = vunpack.c.l.b16 %v3787
        %v4347 = vunpack.c.h.b16 %v3787
        %v4348 = vunpack.c.l.b16 %v3788
        %v4349 = vunpack.c.h.b16 %v3788
        %v4350 = vunpack.c.l.b16 %v3789
        %v4351 = vunpack.c.h.b16 %v3789
        %v4352 = vunpack.c.l.b16 %v3790
        %v4353 = vunpack.c.h.b16 %v3790
        %v4354 = vunpack.c.l.b16 %v3791
        %v4355 = vunpack.c.h.b16 %v3791
        %v4356 = vunpack.c.l.b16 %v3792
        %v4357 = vunpack.c.h.b16 %v3792
        %v4358 = vunpack.c.l.b16 %v3793
        %v4359 = vunpack.c.h.b16 %v3793
        %v4360 = vunpack.c.l.b16 %v3794
        %v4361 = vunpack.c.h.b16 %v3794
        %v4362 = vunpack.c.l.b16 %v3795
        %v4363 = vunpack.c.h.b16 %v3795
        %v4364 = vunpack.c.l.b16 %v3796
        %v4365 = vunpack.c.h.b16 %v3796
        %v4366 = vunpack.c.l.b16 %v3797
        %v4367 = vunpack.c.h.b16 %v3797
        %v4368 = vunpack.c.l.b16 %v3798
        %v4369 = vunpack.c.h.b16 %v3798
        %v4370 = vunpack.c.l.b16 %v3799
        %v4371 = vunpack.c.h.b16 %v3799
        %v4372 = vunpack.c.l.b16 %v3800
        %v4373 = vunpack.c.h.b16 %v3800
        %v4374 = vunpack.c.l.b16 %v3801
        %v4375 = vunpack.c.h.b16 %v3801
        %v4376 = vunpack.c.l.b16 %v3802
        %v4377 = vunpack.c.h.b16 %v3802
        %v4378 = vunpack.c.l.b16 %v3803
        %v4379 = vunpack.c.h.b16 %v3803
        %v4380 = vunpack.c.l.b16 %v3804
        %v4381 = vunpack.c.h.b16 %v3804
        %v4382 = vunpack.c.l.b16 %v3805
        %v4383 = vunpack.c.h.b16 %v3805
        %v4384 = vunpack.c.l.b16 %v3806
        %v4385 = vunpack.c.h.b16 %v3806
        %v4386 = vunpack.c.l.b16 %v3807
        %v4387 = vunpack.c.h.b16 %v3807
        %v4388 = vunpack.c.l.b16 %v3808
        %v4389 = vunpack.c.h.b16 %v3808
        %v4390 = vunpack.c.l.b16 %v3809
        %v4391 = vunpack.c.h.b16 %v3809
        %v4392 = vunpack.c.l.b16 %v3810
        %v4393 = vunpack.c.h.b16 %v3810
        %v4394 = vunpack.c.l.b16 %v3811
        %v4395 = vunpack.c.h.b16 %v3811
        %v4396 = vunpack.c.l.b16 %v3812
        %v4397 = vunpack.c.h.b16 %v3812
        %v4398 = vunpack.c.l.b16 %v3813
        %v4399 = vunpack.c.h.b16 %v3813
        %v4400 = vunpack.c.l.b16 %v3814
        %v4401 = vunpack.c.h.b16 %v3814
        %v4402 = vunpack.c.l.b16 %v3815
        %v4403 = vunpack.c.h.b16 %v3815
        %v4404 = vunpack.c.l.b16 %v3816
        %v4405 = vunpack.c.h.b16 %v3816
        %v4406 = vunpack.c.l.b16 %v3817
        %v4407 = vunpack.c.h.b16 %v3817
        %v4408 = vunpack.c.l.b16 %v3818
        %v4409 = vunpack.c.h.b16 %v3818
        %v4410 = vunpack.c.l.b16 %v3819
        %v4411 = vunpack.c.h.b16 %v3819
        %v4412 = vunpack.c.l.b16 %v3820
        %v4413 = vunpack.c.h.b16 %v3820
        %v4414 = vunpack.c.l.b16 %v3821
        %v4415 = vunpack.c.h.b16 %v3821
        %v4416 = vunpack.c.l.b16 %v3822
        %v4417 = vunpack.c.h.b16 %v3822
        %v4418 = vunpack.c.l.b16 %v3823
        %v4419 = vunpack.c.h.b16 %v3823
        %v4420 = vunpack.c.l.b16 %v3824
        %v4421 = vunpack.c.h.b16 %v3824
        %v4422 = vunpack.c.l.b16 %v3825
        %v4423 = vunpack.c.h.b16 %v3825
        %v4424 = vunpack.c.l.b16 %v3826
        %v4425 = vunpack.c.h.b16 %v3826
        %v4426 = vunpack.c.l.b16 %v3827
        %v4427 = vunpack.c.h.b16 %v3827
        %v4428 = vunpack.c.l.b16 %v3828
        %v4429 = vunpack.c.h.b16 %v3828
        %v4430 = vunpack.c.l.b16 %v3829
        %v4431 = vunpack.c.h.b16 %v3829
        %v4432 = vunpack.c.l.b16 %v3830
        %v4433 = vunpack.c.h.b16 %v3830
        %v4434 = vunpack.c.l.b16 %v3831
        %v4435 = vunpack.c.h.b16 %v3831
        %v4436 = vunpack.c.l.b16 %v3832
        %v4437 = vunpack.c.h.b16 %v3832
        %v4438 = vunpack.c.l.b16 %v3833
        %v4439 = vunpack.c.h.b16 %v3833
        %v4440 = vunpack.c.l.b16 %v3834
        %v4441 = vunpack.c.h.b16 %v3834
        %v4442 = vunpack.c.l.b16 %v3835
        %v4443 = vunpack.c.h.b16 %v3835
        %v4444 = vunpack.c.l.b16 %v3836
        %v4445 = vunpack.c.h.b16 %v3836
        %v4446 = vunpack.c.l.b16 %v3837
        %v4447 = vunpack.c.h.b16 %v3837
        %v4448 = vunpack.c.l.b16 %v3838
        %v4449 = vunpack.c.h.b16 %v3838
        %v4450 = vunpack.c.l.b16 %v3839
        %v4451 = vunpack.c.h.b16 %v3839
        %v4452 = vunpack.c.l.b16 %v3840
        %v4453 = vunpack.c.h.b16 %v3840
        %v4454 = vunpack.c.l.b16 %v3841
        %v4455 = vunpack.c.h.b16 %v3841
        %v4456 = vunpack.c.l.b16 %v3842
        %v4457 = vunpack.c.h.b16 %v3842
        %v4458 = vunpack.c.l.b16 %v3843
        %v4459 = vunpack.c.h.b16 %v3843
        %v4460 = vunpack.c.l.b16 %v3844
        %v4461 = vunpack.c.h.b16 %v3844
        %v4462 = vunpack.c.l.b16 %v3845
        %v4463 = vunpack.c.h.b16 %v3845
        %v4464 = vunpack.c.l.b16 %v3846
        %v4465 = vunpack.c.h.b16 %v3846
        %v4466 = vunpack.c.l.b16 %v3847
        %v4467 = vunpack.c.h.b16 %v3847
        %v4468 = vunpack.c.l.b16 %v3848
        %v4469 = vunpack.c.h.b16 %v3848
        %v4470 = vunpack.c.l.b16 %v3849
        %v4471 = vunpack.c.h.b16 %v3849
        %v4472 = vunpack.c.l.b16 %v3850
        %v4473 = vunpack.c.h.b16 %v3850
        %v4474 = vunpack.c.l.b16 %v3851
        %v4475 = vunpack.c.h.b16 %v3851
        %v4476 = vunpack.c.l.b16 %v3852
        %v4477 = vunpack.c.h.b16 %v3852
        %v4478 = vunpack.c.l.b16 %v3853
        %v4479 = vunpack.c.h.b16 %v3853
        %v4480 = vunpack.c.l.b16 %v3854
        %v4481 = vunpack.c.h.b16 %v3854
        %v4482 = vunpack.c.l.b16 %v3855
        %v4483 = vunpack.c.h.b16 %v3855
        %v4484 = vunpack.c.l.b16 %v3856
        %v4485 = vunpack.c.h.b16 %v3856
        %v4486 = vunpack.c.l.b16 %v3857
        %v4487 = vunpack.c.h.b16 %v3857
        %v4488 = vunpack.c.l.b16 %v3858
        %v4489 = vunpack.c.h.b16 %v3858
        %v4490 = vunpack.c.l.b16 %v3859
        %v4491 = vunpack.c.h.b16 %v3859
        %v4492 = vunpack.c.l.b16 %v3860
        %v4493 = vunpack.c.h.b16 %v3860
        %v4494 = vunpack.c.l.b16 %v3861
        %v4495 = vunpack.c.h.b16 %v3861
        %v4496 = vunpack.c.l.b16 %v3862
        %v4497 = vunpack.c.h.b16 %v3862
        %v4498 = vunpack.c.l.b16 %v3863
        %v4499 = vunpack.c.h.b16 %v3863
        %v4500 = vunpack.c.l.b16 %v3864
        %v4501 = vunpack.c.h.b16 %v3864
        %v4502 = vunpack.c.l.b16 %v3865
        %v4503 = vunpack.c.h.b16 %v3865
        %v4504 = vunpack.c.l.b16 %v3866
        %v4505 = vunpack.c.h.b16 %v3866
        %v4506 = vunpack.c.l.b16 %v3867
        %v4507 = vunpack.c.h.b16 %v3867
        %v4508 = vunpack.c.l.b16 %v3868
        %v4509 = vunpack.c.h.b16 %v3868
        %v4510 = vunpack.c.l.b16 %v3869
        %v4511 = vunpack.c.h.b16 %v3869
        %v4512 = vunpack.c.l.b16 %v3870
        %v4513 = vunpack.c.h.b16 %v3870
        %v4514 = vunpack.c.l.b16 %v3871
        %v4515 = vunpack.c.h.b16 %v3871
        %v4516 = vunpack.c.l.b16 %v3872
        %v4517 = vunpack.c.h.b16 %v3872
        %v4518 = vunpack.c.l.b16 %v3873
        %v4519 = vunpack.c.h.b16 %v3873
        %v4520 = vunpack.c.l.b16 %v3874
        %v4521 = vunpack.c.h.b16 %v3874
        %v4522 = vunpack.c.l.b16 %v3875
        %v4523 = vunpack.c.h.b16 %v3875
        %v4524 = vunpack.c.l.b16 %v3876
        %v4525 = vunpack.c.h.b16 %v3876
        %v4526 = vunpack.c.l.b16 %v3877
        %v4527 = vunpack.c.h.b16 %v3877
        %v4528 = vunpack.c.l.b16 %v3878
        %v4529 = vunpack.c.h.b16 %v3878
        %v4530 = vunpack.c.l.b16 %v3879
        %v4531 = vunpack.c.h.b16 %v3879
        %v4532 = vunpack.c.l.b16 %v3880
        %v4533 = vunpack.c.h.b16 %v3880
        %v4534 = vunpack.c.l.b16 %v3881
        %v4535 = vunpack.c.h.b16 %v3881
        %v4536 = vunpack.c.l.b16 %v3882
        %v4537 = vunpack.c.h.b16 %v3882
        %v4538 = vunpack.c.l.b16 %v3883
        %v4539 = vunpack.c.h.b16 %v3883
        %v4540 = vunpack.c.l.b16 %v3884
        %v4541 = vunpack.c.h.b16 %v3884
        %v4542 = vunpack.c.l.b16 %v3885
        %v4543 = vunpack.c.h.b16 %v3885
        %v4544 = vunpack.c.l.b16 %v3886
        %v4545 = vunpack.c.h.b16 %v3886
        %v4546 = vunpack.c.l.b16 %v3887
        %v4547 = vunpack.c.h.b16 %v3887
        %v4548 = vunpack.c.l.b16 %v3888
        %v4549 = vunpack.c.h.b16 %v3888
        %v4550 = vunpack.c.l.b16 %v3889
        %v4551 = vunpack.c.h.b16 %v3889
        %v4552 = vunpack.c.l.b16 %v3890
        %v4553 = vunpack.c.h.b16 %v3890
        %v4554 = vunpack.c.l.b16 %v3891
        %v4555 = vunpack.c.h.b16 %v3891
        %v4556 = vunpack.c.l.b16 %v3892
        %v4557 = vunpack.c.h.b16 %v3892
        %v4558 = vunpack.c.l.b16 %v3893
        %v4559 = vunpack.c.h.b16 %v3893
        %v4560 = vunpack.c.l.b16 %v3894
        %v4561 = vunpack.c.h.b16 %v3894
        %v4562 = vunpack.c.l.b16 %v3895
        %v4563 = vunpack.c.h.b16 %v3895
        %v4564 = vunpack.c.l.b16 %v3896
        %v4565 = vunpack.c.h.b16 %v3896
        %v4566 = vunpack.c.l.b16 %v3897
        %v4567 = vunpack.c.h.b16 %v3897
        %v4568 = vunpack.c.l.b16 %v3898
        %v4569 = vunpack.c.h.b16 %v3898
        %v4570 = vunpack.c.l.b16 %v3899
        %v4571 = vunpack.c.h.b16 %v3899
        %v4572 = vunpack.c.l.b16 %v3900
        %v4573 = vunpack.c.h.b16 %v3900
        %v4574 = vunpack.c.l.b16 %v3901
        %v4575 = vunpack.c.h.b16 %v3901
        %v4576 = vunpack.c.l.b16 %v3902
        %v4577 = vunpack.c.h.b16 %v3902
        %v4578 = vunpack.c.l.b16 %v3903
        %v4579 = vunpack.c.h.b16 %v3903
        %v4580 = vunpack.c.l.b16 %v3904
        %v4581 = vunpack.c.h.b16 %v3904
        %v4582 = vunpack.c.l.b16 %v3905
        %v4583 = vunpack.c.h.b16 %v3905
        %v4584 = vunpack.c.l.b16 %v3906
        %v4585 = vunpack.c.h.b16 %v3906
        %v4586 = vunpack.c.l.b16 %v3907
        %v4587 = vunpack.c.h.b16 %v3907
        %v4588 = vunpack.c.l.b16 %v3908
        %v4589 = vunpack.c.h.b16 %v3908
        %v4590 = vunpack.c.l.b16 %v3909
        %v4591 = vunpack.c.h.b16 %v3909
        %v4592 = vunpack.c.l.b16 %v3910
        %v4593 = vunpack.c.h.b16 %v3910
        %v4594 = vunpack.c.l.b16 %v3911
        %v4595 = vunpack.c.h.b16 %v3911
        %v4596 = vunpack.c.l.b16 %v3912
        %v4597 = vunpack.c.h.b16 %v3912
        %v4598 = vunpack.c.l.b16 %v3913
        %v4599 = vunpack.c.h.b16 %v3913
        %v4600 = vunpack.c.l.b16 %v3914
        %v4601 = vunpack.c.h.b16 %v3914
        %v4602 = vunpack.c.l.b16 %v3915
        %v4603 = vunpack.c.h.b16 %v3915
        %v4604 = vunpack.c.l.b16 %v3916
        %v4605 = vunpack.c.h.b16 %v3916
        %v4606 = vunpack.c.l.b16 %v3917
        %v4607 = vunpack.c.h.b16 %v3917
        %v4608 = vunpack.c.l.b16 %v3918
        %v4609 = vunpack.c.h.b16 %v3918
        %v4610 = vunpack.c.l.b16 %v3919
        %v4611 = vunpack.c.h.b16 %v3919
        %v4612 = vunpack.c.l.b16 %v3920
        %v4613 = vunpack.c.h.b16 %v3920
        %v4614 = vunpack.c.l.b16 %v3921
        %v4615 = vunpack.c.h.b16 %v3921
        %v4616 = vunpack.c.l.b16 %v3922
        %v4617 = vunpack.c.h.b16 %v3922
        %v4618 = vunpack.c.l.b16 %v3923
        %v4619 = vunpack.c.h.b16 %v3923
        %v4620 = vunpack.c.l.b16 %v3924
        %v4621 = vunpack.c.h.b16 %v3924
        %v4622 = vunpack.c.l.b16 %v3925
        %v4623 = vunpack.c.h.b16 %v3925
        %v4624 = vunpack.c.l.b16 %v3926
        %v4625 = vunpack.c.h.b16 %v3926
        %v4626 = vunpack.c.l.b16 %v3927
        %v4627 = vunpack.c.h.b16 %v3927
        %v4628 = vunpack.c.l.b16 %v3928
        %v4629 = vunpack.c.h.b16 %v3928
        %v4630 = vunpack.c.l.b16 %v3929
        %v4631 = vunpack.c.h.b16 %v3929
        %v4632 = vunpack.c.l.b16 %v3930
        %v4633 = vunpack.c.h.b16 %v3930
        %v4634 = vunpack.c.l.b16 %v3931
        %v4635 = vunpack.c.h.b16 %v3931
        %v4636 = vunpack.c.l.b16 %v3932
        %v4637 = vunpack.c.h.b16 %v3932
        %v4638 = vunpack.c.l.b16 %v3933
        %v4639 = vunpack.c.h.b16 %v3933
        %v4640 = vunpack.c.l.b16 %v3934
        %v4641 = vunpack.c.h.b16 %v3934
        %v4642 = vunpack.c.l.b16 %v3935
        %v4643 = vunpack.c.h.b16 %v3935
        %v4644 = vunpack.c.l.b16 %v3936
        %v4645 = vunpack.c.h.b16 %v3936
        %v4646 = vunpack.c.l.b16 %v3937
        %v4647 = vunpack.c.h.b16 %v3937
        %v4648 = vunpack.c.l.b16 %v3938
        %v4649 = vunpack.c.h.b16 %v3938
        %v4650 = vunpack.c.l.b16 %v3939
        %v4651 = vunpack.c.h.b16 %v3939
        %v4652 = vunpack.c.l.b16 %v3940
        %v4653 = vunpack.c.h.b16 %v3940
        %v4654 = vunpack.c.l.b16 %v3941
        %v4655 = vunpack.c.h.b16 %v3941
        %v4656 = vunpack.c.l.b16 %v3942
        %v4657 = vunpack.c.h.b16 %v3942
        %v4658 = vunpack.c.l.b16 %v3943
        %v4659 = vunpack.c.h.b16 %v3943
        %v4660 = vunpack.c.l.b16 %v3944
        %v4661 = vunpack.c.h.b16 %v3944
        %v4662 = vunpack.c.l.b16 %v3945
        %v4663 = vunpack.c.h.b16 %v3945
        %v4664 = vunpack.c.l.b16 %v3946
        %v4665 = vunpack.c.h.b16 %v3946
        %v4666 = vunpack.c.l.b16 %v3947
        %v4667 = vunpack.c.h.b16 %v3947
        %v4668 = vunpack.c.l.b16 %v3948
        %v4669 = vunpack.c.h.b16 %v3948
        %v4670 = vunpack.c.l.b16 %v3949
        %v4671 = vunpack.c.h.b16 %v3949
        %v4672 = vunpack.c.l.b16 %v3950
        %v4673 = vunpack.c.h.b16 %v3950
        %v4674 = vunpack.c.l.b16 %v3951
        %v4675 = vunpack.c.h.b16 %v3951
        %v4676 = vunpack.c.l.b16 %v3952
        %v4677 = vunpack.c.h.b16 %v3952
        %v4678 = vunpack.c.l.b16 %v3953
        %v4679 = vunpack.c.h.b16 %v3953
        %v4680 = vunpack.c.l.b16 %v3954
        %v4681 = vunpack.c.h.b16 %v3954
        %v4682 = vunpack.c.l.b16 %v3955
        %v4683 = vunpack.c.h.b16 %v3955
        %v4684 = vunpack.c.l.b16 %v3956
        %v4685 = vunpack.c.h.b16 %v3956
        %v4686 = vunpack.c.l.b16 %v3957
        %v4687 = vunpack.c.h.b16 %v3957
        %v4688 = vunpack.c.l.b16 %v3958
        %v4689 = vunpack.c.h.b16 %v3958
        %v4690 = vunpack.c.l.b16 %v3959
        %v4691 = vunpack.c.h.b16 %v3959
        %v4692 = vunpack.c.l.b16 %v3960
        %v4693 = vunpack.c.h.b16 %v3960
        %v4694 = vunpack.c.l.b16 %v3961
        %v4695 = vunpack.c.h.b16 %v3961
        %v4696 = vunpack.c.l.b16 %v3962
        %v4697 = vunpack.c.h.b16 %v3962
        %v4698 = vunpack.c.l.b16 %v3963
        %v4699 = vunpack.c.h.b16 %v3963
        %v4700 = vunpack.c.l.b16 %v3964
        %v4701 = vunpack.c.h.b16 %v3964
        %v4702 = vunpack.c.l.b16 %v3965
        %v4703 = vunpack.c.h.b16 %v3965
        %v4704 = vunpack.c.l.b16 %v3966
        %v4705 = vunpack.c.h.b16 %v3966
        %v4706 = vunpack.c.l.b16 %v3967
        %v4707 = vunpack.c.h.b16 %v3967
        %v4708 = vunpack.c.l.b16 %v3968
        %v4709 = vunpack.c.h.b16 %v3968
        %v4710 = vunpack.c.l.b16 %v3969
        %v4711 = vunpack.c.h.b16 %v3969
        %v4712 = vunpack.c.l.b16 %v3970
        %v4713 = vunpack.c.h.b16 %v3970
        %v4714 = vunpack.c.l.b16 %v3971
        %v4715 = vunpack.c.h.b16 %v3971
        %v4716 = vunpack.c.l.b16 %v3972
        %v4717 = vunpack.c.h.b16 %v3972
        %v4718 = vunpack.c.l.b16 %v3973
        %v4719 = vunpack.c.h.b16 %v3973
        %v4720 = vunpack.c.l.b16 %v3974
        %v4721 = vunpack.c.h.b16 %v3974
        %v4722 = vunpack.c.l.b16 %v3975
        %v4723 = vunpack.c.h.b16 %v3975
        %v4724 = vunpack.c.l.b16 %v3976
        %v4725 = vunpack.c.h.b16 %v3976
        %v4726 = vunpack.c.l.b16 %v3977
        %v4727 = vunpack.c.h.b16 %v3977
        %v4728 = vunpack.c.l.b16 %v3978
        %v4729 = vunpack.c.h.b16 %v3978
        %v4730 = vunpack.c.l.b16 %v3979
        %v4731 = vunpack.c.h.b16 %v3979
        %v4732 = vunpack.c.l.b16 %v3980
        %v4733 = vunpack.c.h.b16 %v3980
        %v4734 = vunpack.c.l.b16 %v3981
        %v4735 = vunpack.c.h.b16 %v3981
        %v4736 = vunpack.c.l.b16 %v3982
        %v4737 = vunpack.c.h.b16 %v3982
        %v4738 = vunpack.c.l.b16 %v3983
        %v4739 = vunpack.c.h.b16 %v3983
        %v4740 = vunpack.c.l.b16 %v3984
        %v4741 = vunpack.c.h.b16 %v3984
        %v4742 = vunpack.c.l.b16 %v3985
        %v4743 = vunpack.c.h.b16 %v3985
        %v4744 = vunpack.c.l.b16 %v3986
        %v4745 = vunpack.c.h.b16 %v3986
        %v4746 = vunpack.c.l.b16 %v3987
        %v4747 = vunpack.c.h.b16 %v3987
        %v4748 = vunpack.c.l.b16 %v3988
        %v4749 = vunpack.c.h.b16 %v3988
        %v4750 = vunpack.c.l.b16 %v3989
        %v4751 = vunpack.c.h.b16 %v3989
        %v4752 = vunpack.c.l.b16 %v3990
        %v4753 = vunpack.c.h.b16 %v3990
        %v4754 = vunpack.c.l.b16 %v3991
        %v4755 = vunpack.c.h.b16 %v3991
        %v4756 = vunpack.c.l.b16 %v3992
        %v4757 = vunpack.c.h.b16 %v3992
        %v4758 = vunpack.c.l.b16 %v3993
        %v4759 = vunpack.c.h.b16 %v3993
        %v4760 = vunpack.c.l.b16 %v3994
        %v4761 = vunpack.c.h.b16 %v3994
        %v4762 = vunpack.c.l.b16 %v3995
        %v4763 = vunpack.c.h.b16 %v3995
        %v4764 = vpack.c.b16 %v4268, %v4252
        %v4765 = vpack.c.b16 %v4269, %v4253
        %v4766 = vpack.c.b16 %v4270, %v4254
        %v4767 = vpack.c.b16 %v4271, %v4255
        %v4768 = vpack.c.b16 %v4272, %v4256
        %v4769 = vpack.c.b16 %v4273, %v4257
        %v4770 = vpack.c.b16 %v4274, %v4258
        %v4771 = vpack.c.b16 %v4275, %v4259
        %v4772 = vpack.c.b16 %v4276, %v4260
        %v4773 = vpack.c.b16 %v4277, %v4261
        %v4774 = vpack.c.b16 %v4278, %v4262
        %v4775 = vpack.c.b16 %v4279, %v4263
        %v4776 = vpack.c.b16 %v4280, %v4264
        %v4777 = vpack.c.b16 %v4281, %v4265
        %v4778 = vpack.c.b16 %v4282, %v4266
        %v4779 = vpack.c.b16 %v4283, %v4267
        %v4780 = vpack.c.b16 %v4300, %v4284
        %v4781 = vpack.c.b16 %v4301, %v4285
        %v4782 = vpack.c.b16 %v4302, %v4286
        %v4783 = vpack.c.b16 %v4303, %v4287
        %v4784 = vpack.c.b16 %v4304, %v4288
        %v4785 = vpack.c.b16 %v4305, %v4289
        %v4786 = vpack.c.b16 %v4306, %v4290
        %v4787 = vpack.c.b16 %v4307, %v4291
        %v4788 = vpack.c.b16 %v4308, %v4292
        %v4789 = vpack.c.b16 %v4309, %v4293
        %v4790 = vpack.c.b16 %v4310, %v4294
        %v4791 = vpack.c.b16 %v4311, %v4295
        %v4792 = vpack.c.b16 %v4312, %v4296
        %v4793 = vpack.c.b16 %v4313, %v4297
        %v4794 = vpack.c.b16 %v4314, %v4298
        %v4795 = vpack.c.b16 %v4315, %v4299
        %v4796 = vpack.c.b16 %v4332, %v4316
        %v4797 = vpack.c.b16 %v4333, %v4317
        %v4798 = vpack.c.b16 %v4334, %v4318
        %v4799 = vpack.c.b16 %v4335, %v4319
        %v4800 = vpack.c.b16 %v4336, %v4320
        %v4801 = vpack.c.b16 %v4337, %v4321
        %v4802 = vpack.c.b16 %v4338, %v4322
        %v4803 = vpack.c.b16 %v4339, %v4323
        %v4804 = vpack.c.b16 %v4340, %v4324
        %v4805 = vpack.c.b16 %v4341, %v4325
        %v4806 = vpack.c.b16 %v4342, %v4326
        %v4807 = vpack.c.b16 %v4343, %v4327
        %v4808 = vpack.c.b16 %v4344, %v4328
        %v4809 = vpack.c.b16 %v4345, %v4329
        %v4810 = vpack.c.b16 %v4346, %v4330
        %v4811 = vpack.c.b16 %v4347, %v4331
        %v4812 = vpack.c.b16 %v4364, %v4348
        %v4813 = vpack.c.b16 %v4365, %v4349
        %v4814 = vpack.c.b16 %v4366, %v4350
        %v4815 = vpack.c.b16 %v4367, %v4351
        %v4816 = vpack.c.b16 %v4368, %v4352
        %v4817 = vpack.c.b16 %v4369, %v4353
        %v4818 = vpack.c.b16 %v4370, %v4354
        %v4819 = vpack.c.b16 %v4371, %v4355
        %v4820 = vpack.c.b16 %v4372, %v4356
        %v4821 = vpack.c.b16 %v4373, %v4357
        %v4822 = vpack.c.b16 %v4374, %v4358
        %v4823 = vpack.c.b16 %v4375, %v4359
        %v4824 = vpack.c.b16 %v4376, %v4360
        %v4825 = vpack.c.b16 %v4377, %v4361
        %v4826 = vpack.c.b16 %v4378, %v4362
        %v4827 = vpack.c.b16 %v4379, %v4363
        %v4828 = vpack.c.b16 %v4396, %v4380
        %v4829 = vpack.c.b16 %v4397, %v4381
        %v4830 = vpack.c.b16 %v4398, %v4382
        %v4831 = vpack.c.b16 %v4399, %v4383
        %v4832 = vpack.c.b16 %v4400, %v4384
        %v4833 = vpack.c.b16 %v4401, %v4385
        %v4834 = vpack.c.b16 %v4402, %v4386
        %v4835 = vpack.c.b16 %v4403, %v4387
        %v4836 = vpack.c.b16 %v4404, %v4388
        %v4837 = vpack.c.b16 %v4405, %v4389
        %v4838 = vpack.c.b16 %v4406, %v4390
        %v4839 = vpack.c.b16 %v4407, %v4391
        %v4840 = vpack.c.b16 %v4408, %v4392
        %v4841 = vpack.c.b16 %v4409, %v4393
        %v4842 = vpack.c.b16 %v4410, %v4394
        %v4843 = vpack.c.b16 %v4411, %v4395
        %v4844 = vpack.c.b16 %v4428, %v4412
        %v4845 = vpack.c.b16 %v4429, %v4413
        %v4846 = vpack.c.b16 %v4430, %v4414
        %v4847 = vpack.c.b16 %v4431, %v4415
        %v4848 = vpack.c.b16 %v4432, %v4416
        %v4849 = vpack.c.b16 %v4433, %v4417
        %v4850 = vpack.c.b16 %v4434, %v4418
        %v4851 = vpack.c.b16 %v4435, %v4419
        %v4852 = vpack.c.b16 %v4436, %v4420
        %v4853 = vpack.c.b16 %v4437, %v4421
        %v4854 = vpack.c.b16 %v4438, %v4422
        %v4855 = vpack.c.b16 %v4439, %v4423
        %v4856 = vpack.c.b16 %v4440, %v4424
        %v4857 = vpack.c.b16 %v4441, %v4425
        %v4858 = vpack.c.b16 %v4442, %v4426
        %v4859 = vpack.c.b16 %v4443, %v4427
        %v4860 = vpack.c.b16 %v4460, %v4444
        %v4861 = vpack.c.b16 %v4461, %v4445
        %v4862 = vpack.c.b16 %v4462, %v4446
        %v4863 = vpack.c.b16 %v4463, %v4447
        %v4864 = vpack.c.b16 %v4464, %v4448
        %v4865 = vpack.c.b16 %v4465, %v4449
        %v4866 = vpack.c.b16 %v4466, %v4450
        %v4867 = vpack.c.b16 %v4467, %v4451
        %v4868 = vpack.c.b16 %v4468, %v4452
        %v4869 = vpack.c.b16 %v4469, %v4453
        %v4870 = vpack.c.b16 %v4470, %v4454
        %v4871 = vpack.c.b16 %v4471, %v4455
        %v4872 = vpack.c.b16 %v4472, %v4456
        %v4873 = vpack.c.b16 %v4473, %v4457
        %v4874 = vpack.c.b16 %v4474, %v4458
        %v4875 = vpack.c.b16 %v4475, %v4459
        %v4876 = vpack.c.b16 %v4492, %v4476
        %v4877 = vpack.c.b16 %v4493, %v4477
        %v4878 = vpack.c.b16 %v4494, %v4478
        %v4879 = vpack.c.b16 %v4495, %v4479
        %v4880 = vpack.c.b16 %v4496, %v4480
        %v4881 = vpack.c.b16 %v4497, %v4481
        %v4882 = vpack.c.b16 %v4498, %v4482
        %v4883 = vpack.c.b16 %v4499, %v4483
        %v4884 = vpack.c.b16 %v4500, %v4484
        %v4885 = vpack.c.b16 %v4501, %v4485
        %v4886 = vpack.c.b16 %v4502, %v4486
        %v4887 = vpack.c.b16 %v4503, %v4487
        %v4888 = vpack.c.b16 %v4504, %v4488
        %v4889 = vpack.c.b16 %v4505, %v4489
        %v4890 = vpack.c.b16 %v4506, %v4490
        %v4891 = vpack.c.b16 %v4507, %v4491
        %v4892 = vpack.c.b16 %v4524, %v4508
        %v4893 = vpack.c.b16 %v4525, %v4509
        %v4894 = vpack.c.b16 %v4526, %v4510
        %v4895 = vpack.c.b16 %v4527, %v4511
        %v4896 = vpack.c.b16 %v4528, %v4512
        %v4897 = vpack.c.b16 %v4529, %v4513
        %v4898 = vpack.c.b16 %v4530, %v4514
        %v4899 = vpack.c.b16 %v4531, %v4515
        %v4900 = vpack.c.b16 %v4532, %v4516
        %v4901 = vpack.c.b16 %v4533, %v4517
        %v4902 = vpack.c.b16 %v4534, %v4518
        %v4903 = vpack.c.b16 %v4535, %v4519
        %v4904 = vpack.c.b16 %v4536, %v4520
        %v4905 = vpack.c.b16 %v4537, %v4521
        %v4906 = vpack.c.b16 %v4538, %v4522
        %v4907 = vpack.c.b16 %v4539, %v4523
        %v4908 = vpack.c.b16 %v4556, %v4540
        %v4909 = vpack.c.b16 %v4557, %v4541
        %v4910 = vpack.c.b16 %v4558, %v4542
        %v4911 = vpack.c.b16 %v4559, %v4543
        %v4912 = vpack.c.b16 %v4560, %v4544
        %v4913 = vpack.c.b16 %v4561, %v4545
        %v4914 = vpack.c.b16 %v4562, %v4546
        %v4915 = vpack.c.b16 %v4563, %v4547
        %v4916 = vpack.c.b16 %v4564, %v4548
        %v4917 = vpack.c.b16 %v4565, %v4549
        %v4918 = vpack.c.b16 %v4566, %v4550
        %v4919 = vpack.c.b16 %v4567, %v4551
        %v4920 = vpack.c.b16 %v4568, %v4552
        %v4921 = vpack.c.b16 %v4569, %v4553
        %v4922 = vpack.c.b16 %v4570, %v4554
        %v4923 = vpack.c.b16 %v4571, %v4555
        %v4924 = vpack.c.b16 %v4588, %v4572
        %v4925 = vpack.c.b16 %v4589, %v4573
        %v4926 = vpack.c.b16 %v4590, %v4574
        %v4927 = vpack.c.b16 %v4591, %v4575
        %v4928 = vpack.c.b16 %v4592, %v4576
        %v4929 = vpack.c.b16 %v4593, %v4577
        %v4930 = vpack.c.b16 %v4594, %v4578
        %v4931 = vpack.c.b16 %v4595, %v4579
        %v4932 = vpack.c.b16 %v4596, %v4580
        %v4933 = vpack.c.b16 %v4597, %v4581
        %v4934 = vpack.c.b16 %v4598, %v4582
        %v4935 = vpack.c.b16 %v4599, %v4583
        %v4936 = vpack.c.b16 %v4600, %v4584
        %v4937 = vpack.c.b16 %v4601, %v4585
        %v4938 = vpack.c.b16 %v4602, %v4586
        %v4939 = vpack.c.b16 %v4603, %v4587
        %v4940 = vpack.c.b16 %v4620, %v4604
        %v4941 = vpack.c.b16 %v4621, %v4605
        %v4942 = vpack.c.b16 %v4622, %v4606
        %v4943 = vpack.c.b16 %v4623, %v4607
        %v4944 = vpack.c.b16 %v4624, %v4608
        %v4945 = vpack.c.b16 %v4625, %v4609
        %v4946 = vpack.c.b16 %v4626, %v4610
        %v4947 = vpack.c.b16 %v4627, %v4611
        %v4948 = vpack.c.b16 %v4628, %v4612
        %v4949 = vpack.c.b16 %v4629, %v4613
        %v4950 = vpack.c.b16 %v4630, %v4614
        %v4951 = vpack.c.b16 %v4631, %v4615
        %v4952 = vpack.c.b16 %v4632, %v4616
        %v4953 = vpack.c.b16 %v4633, %v4617
        %v4954 = vpack.c.b16 %v4634, %v4618
        %v4955 = vpack.c.b16 %v4635, %v4619
        %v4956 = vpack.c.b16 %v4652, %v4636
        %v4957 = vpack.c.b16 %v4653, %v4637
        %v4958 = vpack.c.b16 %v4654, %v4638
        %v4959 = vpack.c.b16 %v4655, %v4639
        %v4960 = vpack.c.b16 %v4656, %v4640
        %v4961 = vpack.c.b16 %v4657, %v4641
        %v4962 = vpack.c.b16 %v4658, %v4642
        %v4963 = vpack.c.b16 %v4659, %v4643
        %v4964 = vpack.c.b16 %v4660, %v4644
        %v4965 = vpack.c.b16 %v4661, %v4645
        %v4966 = vpack.c.b16 %v4662, %v4646
        %v4967 = vpack.c.b16 %v4663, %v4647
        %v4968 = vpack.c.b16 %v4664, %v4648
        %v4969 = vpack.c.b16 %v4665, %v4649
        %v4970 = vpack.c.b16 %v4666, %v4650
        %v4971 = vpack.c.b16 %v4667, %v4651
        %v4972 = vpack.c.b16 %v4684, %v4668
        %v4973 = vpack.c.b16 %v4685, %v4669
        %v4974 = vpack.c.b16 %v4686, %v4670
        %v4975 = vpack.c.b16 %v4687, %v4671
        %v4976 = vpack.c.b16 %v4688, %v4672
        %v4977 = vpack.c.b16 %v4689, %v4673
        %v4978 = vpack.c.b16 %v4690, %v4674
        %v4979 = vpack.c.b16 %v4691, %v4675
        %v4980 = vpack.c.b16 %v4692, %v4676
        %v4981 = vpack.c.b16 %v4693, %v4677
        %v4982 = vpack.c.b16 %v4694, %v4678
        %v4983 = vpack.c.b16 %v4695, %v4679
        %v4984 = vpack.c.b16 %v4696, %v4680
        %v4985 = vpack.c.b16 %v4697, %v4681
        %v4986 = vpack.c.b16 %v4698, %v4682
        %v4987 = vpack.c.b16 %v4699, %v4683
        %v4988 = vpack.c.b16 %v4716, %v4700
        %v4989 = vpack.c.b16 %v4717, %v4701
        %v4990 = vpack.c.b16 %v4718, %v4702
        %v4991 = vpack.c.b16 %v4719, %v4703
        %v4992 = vpack.c.b16 %v4720, %v4704
        %v4993 = vpack.c.b16 %v4721, %v4705
        %v4994 = vpack.c.b16 %v4722, %v4706
        %v4995 = vpack.c.b16 %v4723, %v4707
        %v4996 = vpack.c.b16 %v4724, %v4708
        %v4997 = vpack.c.b16 %v4725, %v4709
        %v4998 = vpack.c.b16 %v4726, %v4710
        %v4999 = vpack.c.b16 %v4727, %v4711
        %v5000 = vpack.c.b16 %v4728, %v4712
        %v5001 = vpack.c.b16 %v4729, %v4713
        %v5002 = vpack.c.b16 %v4730, %v4714
        %v5003 = vpack.c.b16 %v4731, %v4715
        %v5004 = vpack.c.b16 %v4748, %v4732
        %v5005 = vpack.c.b16 %v4749, %v4733
        %v5006 = vpack.c.b16 %v4750, %v4734
        %v5007 = vpack.c.b16 %v4751, %v4735
        %v5008 = vpack.c.b16 %v4752, %v4736
        %v5009 = vpack.c.b16 %v4753, %v4737
        %v5010 = vpack.c.b16 %v4754, %v4738
        %v5011 = vpack.c.b16 %v4755, %v4739
        %v5012 = vpack.c.b16 %v4756, %v4740
        %v5013 = vpack.c.b16 %v4757, %v4741
        %v5014 = vpack.c.b16 %v4758, %v4742
        %v5015 = vpack.c.b16 %v4759, %v4743
        %v5016 = vpack.c.b16 %v4760, %v4744
        %v5017 = vpack.c.b16 %v4761, %v4745
        %v5018 = vpack.c.b16 %v4762, %v4746
        %v5019 = vpack.c.b16 %v4763, %v4747
        %5276 = vmatprep.subr.bf16.mxu0 %v4877
        %5277 = vmatpush1.bf16.msra.mxu0 %v4876
        %5278 = vmatprep.subr.bf16.mxu0 %v4861
        %5279 = vmatpush1.bf16.msra.mxu0 %v4860
        %5280 = vmatprep.subr.bf16.mxu0 %v4845
        %5281 = vmatpush1.bf16.msra.mxu0 %v4844
        %5282 = vmatprep.subr.bf16.mxu0 %v4829
        %5283 = vmatpush1.bf16.msra.mxu0 %v4828
        %5284 = vmatprep.subr.bf16.mxu0 %v4813
        %5285 = vmatpush1.bf16.msra.mxu0 %v4812
        %5286 = vmatprep.subr.bf16.mxu0 %v4797
        %5287 = vmatpush1.bf16.msra.mxu0 %v4796
        %5288 = vmatprep.subr.bf16.mxu0 %v4781
        %5289 = vmatpush1.bf16.msra.mxu0 %v4780
        %5290 = vmatprep.subr.bf16.mxu0 %v4765
        %5291 = vmatpush1.bf16.msra.mxu0 %v4764
        %5292 = vmatprep.subr.bf16.mxu0 %v5005
        %5293 = vmatpush2.bf16.msra.mxu0 %v5004
        %5294 = vmatprep.subr.bf16.mxu0 %v4989
        %5295 = vmatpush2.bf16.msra.mxu0 %v4988
        %5296 = vmatprep.subr.bf16.mxu0 %v4973
        %5297 = vmatpush2.bf16.msra.mxu0 %v4972
        %5298 = vmatprep.subr.bf16.mxu0 %v4957
        %5299 = vmatpush2.bf16.msra.mxu0 %v4956
        %5300 = vmatprep.subr.bf16.mxu0 %v4941
        %5301 = vmatpush2.bf16.msra.mxu0 %v4940
        %5302 = vmatprep.subr.bf16.mxu0 %v4925
        %5303 = vmatpush2.bf16.msra.mxu0 %v4924
        %5304 = vmatprep.subr.bf16.mxu0 %v4909
        %5305 = vmatpush2.bf16.msra.mxu0 %v4908
        %5306 = vmatprep.subr.bf16.mxu0 %v4893
        %5307 = vmatpush2.bf16.msra.mxu0 %v4892
        %5308 = vmatprep.mubr.bf16.mxu0 %v3739
        %5309 = vmatmul.mubr.bf16.gmra.mxu0 %v3738
        %v5310 = vpop.f32.mrf.mxu0
        %v5311 = vadd.f32 0.0, %v5310
        %v5312 = vpop.f32.mrf.mxu0
        %v5313 = vadd.f32 0.0, %v5312
        %v5314 = vpop.f32.mrf.mxu0
        %v5315 = vpop.f32.mrf.mxu0
        %5316 = vdwg.mxu0
        %5317 = vmatprep.subr.bf16.mxu0 %v4879
        %5318 = vmatpush1.bf16.msra.mxu0 %v4878
        %5319 = vmatprep.subr.bf16.mxu0 %v4863
        %5320 = vmatpush1.bf16.msra.mxu0 %v4862
        %5321 = vmatprep.subr.bf16.mxu0 %v4847
        %5322 = vmatpush1.bf16.msra.mxu0 %v4846
        %5323 = vmatprep.subr.bf16.mxu0 %v4831
        %5324 = vmatpush1.bf16.msra.mxu0 %v4830
        %5325 = vmatprep.subr.bf16.mxu0 %v4815
        %5326 = vmatpush1.bf16.msra.mxu0 %v4814
        %5327 = vmatprep.subr.bf16.mxu0 %v4799
        %5328 = vmatpush1.bf16.msra.mxu0 %v4798
        %5329 = vmatprep.subr.bf16.mxu0 %v4783
        %5330 = vmatpush1.bf16.msra.mxu0 %v4782
        %5331 = vmatprep.subr.bf16.mxu0 %v4767
        %5332 = vmatpush1.bf16.msra.mxu0 %v4766
        %5333 = vmatprep.subr.bf16.mxu0 %v5007
        %5334 = vmatpush2.bf16.msra.mxu0 %v5006
        %5335 = vmatprep.subr.bf16.mxu0 %v4991
        %5336 = vmatpush2.bf16.msra.mxu0 %v4990
        %5337 = vmatprep.subr.bf16.mxu0 %v4975
        %5338 = vmatpush2.bf16.msra.mxu0 %v4974
        %5339 = vmatprep.subr.bf16.mxu0 %v4959
        %5340 = vmatpush2.bf16.msra.mxu0 %v4958
        %5341 = vmatprep.subr.bf16.mxu0 %v4943
        %5342 = vmatpush2.bf16.msra.mxu0 %v4942
        %5343 = vmatprep.subr.bf16.mxu0 %v4927
        %5344 = vmatpush2.bf16.msra.mxu0 %v4926
        %5345 = vmatprep.subr.bf16.mxu0 %v4911
        %5346 = vmatpush2.bf16.msra.mxu0 %v4910
        %5347 = vmatprep.subr.bf16.mxu0 %v4895
        %5348 = vmatpush2.bf16.msra.mxu0 %v4894
        %5349 = vmatprep.mubr.bf16.mxu0 %v3739
        %5350 = vmatmul.mubr.bf16.gmra.mxu0 %v3738
        %v5351 = vpop.f32.mrf.mxu0
        %v5352 = vadd.f32 0.0, %v5351
        %v5353 = vpop.f32.mrf.mxu0
        %v5354 = vadd.f32 0.0, %v5353
        %v5355 = vpop.f32.mrf.mxu0
        %v5356 = vpop.f32.mrf.mxu0
        %5357 = vdwg.mxu0
        %5358 = vmatprep.subr.bf16.mxu0 %v4881
        %5359 = vmatpush1.bf16.msra.mxu0 %v4880
        %5360 = vmatprep.subr.bf16.mxu0 %v4865
        %5361 = vmatpush1.bf16.msra.mxu0 %v4864
        %5362 = vmatprep.subr.bf16.mxu0 %v4849
        %5363 = vmatpush1.bf16.msra.mxu0 %v4848
        %5364 = vmatprep.subr.bf16.mxu0 %v4833
        %5365 = vmatpush1.bf16.msra.mxu0 %v4832
        %5366 = vmatprep.subr.bf16.mxu0 %v4817
        %5367 = vmatpush1.bf16.msra.mxu0 %v4816
        %5368 = vmatprep.subr.bf16.mxu0 %v4801
        %5369 = vmatpush1.bf16.msra.mxu0 %v4800
        %5370 = vmatprep.subr.bf16.mxu0 %v4785
        %5371 = vmatpush1.bf16.msra.mxu0 %v4784
        %5372 = vmatprep.subr.bf16.mxu0 %v4769
        %5373 = vmatpush1.bf16.msra.mxu0 %v4768
        %5374 = vmatprep.subr.bf16.mxu0 %v5009
        %5375 = vmatpush2.bf16.msra.mxu0 %v5008
        %5376 = vmatprep.subr.bf16.mxu0 %v4993
        %5377 = vmatpush2.bf16.msra.mxu0 %v4992
        %5378 = vmatprep.subr.bf16.mxu0 %v4977
        %5379 = vmatpush2.bf16.msra.mxu0 %v4976
        %5380 = vmatprep.subr.bf16.mxu0 %v4961
        %5381 = vmatpush2.bf16.msra.mxu0 %v4960
        %5382 = vmatprep.subr.bf16.mxu0 %v4945
        %5383 = vmatpush2.bf16.msra.mxu0 %v4944
        %5384 = vmatprep.subr.bf16.mxu0 %v4929
        %5385 = vmatpush2.bf16.msra.mxu0 %v4928
        %5386 = vmatprep.subr.bf16.mxu0 %v4913
        %5387 = vmatpush2.bf16.msra.mxu0 %v4912
        %5388 = vmatprep.subr.bf16.mxu0 %v4897
        %5389 = vmatpush2.bf16.msra.mxu0 %v4896
        %5390 = vmatprep.mubr.bf16.mxu0 %v3739
        %5391 = vmatmul.mubr.bf16.gmra.mxu0 %v3738
        %v5392 = vpop.f32.mrf.mxu0
        %v5393 = vadd.f32 0.0, %v5392
        %v5394 = vpop.f32.mrf.mxu0
        %v5395 = vadd.f32 0.0, %v5394
        %v5396 = vpop.f32.mrf.mxu0
        %v5397 = vpop.f32.mrf.mxu0
        %5398 = vdwg.mxu0
        %5399 = vmatprep.subr.bf16.mxu0 %v4883
        %5400 = vmatpush1.bf16.msra.mxu0 %v4882
        %5401 = vmatprep.subr.bf16.mxu0 %v4867
        %5402 = vmatpush1.bf16.msra.mxu0 %v4866
        %5403 = vmatprep.subr.bf16.mxu0 %v4851
        %5404 = vmatpush1.bf16.msra.mxu0 %v4850
        %5405 = vmatprep.subr.bf16.mxu0 %v4835
        %5406 = vmatpush1.bf16.msra.mxu0 %v4834
        %5407 = vmatprep.subr.bf16.mxu0 %v4819
        %5408 = vmatpush1.bf16.msra.mxu0 %v4818
        %5409 = vmatprep.subr.bf16.mxu0 %v4803
        %5410 = vmatpush1.bf16.msra.mxu0 %v4802
        %5411 = vmatprep.subr.bf16.mxu0 %v4787
        %5412 = vmatpush1.bf16.msra.mxu0 %v4786
        %5413 = vmatprep.subr.bf16.mxu0 %v4771
        %5414 = vmatpush1.bf16.msra.mxu0 %v4770
        %5415 = vmatprep.subr.bf16.mxu0 %v5011
        %5416 = vmatpush2.bf16.msra.mxu0 %v5010
        %5417 = vmatprep.subr.bf16.mxu0 %v4995
        %5418 = vmatpush2.bf16.msra.mxu0 %v4994
        %5419 = vmatprep.subr.bf16.mxu0 %v4979
        %5420 = vmatpush2.bf16.msra.mxu0 %v4978
        %5421 = vmatprep.subr.bf16.mxu0 %v4963
        %5422 = vmatpush2.bf16.msra.mxu0 %v4962
        %5423 = vmatprep.subr.bf16.mxu0 %v4947
        %5424 = vmatpush2.bf16.msra.mxu0 %v4946
        %5425 = vmatprep.subr.bf16.mxu0 %v4931
        %5426 = vmatpush2.bf16.msra.mxu0 %v4930
        %5427 = vmatprep.subr.bf16.mxu0 %v4915
        %5428 = vmatpush2.bf16.msra.mxu0 %v4914
        %5429 = vmatprep.subr.bf16.mxu0 %v4899
        %5430 = vmatpush2.bf16.msra.mxu0 %v4898
        %5431 = vmatprep.mubr.bf16.mxu0 %v3739
        %5432 = vmatmul.mubr.bf16.gmra.mxu0 %v3738
        %v5433 = vpop.f32.mrf.mxu0
        %v5434 = vadd.f32 0.0, %v5433
        %v5435 = vpop.f32.mrf.mxu0
        %v5436 = vadd.f32 0.0, %v5435
        %v5437 = vpop.f32.mrf.mxu0
        %v5438 = vpop.f32.mrf.mxu0
        %5439 = vdwg.mxu0
        %5440 = vmatprep.subr.bf16.mxu0 %v4885
        %5441 = vmatpush1.bf16.msra.mxu0 %v4884
        %5442 = vmatprep.subr.bf16.mxu0 %v4869
        %5443 = vmatpush1.bf16.msra.mxu0 %v4868
        %5444 = vmatprep.subr.bf16.mxu0 %v4853
        %5445 = vmatpush1.bf16.msra.mxu0 %v4852
        %5446 = vmatprep.subr.bf16.mxu0 %v4837
        %5447 = vmatpush1.bf16.msra.mxu0 %v4836
        %5448 = vmatprep.subr.bf16.mxu0 %v4821
        %5449 = vmatpush1.bf16.msra.mxu0 %v4820
        %5450 = vmatprep.subr.bf16.mxu0 %v4805
        %5451 = vmatpush1.bf16.msra.mxu0 %v4804
        %5452 = vmatprep.subr.bf16.mxu0 %v4789
        %5453 = vmatpush1.bf16.msra.mxu0 %v4788
        %5454 = vmatprep.subr.bf16.mxu0 %v4773
        %5455 = vmatpush1.bf16.msra.mxu0 %v4772
        %5456 = vmatprep.subr.bf16.mxu0 %v5013
        %5457 = vmatpush2.bf16.msra.mxu0 %v5012
        %5458 = vmatprep.subr.bf16.mxu0 %v4997
        %5459 = vmatpush2.bf16.msra.mxu0 %v4996
        %5460 = vmatprep.subr.bf16.mxu0 %v4981
        %5461 = vmatpush2.bf16.msra.mxu0 %v4980
        %5462 = vmatprep.subr.bf16.mxu0 %v4965
        %5463 = vmatpush2.bf16.msra.mxu0 %v4964
        %5464 = vmatprep.subr.bf16.mxu0 %v4949
        %5465 = vmatpush2.bf16.msra.mxu0 %v4948
        %5466 = vmatprep.subr.bf16.mxu0 %v4933
        %5467 = vmatpush2.bf16.msra.mxu0 %v4932
        %5468 = vmatprep.subr.bf16.mxu0 %v4917
        %5469 = vmatpush2.bf16.msra.mxu0 %v4916
        %5470 = vmatprep.subr.bf16.mxu0 %v4901
        %5471 = vmatpush2.bf16.msra.mxu0 %v4900
        %5472 = vmatprep.mubr.bf16.mxu0 %v3739
        %5473 = vmatmul.mubr.bf16.gmra.mxu0 %v3738
        %v5474 = vpop.f32.mrf.mxu0
        %v5475 = vadd.f32 0.0, %v5474
        %v5476 = vpop.f32.mrf.mxu0
        %v5477 = vadd.f32 0.0, %v5476
        %v5478 = vpop.f32.mrf.mxu0
        %v5479 = vpop.f32.mrf.mxu0
        %5480 = vdwg.mxu0
        %5481 = vmatprep.subr.bf16.mxu0 %v4887
        %5482 = vmatpush1.bf16.msra.mxu0 %v4886
        %5483 = vmatprep.subr.bf16.mxu0 %v4871
        %5484 = vmatpush1.bf16.msra.mxu0 %v4870
        %5485 = vmatprep.subr.bf16.mxu0 %v4855
        %5486 = vmatpush1.bf16.msra.mxu0 %v4854
        %5487 = vmatprep.subr.bf16.mxu0 %v4839
        %5488 = vmatpush1.bf16.msra.mxu0 %v4838
        %5489 = vmatprep.subr.bf16.mxu0 %v4823
        %5490 = vmatpush1.bf16.msra.mxu0 %v4822
        %5491 = vmatprep.subr.bf16.mxu0 %v4807
        %5492 = vmatpush1.bf16.msra.mxu0 %v4806
        %5493 = vmatprep.subr.bf16.mxu0 %v4791
        %5494 = vmatpush1.bf16.msra.mxu0 %v4790
        %5495 = vmatprep.subr.bf16.mxu0 %v4775
        %5496 = vmatpush1.bf16.msra.mxu0 %v4774
        %5497 = vmatprep.subr.bf16.mxu0 %v5015
        %5498 = vmatpush2.bf16.msra.mxu0 %v5014
        %5499 = vmatprep.subr.bf16.mxu0 %v4999
        %5500 = vmatpush2.bf16.msra.mxu0 %v4998
        %5501 = vmatprep.subr.bf16.mxu0 %v4983
        %5502 = vmatpush2.bf16.msra.mxu0 %v4982
        %5503 = vmatprep.subr.bf16.mxu0 %v4967
        %5504 = vmatpush2.bf16.msra.mxu0 %v4966
        %5505 = vmatprep.subr.bf16.mxu0 %v4951
        %5506 = vmatpush2.bf16.msra.mxu0 %v4950
        %5507 = vmatprep.subr.bf16.mxu0 %v4935
        %5508 = vmatpush2.bf16.msra.mxu0 %v4934
        %5509 = vmatprep.subr.bf16.mxu0 %v4919
        %5510 = vmatpush2.bf16.msra.mxu0 %v4918
        %5511 = vmatprep.subr.bf16.mxu0 %v4903
        %5512 = vmatpush2.bf16.msra.mxu0 %v4902
        %5513 = vmatprep.mubr.bf16.mxu0 %v3739
        %5514 = vmatmul.mubr.bf16.gmra.mxu0 %v3738
        %v5515 = vpop.f32.mrf.mxu0
        %v5516 = vadd.f32 0.0, %v5515
        %v5517 = vpop.f32.mrf.mxu0
        %v5518 = vadd.f32 0.0, %v5517
        %v5519 = vpop.f32.mrf.mxu0
        %v5520 = vpop.f32.mrf.mxu0
        %5521 = vdwg.mxu0
        %5522 = vmatprep.subr.bf16.mxu0 %v4889
        %5523 = vmatpush1.bf16.msra.mxu0 %v4888
        %5524 = vmatprep.subr.bf16.mxu0 %v4873
        %5525 = vmatpush1.bf16.msra.mxu0 %v4872
        %5526 = vmatprep.subr.bf16.mxu0 %v4857
        %5527 = vmatpush1.bf16.msra.mxu0 %v4856
        %5528 = vmatprep.subr.bf16.mxu0 %v4841
        %5529 = vmatpush1.bf16.msra.mxu0 %v4840
        %5530 = vmatprep.subr.bf16.mxu0 %v4825
        %5531 = vmatpush1.bf16.msra.mxu0 %v4824
        %5532 = vmatprep.subr.bf16.mxu0 %v4809
        %5533 = vmatpush1.bf16.msra.mxu0 %v4808
        %5534 = vmatprep.subr.bf16.mxu0 %v4793
        %5535 = vmatpush1.bf16.msra.mxu0 %v4792
        %5536 = vmatprep.subr.bf16.mxu0 %v4777
        %5537 = vmatpush1.bf16.msra.mxu0 %v4776
        %5538 = vmatprep.subr.bf16.mxu0 %v5017
        %5539 = vmatpush2.bf16.msra.mxu0 %v5016
        %5540 = vmatprep.subr.bf16.mxu0 %v5001
        %5541 = vmatpush2.bf16.msra.mxu0 %v5000
        %5542 = vmatprep.subr.bf16.mxu0 %v4985
        %5543 = vmatpush2.bf16.msra.mxu0 %v4984
        %5544 = vmatprep.subr.bf16.mxu0 %v4969
        %5545 = vmatpush2.bf16.msra.mxu0 %v4968
        %5546 = vmatprep.subr.bf16.mxu0 %v4953
        %5547 = vmatpush2.bf16.msra.mxu0 %v4952
        %5548 = vmatprep.subr.bf16.mxu0 %v4937
        %5549 = vmatpush2.bf16.msra.mxu0 %v4936
        %5550 = vmatprep.subr.bf16.mxu0 %v4921
        %5551 = vmatpush2.bf16.msra.mxu0 %v4920
        %5552 = vmatprep.subr.bf16.mxu0 %v4905
        %5553 = vmatpush2.bf16.msra.mxu0 %v4904
        %5554 = vmatprep.mubr.bf16.mxu0 %v3739
        %5555 = vmatmul.mubr.bf16.gmra.mxu0 %v3738
        %v5556 = vpop.f32.mrf.mxu0
        %v5557 = vadd.f32 0.0, %v5556
        %v5558 = vpop.f32.mrf.mxu0
        %v5559 = vadd.f32 0.0, %v5558
        %v5560 = vpop.f32.mrf.mxu0
        %v5561 = vpop.f32.mrf.mxu0
        %5562 = vdwg.mxu0
        %5563 = vmatprep.subr.bf16.mxu0 %v4891
        %5564 = vmatpush1.bf16.msra.mxu0 %v4890
        %5565 = vmatprep.subr.bf16.mxu0 %v4875
        %5566 = vmatpush1.bf16.msra.mxu0 %v4874
        %5567 = vmatprep.subr.bf16.mxu0 %v4859
        %5568 = vmatpush1.bf16.msra.mxu0 %v4858
        %5569 = vmatprep.subr.bf16.mxu0 %v4843
        %5570 = vmatpush1.bf16.msra.mxu0 %v4842
        %5571 = vmatprep.subr.bf16.mxu0 %v4827
        %5572 = vmatpush1.bf16.msra.mxu0 %v4826
        %5573 = vmatprep.subr.bf16.mxu0 %v4811
        %5574 = vmatpush1.bf16.msra.mxu0 %v4810
        %5575 = vmatprep.subr.bf16.mxu0 %v4795
        %5576 = vmatpush1.bf16.msra.mxu0 %v4794
        %5577 = vmatprep.subr.bf16.mxu0 %v4779
        %5578 = vmatpush1.bf16.msra.mxu0 %v4778
        %5579 = vmatprep.subr.bf16.mxu0 %v5019
        %5580 = vmatpush2.bf16.msra.mxu0 %v5018
        %5581 = vmatprep.subr.bf16.mxu0 %v5003
        %5582 = vmatpush2.bf16.msra.mxu0 %v5002
        %5583 = vmatprep.subr.bf16.mxu0 %v4987
        %5584 = vmatpush2.bf16.msra.mxu0 %v4986
        %5585 = vmatprep.subr.bf16.mxu0 %v4971
        %5586 = vmatpush2.bf16.msra.mxu0 %v4970
        %5587 = vmatprep.subr.bf16.mxu0 %v4955
        %5588 = vmatpush2.bf16.msra.mxu0 %v4954
        %5589 = vmatprep.subr.bf16.mxu0 %v4939
        %5590 = vmatpush2.bf16.msra.mxu0 %v4938
        %5591 = vmatprep.subr.bf16.mxu0 %v4923
        %5592 = vmatpush2.bf16.msra.mxu0 %v4922
        %5593 = vmatprep.subr.bf16.mxu0 %v4907
        %5594 = vmatpush2.bf16.msra.mxu0 %v4906
        %5595 = vmatprep.mubr.bf16.mxu0 %v3739
        %5596 = vmatmul.mubr.bf16.gmra.mxu0 %v3738
        %v5597 = vpop.f32.mrf.mxu0
        %v5598 = vadd.f32 0.0, %v5597
        %v5599 = vpop.f32.mrf.mxu0
        %v5600 = vadd.f32 0.0, %v5599
        %v5601 = vpop.f32.mrf.mxu0
        %v5602 = vpop.f32.mrf.mxu0
        %5603 = vdwg.mxu0
        %v5604 = vld [vmem:[#allocation2] sm:$0xff]
        %v5605 = vld [vmem:[#allocation2 + $0x8] sm:$0xff]
        %v5608 = vcombine.high %v3723, %v3723
        %v5610 = vunpack.c.l.s4 1983009808
        %v5611 = vunpack.c.0.s8 %v5610
        %v5612 = vlaneseq
        %v5613 = vshrl.u32 %v5612, 7
        %v5614 = vsub.s32 %v5611, %v5613
        %v5615 = vrot.slane %v3723, %v5614
        %v5617 = vunpack.c.l.s4 1983009808
        %v5618 = vunpack.c.0.s8 %v5617
        %v5619 = vlaneseq
        %v5620 = vshrl.u32 %v5619, 7
        %v5621 = vsub.s32 %v5618, %v5620
        %v5622 = vrot.slane %v5608, %v5621
        %v5623 = vcombine.high %v5615, %v5615
        %v5624 = vcombine.high %v5622, %v5622
        %v5626 = vunpack.c.l.s4 1983009808
        %v5627 = vunpack.c.0.s8 %v5626
        %v5628 = vlaneseq
        %v5629 = vshrl.u32 %v5628, 7
        %v5630 = vsub.s32 %v5627, %v5629
        %v5631 = vrot.slane %v3725, %v5630
        %v5632 = vcombine.high %v5631, %v5631
        %v5639 = vpack.c.bf16 %v5615, %v5615
        %v5640 = vpack.c.bf16 %v5623, %v5623
        %v5641 = vpack.c.bf16 %v5622, %v5622
        %v5642 = vpack.c.bf16 %v5624, %v5624
        %v5643 = vpack.c.bf16 %v5631, %v5631
        %v5644 = vpack.c.bf16 %v5632, %v5632
        %v5645 = vld [vmem:[#allocation16] sm:$0xff]
        %v5646 = vld [vmem:[#allocation16 + $0x8] sm:$0xff]
        %v5647 = vld [vmem:[#allocation16 + $0x10] sm:$0xff]
        %v5648 = vld [vmem:[#allocation16 + $0x18] sm:$0xff]
        %v5649 = vld [vmem:[#allocation16 + $0x20] sm:$0xff]
        %v5650 = vld [vmem:[#allocation16 + $0x28] sm:$0xff]
        %v5651 = vld [vmem:[#allocation16 + $0x30] sm:$0xff]
        %v5652 = vld [vmem:[#allocation16 + $0x38] sm:$0xff]
        %v5653 = vld [vmem:[#allocation16 + $0x40] sm:$0xff]
        %v5654 = vld [vmem:[#allocation16 + $0x48] sm:$0xff]
        %v5655 = vld [vmem:[#allocation16 + $0x50] sm:$0xff]
        %v5656 = vld [vmem:[#allocation16 + $0x58] sm:$0xff]
        %v5657 = vld [vmem:[#allocation16 + $0x60] sm:$0xff]
        %v5658 = vld [vmem:[#allocation16 + $0x68] sm:$0xff]
        %v5659 = vld [vmem:[#allocation16 + $0x70] sm:$0xff]
        %v5660 = vld [vmem:[#allocation16 + $0x78] sm:$0xff]
        %v5661 = vld [vmem:[#allocation16 + $0x80] sm:$0xff]
        %v5662 = vld [vmem:[#allocation16 + $0x88] sm:$0xff]
        %v5663 = vld [vmem:[#allocation16 + $0x90] sm:$0xff]
        %v5664 = vld [vmem:[#allocation16 + $0x98] sm:$0xff]
        %v5665 = vld [vmem:[#allocation16 + $0xa0] sm:$0xff]
        %v5666 = vld [vmem:[#allocation16 + $0xa8] sm:$0xff]
        %v5667 = vld [vmem:[#allocation16 + $0xb0] sm:$0xff]
        %v5668 = vld [vmem:[#allocation16 + $0xb8] sm:$0xff]
        %v5669 = vld [vmem:[#allocation16 + $0xc0] sm:$0xff]
        %v5670 = vld [vmem:[#allocation16 + $0xc8] sm:$0xff]
        %v5671 = vld [vmem:[#allocation16 + $0xd0] sm:$0xff]
        %v5672 = vld [vmem:[#allocation16 + $0xd8] sm:$0xff]
        %v5673 = vld [vmem:[#allocation16 + $0xe0] sm:$0xff]
        %v5674 = vld [vmem:[#allocation16 + $0xe8] sm:$0xff]
        %v5675 = vld [vmem:[#allocation16 + $0xf0] sm:$0xff]
        %v5676 = vld [vmem:[#allocation16 + $0xf8] sm:$0xff]
        %v5677 = vld [vmem:[#allocation16 + $0x100] sm:$0xff]
        %v5678 = vld [vmem:[#allocation16 + $0x108] sm:$0xff]
        %v5679 = vld [vmem:[#allocation16 + $0x110] sm:$0xff]
        %v5680 = vld [vmem:[#allocation16 + $0x118] sm:$0xff]
        %v5681 = vld [vmem:[#allocation16 + $0x120] sm:$0xff]
        %v5682 = vld [vmem:[#allocation16 + $0x128] sm:$0xff]
        %v5683 = vld [vmem:[#allocation16 + $0x130] sm:$0xff]
        %v5684 = vld [vmem:[#allocation16 + $0x138] sm:$0xff]
        %v5685 = vld [vmem:[#allocation16 + $0x140] sm:$0xff]
        %v5686 = vld [vmem:[#allocation16 + $0x148] sm:$0xff]
        %v5687 = vld [vmem:[#allocation16 + $0x150] sm:$0xff]
        %v5688 = vld [vmem:[#allocation16 + $0x158] sm:$0xff]
        %v5689 = vld [vmem:[#allocation16 + $0x160] sm:$0xff]
        %v5690 = vld [vmem:[#allocation16 + $0x168] sm:$0xff]
        %v5691 = vld [vmem:[#allocation16 + $0x170] sm:$0xff]
        %v5692 = vld [vmem:[#allocation16 + $0x178] sm:$0xff]
        %v5693 = vld [vmem:[#allocation16 + $0x180] sm:$0xff]
        %v5694 = vld [vmem:[#allocation16 + $0x188] sm:$0xff]
        %v5695 = vld [vmem:[#allocation16 + $0x190] sm:$0xff]
        %v5696 = vld [vmem:[#allocation16 + $0x198] sm:$0xff]
        %v5697 = vld [vmem:[#allocation16 + $0x1a0] sm:$0xff]
        %v5698 = vld [vmem:[#allocation16 + $0x1a8] sm:$0xff]
        %v5699 = vld [vmem:[#allocation16 + $0x1b0] sm:$0xff]
        %v5700 = vld [vmem:[#allocation16 + $0x1b8] sm:$0xff]
        %v5701 = vld [vmem:[#allocation16 + $0x1c0] sm:$0xff]
        %v5702 = vld [vmem:[#allocation16 + $0x1c8] sm:$0xff]
        %v5703 = vld [vmem:[#allocation16 + $0x1d0] sm:$0xff]
        %v5704 = vld [vmem:[#allocation16 + $0x1d8] sm:$0xff]
        %v5705 = vld [vmem:[#allocation16 + $0x1e0] sm:$0xff]
        %v5706 = vld [vmem:[#allocation16 + $0x1e8] sm:$0xff]
        %v5707 = vld [vmem:[#allocation16 + $0x1f0] sm:$0xff]
        %v5708 = vld [vmem:[#allocation16 + $0x1f8] sm:$0xff]
        %v5709 = vld [vmem:[#allocation16 + $0x200] sm:$0xff]
        %v5710 = vld [vmem:[#allocation16 + $0x208] sm:$0xff]
        %v5711 = vld [vmem:[#allocation16 + $0x210] sm:$0xff]
        %v5712 = vld [vmem:[#allocation16 + $0x218] sm:$0xff]
        %v5713 = vld [vmem:[#allocation16 + $0x220] sm:$0xff]
        %v5714 = vld [vmem:[#allocation16 + $0x228] sm:$0xff]
        %v5715 = vld [vmem:[#allocation16 + $0x230] sm:$0xff]
        %v5716 = vld [vmem:[#allocation16 + $0x238] sm:$0xff]
        %v5717 = vld [vmem:[#allocation16 + $0x240] sm:$0xff]
        %v5718 = vld [vmem:[#allocation16 + $0x248] sm:$0xff]
        %v5719 = vld [vmem:[#allocation16 + $0x250] sm:$0xff]
        %v5720 = vld [vmem:[#allocation16 + $0x258] sm:$0xff]
        %v5721 = vld [vmem:[#allocation16 + $0x260] sm:$0xff]
        %v5722 = vld [vmem:[#allocation16 + $0x268] sm:$0xff]
        %v5723 = vld [vmem:[#allocation16 + $0x270] sm:$0xff]
        %v5724 = vld [vmem:[#allocation16 + $0x278] sm:$0xff]
        %v5725 = vld [vmem:[#allocation16 + $0x280] sm:$0xff]
        %v5726 = vld [vmem:[#allocation16 + $0x288] sm:$0xff]
        %v5727 = vld [vmem:[#allocation16 + $0x290] sm:$0xff]
        %v5728 = vld [vmem:[#allocation16 + $0x298] sm:$0xff]
        %v5729 = vld [vmem:[#allocation16 + $0x2a0] sm:$0xff]
        %v5730 = vld [vmem:[#allocation16 + $0x2a8] sm:$0xff]
        %v5731 = vld [vmem:[#allocation16 + $0x2b0] sm:$0xff]
        %v5732 = vld [vmem:[#allocation16 + $0x2b8] sm:$0xff]
        %v5733 = vld [vmem:[#allocation16 + $0x2c0] sm:$0xff]
        %v5734 = vld [vmem:[#allocation16 + $0x2c8] sm:$0xff]
        %v5735 = vld [vmem:[#allocation16 + $0x2d0] sm:$0xff]
        %v5736 = vld [vmem:[#allocation16 + $0x2d8] sm:$0xff]
        %v5737 = vld [vmem:[#allocation16 + $0x2e0] sm:$0xff]
        %v5738 = vld [vmem:[#allocation16 + $0x2e8] sm:$0xff]
        %v5739 = vld [vmem:[#allocation16 + $0x2f0] sm:$0xff]
        %v5740 = vld [vmem:[#allocation16 + $0x2f8] sm:$0xff]
        %v5741 = vld [vmem:[#allocation16 + $0x300] sm:$0xff]
        %v5742 = vld [vmem:[#allocation16 + $0x308] sm:$0xff]
        %v5743 = vld [vmem:[#allocation16 + $0x310] sm:$0xff]
        %v5744 = vld [vmem:[#allocation16 + $0x318] sm:$0xff]
        %v5745 = vld [vmem:[#allocation16 + $0x320] sm:$0xff]
        %v5746 = vld [vmem:[#allocation16 + $0x328] sm:$0xff]
        %v5747 = vld [vmem:[#allocation16 + $0x330] sm:$0xff]
        %v5748 = vld [vmem:[#allocation16 + $0x338] sm:$0xff]
        %v5749 = vld [vmem:[#allocation16 + $0x340] sm:$0xff]
        %v5750 = vld [vmem:[#allocation16 + $0x348] sm:$0xff]
        %v5751 = vld [vmem:[#allocation16 + $0x350] sm:$0xff]
        %v5752 = vld [vmem:[#allocation16 + $0x358] sm:$0xff]
        %v5753 = vld [vmem:[#allocation16 + $0x360] sm:$0xff]
        %v5754 = vld [vmem:[#allocation16 + $0x368] sm:$0xff]
        %v5755 = vld [vmem:[#allocation16 + $0x370] sm:$0xff]
        %v5756 = vld [vmem:[#allocation16 + $0x378] sm:$0xff]
        %v5757 = vld [vmem:[#allocation16 + $0x380] sm:$0xff]
        %v5758 = vld [vmem:[#allocation16 + $0x388] sm:$0xff]
        %v5759 = vld [vmem:[#allocation16 + $0x390] sm:$0xff]
        %v5760 = vld [vmem:[#allocation16 + $0x398] sm:$0xff]
        %v5761 = vld [vmem:[#allocation16 + $0x3a0] sm:$0xff]
        %v5762 = vld [vmem:[#allocation16 + $0x3a8] sm:$0xff]
        %v5763 = vld [vmem:[#allocation16 + $0x3b0] sm:$0xff]
        %v5764 = vld [vmem:[#allocation16 + $0x3b8] sm:$0xff]
        %v5765 = vld [vmem:[#allocation16 + $0x3c0] sm:$0xff]
        %v5766 = vld [vmem:[#allocation16 + $0x3c8] sm:$0xff]
        %v5767 = vld [vmem:[#allocation16 + $0x3d0] sm:$0xff]
        %v5768 = vld [vmem:[#allocation16 + $0x3d8] sm:$0xff]
        %v5769 = vld [vmem:[#allocation16 + $0x3e0] sm:$0xff]
        %v5770 = vld [vmem:[#allocation16 + $0x3e8] sm:$0xff]
        %v5771 = vld [vmem:[#allocation16 + $0x3f0] sm:$0xff]
        %v5772 = vld [vmem:[#allocation16 + $0x3f8] sm:$0xff]
        %v5773 = vld [vmem:[#allocation16 + $0x400] sm:$0xff]
        %v5774 = vld [vmem:[#allocation16 + $0x408] sm:$0xff]
        %v5775 = vld [vmem:[#allocation16 + $0x410] sm:$0xff]
        %v5776 = vld [vmem:[#allocation16 + $0x418] sm:$0xff]
        %v5777 = vld [vmem:[#allocation16 + $0x420] sm:$0xff]
        %v5778 = vld [vmem:[#allocation16 + $0x428] sm:$0xff]
        %v5779 = vld [vmem:[#allocation16 + $0x430] sm:$0xff]
        %v5780 = vld [vmem:[#allocation16 + $0x438] sm:$0xff]
        %v5781 = vld [vmem:[#allocation16 + $0x440] sm:$0xff]
        %v5782 = vld [vmem:[#allocation16 + $0x448] sm:$0xff]
        %v5783 = vld [vmem:[#allocation16 + $0x450] sm:$0xff]
        %v5784 = vld [vmem:[#allocation16 + $0x458] sm:$0xff]
        %v5785 = vld [vmem:[#allocation16 + $0x460] sm:$0xff]
        %v5786 = vld [vmem:[#allocation16 + $0x468] sm:$0xff]
        %v5787 = vld [vmem:[#allocation16 + $0x470] sm:$0xff]
        %v5788 = vld [vmem:[#allocation16 + $0x478] sm:$0xff]
        %v5789 = vld [vmem:[#allocation16 + $0x480] sm:$0xff]
        %v5790 = vld [vmem:[#allocation16 + $0x488] sm:$0xff]
        %v5791 = vld [vmem:[#allocation16 + $0x490] sm:$0xff]
        %v5792 = vld [vmem:[#allocation16 + $0x498] sm:$0xff]
        %v5793 = vld [vmem:[#allocation16 + $0x4a0] sm:$0xff]
        %v5794 = vld [vmem:[#allocation16 + $0x4a8] sm:$0xff]
        %v5795 = vld [vmem:[#allocation16 + $0x4b0] sm:$0xff]
        %v5796 = vld [vmem:[#allocation16 + $0x4b8] sm:$0xff]
        %v5797 = vld [vmem:[#allocation16 + $0x4c0] sm:$0xff]
        %v5798 = vld [vmem:[#allocation16 + $0x4c8] sm:$0xff]
        %v5799 = vld [vmem:[#allocation16 + $0x4d0] sm:$0xff]
        %v5800 = vld [vmem:[#allocation16 + $0x4d8] sm:$0xff]
        %v5801 = vld [vmem:[#allocation16 + $0x4e0] sm:$0xff]
        %v5802 = vld [vmem:[#allocation16 + $0x4e8] sm:$0xff]
        %v5803 = vld [vmem:[#allocation16 + $0x4f0] sm:$0xff]
        %v5804 = vld [vmem:[#allocation16 + $0x4f8] sm:$0xff]
        %v5805 = vld [vmem:[#allocation16 + $0x500] sm:$0xff]
        %v5806 = vld [vmem:[#allocation16 + $0x508] sm:$0xff]
        %v5807 = vld [vmem:[#allocation16 + $0x510] sm:$0xff]
        %v5808 = vld [vmem:[#allocation16 + $0x518] sm:$0xff]
        %v5809 = vld [vmem:[#allocation16 + $0x520] sm:$0xff]
        %v5810 = vld [vmem:[#allocation16 + $0x528] sm:$0xff]
        %v5811 = vld [vmem:[#allocation16 + $0x530] sm:$0xff]
        %v5812 = vld [vmem:[#allocation16 + $0x538] sm:$0xff]
        %v5813 = vld [vmem:[#allocation16 + $0x540] sm:$0xff]
        %v5814 = vld [vmem:[#allocation16 + $0x548] sm:$0xff]
        %v5815 = vld [vmem:[#allocation16 + $0x550] sm:$0xff]
        %v5816 = vld [vmem:[#allocation16 + $0x558] sm:$0xff]
        %v5817 = vld [vmem:[#allocation16 + $0x560] sm:$0xff]
        %v5818 = vld [vmem:[#allocation16 + $0x568] sm:$0xff]
        %v5819 = vld [vmem:[#allocation16 + $0x570] sm:$0xff]
        %v5820 = vld [vmem:[#allocation16 + $0x578] sm:$0xff]
        %v5821 = vld [vmem:[#allocation16 + $0x580] sm:$0xff]
        %v5822 = vld [vmem:[#allocation16 + $0x588] sm:$0xff]
        %v5823 = vld [vmem:[#allocation16 + $0x590] sm:$0xff]
        %v5824 = vld [vmem:[#allocation16 + $0x598] sm:$0xff]
        %v5825 = vld [vmem:[#allocation16 + $0x5a0] sm:$0xff]
        %v5826 = vld [vmem:[#allocation16 + $0x5a8] sm:$0xff]
        %v5827 = vld [vmem:[#allocation16 + $0x5b0] sm:$0xff]
        %v5828 = vld [vmem:[#allocation16 + $0x5b8] sm:$0xff]
        %v5829 = vld [vmem:[#allocation16 + $0x5c0] sm:$0xff]
        %v5830 = vld [vmem:[#allocation16 + $0x5c8] sm:$0xff]
        %v5831 = vld [vmem:[#allocation16 + $0x5d0] sm:$0xff]
        %v5832 = vld [vmem:[#allocation16 + $0x5d8] sm:$0xff]
        %v5833 = vld [vmem:[#allocation16 + $0x5e0] sm:$0xff]
        %v5834 = vld [vmem:[#allocation16 + $0x5e8] sm:$0xff]
        %v5835 = vld [vmem:[#allocation16 + $0x5f0] sm:$0xff]
        %v5836 = vld [vmem:[#allocation16 + $0x5f8] sm:$0xff]
        %v5837 = vld [vmem:[#allocation16 + $0x600] sm:$0xff]
        %v5838 = vld [vmem:[#allocation16 + $0x608] sm:$0xff]
        %v5839 = vld [vmem:[#allocation16 + $0x610] sm:$0xff]
        %v5840 = vld [vmem:[#allocation16 + $0x618] sm:$0xff]
        %v5841 = vld [vmem:[#allocation16 + $0x620] sm:$0xff]
        %v5842 = vld [vmem:[#allocation16 + $0x628] sm:$0xff]
        %v5843 = vld [vmem:[#allocation16 + $0x630] sm:$0xff]
        %v5844 = vld [vmem:[#allocation16 + $0x638] sm:$0xff]
        %v5845 = vld [vmem:[#allocation16 + $0x640] sm:$0xff]
        %v5846 = vld [vmem:[#allocation16 + $0x648] sm:$0xff]
        %v5847 = vld [vmem:[#allocation16 + $0x650] sm:$0xff]
        %v5848 = vld [vmem:[#allocation16 + $0x658] sm:$0xff]
        %v5849 = vld [vmem:[#allocation16 + $0x660] sm:$0xff]
        %v5850 = vld [vmem:[#allocation16 + $0x668] sm:$0xff]
        %v5851 = vld [vmem:[#allocation16 + $0x670] sm:$0xff]
        %v5852 = vld [vmem:[#allocation16 + $0x678] sm:$0xff]
        %v5853 = vld [vmem:[#allocation16 + $0x680] sm:$0xff]
        %v5854 = vld [vmem:[#allocation16 + $0x688] sm:$0xff]
        %v5855 = vld [vmem:[#allocation16 + $0x690] sm:$0xff]
        %v5856 = vld [vmem:[#allocation16 + $0x698] sm:$0xff]
        %v5857 = vld [vmem:[#allocation16 + $0x6a0] sm:$0xff]
        %v5858 = vld [vmem:[#allocation16 + $0x6a8] sm:$0xff]
        %v5859 = vld [vmem:[#allocation16 + $0x6b0] sm:$0xff]
        %v5860 = vld [vmem:[#allocation16 + $0x6b8] sm:$0xff]
        %v5861 = vld [vmem:[#allocation16 + $0x6c0] sm:$0xff]
        %v5862 = vld [vmem:[#allocation16 + $0x6c8] sm:$0xff]
        %v5863 = vld [vmem:[#allocation16 + $0x6d0] sm:$0xff]
        %v5864 = vld [vmem:[#allocation16 + $0x6d8] sm:$0xff]
        %v5865 = vld [vmem:[#allocation16 + $0x6e0] sm:$0xff]
        %v5866 = vld [vmem:[#allocation16 + $0x6e8] sm:$0xff]
        %v5867 = vld [vmem:[#allocation16 + $0x6f0] sm:$0xff]
        %v5868 = vld [vmem:[#allocation16 + $0x6f8] sm:$0xff]
        %v5869 = vld [vmem:[#allocation16 + $0x700] sm:$0xff]
        %v5870 = vld [vmem:[#allocation16 + $0x708] sm:$0xff]
        %v5871 = vld [vmem:[#allocation16 + $0x710] sm:$0xff]
        %v5872 = vld [vmem:[#allocation16 + $0x718] sm:$0xff]
        %v5873 = vld [vmem:[#allocation16 + $0x720] sm:$0xff]
        %v5874 = vld [vmem:[#allocation16 + $0x728] sm:$0xff]
        %v5875 = vld [vmem:[#allocation16 + $0x730] sm:$0xff]
        %v5876 = vld [vmem:[#allocation16 + $0x738] sm:$0xff]
        %v5877 = vld [vmem:[#allocation16 + $0x740] sm:$0xff]
        %v5878 = vld [vmem:[#allocation16 + $0x748] sm:$0xff]
        %v5879 = vld [vmem:[#allocation16 + $0x750] sm:$0xff]
        %v5880 = vld [vmem:[#allocation16 + $0x758] sm:$0xff]
        %v5881 = vld [vmem:[#allocation16 + $0x760] sm:$0xff]
        %v5882 = vld [vmem:[#allocation16 + $0x768] sm:$0xff]
        %v5883 = vld [vmem:[#allocation16 + $0x770] sm:$0xff]
        %v5884 = vld [vmem:[#allocation16 + $0x778] sm:$0xff]
        %v5885 = vld [vmem:[#allocation16 + $0x780] sm:$0xff]
        %v5886 = vld [vmem:[#allocation16 + $0x788] sm:$0xff]
        %v5887 = vld [vmem:[#allocation16 + $0x790] sm:$0xff]
        %v5888 = vld [vmem:[#allocation16 + $0x798] sm:$0xff]
        %v5889 = vld [vmem:[#allocation16 + $0x7a0] sm:$0xff]
        %v5890 = vld [vmem:[#allocation16 + $0x7a8] sm:$0xff]
        %v5891 = vld [vmem:[#allocation16 + $0x7b0] sm:$0xff]
        %v5892 = vld [vmem:[#allocation16 + $0x7b8] sm:$0xff]
        %v5893 = vld [vmem:[#allocation16 + $0x7c0] sm:$0xff]
        %v5894 = vld [vmem:[#allocation16 + $0x7c8] sm:$0xff]
        %v5895 = vld [vmem:[#allocation16 + $0x7d0] sm:$0xff]
        %v5896 = vld [vmem:[#allocation16 + $0x7d8] sm:$0xff]
        %v5897 = vld [vmem:[#allocation16 + $0x7e0] sm:$0xff]
        %v5898 = vld [vmem:[#allocation16 + $0x7e8] sm:$0xff]
        %v5899 = vld [vmem:[#allocation16 + $0x7f0] sm:$0xff]
        %v5900 = vld [vmem:[#allocation16 + $0x7f8] sm:$0xff]
        %v5901 = vld [vmem:[#allocation16 + $0x800] sm:$0xff]
        %v5902 = vld [vmem:[#allocation16 + $0x808] sm:$0xff]
        %v5903 = vld [vmem:[#allocation16 + $0x810] sm:$0xff]
        %v5904 = vld [vmem:[#allocation16 + $0x818] sm:$0xff]
        %v5905 = vld [vmem:[#allocation16 + $0x820] sm:$0xff]
        %v5906 = vld [vmem:[#allocation16 + $0x828] sm:$0xff]
        %v5907 = vld [vmem:[#allocation16 + $0x830] sm:$0xff]
        %v5908 = vld [vmem:[#allocation16 + $0x838] sm:$0xff]
        %v5909 = vld [vmem:[#allocation16 + $0x840] sm:$0xff]
        %v5910 = vld [vmem:[#allocation16 + $0x848] sm:$0xff]
        %v5911 = vld [vmem:[#allocation16 + $0x850] sm:$0xff]
        %v5912 = vld [vmem:[#allocation16 + $0x858] sm:$0xff]
        %v5913 = vld [vmem:[#allocation16 + $0x860] sm:$0xff]
        %v5914 = vld [vmem:[#allocation16 + $0x868] sm:$0xff]
        %v5915 = vld [vmem:[#allocation16 + $0x870] sm:$0xff]
        %v5916 = vld [vmem:[#allocation16 + $0x878] sm:$0xff]
        %v5917 = vld [vmem:[#allocation16 + $0x880] sm:$0xff]
        %v5918 = vld [vmem:[#allocation16 + $0x888] sm:$0xff]
        %v5919 = vld [vmem:[#allocation16 + $0x890] sm:$0xff]
        %v5920 = vld [vmem:[#allocation16 + $0x898] sm:$0xff]
        %v5921 = vld [vmem:[#allocation16 + $0x8a0] sm:$0xff]
        %v5922 = vld [vmem:[#allocation16 + $0x8a8] sm:$0xff]
        %v5923 = vld [vmem:[#allocation16 + $0x8b0] sm:$0xff]
        %v5924 = vld [vmem:[#allocation16 + $0x8b8] sm:$0xff]
        %v5925 = vld [vmem:[#allocation16 + $0x8c0] sm:$0xff]
        %v5926 = vld [vmem:[#allocation16 + $0x8c8] sm:$0xff]
        %v5927 = vld [vmem:[#allocation16 + $0x8d0] sm:$0xff]
        %v5928 = vld [vmem:[#allocation16 + $0x8d8] sm:$0xff]
        %v5929 = vld [vmem:[#allocation16 + $0x8e0] sm:$0xff]
        %v5930 = vld [vmem:[#allocation16 + $0x8e8] sm:$0xff]
        %v5931 = vld [vmem:[#allocation16 + $0x8f0] sm:$0xff]
        %v5932 = vld [vmem:[#allocation16 + $0x8f8] sm:$0xff]
        %v5933 = vld [vmem:[#allocation16 + $0x900] sm:$0xff]
        %v5934 = vld [vmem:[#allocation16 + $0x908] sm:$0xff]
        %v5935 = vld [vmem:[#allocation16 + $0x910] sm:$0xff]
        %v5936 = vld [vmem:[#allocation16 + $0x918] sm:$0xff]
        %v5937 = vld [vmem:[#allocation16 + $0x920] sm:$0xff]
        %v5938 = vld [vmem:[#allocation16 + $0x928] sm:$0xff]
        %v5939 = vld [vmem:[#allocation16 + $0x930] sm:$0xff]
        %v5940 = vld [vmem:[#allocation16 + $0x938] sm:$0xff]
        %v5941 = vld [vmem:[#allocation16 + $0x940] sm:$0xff]
        %v5942 = vld [vmem:[#allocation16 + $0x948] sm:$0xff]
        %v5943 = vld [vmem:[#allocation16 + $0x950] sm:$0xff]
        %v5944 = vld [vmem:[#allocation16 + $0x958] sm:$0xff]
        %v5945 = vld [vmem:[#allocation16 + $0x960] sm:$0xff]
        %v5946 = vld [vmem:[#allocation16 + $0x968] sm:$0xff]
        %v5947 = vld [vmem:[#allocation16 + $0x970] sm:$0xff]
        %v5948 = vld [vmem:[#allocation16 + $0x978] sm:$0xff]
        %v5949 = vld [vmem:[#allocation16 + $0x980] sm:$0xff]
        %v5950 = vld [vmem:[#allocation16 + $0x988] sm:$0xff]
        %v5951 = vld [vmem:[#allocation16 + $0x990] sm:$0xff]
        %v5952 = vld [vmem:[#allocation16 + $0x998] sm:$0xff]
        %v5953 = vld [vmem:[#allocation16 + $0x9a0] sm:$0xff]
        %v5954 = vld [vmem:[#allocation16 + $0x9a8] sm:$0xff]
        %v5955 = vld [vmem:[#allocation16 + $0x9b0] sm:$0xff]
        %v5956 = vld [vmem:[#allocation16 + $0x9b8] sm:$0xff]
        %v5957 = vld [vmem:[#allocation16 + $0x9c0] sm:$0xff]
        %v5958 = vld [vmem:[#allocation16 + $0x9c8] sm:$0xff]
        %v5959 = vld [vmem:[#allocation16 + $0x9d0] sm:$0xff]
        %v5960 = vld [vmem:[#allocation16 + $0x9d8] sm:$0xff]
        %v5961 = vld [vmem:[#allocation16 + $0x9e0] sm:$0xff]
        %v5962 = vld [vmem:[#allocation16 + $0x9e8] sm:$0xff]
        %v5963 = vld [vmem:[#allocation16 + $0x9f0] sm:$0xff]
        %v5964 = vld [vmem:[#allocation16 + $0x9f8] sm:$0xff]
        %v5965 = vld [vmem:[#allocation16 + $0xa00] sm:$0xff]
        %v5966 = vld [vmem:[#allocation16 + $0xa08] sm:$0xff]
        %v5967 = vld [vmem:[#allocation16 + $0xa10] sm:$0xff]
        %v5968 = vld [vmem:[#allocation16 + $0xa18] sm:$0xff]
        %v5969 = vld [vmem:[#allocation16 + $0xa20] sm:$0xff]
        %v5970 = vld [vmem:[#allocation16 + $0xa28] sm:$0xff]
        %v5971 = vld [vmem:[#allocation16 + $0xa30] sm:$0xff]
        %v5972 = vld [vmem:[#allocation16 + $0xa38] sm:$0xff]
        %v5973 = vld [vmem:[#allocation16 + $0xa40] sm:$0xff]
        %v5974 = vld [vmem:[#allocation16 + $0xa48] sm:$0xff]
        %v5975 = vld [vmem:[#allocation16 + $0xa50] sm:$0xff]
        %v5976 = vld [vmem:[#allocation16 + $0xa58] sm:$0xff]
        %v5977 = vld [vmem:[#allocation16 + $0xa60] sm:$0xff]
        %v5978 = vld [vmem:[#allocation16 + $0xa68] sm:$0xff]
        %v5979 = vld [vmem:[#allocation16 + $0xa70] sm:$0xff]
        %v5980 = vld [vmem:[#allocation16 + $0xa78] sm:$0xff]
        %v5981 = vld [vmem:[#allocation16 + $0xa80] sm:$0xff]
        %v5982 = vld [vmem:[#allocation16 + $0xa88] sm:$0xff]
        %v5983 = vld [vmem:[#allocation16 + $0xa90] sm:$0xff]
        %v5984 = vld [vmem:[#allocation16 + $0xa98] sm:$0xff]
        %v5985 = vld [vmem:[#allocation16 + $0xaa0] sm:$0xff]
        %v5986 = vld [vmem:[#allocation16 + $0xaa8] sm:$0xff]
        %v5987 = vld [vmem:[#allocation16 + $0xab0] sm:$0xff]
        %v5988 = vld [vmem:[#allocation16 + $0xab8] sm:$0xff]
        %v5989 = vld [vmem:[#allocation16 + $0xac0] sm:$0xff]
        %v5990 = vld [vmem:[#allocation16 + $0xac8] sm:$0xff]
        %v5991 = vld [vmem:[#allocation16 + $0xad0] sm:$0xff]
        %v5992 = vld [vmem:[#allocation16 + $0xad8] sm:$0xff]
        %v5993 = vld [vmem:[#allocation16 + $0xae0] sm:$0xff]
        %v5994 = vld [vmem:[#allocation16 + $0xae8] sm:$0xff]
        %v5995 = vld [vmem:[#allocation16 + $0xaf0] sm:$0xff]
        %v5996 = vld [vmem:[#allocation16 + $0xaf8] sm:$0xff]
        %v5997 = vld [vmem:[#allocation16 + $0xb00] sm:$0xff]
        %v5998 = vld [vmem:[#allocation16 + $0xb08] sm:$0xff]
        %v5999 = vld [vmem:[#allocation16 + $0xb10] sm:$0xff]
        %v6000 = vld [vmem:[#allocation16 + $0xb18] sm:$0xff]
        %v6001 = vld [vmem:[#allocation16 + $0xb20] sm:$0xff]
        %v6002 = vld [vmem:[#allocation16 + $0xb28] sm:$0xff]
        %v6003 = vld [vmem:[#allocation16 + $0xb30] sm:$0xff]
        %v6004 = vld [vmem:[#allocation16 + $0xb38] sm:$0xff]
        %v6005 = vld [vmem:[#allocation16 + $0xb40] sm:$0xff]
        %v6006 = vld [vmem:[#allocation16 + $0xb48] sm:$0xff]
        %v6007 = vld [vmem:[#allocation16 + $0xb50] sm:$0xff]
        %v6008 = vld [vmem:[#allocation16 + $0xb58] sm:$0xff]
        %v6009 = vld [vmem:[#allocation16 + $0xb60] sm:$0xff]
        %v6010 = vld [vmem:[#allocation16 + $0xb68] sm:$0xff]
        %v6011 = vld [vmem:[#allocation16 + $0xb70] sm:$0xff]
        %v6012 = vld [vmem:[#allocation16 + $0xb78] sm:$0xff]
        %v6013 = vld [vmem:[#allocation16 + $0xb80] sm:$0xff]
        %v6014 = vld [vmem:[#allocation16 + $0xb88] sm:$0xff]
        %v6015 = vld [vmem:[#allocation16 + $0xb90] sm:$0xff]
        %v6016 = vld [vmem:[#allocation16 + $0xb98] sm:$0xff]
        %v6017 = vld [vmem:[#allocation16 + $0xba0] sm:$0xff]
        %v6018 = vld [vmem:[#allocation16 + $0xba8] sm:$0xff]
        %v6019 = vld [vmem:[#allocation16 + $0xbb0] sm:$0xff]
        %v6020 = vld [vmem:[#allocation16 + $0xbb8] sm:$0xff]
        %v6021 = vld [vmem:[#allocation16 + $0xbc0] sm:$0xff]
        %v6022 = vld [vmem:[#allocation16 + $0xbc8] sm:$0xff]
        %v6023 = vld [vmem:[#allocation16 + $0xbd0] sm:$0xff]
        %v6024 = vld [vmem:[#allocation16 + $0xbd8] sm:$0xff]
        %v6025 = vld [vmem:[#allocation16 + $0xbe0] sm:$0xff]
        %v6026 = vld [vmem:[#allocation16 + $0xbe8] sm:$0xff]
        %v6027 = vld [vmem:[#allocation16 + $0xbf0] sm:$0xff]
        %v6028 = vld [vmem:[#allocation16 + $0xbf8] sm:$0xff]
        %v6413 = vunpack.c.l.b16 %v5645
        %v6414 = vunpack.c.h.b16 %v5645
        %v6415 = vunpack.c.l.b16 %v5646
        %v6416 = vunpack.c.h.b16 %v5646
        %v6417 = vunpack.c.l.b16 %v5647
        %v6418 = vunpack.c.h.b16 %v5647
        %v6419 = vunpack.c.l.b16 %v5648
        %v6420 = vunpack.c.h.b16 %v5648
        %v6421 = vunpack.c.l.b16 %v5649
        %v6422 = vunpack.c.h.b16 %v5649
        %v6423 = vunpack.c.l.b16 %v5650
        %v6424 = vunpack.c.h.b16 %v5650
        %v6425 = vunpack.c.l.b16 %v5651
        %v6426 = vunpack.c.h.b16 %v5651
        %v6427 = vunpack.c.l.b16 %v5652
        %v6428 = vunpack.c.h.b16 %v5652
        %v6429 = vunpack.c.l.b16 %v5653
        %v6430 = vunpack.c.h.b16 %v5653
        %v6431 = vunpack.c.l.b16 %v5654
        %v6432 = vunpack.c.h.b16 %v5654
        %v6433 = vunpack.c.l.b16 %v5655
        %v6434 = vunpack.c.h.b16 %v5655
        %v6435 = vunpack.c.l.b16 %v5656
        %v6436 = vunpack.c.h.b16 %v5656
        %v6437 = vunpack.c.l.b16 %v5657
        %v6438 = vunpack.c.h.b16 %v5657
        %v6439 = vunpack.c.l.b16 %v5658
        %v6440 = vunpack.c.h.b16 %v5658
        %v6441 = vunpack.c.l.b16 %v5659
        %v6442 = vunpack.c.h.b16 %v5659
        %v6443 = vunpack.c.l.b16 %v5660
        %v6444 = vunpack.c.h.b16 %v5660
        %v6445 = vunpack.c.l.b16 %v5661
        %v6446 = vunpack.c.h.b16 %v5661
        %v6447 = vunpack.c.l.b16 %v5662
        %v6448 = vunpack.c.h.b16 %v5662
        %v6449 = vunpack.c.l.b16 %v5663
        %v6450 = vunpack.c.h.b16 %v5663
        %v6451 = vunpack.c.l.b16 %v5664
        %v6452 = vunpack.c.h.b16 %v5664
        %v6453 = vunpack.c.l.b16 %v5665
        %v6454 = vunpack.c.h.b16 %v5665
        %v6455 = vunpack.c.l.b16 %v5666
        %v6456 = vunpack.c.h.b16 %v5666
        %v6457 = vunpack.c.l.b16 %v5667
        %v6458 = vunpack.c.h.b16 %v5667
        %v6459 = vunpack.c.l.b16 %v5668
        %v6460 = vunpack.c.h.b16 %v5668
        %v6461 = vunpack.c.l.b16 %v5669
        %v6462 = vunpack.c.h.b16 %v5669
        %v6463 = vunpack.c.l.b16 %v5670
        %v6464 = vunpack.c.h.b16 %v5670
        %v6465 = vunpack.c.l.b16 %v5671
        %v6466 = vunpack.c.h.b16 %v5671
        %v6467 = vunpack.c.l.b16 %v5672
        %v6468 = vunpack.c.h.b16 %v5672
        %v6469 = vunpack.c.l.b16 %v5673
        %v6470 = vunpack.c.h.b16 %v5673
        %v6471 = vunpack.c.l.b16 %v5674
        %v6472 = vunpack.c.h.b16 %v5674
        %v6473 = vunpack.c.l.b16 %v5675
        %v6474 = vunpack.c.h.b16 %v5675
        %v6475 = vunpack.c.l.b16 %v5676
        %v6476 = vunpack.c.h.b16 %v5676
        %v6477 = vunpack.c.l.b16 %v5677
        %v6478 = vunpack.c.h.b16 %v5677
        %v6479 = vunpack.c.l.b16 %v5678
        %v6480 = vunpack.c.h.b16 %v5678
        %v6481 = vunpack.c.l.b16 %v5679
        %v6482 = vunpack.c.h.b16 %v5679
        %v6483 = vunpack.c.l.b16 %v5680
        %v6484 = vunpack.c.h.b16 %v5680
        %v6485 = vunpack.c.l.b16 %v5681
        %v6486 = vunpack.c.h.b16 %v5681
        %v6487 = vunpack.c.l.b16 %v5682
        %v6488 = vunpack.c.h.b16 %v5682
        %v6489 = vunpack.c.l.b16 %v5683
        %v6490 = vunpack.c.h.b16 %v5683
        %v6491 = vunpack.c.l.b16 %v5684
        %v6492 = vunpack.c.h.b16 %v5684
        %v6493 = vunpack.c.l.b16 %v5685
        %v6494 = vunpack.c.h.b16 %v5685
        %v6495 = vunpack.c.l.b16 %v5686
        %v6496 = vunpack.c.h.b16 %v5686
        %v6497 = vunpack.c.l.b16 %v5687
        %v6498 = vunpack.c.h.b16 %v5687
        %v6499 = vunpack.c.l.b16 %v5688
        %v6500 = vunpack.c.h.b16 %v5688
        %v6501 = vunpack.c.l.b16 %v5689
        %v6502 = vunpack.c.h.b16 %v5689
        %v6503 = vunpack.c.l.b16 %v5690
        %v6504 = vunpack.c.h.b16 %v5690
        %v6505 = vunpack.c.l.b16 %v5691
        %v6506 = vunpack.c.h.b16 %v5691
        %v6507 = vunpack.c.l.b16 %v5692
        %v6508 = vunpack.c.h.b16 %v5692
        %v6509 = vunpack.c.l.b16 %v5693
        %v6510 = vunpack.c.h.b16 %v5693
        %v6511 = vunpack.c.l.b16 %v5694
        %v6512 = vunpack.c.h.b16 %v5694
        %v6513 = vunpack.c.l.b16 %v5695
        %v6514 = vunpack.c.h.b16 %v5695
        %v6515 = vunpack.c.l.b16 %v5696
        %v6516 = vunpack.c.h.b16 %v5696
        %v6517 = vunpack.c.l.b16 %v5697
        %v6518 = vunpack.c.h.b16 %v5697
        %v6519 = vunpack.c.l.b16 %v5698
        %v6520 = vunpack.c.h.b16 %v5698
        %v6521 = vunpack.c.l.b16 %v5699
        %v6522 = vunpack.c.h.b16 %v5699
        %v6523 = vunpack.c.l.b16 %v5700
        %v6524 = vunpack.c.h.b16 %v5700
        %v6525 = vunpack.c.l.b16 %v5701
        %v6526 = vunpack.c.h.b16 %v5701
        %v6527 = vunpack.c.l.b16 %v5702
        %v6528 = vunpack.c.h.b16 %v5702
        %v6529 = vunpack.c.l.b16 %v5703
        %v6530 = vunpack.c.h.b16 %v5703
        %v6531 = vunpack.c.l.b16 %v5704
        %v6532 = vunpack.c.h.b16 %v5704
        %v6533 = vunpack.c.l.b16 %v5705
        %v6534 = vunpack.c.h.b16 %v5705
        %v6535 = vunpack.c.l.b16 %v5706
        %v6536 = vunpack.c.h.b16 %v5706
        %v6537 = vunpack.c.l.b16 %v5707
        %v6538 = vunpack.c.h.b16 %v5707
        %v6539 = vunpack.c.l.b16 %v5708
        %v6540 = vunpack.c.h.b16 %v5708
        %v6541 = vunpack.c.l.b16 %v5709
        %v6542 = vunpack.c.h.b16 %v5709
        %v6543 = vunpack.c.l.b16 %v5710
        %v6544 = vunpack.c.h.b16 %v5710
        %v6545 = vunpack.c.l.b16 %v5711
        %v6546 = vunpack.c.h.b16 %v5711
        %v6547 = vunpack.c.l.b16 %v5712
        %v6548 = vunpack.c.h.b16 %v5712
        %v6549 = vunpack.c.l.b16 %v5713
        %v6550 = vunpack.c.h.b16 %v5713
        %v6551 = vunpack.c.l.b16 %v5714
        %v6552 = vunpack.c.h.b16 %v5714
        %v6553 = vunpack.c.l.b16 %v5715
        %v6554 = vunpack.c.h.b16 %v5715
        %v6555 = vunpack.c.l.b16 %v5716
        %v6556 = vunpack.c.h.b16 %v5716
        %v6557 = vunpack.c.l.b16 %v5717
        %v6558 = vunpack.c.h.b16 %v5717
        %v6559 = vunpack.c.l.b16 %v5718
        %v6560 = vunpack.c.h.b16 %v5718
        %v6561 = vunpack.c.l.b16 %v5719
        %v6562 = vunpack.c.h.b16 %v5719
        %v6563 = vunpack.c.l.b16 %v5720
        %v6564 = vunpack.c.h.b16 %v5720
        %v6565 = vunpack.c.l.b16 %v5721
        %v6566 = vunpack.c.h.b16 %v5721
        %v6567 = vunpack.c.l.b16 %v5722
        %v6568 = vunpack.c.h.b16 %v5722
        %v6569 = vunpack.c.l.b16 %v5723
        %v6570 = vunpack.c.h.b16 %v5723
        %v6571 = vunpack.c.l.b16 %v5724
        %v6572 = vunpack.c.h.b16 %v5724
        %v6573 = vunpack.c.l.b16 %v5725
        %v6574 = vunpack.c.h.b16 %v5725
        %v6575 = vunpack.c.l.b16 %v5726
        %v6576 = vunpack.c.h.b16 %v5726
        %v6577 = vunpack.c.l.b16 %v5727
        %v6578 = vunpack.c.h.b16 %v5727
        %v6579 = vunpack.c.l.b16 %v5728
        %v6580 = vunpack.c.h.b16 %v5728
        %v6581 = vunpack.c.l.b16 %v5729
        %v6582 = vunpack.c.h.b16 %v5729
        %v6583 = vunpack.c.l.b16 %v5730
        %v6584 = vunpack.c.h.b16 %v5730
        %v6585 = vunpack.c.l.b16 %v5731
        %v6586 = vunpack.c.h.b16 %v5731
        %v6587 = vunpack.c.l.b16 %v5732
        %v6588 = vunpack.c.h.b16 %v5732
        %v6589 = vunpack.c.l.b16 %v5733
        %v6590 = vunpack.c.h.b16 %v5733
        %v6591 = vunpack.c.l.b16 %v5734
        %v6592 = vunpack.c.h.b16 %v5734
        %v6593 = vunpack.c.l.b16 %v5735
        %v6594 = vunpack.c.h.b16 %v5735
        %v6595 = vunpack.c.l.b16 %v5736
        %v6596 = vunpack.c.h.b16 %v5736
        %v6597 = vunpack.c.l.b16 %v5737
        %v6598 = vunpack.c.h.b16 %v5737
        %v6599 = vunpack.c.l.b16 %v5738
        %v6600 = vunpack.c.h.b16 %v5738
        %v6601 = vunpack.c.l.b16 %v5739
        %v6602 = vunpack.c.h.b16 %v5739
        %v6603 = vunpack.c.l.b16 %v5740
        %v6604 = vunpack.c.h.b16 %v5740
        %v6605 = vunpack.c.l.b16 %v5741
        %v6606 = vunpack.c.h.b16 %v5741
        %v6607 = vunpack.c.l.b16 %v5742
        %v6608 = vunpack.c.h.b16 %v5742
        %v6609 = vunpack.c.l.b16 %v5743
        %v6610 = vunpack.c.h.b16 %v5743
        %v6611 = vunpack.c.l.b16 %v5744
        %v6612 = vunpack.c.h.b16 %v5744
        %v6613 = vunpack.c.l.b16 %v5745
        %v6614 = vunpack.c.h.b16 %v5745
        %v6615 = vunpack.c.l.b16 %v5746
        %v6616 = vunpack.c.h.b16 %v5746
        %v6617 = vunpack.c.l.b16 %v5747
        %v6618 = vunpack.c.h.b16 %v5747
        %v6619 = vunpack.c.l.b16 %v5748
        %v6620 = vunpack.c.h.b16 %v5748
        %v6621 = vunpack.c.l.b16 %v5749
        %v6622 = vunpack.c.h.b16 %v5749
        %v6623 = vunpack.c.l.b16 %v5750
        %v6624 = vunpack.c.h.b16 %v5750
        %v6625 = vunpack.c.l.b16 %v5751
        %v6626 = vunpack.c.h.b16 %v5751
        %v6627 = vunpack.c.l.b16 %v5752
        %v6628 = vunpack.c.h.b16 %v5752
        %v6629 = vunpack.c.l.b16 %v5753
        %v6630 = vunpack.c.h.b16 %v5753
        %v6631 = vunpack.c.l.b16 %v5754
        %v6632 = vunpack.c.h.b16 %v5754
        %v6633 = vunpack.c.l.b16 %v5755
        %v6634 = vunpack.c.h.b16 %v5755
        %v6635 = vunpack.c.l.b16 %v5756
        %v6636 = vunpack.c.h.b16 %v5756
        %v6637 = vunpack.c.l.b16 %v5757
        %v6638 = vunpack.c.h.b16 %v5757
        %v6639 = vunpack.c.l.b16 %v5758
        %v6640 = vunpack.c.h.b16 %v5758
        %v6641 = vunpack.c.l.b16 %v5759
        %v6642 = vunpack.c.h.b16 %v5759
        %v6643 = vunpack.c.l.b16 %v5760
        %v6644 = vunpack.c.h.b16 %v5760
        %v6645 = vunpack.c.l.b16 %v5761
        %v6646 = vunpack.c.h.b16 %v5761
        %v6647 = vunpack.c.l.b16 %v5762
        %v6648 = vunpack.c.h.b16 %v5762
        %v6649 = vunpack.c.l.b16 %v5763
        %v6650 = vunpack.c.h.b16 %v5763
        %v6651 = vunpack.c.l.b16 %v5764
        %v6652 = vunpack.c.h.b16 %v5764
        %v6653 = vunpack.c.l.b16 %v5765
        %v6654 = vunpack.c.h.b16 %v5765
        %v6655 = vunpack.c.l.b16 %v5766
        %v6656 = vunpack.c.h.b16 %v5766
        %v6657 = vunpack.c.l.b16 %v5767
        %v6658 = vunpack.c.h.b16 %v5767
        %v6659 = vunpack.c.l.b16 %v5768
        %v6660 = vunpack.c.h.b16 %v5768
        %v6661 = vunpack.c.l.b16 %v5769
        %v6662 = vunpack.c.h.b16 %v5769
        %v6663 = vunpack.c.l.b16 %v5770
        %v6664 = vunpack.c.h.b16 %v5770
        %v6665 = vunpack.c.l.b16 %v5771
        %v6666 = vunpack.c.h.b16 %v5771
        %v6667 = vunpack.c.l.b16 %v5772
        %v6668 = vunpack.c.h.b16 %v5772
        %v6669 = vunpack.c.l.b16 %v5773
        %v6670 = vunpack.c.h.b16 %v5773
        %v6671 = vunpack.c.l.b16 %v5774
        %v6672 = vunpack.c.h.b16 %v5774
        %v6673 = vunpack.c.l.b16 %v5775
        %v6674 = vunpack.c.h.b16 %v5775
        %v6675 = vunpack.c.l.b16 %v5776
        %v6676 = vunpack.c.h.b16 %v5776
        %v6677 = vunpack.c.l.b16 %v5777
        %v6678 = vunpack.c.h.b16 %v5777
        %v6679 = vunpack.c.l.b16 %v5778
        %v6680 = vunpack.c.h.b16 %v5778
        %v6681 = vunpack.c.l.b16 %v5779
        %v6682 = vunpack.c.h.b16 %v5779
        %v6683 = vunpack.c.l.b16 %v5780
        %v6684 = vunpack.c.h.b16 %v5780
        %v6685 = vunpack.c.l.b16 %v5781
        %v6686 = vunpack.c.h.b16 %v5781
        %v6687 = vunpack.c.l.b16 %v5782
        %v6688 = vunpack.c.h.b16 %v5782
        %v6689 = vunpack.c.l.b16 %v5783
        %v6690 = vunpack.c.h.b16 %v5783
        %v6691 = vunpack.c.l.b16 %v5784
        %v6692 = vunpack.c.h.b16 %v5784
        %v6693 = vunpack.c.l.b16 %v5785
        %v6694 = vunpack.c.h.b16 %v5785
        %v6695 = vunpack.c.l.b16 %v5786
        %v6696 = vunpack.c.h.b16 %v5786
        %v6697 = vunpack.c.l.b16 %v5787
        %v6698 = vunpack.c.h.b16 %v5787
        %v6699 = vunpack.c.l.b16 %v5788
        %v6700 = vunpack.c.h.b16 %v5788
        %v6701 = vunpack.c.l.b16 %v5789
        %v6702 = vunpack.c.h.b16 %v5789
        %v6703 = vunpack.c.l.b16 %v5790
        %v6704 = vunpack.c.h.b16 %v5790
        %v6705 = vunpack.c.l.b16 %v5791
        %v6706 = vunpack.c.h.b16 %v5791
        %v6707 = vunpack.c.l.b16 %v5792
        %v6708 = vunpack.c.h.b16 %v5792
        %v6709 = vunpack.c.l.b16 %v5793
        %v6710 = vunpack.c.h.b16 %v5793
        %v6711 = vunpack.c.l.b16 %v5794
        %v6712 = vunpack.c.h.b16 %v5794
        %v6713 = vunpack.c.l.b16 %v5795
        %v6714 = vunpack.c.h.b16 %v5795
        %v6715 = vunpack.c.l.b16 %v5796
        %v6716 = vunpack.c.h.b16 %v5796
        %v6717 = vunpack.c.l.b16 %v5797
        %v6718 = vunpack.c.h.b16 %v5797
        %v6719 = vunpack.c.l.b16 %v5798
        %v6720 = vunpack.c.h.b16 %v5798
        %v6721 = vunpack.c.l.b16 %v5799
        %v6722 = vunpack.c.h.b16 %v5799
        %v6723 = vunpack.c.l.b16 %v5800
        %v6724 = vunpack.c.h.b16 %v5800
        %v6725 = vunpack.c.l.b16 %v5801
        %v6726 = vunpack.c.h.b16 %v5801
        %v6727 = vunpack.c.l.b16 %v5802
        %v6728 = vunpack.c.h.b16 %v5802
        %v6729 = vunpack.c.l.b16 %v5803
        %v6730 = vunpack.c.h.b16 %v5803
        %v6731 = vunpack.c.l.b16 %v5804
        %v6732 = vunpack.c.h.b16 %v5804
        %v6733 = vunpack.c.l.b16 %v5805
        %v6734 = vunpack.c.h.b16 %v5805
        %v6735 = vunpack.c.l.b16 %v5806
        %v6736 = vunpack.c.h.b16 %v5806
        %v6737 = vunpack.c.l.b16 %v5807
        %v6738 = vunpack.c.h.b16 %v5807
        %v6739 = vunpack.c.l.b16 %v5808
        %v6740 = vunpack.c.h.b16 %v5808
        %v6741 = vunpack.c.l.b16 %v5809
        %v6742 = vunpack.c.h.b16 %v5809
        %v6743 = vunpack.c.l.b16 %v5810
        %v6744 = vunpack.c.h.b16 %v5810
        %v6745 = vunpack.c.l.b16 %v5811
        %v6746 = vunpack.c.h.b16 %v5811
        %v6747 = vunpack.c.l.b16 %v5812
        %v6748 = vunpack.c.h.b16 %v5812
        %v6749 = vunpack.c.l.b16 %v5813
        %v6750 = vunpack.c.h.b16 %v5813
        %v6751 = vunpack.c.l.b16 %v5814
        %v6752 = vunpack.c.h.b16 %v5814
        %v6753 = vunpack.c.l.b16 %v5815
        %v6754 = vunpack.c.h.b16 %v5815
        %v6755 = vunpack.c.l.b16 %v5816
        %v6756 = vunpack.c.h.b16 %v5816
        %v6757 = vunpack.c.l.b16 %v5817
        %v6758 = vunpack.c.h.b16 %v5817
        %v6759 = vunpack.c.l.b16 %v5818
        %v6760 = vunpack.c.h.b16 %v5818
        %v6761 = vunpack.c.l.b16 %v5819
        %v6762 = vunpack.c.h.b16 %v5819
        %v6763 = vunpack.c.l.b16 %v5820
        %v6764 = vunpack.c.h.b16 %v5820
        %v6765 = vunpack.c.l.b16 %v5821
        %v6766 = vunpack.c.h.b16 %v5821
        %v6767 = vunpack.c.l.b16 %v5822
        %v6768 = vunpack.c.h.b16 %v5822
        %v6769 = vunpack.c.l.b16 %v5823
        %v6770 = vunpack.c.h.b16 %v5823
        %v6771 = vunpack.c.l.b16 %v5824
        %v6772 = vunpack.c.h.b16 %v5824
        %v6773 = vunpack.c.l.b16 %v5825
        %v6774 = vunpack.c.h.b16 %v5825
        %v6775 = vunpack.c.l.b16 %v5826
        %v6776 = vunpack.c.h.b16 %v5826
        %v6777 = vunpack.c.l.b16 %v5827
        %v6778 = vunpack.c.h.b16 %v5827
        %v6779 = vunpack.c.l.b16 %v5828
        %v6780 = vunpack.c.h.b16 %v5828
        %v6781 = vunpack.c.l.b16 %v5829
        %v6782 = vunpack.c.h.b16 %v5829
        %v6783 = vunpack.c.l.b16 %v5830
        %v6784 = vunpack.c.h.b16 %v5830
        %v6785 = vunpack.c.l.b16 %v5831
        %v6786 = vunpack.c.h.b16 %v5831
        %v6787 = vunpack.c.l.b16 %v5832
        %v6788 = vunpack.c.h.b16 %v5832
        %v6789 = vunpack.c.l.b16 %v5833
        %v6790 = vunpack.c.h.b16 %v5833
        %v6791 = vunpack.c.l.b16 %v5834
        %v6792 = vunpack.c.h.b16 %v5834
        %v6793 = vunpack.c.l.b16 %v5835
        %v6794 = vunpack.c.h.b16 %v5835
        %v6795 = vunpack.c.l.b16 %v5836
        %v6796 = vunpack.c.h.b16 %v5836
        %v6797 = vunpack.c.l.b16 %v5837
        %v6798 = vunpack.c.h.b16 %v5837
        %v6799 = vunpack.c.l.b16 %v5838
        %v6800 = vunpack.c.h.b16 %v5838
        %v6801 = vunpack.c.l.b16 %v5839
        %v6802 = vunpack.c.h.b16 %v5839
        %v6803 = vunpack.c.l.b16 %v5840
        %v6804 = vunpack.c.h.b16 %v5840
        %v6805 = vunpack.c.l.b16 %v5841
        %v6806 = vunpack.c.h.b16 %v5841
        %v6807 = vunpack.c.l.b16 %v5842
        %v6808 = vunpack.c.h.b16 %v5842
        %v6809 = vunpack.c.l.b16 %v5843
        %v6810 = vunpack.c.h.b16 %v5843
        %v6811 = vunpack.c.l.b16 %v5844
        %v6812 = vunpack.c.h.b16 %v5844
        %v6813 = vunpack.c.l.b16 %v5845
        %v6814 = vunpack.c.h.b16 %v5845
        %v6815 = vunpack.c.l.b16 %v5846
        %v6816 = vunpack.c.h.b16 %v5846
        %v6817 = vunpack.c.l.b16 %v5847
        %v6818 = vunpack.c.h.b16 %v5847
        %v6819 = vunpack.c.l.b16 %v5848
        %v6820 = vunpack.c.h.b16 %v5848
        %v6821 = vunpack.c.l.b16 %v5849
        %v6822 = vunpack.c.h.b16 %v5849
        %v6823 = vunpack.c.l.b16 %v5850
        %v6824 = vunpack.c.h.b16 %v5850
        %v6825 = vunpack.c.l.b16 %v5851
        %v6826 = vunpack.c.h.b16 %v5851
        %v6827 = vunpack.c.l.b16 %v5852
        %v6828 = vunpack.c.h.b16 %v5852
        %v6829 = vunpack.c.l.b16 %v5853
        %v6830 = vunpack.c.h.b16 %v5853
        %v6831 = vunpack.c.l.b16 %v5854
        %v6832 = vunpack.c.h.b16 %v5854
        %v6833 = vunpack.c.l.b16 %v5855
        %v6834 = vunpack.c.h.b16 %v5855
        %v6835 = vunpack.c.l.b16 %v5856
        %v6836 = vunpack.c.h.b16 %v5856
        %v6837 = vunpack.c.l.b16 %v5857
        %v6838 = vunpack.c.h.b16 %v5857
        %v6839 = vunpack.c.l.b16 %v5858
        %v6840 = vunpack.c.h.b16 %v5858
        %v6841 = vunpack.c.l.b16 %v5859
        %v6842 = vunpack.c.h.b16 %v5859
        %v6843 = vunpack.c.l.b16 %v5860
        %v6844 = vunpack.c.h.b16 %v5860
        %v6845 = vunpack.c.l.b16 %v5861
        %v6846 = vunpack.c.h.b16 %v5861
        %v6847 = vunpack.c.l.b16 %v5862
        %v6848 = vunpack.c.h.b16 %v5862
        %v6849 = vunpack.c.l.b16 %v5863
        %v6850 = vunpack.c.h.b16 %v5863
        %v6851 = vunpack.c.l.b16 %v5864
        %v6852 = vunpack.c.h.b16 %v5864
        %v6853 = vunpack.c.l.b16 %v5865
        %v6854 = vunpack.c.h.b16 %v5865
        %v6855 = vunpack.c.l.b16 %v5866
        %v6856 = vunpack.c.h.b16 %v5866
        %v6857 = vunpack.c.l.b16 %v5867
        %v6858 = vunpack.c.h.b16 %v5867
        %v6859 = vunpack.c.l.b16 %v5868
        %v6860 = vunpack.c.h.b16 %v5868
        %v6861 = vunpack.c.l.b16 %v5869
        %v6862 = vunpack.c.h.b16 %v5869
        %v6863 = vunpack.c.l.b16 %v5870
        %v6864 = vunpack.c.h.b16 %v5870
        %v6865 = vunpack.c.l.b16 %v5871
        %v6866 = vunpack.c.h.b16 %v5871
        %v6867 = vunpack.c.l.b16 %v5872
        %v6868 = vunpack.c.h.b16 %v5872
        %v6869 = vunpack.c.l.b16 %v5873
        %v6870 = vunpack.c.h.b16 %v5873
        %v6871 = vunpack.c.l.b16 %v5874
        %v6872 = vunpack.c.h.b16 %v5874
        %v6873 = vunpack.c.l.b16 %v5875
        %v6874 = vunpack.c.h.b16 %v5875
        %v6875 = vunpack.c.l.b16 %v5876
        %v6876 = vunpack.c.h.b16 %v5876
        %v6877 = vunpack.c.l.b16 %v5877
        %v6878 = vunpack.c.h.b16 %v5877
        %v6879 = vunpack.c.l.b16 %v5878
        %v6880 = vunpack.c.h.b16 %v5878
        %v6881 = vunpack.c.l.b16 %v5879
        %v6882 = vunpack.c.h.b16 %v5879
        %v6883 = vunpack.c.l.b16 %v5880
        %v6884 = vunpack.c.h.b16 %v5880
        %v6885 = vunpack.c.l.b16 %v5881
        %v6886 = vunpack.c.h.b16 %v5881
        %v6887 = vunpack.c.l.b16 %v5882
        %v6888 = vunpack.c.h.b16 %v5882
        %v6889 = vunpack.c.l.b16 %v5883
        %v6890 = vunpack.c.h.b16 %v5883
        %v6891 = vunpack.c.l.b16 %v5884
        %v6892 = vunpack.c.h.b16 %v5884
        %v6893 = vunpack.c.l.b16 %v5885
        %v6894 = vunpack.c.h.b16 %v5885
        %v6895 = vunpack.c.l.b16 %v5886
        %v6896 = vunpack.c.h.b16 %v5886
        %v6897 = vunpack.c.l.b16 %v5887
        %v6898 = vunpack.c.h.b16 %v5887
        %v6899 = vunpack.c.l.b16 %v5888
        %v6900 = vunpack.c.h.b16 %v5888
        %v6901 = vunpack.c.l.b16 %v5889
        %v6902 = vunpack.c.h.b16 %v5889
        %v6903 = vunpack.c.l.b16 %v5890
        %v6904 = vunpack.c.h.b16 %v5890
        %v6905 = vunpack.c.l.b16 %v5891
        %v6906 = vunpack.c.h.b16 %v5891
        %v6907 = vunpack.c.l.b16 %v5892
        %v6908 = vunpack.c.h.b16 %v5892
        %v6909 = vunpack.c.l.b16 %v5893
        %v6910 = vunpack.c.h.b16 %v5893
        %v6911 = vunpack.c.l.b16 %v5894
        %v6912 = vunpack.c.h.b16 %v5894
        %v6913 = vunpack.c.l.b16 %v5895
        %v6914 = vunpack.c.h.b16 %v5895
        %v6915 = vunpack.c.l.b16 %v5896
        %v6916 = vunpack.c.h.b16 %v5896
        %v6917 = vunpack.c.l.b16 %v5897
        %v6918 = vunpack.c.h.b16 %v5897
        %v6919 = vunpack.c.l.b16 %v5898
        %v6920 = vunpack.c.h.b16 %v5898
        %v6921 = vunpack.c.l.b16 %v5899
        %v6922 = vunpack.c.h.b16 %v5899
        %v6923 = vunpack.c.l.b16 %v5900
        %v6924 = vunpack.c.h.b16 %v5900
        %v6925 = vunpack.c.l.b16 %v5901
        %v6926 = vunpack.c.h.b16 %v5901
        %v6927 = vunpack.c.l.b16 %v5902
        %v6928 = vunpack.c.h.b16 %v5902
        %v6929 = vunpack.c.l.b16 %v5903
        %v6930 = vunpack.c.h.b16 %v5903
        %v6931 = vunpack.c.l.b16 %v5904
        %v6932 = vunpack.c.h.b16 %v5904
        %v6933 = vunpack.c.l.b16 %v5905
        %v6934 = vunpack.c.h.b16 %v5905
        %v6935 = vunpack.c.l.b16 %v5906
        %v6936 = vunpack.c.h.b16 %v5906
        %v6937 = vunpack.c.l.b16 %v5907
        %v6938 = vunpack.c.h.b16 %v5907
        %v6939 = vunpack.c.l.b16 %v5908
        %v6940 = vunpack.c.h.b16 %v5908
        %v6941 = vunpack.c.l.b16 %v5909
        %v6942 = vunpack.c.h.b16 %v5909
        %v6943 = vunpack.c.l.b16 %v5910
        %v6944 = vunpack.c.h.b16 %v5910
        %v6945 = vunpack.c.l.b16 %v5911
        %v6946 = vunpack.c.h.b16 %v5911
        %v6947 = vunpack.c.l.b16 %v5912
        %v6948 = vunpack.c.h.b16 %v5912
        %v6949 = vunpack.c.l.b16 %v5913
        %v6950 = vunpack.c.h.b16 %v5913
        %v6951 = vunpack.c.l.b16 %v5914
        %v6952 = vunpack.c.h.b16 %v5914
        %v6953 = vunpack.c.l.b16 %v5915
        %v6954 = vunpack.c.h.b16 %v5915
        %v6955 = vunpack.c.l.b16 %v5916
        %v6956 = vunpack.c.h.b16 %v5916
        %v6957 = vunpack.c.l.b16 %v5917
        %v6958 = vunpack.c.h.b16 %v5917
        %v6959 = vunpack.c.l.b16 %v5918
        %v6960 = vunpack.c.h.b16 %v5918
        %v6961 = vunpack.c.l.b16 %v5919
        %v6962 = vunpack.c.h.b16 %v5919
        %v6963 = vunpack.c.l.b16 %v5920
        %v6964 = vunpack.c.h.b16 %v5920
        %v6965 = vunpack.c.l.b16 %v5921
        %v6966 = vunpack.c.h.b16 %v5921
        %v6967 = vunpack.c.l.b16 %v5922
        %v6968 = vunpack.c.h.b16 %v5922
        %v6969 = vunpack.c.l.b16 %v5923
        %v6970 = vunpack.c.h.b16 %v5923
        %v6971 = vunpack.c.l.b16 %v5924
        %v6972 = vunpack.c.h.b16 %v5924
        %v6973 = vunpack.c.l.b16 %v5925
        %v6974 = vunpack.c.h.b16 %v5925
        %v6975 = vunpack.c.l.b16 %v5926
        %v6976 = vunpack.c.h.b16 %v5926
        %v6977 = vunpack.c.l.b16 %v5927
        %v6978 = vunpack.c.h.b16 %v5927
        %v6979 = vunpack.c.l.b16 %v5928
        %v6980 = vunpack.c.h.b16 %v5928
        %v6981 = vunpack.c.l.b16 %v5929
        %v6982 = vunpack.c.h.b16 %v5929
        %v6983 = vunpack.c.l.b16 %v5930
        %v6984 = vunpack.c.h.b16 %v5930
        %v6985 = vunpack.c.l.b16 %v5931
        %v6986 = vunpack.c.h.b16 %v5931
        %v6987 = vunpack.c.l.b16 %v5932
        %v6988 = vunpack.c.h.b16 %v5932
        %v6989 = vunpack.c.l.b16 %v5933
        %v6990 = vunpack.c.h.b16 %v5933
        %v6991 = vunpack.c.l.b16 %v5934
        %v6992 = vunpack.c.h.b16 %v5934
        %v6993 = vunpack.c.l.b16 %v5935
        %v6994 = vunpack.c.h.b16 %v5935
        %v6995 = vunpack.c.l.b16 %v5936
        %v6996 = vunpack.c.h.b16 %v5936
        %v6997 = vunpack.c.l.b16 %v5937
        %v6998 = vunpack.c.h.b16 %v5937
        %v6999 = vunpack.c.l.b16 %v5938
        %v7000 = vunpack.c.h.b16 %v5938
        %v7001 = vunpack.c.l.b16 %v5939
        %v7002 = vunpack.c.h.b16 %v5939
        %v7003 = vunpack.c.l.b16 %v5940
        %v7004 = vunpack.c.h.b16 %v5940
        %v7005 = vunpack.c.l.b16 %v5941
        %v7006 = vunpack.c.h.b16 %v5941
        %v7007 = vunpack.c.l.b16 %v5942
        %v7008 = vunpack.c.h.b16 %v5942
        %v7009 = vunpack.c.l.b16 %v5943
        %v7010 = vunpack.c.h.b16 %v5943
        %v7011 = vunpack.c.l.b16 %v5944
        %v7012 = vunpack.c.h.b16 %v5944
        %v7013 = vunpack.c.l.b16 %v5945
        %v7014 = vunpack.c.h.b16 %v5945
        %v7015 = vunpack.c.l.b16 %v5946
        %v7016 = vunpack.c.h.b16 %v5946
        %v7017 = vunpack.c.l.b16 %v5947
        %v7018 = vunpack.c.h.b16 %v5947
        %v7019 = vunpack.c.l.b16 %v5948
        %v7020 = vunpack.c.h.b16 %v5948
        %v7021 = vunpack.c.l.b16 %v5949
        %v7022 = vunpack.c.h.b16 %v5949
        %v7023 = vunpack.c.l.b16 %v5950
        %v7024 = vunpack.c.h.b16 %v5950
        %v7025 = vunpack.c.l.b16 %v5951
        %v7026 = vunpack.c.h.b16 %v5951
        %v7027 = vunpack.c.l.b16 %v5952
        %v7028 = vunpack.c.h.b16 %v5952
        %v7029 = vunpack.c.l.b16 %v5953
        %v7030 = vunpack.c.h.b16 %v5953
        %v7031 = vunpack.c.l.b16 %v5954
        %v7032 = vunpack.c.h.b16 %v5954
        %v7033 = vunpack.c.l.b16 %v5955
        %v7034 = vunpack.c.h.b16 %v5955
        %v7035 = vunpack.c.l.b16 %v5956
        %v7036 = vunpack.c.h.b16 %v5956
        %v7037 = vunpack.c.l.b16 %v5957
        %v7038 = vunpack.c.h.b16 %v5957
        %v7039 = vunpack.c.l.b16 %v5958
        %v7040 = vunpack.c.h.b16 %v5958
        %v7041 = vunpack.c.l.b16 %v5959
        %v7042 = vunpack.c.h.b16 %v5959
        %v7043 = vunpack.c.l.b16 %v5960
        %v7044 = vunpack.c.h.b16 %v5960
        %v7045 = vunpack.c.l.b16 %v5961
        %v7046 = vunpack.c.h.b16 %v5961
        %v7047 = vunpack.c.l.b16 %v5962
        %v7048 = vunpack.c.h.b16 %v5962
        %v7049 = vunpack.c.l.b16 %v5963
        %v7050 = vunpack.c.h.b16 %v5963
        %v7051 = vunpack.c.l.b16 %v5964
        %v7052 = vunpack.c.h.b16 %v5964
        %v7053 = vunpack.c.l.b16 %v5965
        %v7054 = vunpack.c.h.b16 %v5965
        %v7055 = vunpack.c.l.b16 %v5966
        %v7056 = vunpack.c.h.b16 %v5966
        %v7057 = vunpack.c.l.b16 %v5967
        %v7058 = vunpack.c.h.b16 %v5967
        %v7059 = vunpack.c.l.b16 %v5968
        %v7060 = vunpack.c.h.b16 %v5968
        %v7061 = vunpack.c.l.b16 %v5969
        %v7062 = vunpack.c.h.b16 %v5969
        %v7063 = vunpack.c.l.b16 %v5970
        %v7064 = vunpack.c.h.b16 %v5970
        %v7065 = vunpack.c.l.b16 %v5971
        %v7066 = vunpack.c.h.b16 %v5971
        %v7067 = vunpack.c.l.b16 %v5972
        %v7068 = vunpack.c.h.b16 %v5972
        %v7069 = vunpack.c.l.b16 %v5973
        %v7070 = vunpack.c.h.b16 %v5973
        %v7071 = vunpack.c.l.b16 %v5974
        %v7072 = vunpack.c.h.b16 %v5974
        %v7073 = vunpack.c.l.b16 %v5975
        %v7074 = vunpack.c.h.b16 %v5975
        %v7075 = vunpack.c.l.b16 %v5976
        %v7076 = vunpack.c.h.b16 %v5976
        %v7077 = vunpack.c.l.b16 %v5977
        %v7078 = vunpack.c.h.b16 %v5977
        %v7079 = vunpack.c.l.b16 %v5978
        %v7080 = vunpack.c.h.b16 %v5978
        %v7081 = vunpack.c.l.b16 %v5979
        %v7082 = vunpack.c.h.b16 %v5979
        %v7083 = vunpack.c.l.b16 %v5980
        %v7084 = vunpack.c.h.b16 %v5980
        %v7085 = vunpack.c.l.b16 %v5981
        %v7086 = vunpack.c.h.b16 %v5981
        %v7087 = vunpack.c.l.b16 %v5982
        %v7088 = vunpack.c.h.b16 %v5982
        %v7089 = vunpack.c.l.b16 %v5983
        %v7090 = vunpack.c.h.b16 %v5983
        %v7091 = vunpack.c.l.b16 %v5984
        %v7092 = vunpack.c.h.b16 %v5984
        %v7093 = vunpack.c.l.b16 %v5985
        %v7094 = vunpack.c.h.b16 %v5985
        %v7095 = vunpack.c.l.b16 %v5986
        %v7096 = vunpack.c.h.b16 %v5986
        %v7097 = vunpack.c.l.b16 %v5987
        %v7098 = vunpack.c.h.b16 %v5987
        %v7099 = vunpack.c.l.b16 %v5988
        %v7100 = vunpack.c.h.b16 %v5988
        %v7101 = vunpack.c.l.b16 %v5989
        %v7102 = vunpack.c.h.b16 %v5989
        %v7103 = vunpack.c.l.b16 %v5990
        %v7104 = vunpack.c.h.b16 %v5990
        %v7105 = vunpack.c.l.b16 %v5991
        %v7106 = vunpack.c.h.b16 %v5991
        %v7107 = vunpack.c.l.b16 %v5992
        %v7108 = vunpack.c.h.b16 %v5992
        %v7109 = vunpack.c.l.b16 %v5993
        %v7110 = vunpack.c.h.b16 %v5993
        %v7111 = vunpack.c.l.b16 %v5994
        %v7112 = vunpack.c.h.b16 %v5994
        %v7113 = vunpack.c.l.b16 %v5995
        %v7114 = vunpack.c.h.b16 %v5995
        %v7115 = vunpack.c.l.b16 %v5996
        %v7116 = vunpack.c.h.b16 %v5996
        %v7117 = vunpack.c.l.b16 %v5997
        %v7118 = vunpack.c.h.b16 %v5997
        %v7119 = vunpack.c.l.b16 %v5998
        %v7120 = vunpack.c.h.b16 %v5998
        %v7121 = vunpack.c.l.b16 %v5999
        %v7122 = vunpack.c.h.b16 %v5999
        %v7123 = vunpack.c.l.b16 %v6000
        %v7124 = vunpack.c.h.b16 %v6000
        %v7125 = vunpack.c.l.b16 %v6001
        %v7126 = vunpack.c.h.b16 %v6001
        %v7127 = vunpack.c.l.b16 %v6002
        %v7128 = vunpack.c.h.b16 %v6002
        %v7129 = vunpack.c.l.b16 %v6003
        %v7130 = vunpack.c.h.b16 %v6003
        %v7131 = vunpack.c.l.b16 %v6004
        %v7132 = vunpack.c.h.b16 %v6004
        %v7133 = vunpack.c.l.b16 %v6005
        %v7134 = vunpack.c.h.b16 %v6005
        %v7135 = vunpack.c.l.b16 %v6006
        %v7136 = vunpack.c.h.b16 %v6006
        %v7137 = vunpack.c.l.b16 %v6007
        %v7138 = vunpack.c.h.b16 %v6007
        %v7139 = vunpack.c.l.b16 %v6008
        %v7140 = vunpack.c.h.b16 %v6008
        %v7141 = vunpack.c.l.b16 %v6009
        %v7142 = vunpack.c.h.b16 %v6009
        %v7143 = vunpack.c.l.b16 %v6010
        %v7144 = vunpack.c.h.b16 %v6010
        %v7145 = vunpack.c.l.b16 %v6011
        %v7146 = vunpack.c.h.b16 %v6011
        %v7147 = vunpack.c.l.b16 %v6012
        %v7148 = vunpack.c.h.b16 %v6012
        %v7149 = vunpack.c.l.b16 %v6013
        %v7150 = vunpack.c.h.b16 %v6013
        %v7151 = vunpack.c.l.b16 %v6014
        %v7152 = vunpack.c.h.b16 %v6014
        %v7153 = vunpack.c.l.b16 %v6015
        %v7154 = vunpack.c.h.b16 %v6015
        %v7155 = vunpack.c.l.b16 %v6016
        %v7156 = vunpack.c.h.b16 %v6016
        %v7157 = vunpack.c.l.b16 %v6017
        %v7158 = vunpack.c.h.b16 %v6017
        %v7159 = vunpack.c.l.b16 %v6018
        %v7160 = vunpack.c.h.b16 %v6018
        %v7161 = vunpack.c.l.b16 %v6019
        %v7162 = vunpack.c.h.b16 %v6019
        %v7163 = vunpack.c.l.b16 %v6020
        %v7164 = vunpack.c.h.b16 %v6020
        %v7165 = vunpack.c.l.b16 %v6021
        %v7166 = vunpack.c.h.b16 %v6021
        %v7167 = vunpack.c.l.b16 %v6022
        %v7168 = vunpack.c.h.b16 %v6022
        %v7169 = vunpack.c.l.b16 %v6023
        %v7170 = vunpack.c.h.b16 %v6023
        %v7171 = vunpack.c.l.b16 %v6024
        %v7172 = vunpack.c.h.b16 %v6024
        %v7173 = vunpack.c.l.b16 %v6025
        %v7174 = vunpack.c.h.b16 %v6025
        %v7175 = vunpack.c.l.b16 %v6026
        %v7176 = vunpack.c.h.b16 %v6026
        %v7177 = vunpack.c.l.b16 %v6027
        %v7178 = vunpack.c.h.b16 %v6027
        %v7179 = vunpack.c.l.b16 %v6028
        %v7180 = vunpack.c.h.b16 %v6028
        %v7181 = vpack.c.b16 %v6421, %v6413
        %v7182 = vpack.c.b16 %v6422, %v6414
        %v7183 = vpack.c.b16 %v6423, %v6415
        %v7184 = vpack.c.b16 %v6424, %v6416
        %v7185 = vpack.c.b16 %v6425, %v6417
        %v7186 = vpack.c.b16 %v6426, %v6418
        %v7187 = vpack.c.b16 %v6427, %v6419
        %v7188 = vpack.c.b16 %v6428, %v6420
        %v7189 = vpack.c.b16 %v6437, %v6429
        %v7190 = vpack.c.b16 %v6438, %v6430
        %v7191 = vpack.c.b16 %v6439, %v6431
        %v7192 = vpack.c.b16 %v6440, %v6432
        %v7193 = vpack.c.b16 %v6441, %v6433
        %v7194 = vpack.c.b16 %v6442, %v6434
        %v7195 = vpack.c.b16 %v6443, %v6435
        %v7196 = vpack.c.b16 %v6444, %v6436
        %v7197 = vpack.c.b16 %v6453, %v6445
        %v7198 = vpack.c.b16 %v6454, %v6446
        %v7199 = vpack.c.b16 %v6455, %v6447
        %v7200 = vpack.c.b16 %v6456, %v6448
        %v7201 = vpack.c.b16 %v6457, %v6449
        %v7202 = vpack.c.b16 %v6458, %v6450
        %v7203 = vpack.c.b16 %v6459, %v6451
        %v7204 = vpack.c.b16 %v6460, %v6452
        %v7205 = vpack.c.b16 %v6469, %v6461
        %v7206 = vpack.c.b16 %v6470, %v6462
        %v7207 = vpack.c.b16 %v6471, %v6463
        %v7208 = vpack.c.b16 %v6472, %v6464
        %v7209 = vpack.c.b16 %v6473, %v6465
        %v7210 = vpack.c.b16 %v6474, %v6466
        %v7211 = vpack.c.b16 %v6475, %v6467
        %v7212 = vpack.c.b16 %v6476, %v6468
        %v7213 = vpack.c.b16 %v6485, %v6477
        %v7214 = vpack.c.b16 %v6486, %v6478
        %v7215 = vpack.c.b16 %v6487, %v6479
        %v7216 = vpack.c.b16 %v6488, %v6480
        %v7217 = vpack.c.b16 %v6489, %v6481
        %v7218 = vpack.c.b16 %v6490, %v6482
        %v7219 = vpack.c.b16 %v6491, %v6483
        %v7220 = vpack.c.b16 %v6492, %v6484
        %v7221 = vpack.c.b16 %v6501, %v6493
        %v7222 = vpack.c.b16 %v6502, %v6494
        %v7223 = vpack.c.b16 %v6503, %v6495
        %v7224 = vpack.c.b16 %v6504, %v6496
        %v7225 = vpack.c.b16 %v6505, %v6497
        %v7226 = vpack.c.b16 %v6506, %v6498
        %v7227 = vpack.c.b16 %v6507, %v6499
        %v7228 = vpack.c.b16 %v6508, %v6500
        %v7229 = vpack.c.b16 %v6517, %v6509
        %v7230 = vpack.c.b16 %v6518, %v6510
        %v7231 = vpack.c.b16 %v6519, %v6511
        %v7232 = vpack.c.b16 %v6520, %v6512
        %v7233 = vpack.c.b16 %v6521, %v6513
        %v7234 = vpack.c.b16 %v6522, %v6514
        %v7235 = vpack.c.b16 %v6523, %v6515
        %v7236 = vpack.c.b16 %v6524, %v6516
        %v7237 = vpack.c.b16 %v6533, %v6525
        %v7238 = vpack.c.b16 %v6534, %v6526
        %v7239 = vpack.c.b16 %v6535, %v6527
        %v7240 = vpack.c.b16 %v6536, %v6528
        %v7241 = vpack.c.b16 %v6537, %v6529
        %v7242 = vpack.c.b16 %v6538, %v6530
        %v7243 = vpack.c.b16 %v6539, %v6531
        %v7244 = vpack.c.b16 %v6540, %v6532
        %v7245 = vpack.c.b16 %v6549, %v6541
        %v7246 = vpack.c.b16 %v6550, %v6542
        %v7247 = vpack.c.b16 %v6551, %v6543
        %v7248 = vpack.c.b16 %v6552, %v6544
        %v7249 = vpack.c.b16 %v6553, %v6545
        %v7250 = vpack.c.b16 %v6554, %v6546
        %v7251 = vpack.c.b16 %v6555, %v6547
        %v7252 = vpack.c.b16 %v6556, %v6548
        %v7253 = vpack.c.b16 %v6565, %v6557
        %v7254 = vpack.c.b16 %v6566, %v6558
        %v7255 = vpack.c.b16 %v6567, %v6559
        %v7256 = vpack.c.b16 %v6568, %v6560
        %v7257 = vpack.c.b16 %v6569, %v6561
        %v7258 = vpack.c.b16 %v6570, %v6562
        %v7259 = vpack.c.b16 %v6571, %v6563
        %v7260 = vpack.c.b16 %v6572, %v6564
        %v7261 = vpack.c.b16 %v6581, %v6573
        %v7262 = vpack.c.b16 %v6582, %v6574
        %v7263 = vpack.c.b16 %v6583, %v6575
        %v7264 = vpack.c.b16 %v6584, %v6576
        %v7265 = vpack.c.b16 %v6585, %v6577
        %v7266 = vpack.c.b16 %v6586, %v6578
        %v7267 = vpack.c.b16 %v6587, %v6579
        %v7268 = vpack.c.b16 %v6588, %v6580
        %v7269 = vpack.c.b16 %v6597, %v6589
        %v7270 = vpack.c.b16 %v6598, %v6590
        %v7271 = vpack.c.b16 %v6599, %v6591
        %v7272 = vpack.c.b16 %v6600, %v6592
        %v7273 = vpack.c.b16 %v6601, %v6593
        %v7274 = vpack.c.b16 %v6602, %v6594
        %v7275 = vpack.c.b16 %v6603, %v6595
        %v7276 = vpack.c.b16 %v6604, %v6596
        %v7277 = vpack.c.b16 %v6613, %v6605
        %v7278 = vpack.c.b16 %v6614, %v6606
        %v7279 = vpack.c.b16 %v6615, %v6607
        %v7280 = vpack.c.b16 %v6616, %v6608
        %v7281 = vpack.c.b16 %v6617, %v6609
        %v7282 = vpack.c.b16 %v6618, %v6610
        %v7283 = vpack.c.b16 %v6619, %v6611
        %v7284 = vpack.c.b16 %v6620, %v6612
        %v7285 = vpack.c.b16 %v6629, %v6621
        %v7286 = vpack.c.b16 %v6630, %v6622
        %v7287 = vpack.c.b16 %v6631, %v6623
        %v7288 = vpack.c.b16 %v6632, %v6624
        %v7289 = vpack.c.b16 %v6633, %v6625
        %v7290 = vpack.c.b16 %v6634, %v6626
        %v7291 = vpack.c.b16 %v6635, %v6627
        %v7292 = vpack.c.b16 %v6636, %v6628
        %v7293 = vpack.c.b16 %v6645, %v6637
        %v7294 = vpack.c.b16 %v6646, %v6638
        %v7295 = vpack.c.b16 %v6647, %v6639
        %v7296 = vpack.c.b16 %v6648, %v6640
        %v7297 = vpack.c.b16 %v6649, %v6641
        %v7298 = vpack.c.b16 %v6650, %v6642
        %v7299 = vpack.c.b16 %v6651, %v6643
        %v7300 = vpack.c.b16 %v6652, %v6644
        %v7301 = vpack.c.b16 %v6661, %v6653
        %v7302 = vpack.c.b16 %v6662, %v6654
        %v7303 = vpack.c.b16 %v6663, %v6655
        %v7304 = vpack.c.b16 %v6664, %v6656
        %v7305 = vpack.c.b16 %v6665, %v6657
        %v7306 = vpack.c.b16 %v6666, %v6658
        %v7307 = vpack.c.b16 %v6667, %v6659
        %v7308 = vpack.c.b16 %v6668, %v6660
        %v7309 = vpack.c.b16 %v6677, %v6669
        %v7310 = vpack.c.b16 %v6678, %v6670
        %v7311 = vpack.c.b16 %v6679, %v6671
        %v7312 = vpack.c.b16 %v6680, %v6672
        %v7313 = vpack.c.b16 %v6681, %v6673
        %v7314 = vpack.c.b16 %v6682, %v6674
        %v7315 = vpack.c.b16 %v6683, %v6675
        %v7316 = vpack.c.b16 %v6684, %v6676
        %v7317 = vpack.c.b16 %v6693, %v6685
        %v7318 = vpack.c.b16 %v6694, %v6686
        %v7319 = vpack.c.b16 %v6695, %v6687
        %v7320 = vpack.c.b16 %v6696, %v6688
        %v7321 = vpack.c.b16 %v6697, %v6689
        %v7322 = vpack.c.b16 %v6698, %v6690
        %v7323 = vpack.c.b16 %v6699, %v6691
        %v7324 = vpack.c.b16 %v6700, %v6692
        %v7325 = vpack.c.b16 %v6709, %v6701
        %v7326 = vpack.c.b16 %v6710, %v6702
        %v7327 = vpack.c.b16 %v6711, %v6703
        %v7328 = vpack.c.b16 %v6712, %v6704
        %v7329 = vpack.c.b16 %v6713, %v6705
        %v7330 = vpack.c.b16 %v6714, %v6706
        %v7331 = vpack.c.b16 %v6715, %v6707
        %v7332 = vpack.c.b16 %v6716, %v6708
        %v7333 = vpack.c.b16 %v6725, %v6717
        %v7334 = vpack.c.b16 %v6726, %v6718
        %v7335 = vpack.c.b16 %v6727, %v6719
        %v7336 = vpack.c.b16 %v6728, %v6720
        %v7337 = vpack.c.b16 %v6729, %v6721
        %v7338 = vpack.c.b16 %v6730, %v6722
        %v7339 = vpack.c.b16 %v6731, %v6723
        %v7340 = vpack.c.b16 %v6732, %v6724
        %v7341 = vpack.c.b16 %v6741, %v6733
        %v7342 = vpack.c.b16 %v6742, %v6734
        %v7343 = vpack.c.b16 %v6743, %v6735
        %v7344 = vpack.c.b16 %v6744, %v6736
        %v7345 = vpack.c.b16 %v6745, %v6737
        %v7346 = vpack.c.b16 %v6746, %v6738
        %v7347 = vpack.c.b16 %v6747, %v6739
        %v7348 = vpack.c.b16 %v6748, %v6740
        %v7349 = vpack.c.b16 %v6757, %v6749
        %v7350 = vpack.c.b16 %v6758, %v6750
        %v7351 = vpack.c.b16 %v6759, %v6751
        %v7352 = vpack.c.b16 %v6760, %v6752
        %v7353 = vpack.c.b16 %v6761, %v6753
        %v7354 = vpack.c.b16 %v6762, %v6754
        %v7355 = vpack.c.b16 %v6763, %v6755
        %v7356 = vpack.c.b16 %v6764, %v6756
        %v7357 = vpack.c.b16 %v6773, %v6765
        %v7358 = vpack.c.b16 %v6774, %v6766
        %v7359 = vpack.c.b16 %v6775, %v6767
        %v7360 = vpack.c.b16 %v6776, %v6768
        %v7361 = vpack.c.b16 %v6777, %v6769
        %v7362 = vpack.c.b16 %v6778, %v6770
        %v7363 = vpack.c.b16 %v6779, %v6771
        %v7364 = vpack.c.b16 %v6780, %v6772
        %v7365 = vpack.c.b16 %v6789, %v6781
        %v7366 = vpack.c.b16 %v6790, %v6782
        %v7367 = vpack.c.b16 %v6791, %v6783
        %v7368 = vpack.c.b16 %v6792, %v6784
        %v7369 = vpack.c.b16 %v6793, %v6785
        %v7370 = vpack.c.b16 %v6794, %v6786
        %v7371 = vpack.c.b16 %v6795, %v6787
        %v7372 = vpack.c.b16 %v6796, %v6788
        %v7373 = vpack.c.b16 %v6805, %v6797
        %v7374 = vpack.c.b16 %v6806, %v6798
        %v7375 = vpack.c.b16 %v6807, %v6799
        %v7376 = vpack.c.b16 %v6808, %v6800
        %v7377 = vpack.c.b16 %v6809, %v6801
        %v7378 = vpack.c.b16 %v6810, %v6802
        %v7379 = vpack.c.b16 %v6811, %v6803
        %v7380 = vpack.c.b16 %v6812, %v6804
        %v7381 = vpack.c.b16 %v6821, %v6813
        %v7382 = vpack.c.b16 %v6822, %v6814
        %v7383 = vpack.c.b16 %v6823, %v6815
        %v7384 = vpack.c.b16 %v6824, %v6816
        %v7385 = vpack.c.b16 %v6825, %v6817
        %v7386 = vpack.c.b16 %v6826, %v6818
        %v7387 = vpack.c.b16 %v6827, %v6819
        %v7388 = vpack.c.b16 %v6828, %v6820
        %v7389 = vpack.c.b16 %v6837, %v6829
        %v7390 = vpack.c.b16 %v6838, %v6830
        %v7391 = vpack.c.b16 %v6839, %v6831
        %v7392 = vpack.c.b16 %v6840, %v6832
        %v7393 = vpack.c.b16 %v6841, %v6833
        %v7394 = vpack.c.b16 %v6842, %v6834
        %v7395 = vpack.c.b16 %v6843, %v6835
        %v7396 = vpack.c.b16 %v6844, %v6836
        %v7397 = vpack.c.b16 %v6853, %v6845
        %v7398 = vpack.c.b16 %v6854, %v6846
        %v7399 = vpack.c.b16 %v6855, %v6847
        %v7400 = vpack.c.b16 %v6856, %v6848
        %v7401 = vpack.c.b16 %v6857, %v6849
        %v7402 = vpack.c.b16 %v6858, %v6850
        %v7403 = vpack.c.b16 %v6859, %v6851
        %v7404 = vpack.c.b16 %v6860, %v6852
        %v7405 = vpack.c.b16 %v6869, %v6861
        %v7406 = vpack.c.b16 %v6870, %v6862
        %v7407 = vpack.c.b16 %v6871, %v6863
        %v7408 = vpack.c.b16 %v6872, %v6864
        %v7409 = vpack.c.b16 %v6873, %v6865
        %v7410 = vpack.c.b16 %v6874, %v6866
        %v7411 = vpack.c.b16 %v6875, %v6867
        %v7412 = vpack.c.b16 %v6876, %v6868
        %v7413 = vpack.c.b16 %v6885, %v6877
        %v7414 = vpack.c.b16 %v6886, %v6878
        %v7415 = vpack.c.b16 %v6887, %v6879
        %v7416 = vpack.c.b16 %v6888, %v6880
        %v7417 = vpack.c.b16 %v6889, %v6881
        %v7418 = vpack.c.b16 %v6890, %v6882
        %v7419 = vpack.c.b16 %v6891, %v6883
        %v7420 = vpack.c.b16 %v6892, %v6884
        %v7421 = vpack.c.b16 %v6901, %v6893
        %v7422 = vpack.c.b16 %v6902, %v6894
        %v7423 = vpack.c.b16 %v6903, %v6895
        %v7424 = vpack.c.b16 %v6904, %v6896
        %v7425 = vpack.c.b16 %v6905, %v6897
        %v7426 = vpack.c.b16 %v6906, %v6898
        %v7427 = vpack.c.b16 %v6907, %v6899
        %v7428 = vpack.c.b16 %v6908, %v6900
        %v7429 = vpack.c.b16 %v6917, %v6909
        %v7430 = vpack.c.b16 %v6918, %v6910
        %v7431 = vpack.c.b16 %v6919, %v6911
        %v7432 = vpack.c.b16 %v6920, %v6912
        %v7433 = vpack.c.b16 %v6921, %v6913
        %v7434 = vpack.c.b16 %v6922, %v6914
        %v7435 = vpack.c.b16 %v6923, %v6915
        %v7436 = vpack.c.b16 %v6924, %v6916
        %v7437 = vpack.c.b16 %v6933, %v6925
        %v7438 = vpack.c.b16 %v6934, %v6926
        %v7439 = vpack.c.b16 %v6935, %v6927
        %v7440 = vpack.c.b16 %v6936, %v6928
        %v7441 = vpack.c.b16 %v6937, %v6929
        %v7442 = vpack.c.b16 %v6938, %v6930
        %v7443 = vpack.c.b16 %v6939, %v6931
        %v7444 = vpack.c.b16 %v6940, %v6932
        %v7445 = vpack.c.b16 %v6949, %v6941
        %v7446 = vpack.c.b16 %v6950, %v6942
        %v7447 = vpack.c.b16 %v6951, %v6943
        %v7448 = vpack.c.b16 %v6952, %v6944
        %v7449 = vpack.c.b16 %v6953, %v6945
        %v7450 = vpack.c.b16 %v6954, %v6946
        %v7451 = vpack.c.b16 %v6955, %v6947
        %v7452 = vpack.c.b16 %v6956, %v6948
        %v7453 = vpack.c.b16 %v6965, %v6957
        %v7454 = vpack.c.b16 %v6966, %v6958
        %v7455 = vpack.c.b16 %v6967, %v6959
        %v7456 = vpack.c.b16 %v6968, %v6960
        %v7457 = vpack.c.b16 %v6969, %v6961
        %v7458 = vpack.c.b16 %v6970, %v6962
        %v7459 = vpack.c.b16 %v6971, %v6963
        %v7460 = vpack.c.b16 %v6972, %v6964
        %v7461 = vpack.c.b16 %v6981, %v6973
        %v7462 = vpack.c.b16 %v6982, %v6974
        %v7463 = vpack.c.b16 %v6983, %v6975
        %v7464 = vpack.c.b16 %v6984, %v6976
        %v7465 = vpack.c.b16 %v6985, %v6977
        %v7466 = vpack.c.b16 %v6986, %v6978
        %v7467 = vpack.c.b16 %v6987, %v6979
        %v7468 = vpack.c.b16 %v6988, %v6980
        %v7469 = vpack.c.b16 %v6997, %v6989
        %v7470 = vpack.c.b16 %v6998, %v6990
        %v7471 = vpack.c.b16 %v6999, %v6991
        %v7472 = vpack.c.b16 %v7000, %v6992
        %v7473 = vpack.c.b16 %v7001, %v6993
        %v7474 = vpack.c.b16 %v7002, %v6994
        %v7475 = vpack.c.b16 %v7003, %v6995
        %v7476 = vpack.c.b16 %v7004, %v6996
        %v7477 = vpack.c.b16 %v7013, %v7005
        %v7478 = vpack.c.b16 %v7014, %v7006
        %v7479 = vpack.c.b16 %v7015, %v7007
        %v7480 = vpack.c.b16 %v7016, %v7008
        %v7481 = vpack.c.b16 %v7017, %v7009
        %v7482 = vpack.c.b16 %v7018, %v7010
        %v7483 = vpack.c.b16 %v7019, %v7011
        %v7484 = vpack.c.b16 %v7020, %v7012
        %v7485 = vpack.c.b16 %v7029, %v7021
        %v7486 = vpack.c.b16 %v7030, %v7022
        %v7487 = vpack.c.b16 %v7031, %v7023
        %v7488 = vpack.c.b16 %v7032, %v7024
        %v7489 = vpack.c.b16 %v7033, %v7025
        %v7490 = vpack.c.b16 %v7034, %v7026
        %v7491 = vpack.c.b16 %v7035, %v7027
        %v7492 = vpack.c.b16 %v7036, %v7028
        %v7493 = vpack.c.b16 %v7045, %v7037
        %v7494 = vpack.c.b16 %v7046, %v7038
        %v7495 = vpack.c.b16 %v7047, %v7039
        %v7496 = vpack.c.b16 %v7048, %v7040
        %v7497 = vpack.c.b16 %v7049, %v7041
        %v7498 = vpack.c.b16 %v7050, %v7042
        %v7499 = vpack.c.b16 %v7051, %v7043
        %v7500 = vpack.c.b16 %v7052, %v7044
        %v7501 = vpack.c.b16 %v7061, %v7053
        %v7502 = vpack.c.b16 %v7062, %v7054
        %v7503 = vpack.c.b16 %v7063, %v7055
        %v7504 = vpack.c.b16 %v7064, %v7056
        %v7505 = vpack.c.b16 %v7065, %v7057
        %v7506 = vpack.c.b16 %v7066, %v7058
        %v7507 = vpack.c.b16 %v7067, %v7059
        %v7508 = vpack.c.b16 %v7068, %v7060
        %v7509 = vpack.c.b16 %v7077, %v7069
        %v7510 = vpack.c.b16 %v7078, %v7070
        %v7511 = vpack.c.b16 %v7079, %v7071
        %v7512 = vpack.c.b16 %v7080, %v7072
        %v7513 = vpack.c.b16 %v7081, %v7073
        %v7514 = vpack.c.b16 %v7082, %v7074
        %v7515 = vpack.c.b16 %v7083, %v7075
        %v7516 = vpack.c.b16 %v7084, %v7076
        %v7517 = vpack.c.b16 %v7093, %v7085
        %v7518 = vpack.c.b16 %v7094, %v7086
        %v7519 = vpack.c.b16 %v7095, %v7087
        %v7520 = vpack.c.b16 %v7096, %v7088
        %v7521 = vpack.c.b16 %v7097, %v7089
        %v7522 = vpack.c.b16 %v7098, %v7090
        %v7523 = vpack.c.b16 %v7099, %v7091
        %v7524 = vpack.c.b16 %v7100, %v7092
        %v7525 = vpack.c.b16 %v7109, %v7101
        %v7526 = vpack.c.b16 %v7110, %v7102
        %v7527 = vpack.c.b16 %v7111, %v7103
        %v7528 = vpack.c.b16 %v7112, %v7104
        %v7529 = vpack.c.b16 %v7113, %v7105
        %v7530 = vpack.c.b16 %v7114, %v7106
        %v7531 = vpack.c.b16 %v7115, %v7107
        %v7532 = vpack.c.b16 %v7116, %v7108
        %v7533 = vpack.c.b16 %v7125, %v7117
        %v7534 = vpack.c.b16 %v7126, %v7118
        %v7535 = vpack.c.b16 %v7127, %v7119
        %v7536 = vpack.c.b16 %v7128, %v7120
        %v7537 = vpack.c.b16 %v7129, %v7121
        %v7538 = vpack.c.b16 %v7130, %v7122
        %v7539 = vpack.c.b16 %v7131, %v7123
        %v7540 = vpack.c.b16 %v7132, %v7124
        %v7541 = vpack.c.b16 %v7141, %v7133
        %v7542 = vpack.c.b16 %v7142, %v7134
        %v7543 = vpack.c.b16 %v7143, %v7135
        %v7544 = vpack.c.b16 %v7144, %v7136
        %v7545 = vpack.c.b16 %v7145, %v7137
        %v7546 = vpack.c.b16 %v7146, %v7138
        %v7547 = vpack.c.b16 %v7147, %v7139
        %v7548 = vpack.c.b16 %v7148, %v7140
        %v7549 = vpack.c.b16 %v7157, %v7149
        %v7550 = vpack.c.b16 %v7158, %v7150
        %v7551 = vpack.c.b16 %v7159, %v7151
        %v7552 = vpack.c.b16 %v7160, %v7152
        %v7553 = vpack.c.b16 %v7161, %v7153
        %v7554 = vpack.c.b16 %v7162, %v7154
        %v7555 = vpack.c.b16 %v7163, %v7155
        %v7556 = vpack.c.b16 %v7164, %v7156
        %v7557 = vpack.c.b16 %v7173, %v7165
        %v7558 = vpack.c.b16 %v7174, %v7166
        %v7559 = vpack.c.b16 %v7175, %v7167
        %v7560 = vpack.c.b16 %v7176, %v7168
        %v7561 = vpack.c.b16 %v7177, %v7169
        %v7562 = vpack.c.b16 %v7178, %v7170
        %v7563 = vpack.c.b16 %v7179, %v7171
        %v7564 = vpack.c.b16 %v7180, %v7172
        %7949 = vmatprep.subr.bf16.mxu0 %v7238
        %7950 = vmatpush1.bf16.msra.mxu0 %v7237
        %7951 = vmatprep.subr.bf16.mxu0 %v7230
        %7952 = vmatpush1.bf16.msra.mxu0 %v7229
        %7953 = vmatprep.subr.bf16.mxu0 %v7222
        %7954 = vmatpush1.bf16.msra.mxu0 %v7221
        %7955 = vmatprep.subr.bf16.mxu0 %v7214
        %7956 = vmatpush1.bf16.msra.mxu0 %v7213
        %7957 = vmatprep.subr.bf16.mxu0 %v7206
        %7958 = vmatpush1.bf16.msra.mxu0 %v7205
        %7959 = vmatprep.subr.bf16.mxu0 %v7198
        %7960 = vmatpush1.bf16.msra.mxu0 %v7197
        %7961 = vmatprep.subr.bf16.mxu0 %v7190
        %7962 = vmatpush1.bf16.msra.mxu0 %v7189
        %7963 = vmatprep.subr.bf16.mxu0 %v7182
        %7964 = vmatpush1.bf16.msra.mxu0 %v7181
        %7965 = vmatprep.subr.bf16.mxu0 %v7302
        %7966 = vmatpush2.bf16.msra.mxu0 %v7301
        %7967 = vmatprep.subr.bf16.mxu0 %v7294
        %7968 = vmatpush2.bf16.msra.mxu0 %v7293
        %7969 = vmatprep.subr.bf16.mxu0 %v7286
        %7970 = vmatpush2.bf16.msra.mxu0 %v7285
        %7971 = vmatprep.subr.bf16.mxu0 %v7278
        %7972 = vmatpush2.bf16.msra.mxu0 %v7277
        %7973 = vmatprep.subr.bf16.mxu0 %v7270
        %7974 = vmatpush2.bf16.msra.mxu0 %v7269
        %7975 = vmatprep.subr.bf16.mxu0 %v7262
        %7976 = vmatpush2.bf16.msra.mxu0 %v7261
        %7977 = vmatprep.subr.bf16.mxu0 %v7254
        %7978 = vmatpush2.bf16.msra.mxu0 %v7253
        %7979 = vmatprep.subr.bf16.mxu0 %v7246
        %7980 = vmatpush2.bf16.msra.mxu0 %v7245
        %7981 = vmatprep.mubr.bf16.mxu0 %v5640
        %7982 = vmatmul.mubr.bf16.gmra.mxu0 %v5639
        %v7983 = vpop.f32.mrf.mxu0
        %v7984 = vadd.f32 0.0, %v7983
        %v7985 = vpop.f32.mrf.mxu0
        %v7986 = vadd.f32 0.0, %v7985
        %v7987 = vpop.f32.mrf.mxu0
        %v7988 = vpop.f32.mrf.mxu0
        %7989 = vdwg.mxu0
        %7990 = vmatprep.subr.bf16.mxu0 %v7366
        %7991 = vmatpush1.bf16.msra.mxu0 %v7365
        %7992 = vmatprep.subr.bf16.mxu0 %v7358
        %7993 = vmatpush1.bf16.msra.mxu0 %v7357
        %7994 = vmatprep.subr.bf16.mxu0 %v7350
        %7995 = vmatpush1.bf16.msra.mxu0 %v7349
        %7996 = vmatprep.subr.bf16.mxu0 %v7342
        %7997 = vmatpush1.bf16.msra.mxu0 %v7341
        %7998 = vmatprep.subr.bf16.mxu0 %v7334
        %7999 = vmatpush1.bf16.msra.mxu0 %v7333
        %8000 = vmatprep.subr.bf16.mxu0 %v7326
        %8001 = vmatpush1.bf16.msra.mxu0 %v7325
        %8002 = vmatprep.subr.bf16.mxu0 %v7318
        %8003 = vmatpush1.bf16.msra.mxu0 %v7317
        %8004 = vmatprep.subr.bf16.mxu0 %v7310
        %8005 = vmatpush1.bf16.msra.mxu0 %v7309
        %8006 = vmatprep.subr.bf16.mxu0 %v7430
        %8007 = vmatpush2.bf16.msra.mxu0 %v7429
        %8008 = vmatprep.subr.bf16.mxu0 %v7422
        %8009 = vmatpush2.bf16.msra.mxu0 %v7421
        %8010 = vmatprep.subr.bf16.mxu0 %v7414
        %8011 = vmatpush2.bf16.msra.mxu0 %v7413
        %8012 = vmatprep.subr.bf16.mxu0 %v7406
        %8013 = vmatpush2.bf16.msra.mxu0 %v7405
        %8014 = vmatprep.subr.bf16.mxu0 %v7398
        %8015 = vmatpush2.bf16.msra.mxu0 %v7397
        %8016 = vmatprep.subr.bf16.mxu0 %v7390
        %8017 = vmatpush2.bf16.msra.mxu0 %v7389
        %8018 = vmatprep.subr.bf16.mxu0 %v7382
        %8019 = vmatpush2.bf16.msra.mxu0 %v7381
        %8020 = vmatprep.subr.bf16.mxu0 %v7374
        %8021 = vmatpush2.bf16.msra.mxu0 %v7373
        %8022 = vmatprep.mubr.bf16.mxu0 %v5642
        %8023 = vmatmul.mubr.bf16.gmra.mxu0 %v5641
        %v8024 = vpop.f32.mrf.mxu0
        %v8025 = vadd.f32 %v7984, %v8024
        %v8026 = vpop.f32.mrf.mxu0
        %v8027 = vadd.f32 %v7986, %v8026
        %v8028 = vpop.f32.mrf.mxu0
        %v8029 = vpop.f32.mrf.mxu0
        %8030 = vdwg.mxu0
        %8031 = vmatprep.subr.bf16.mxu0 %v7494
        %8032 = vmatpush1.bf16.msra.mxu0 %v7493
        %8033 = vmatprep.subr.bf16.mxu0 %v7486
        %8034 = vmatpush1.bf16.msra.mxu0 %v7485
        %8035 = vmatprep.subr.bf16.mxu0 %v7478
        %8036 = vmatpush1.bf16.msra.mxu0 %v7477
        %8037 = vmatprep.subr.bf16.mxu0 %v7470
        %8038 = vmatpush1.bf16.msra.mxu0 %v7469
        %8039 = vmatprep.subr.bf16.mxu0 %v7462
        %8040 = vmatpush1.bf16.msra.mxu0 %v7461
        %8041 = vmatprep.subr.bf16.mxu0 %v7454
        %8042 = vmatpush1.bf16.msra.mxu0 %v7453
        %8043 = vmatprep.subr.bf16.mxu0 %v7446
        %8044 = vmatpush1.bf16.msra.mxu0 %v7445
        %8045 = vmatprep.subr.bf16.mxu0 %v7438
        %8046 = vmatpush1.bf16.msra.mxu0 %v7437
        %8047 = vmatprep.subr.bf16.mxu0 %v7558
        %8048 = vmatpush2.bf16.msra.mxu0 %v7557
        %8049 = vmatprep.subr.bf16.mxu0 %v7550
        %8050 = vmatpush2.bf16.msra.mxu0 %v7549
        %8051 = vmatprep.subr.bf16.mxu0 %v7542
        %8052 = vmatpush2.bf16.msra.mxu0 %v7541
        %8053 = vmatprep.subr.bf16.mxu0 %v7534
        %8054 = vmatpush2.bf16.msra.mxu0 %v7533
        %8055 = vmatprep.subr.bf16.mxu0 %v7526
        %8056 = vmatpush2.bf16.msra.mxu0 %v7525
        %8057 = vmatprep.subr.bf16.mxu0 %v7518
        %8058 = vmatpush2.bf16.msra.mxu0 %v7517
        %8059 = vmatprep.subr.bf16.mxu0 %v7510
        %8060 = vmatpush2.bf16.msra.mxu0 %v7509
        %8061 = vmatprep.subr.bf16.mxu0 %v7502
        %8062 = vmatpush2.bf16.msra.mxu0 %v7501
        %8063 = vmatprep.mubr.bf16.mxu0 %v5644
        %8064 = vmatmul.mubr.bf16.gmra.mxu0 %v5643
        %v8065 = vpop.f32.mrf.mxu0
        %v8066 = vadd.f32 %v8025, %v8065
        %v8067 = vpop.f32.mrf.mxu0
        %v8068 = vadd.f32 %v8027, %v8067
        %v8069 = vpop.f32.mrf.mxu0
        %v8070 = vpop.f32.mrf.mxu0
        %8071 = vdwg.mxu0
        %8072 = vmatprep.subr.bf16.mxu0 %v7240
        %8073 = vmatpush1.bf16.msra.mxu0 %v7239
        %8074 = vmatprep.subr.bf16.mxu0 %v7232
        %8075 = vmatpush1.bf16.msra.mxu0 %v7231
        %8076 = vmatprep.subr.bf16.mxu0 %v7224
        %8077 = vmatpush1.bf16.msra.mxu0 %v7223
        %8078 = vmatprep.subr.bf16.mxu0 %v7216
        %8079 = vmatpush1.bf16.msra.mxu0 %v7215
        %8080 = vmatprep.subr.bf16.mxu0 %v7208
        %8081 = vmatpush1.bf16.msra.mxu0 %v7207
        %8082 = vmatprep.subr.bf16.mxu0 %v7200
        %8083 = vmatpush1.bf16.msra.mxu0 %v7199
        %8084 = vmatprep.subr.bf16.mxu0 %v7192
        %8085 = vmatpush1.bf16.msra.mxu0 %v7191
        %8086 = vmatprep.subr.bf16.mxu0 %v7184
        %8087 = vmatpush1.bf16.msra.mxu0 %v7183
        %8088 = vmatprep.subr.bf16.mxu0 %v7304
        %8089 = vmatpush2.bf16.msra.mxu0 %v7303
        %8090 = vmatprep.subr.bf16.mxu0 %v7296
        %8091 = vmatpush2.bf16.msra.mxu0 %v7295
        %8092 = vmatprep.subr.bf16.mxu0 %v7288
        %8093 = vmatpush2.bf16.msra.mxu0 %v7287
        %8094 = vmatprep.subr.bf16.mxu0 %v7280
        %8095 = vmatpush2.bf16.msra.mxu0 %v7279
        %8096 = vmatprep.subr.bf16.mxu0 %v7272
        %8097 = vmatpush2.bf16.msra.mxu0 %v7271
        %8098 = vmatprep.subr.bf16.mxu0 %v7264
        %8099 = vmatpush2.bf16.msra.mxu0 %v7263
        %8100 = vmatprep.subr.bf16.mxu0 %v7256
        %8101 = vmatpush2.bf16.msra.mxu0 %v7255
        %8102 = vmatprep.subr.bf16.mxu0 %v7248
        %8103 = vmatpush2.bf16.msra.mxu0 %v7247
        %8104 = vmatprep.mubr.bf16.mxu0 %v5640
        %8105 = vmatmul.mubr.bf16.gmra.mxu0 %v5639
        %v8106 = vpop.f32.mrf.mxu0
        %v8107 = vadd.f32 0.0, %v8106
        %v8108 = vpop.f32.mrf.mxu0
        %v8109 = vadd.f32 0.0, %v8108
        %v8110 = vpop.f32.mrf.mxu0
        %v8111 = vpop.f32.mrf.mxu0
        %8112 = vdwg.mxu0
        %8113 = vmatprep.subr.bf16.mxu0 %v7368
        %8114 = vmatpush1.bf16.msra.mxu0 %v7367
        %8115 = vmatprep.subr.bf16.mxu0 %v7360
        %8116 = vmatpush1.bf16.msra.mxu0 %v7359
        %8117 = vmatprep.subr.bf16.mxu0 %v7352
        %8118 = vmatpush1.bf16.msra.mxu0 %v7351
        %8119 = vmatprep.subr.bf16.mxu0 %v7344
        %8120 = vmatpush1.bf16.msra.mxu0 %v7343
        %8121 = vmatprep.subr.bf16.mxu0 %v7336
        %8122 = vmatpush1.bf16.msra.mxu0 %v7335
        %8123 = vmatprep.subr.bf16.mxu0 %v7328
        %8124 = vmatpush1.bf16.msra.mxu0 %v7327
        %8125 = vmatprep.subr.bf16.mxu0 %v7320
        %8126 = vmatpush1.bf16.msra.mxu0 %v7319
        %8127 = vmatprep.subr.bf16.mxu0 %v7312
        %8128 = vmatpush1.bf16.msra.mxu0 %v7311
        %8129 = vmatprep.subr.bf16.mxu0 %v7432
        %8130 = vmatpush2.bf16.msra.mxu0 %v7431
        %8131 = vmatprep.subr.bf16.mxu0 %v7424
        %8132 = vmatpush2.bf16.msra.mxu0 %v7423
        %8133 = vmatprep.subr.bf16.mxu0 %v7416
        %8134 = vmatpush2.bf16.msra.mxu0 %v7415
        %8135 = vmatprep.subr.bf16.mxu0 %v7408
        %8136 = vmatpush2.bf16.msra.mxu0 %v7407
        %8137 = vmatprep.subr.bf16.mxu0 %v7400
        %8138 = vmatpush2.bf16.msra.mxu0 %v7399
        %8139 = vmatprep.subr.bf16.mxu0 %v7392
        %8140 = vmatpush2.bf16.msra.mxu0 %v7391
        %8141 = vmatprep.subr.bf16.mxu0 %v7384
        %8142 = vmatpush2.bf16.msra.mxu0 %v7383
        %8143 = vmatprep.subr.bf16.mxu0 %v7376
        %8144 = vmatpush2.bf16.msra.mxu0 %v7375
        %8145 = vmatprep.mubr.bf16.mxu0 %v5642
        %8146 = vmatmul.mubr.bf16.gmra.mxu0 %v5641
        %v8147 = vpop.f32.mrf.mxu0
        %v8148 = vadd.f32 %v8107, %v8147
        %v8149 = vpop.f32.mrf.mxu0
        %v8150 = vadd.f32 %v8109, %v8149
        %v8151 = vpop.f32.mrf.mxu0
        %v8152 = vpop.f32.mrf.mxu0
        %8153 = vdwg.mxu0
        %8154 = vmatprep.subr.bf16.mxu0 %v7496
        %8155 = vmatpush1.bf16.msra.mxu0 %v7495
        %8156 = vmatprep.subr.bf16.mxu0 %v7488
        %8157 = vmatpush1.bf16.msra.mxu0 %v7487
        %8158 = vmatprep.subr.bf16.mxu0 %v7480
        %8159 = vmatpush1.bf16.msra.mxu0 %v7479
        %8160 = vmatprep.subr.bf16.mxu0 %v7472
        %8161 = vmatpush1.bf16.msra.mxu0 %v7471
        %8162 = vmatprep.subr.bf16.mxu0 %v7464
        %8163 = vmatpush1.bf16.msra.mxu0 %v7463
        %8164 = vmatprep.subr.bf16.mxu0 %v7456
        %8165 = vmatpush1.bf16.msra.mxu0 %v7455
        %8166 = vmatprep.subr.bf16.mxu0 %v7448
        %8167 = vmatpush1.bf16.msra.mxu0 %v7447
        %8168 = vmatprep.subr.bf16.mxu0 %v7440
        %8169 = vmatpush1.bf16.msra.mxu0 %v7439
        %8170 = vmatprep.subr.bf16.mxu0 %v7560
        %8171 = vmatpush2.bf16.msra.mxu0 %v7559
        %8172 = vmatprep.subr.bf16.mxu0 %v7552
        %8173 = vmatpush2.bf16.msra.mxu0 %v7551
        %8174 = vmatprep.subr.bf16.mxu0 %v7544
        %8175 = vmatpush2.bf16.msra.mxu0 %v7543
        %8176 = vmatprep.subr.bf16.mxu0 %v7536
        %8177 = vmatpush2.bf16.msra.mxu0 %v7535
        %8178 = vmatprep.subr.bf16.mxu0 %v7528
        %8179 = vmatpush2.bf16.msra.mxu0 %v7527
        %8180 = vmatprep.subr.bf16.mxu0 %v7520
        %8181 = vmatpush2.bf16.msra.mxu0 %v7519
        %8182 = vmatprep.subr.bf16.mxu0 %v7512
        %8183 = vmatpush2.bf16.msra.mxu0 %v7511
        %8184 = vmatprep.subr.bf16.mxu0 %v7504
        %8185 = vmatpush2.bf16.msra.mxu0 %v7503
        %8186 = vmatprep.mubr.bf16.mxu0 %v5644
        %8187 = vmatmul.mubr.bf16.gmra.mxu0 %v5643
        %v8188 = vpop.f32.mrf.mxu0
        %v8189 = vadd.f32 %v8148, %v8188
        %v8190 = vpop.f32.mrf.mxu0
        %v8191 = vadd.f32 %v8150, %v8190
        %v8192 = vpop.f32.mrf.mxu0
        %v8193 = vpop.f32.mrf.mxu0
        %8194 = vdwg.mxu0
        %8195 = vmatprep.subr.bf16.mxu0 %v7242
        %8196 = vmatpush1.bf16.msra.mxu0 %v7241
        %8197 = vmatprep.subr.bf16.mxu0 %v7234
        %8198 = vmatpush1.bf16.msra.mxu0 %v7233
        %8199 = vmatprep.subr.bf16.mxu0 %v7226
        %8200 = vmatpush1.bf16.msra.mxu0 %v7225
        %8201 = vmatprep.subr.bf16.mxu0 %v7218
        %8202 = vmatpush1.bf16.msra.mxu0 %v7217
        %8203 = vmatprep.subr.bf16.mxu0 %v7210
        %8204 = vmatpush1.bf16.msra.mxu0 %v7209
        %8205 = vmatprep.subr.bf16.mxu0 %v7202
        %8206 = vmatpush1.bf16.msra.mxu0 %v7201
        %8207 = vmatprep.subr.bf16.mxu0 %v7194
        %8208 = vmatpush1.bf16.msra.mxu0 %v7193
        %8209 = vmatprep.subr.bf16.mxu0 %v7186
        %8210 = vmatpush1.bf16.msra.mxu0 %v7185
        %8211 = vmatprep.subr.bf16.mxu0 %v7306
        %8212 = vmatpush2.bf16.msra.mxu0 %v7305
        %8213 = vmatprep.subr.bf16.mxu0 %v7298
        %8214 = vmatpush2.bf16.msra.mxu0 %v7297
        %8215 = vmatprep.subr.bf16.mxu0 %v7290
        %8216 = vmatpush2.bf16.msra.mxu0 %v7289
        %8217 = vmatprep.subr.bf16.mxu0 %v7282
        %8218 = vmatpush2.bf16.msra.mxu0 %v7281
        %8219 = vmatprep.subr.bf16.mxu0 %v7274
        %8220 = vmatpush2.bf16.msra.mxu0 %v7273
        %8221 = vmatprep.subr.bf16.mxu0 %v7266
        %8222 = vmatpush2.bf16.msra.mxu0 %v7265
        %8223 = vmatprep.subr.bf16.mxu0 %v7258
        %8224 = vmatpush2.bf16.msra.mxu0 %v7257
        %8225 = vmatprep.subr.bf16.mxu0 %v7250
        %8226 = vmatpush2.bf16.msra.mxu0 %v7249
        %8227 = vmatprep.mubr.bf16.mxu0 %v5640
        %8228 = vmatmul.mubr.bf16.gmra.mxu0 %v5639
        %v8229 = vpop.f32.mrf.mxu0
        %v8230 = vadd.f32 0.0, %v8229
        %v8231 = vpop.f32.mrf.mxu0
        %v8232 = vadd.f32 0.0, %v8231
        %v8233 = vpop.f32.mrf.mxu0
        %v8234 = vpop.f32.mrf.mxu0
        %8235 = vdwg.mxu0
        %8236 = vmatprep.subr.bf16.mxu0 %v7370
        %8237 = vmatpush1.bf16.msra.mxu0 %v7369
        %8238 = vmatprep.subr.bf16.mxu0 %v7362
        %8239 = vmatpush1.bf16.msra.mxu0 %v7361
        %8240 = vmatprep.subr.bf16.mxu0 %v7354
        %8241 = vmatpush1.bf16.msra.mxu0 %v7353
        %8242 = vmatprep.subr.bf16.mxu0 %v7346
        %8243 = vmatpush1.bf16.msra.mxu0 %v7345
        %8244 = vmatprep.subr.bf16.mxu0 %v7338
        %8245 = vmatpush1.bf16.msra.mxu0 %v7337
        %8246 = vmatprep.subr.bf16.mxu0 %v7330
        %8247 = vmatpush1.bf16.msra.mxu0 %v7329
        %8248 = vmatprep.subr.bf16.mxu0 %v7322
        %8249 = vmatpush1.bf16.msra.mxu0 %v7321
        %8250 = vmatprep.subr.bf16.mxu0 %v7314
        %8251 = vmatpush1.bf16.msra.mxu0 %v7313
        %8252 = vmatprep.subr.bf16.mxu0 %v7434
        %8253 = vmatpush2.bf16.msra.mxu0 %v7433
        %8254 = vmatprep.subr.bf16.mxu0 %v7426
        %8255 = vmatpush2.bf16.msra.mxu0 %v7425
        %8256 = vmatprep.subr.bf16.mxu0 %v7418
        %8257 = vmatpush2.bf16.msra.mxu0 %v7417
        %8258 = vmatprep.subr.bf16.mxu0 %v7410
        %8259 = vmatpush2.bf16.msra.mxu0 %v7409
        %8260 = vmatprep.subr.bf16.mxu0 %v7402
        %8261 = vmatpush2.bf16.msra.mxu0 %v7401
        %8262 = vmatprep.subr.bf16.mxu0 %v7394
        %8263 = vmatpush2.bf16.msra.mxu0 %v7393
        %8264 = vmatprep.subr.bf16.mxu0 %v7386
        %8265 = vmatpush2.bf16.msra.mxu0 %v7385
        %8266 = vmatprep.subr.bf16.mxu0 %v7378
        %8267 = vmatpush2.bf16.msra.mxu0 %v7377
        %8268 = vmatprep.mubr.bf16.mxu0 %v5642
        %8269 = vmatmul.mubr.bf16.gmra.mxu0 %v5641
        %v8270 = vpop.f32.mrf.mxu0
        %v8271 = vadd.f32 %v8230, %v8270
        %v8272 = vpop.f32.mrf.mxu0
        %v8273 = vadd.f32 %v8232, %v8272
        %v8274 = vpop.f32.mrf.mxu0
        %v8275 = vpop.f32.mrf.mxu0
        %8276 = vdwg.mxu0
        %8277 = vmatprep.subr.bf16.mxu0 %v7498
        %8278 = vmatpush1.bf16.msra.mxu0 %v7497
        %8279 = vmatprep.subr.bf16.mxu0 %v7490
        %8280 = vmatpush1.bf16.msra.mxu0 %v7489
        %8281 = vmatprep.subr.bf16.mxu0 %v7482
        %8282 = vmatpush1.bf16.msra.mxu0 %v7481
        %8283 = vmatprep.subr.bf16.mxu0 %v7474
        %8284 = vmatpush1.bf16.msra.mxu0 %v7473
        %8285 = vmatprep.subr.bf16.mxu0 %v7466
        %8286 = vmatpush1.bf16.msra.mxu0 %v7465
        %8287 = vmatprep.subr.bf16.mxu0 %v7458
        %8288 = vmatpush1.bf16.msra.mxu0 %v7457
        %8289 = vmatprep.subr.bf16.mxu0 %v7450
        %8290 = vmatpush1.bf16.msra.mxu0 %v7449
        %8291 = vmatprep.subr.bf16.mxu0 %v7442
        %8292 = vmatpush1.bf16.msra.mxu0 %v7441
        %8293 = vmatprep.subr.bf16.mxu0 %v7562
        %8294 = vmatpush2.bf16.msra.mxu0 %v7561
        %8295 = vmatprep.subr.bf16.mxu0 %v7554
        %8296 = vmatpush2.bf16.msra.mxu0 %v7553
        %8297 = vmatprep.subr.bf16.mxu0 %v7546
        %8298 = vmatpush2.bf16.msra.mxu0 %v7545
        %8299 = vmatprep.subr.bf16.mxu0 %v7538
        %8300 = vmatpush2.bf16.msra.mxu0 %v7537
        %8301 = vmatprep.subr.bf16.mxu0 %v7530
        %8302 = vmatpush2.bf16.msra.mxu0 %v7529
        %8303 = vmatprep.subr.bf16.mxu0 %v7522
        %8304 = vmatpush2.bf16.msra.mxu0 %v7521
        %8305 = vmatprep.subr.bf16.mxu0 %v7514
        %8306 = vmatpush2.bf16.msra.mxu0 %v7513
        %8307 = vmatprep.subr.bf16.mxu0 %v7506
        %8308 = vmatpush2.bf16.msra.mxu0 %v7505
        %8309 = vmatprep.mubr.bf16.mxu0 %v5644
        %8310 = vmatmul.mubr.bf16.gmra.mxu0 %v5643
        %v8311 = vpop.f32.mrf.mxu0
        %v8312 = vadd.f32 %v8271, %v8311
        %v8313 = vpop.f32.mrf.mxu0
        %v8314 = vadd.f32 %v8273, %v8313
        %v8315 = vpop.f32.mrf.mxu0
        %v8316 = vpop.f32.mrf.mxu0
        %8317 = vdwg.mxu0
        %8318 = vmatprep.subr.bf16.mxu0 %v7244
        %8319 = vmatpush1.bf16.msra.mxu0 %v7243
        %8320 = vmatprep.subr.bf16.mxu0 %v7236
        %8321 = vmatpush1.bf16.msra.mxu0 %v7235
        %8322 = vmatprep.subr.bf16.mxu0 %v7228
        %8323 = vmatpush1.bf16.msra.mxu0 %v7227
        %8324 = vmatprep.subr.bf16.mxu0 %v7220
        %8325 = vmatpush1.bf16.msra.mxu0 %v7219
        %8326 = vmatprep.subr.bf16.mxu0 %v7212
        %8327 = vmatpush1.bf16.msra.mxu0 %v7211
        %8328 = vmatprep.subr.bf16.mxu0 %v7204
        %8329 = vmatpush1.bf16.msra.mxu0 %v7203
        %8330 = vmatprep.subr.bf16.mxu0 %v7196
        %8331 = vmatpush1.bf16.msra.mxu0 %v7195
        %8332 = vmatprep.subr.bf16.mxu0 %v7188
        %8333 = vmatpush1.bf16.msra.mxu0 %v7187
        %8334 = vmatprep.subr.bf16.mxu0 %v7308
        %8335 = vmatpush2.bf16.msra.mxu0 %v7307
        %8336 = vmatprep.subr.bf16.mxu0 %v7300
        %8337 = vmatpush2.bf16.msra.mxu0 %v7299
        %8338 = vmatprep.subr.bf16.mxu0 %v7292
        %8339 = vmatpush2.bf16.msra.mxu0 %v7291
        %8340 = vmatprep.subr.bf16.mxu0 %v7284
        %8341 = vmatpush2.bf16.msra.mxu0 %v7283
        %8342 = vmatprep.subr.bf16.mxu0 %v7276
        %8343 = vmatpush2.bf16.msra.mxu0 %v7275
        %8344 = vmatprep.subr.bf16.mxu0 %v7268
        %8345 = vmatpush2.bf16.msra.mxu0 %v7267
        %8346 = vmatprep.subr.bf16.mxu0 %v7260
        %8347 = vmatpush2.bf16.msra.mxu0 %v7259
        %8348 = vmatprep.subr.bf16.mxu0 %v7252
        %8349 = vmatpush2.bf16.msra.mxu0 %v7251
        %8350 = vmatprep.mubr.bf16.mxu0 %v5640
        %8351 = vmatmul.mubr.bf16.gmra.mxu0 %v5639
        %v8352 = vpop.f32.mrf.mxu0
        %v8353 = vadd.f32 0.0, %v8352
        %v8354 = vpop.f32.mrf.mxu0
        %v8355 = vadd.f32 0.0, %v8354
        %v8356 = vpop.f32.mrf.mxu0
        %v8357 = vpop.f32.mrf.mxu0
        %8358 = vdwg.mxu0
        %8359 = vmatprep.subr.bf16.mxu0 %v7372
        %8360 = vmatpush1.bf16.msra.mxu0 %v7371
        %8361 = vmatprep.subr.bf16.mxu0 %v7364
        %8362 = vmatpush1.bf16.msra.mxu0 %v7363
        %8363 = vmatprep.subr.bf16.mxu0 %v7356
        %8364 = vmatpush1.bf16.msra.mxu0 %v7355
        %8365 = vmatprep.subr.bf16.mxu0 %v7348
        %8366 = vmatpush1.bf16.msra.mxu0 %v7347
        %8367 = vmatprep.subr.bf16.mxu0 %v7340
        %8368 = vmatpush1.bf16.msra.mxu0 %v7339
        %8369 = vmatprep.subr.bf16.mxu0 %v7332
        %8370 = vmatpush1.bf16.msra.mxu0 %v7331
        %8371 = vmatprep.subr.bf16.mxu0 %v7324
        %8372 = vmatpush1.bf16.msra.mxu0 %v7323
        %8373 = vmatprep.subr.bf16.mxu0 %v7316
        %8374 = vmatpush1.bf16.msra.mxu0 %v7315
        %8375 = vmatprep.subr.bf16.mxu0 %v7436
        %8376 = vmatpush2.bf16.msra.mxu0 %v7435
        %8377 = vmatprep.subr.bf16.mxu0 %v7428
        %8378 = vmatpush2.bf16.msra.mxu0 %v7427
        %8379 = vmatprep.subr.bf16.mxu0 %v7420
        %8380 = vmatpush2.bf16.msra.mxu0 %v7419
        %8381 = vmatprep.subr.bf16.mxu0 %v7412
        %8382 = vmatpush2.bf16.msra.mxu0 %v7411
        %8383 = vmatprep.subr.bf16.mxu0 %v7404
        %8384 = vmatpush2.bf16.msra.mxu0 %v7403
        %8385 = vmatprep.subr.bf16.mxu0 %v7396
        %8386 = vmatpush2.bf16.msra.mxu0 %v7395
        %8387 = vmatprep.subr.bf16.mxu0 %v7388
        %8388 = vmatpush2.bf16.msra.mxu0 %v7387
        %8389 = vmatprep.subr.bf16.mxu0 %v7380
        %8390 = vmatpush2.bf16.msra.mxu0 %v7379
        %8391 = vmatprep.mubr.bf16.mxu0 %v5642
        %8392 = vmatmul.mubr.bf16.gmra.mxu0 %v5641
        %v8393 = vpop.f32.mrf.mxu0
        %v8394 = vadd.f32 %v8353, %v8393
        %v8395 = vpop.f32.mrf.mxu0
        %v8396 = vadd.f32 %v8355, %v8395
        %v8397 = vpop.f32.mrf.mxu0
        %v8398 = vpop.f32.mrf.mxu0
        %8399 = vdwg.mxu0
        %8400 = vmatprep.subr.bf16.mxu0 %v7500
        %8401 = vmatpush1.bf16.msra.mxu0 %v7499
        %8402 = vmatprep.subr.bf16.mxu0 %v7492
        %8403 = vmatpush1.bf16.msra.mxu0 %v7491
        %8404 = vmatprep.subr.bf16.mxu0 %v7484
        %8405 = vmatpush1.bf16.msra.mxu0 %v7483
        %8406 = vmatprep.subr.bf16.mxu0 %v7476
        %8407 = vmatpush1.bf16.msra.mxu0 %v7475
        %8408 = vmatprep.subr.bf16.mxu0 %v7468
        %8409 = vmatpush1.bf16.msra.mxu0 %v7467
        %8410 = vmatprep.subr.bf16.mxu0 %v7460
        %8411 = vmatpush1.bf16.msra.mxu0 %v7459
        %8412 = vmatprep.subr.bf16.mxu0 %v7452
        %8413 = vmatpush1.bf16.msra.mxu0 %v7451
        %8414 = vmatprep.subr.bf16.mxu0 %v7444
        %8415 = vmatpush1.bf16.msra.mxu0 %v7443
        %8416 = vmatprep.subr.bf16.mxu0 %v7564
        %8417 = vmatpush2.bf16.msra.mxu0 %v7563
        %8418 = vmatprep.subr.bf16.mxu0 %v7556
        %8419 = vmatpush2.bf16.msra.mxu0 %v7555
        %8420 = vmatprep.subr.bf16.mxu0 %v7548
        %8421 = vmatpush2.bf16.msra.mxu0 %v7547
        %8422 = vmatprep.subr.bf16.mxu0 %v7540
        %8423 = vmatpush2.bf16.msra.mxu0 %v7539
        %8424 = vmatprep.subr.bf16.mxu0 %v7532
        %8425 = vmatpush2.bf16.msra.mxu0 %v7531
        %8426 = vmatprep.subr.bf16.mxu0 %v7524
        %8427 = vmatpush2.bf16.msra.mxu0 %v7523
        %8428 = vmatprep.subr.bf16.mxu0 %v7516
        %8429 = vmatpush2.bf16.msra.mxu0 %v7515
        %8430 = vmatprep.subr.bf16.mxu0 %v7508
        %8431 = vmatpush2.bf16.msra.mxu0 %v7507
        %8432 = vmatprep.mubr.bf16.mxu0 %v5644
        %8433 = vmatmul.mubr.bf16.gmra.mxu0 %v5643
        %v8434 = vpop.f32.mrf.mxu0
        %v8435 = vadd.f32 %v8394, %v8434
        %v8436 = vpop.f32.mrf.mxu0
        %v8437 = vadd.f32 %v8396, %v8436
        %v8438 = vpop.f32.mrf.mxu0
        %v8439 = vpop.f32.mrf.mxu0
        %8440 = vdwg.mxu0
        %v8449 = vcombine.low %v8066, %v8068
        %v8450 = vcombine.low %v8189, %v8191
        %v8452 = vunpack.c.l.s4 1983009808
        %v8453 = vunpack.c.0.s8 %v8452
        %v8454 = vlaneseq
        %v8455 = vshrl.u32 %v8454, 7
        %v8456 = vsub.s32 %v8453, %v8455
        %v8457 = vrot.slane %v8449, %v8456
        %v8459 = vunpack.c.l.s4 1983009808
        %v8460 = vunpack.c.0.s8 %v8459
        %v8461 = vlaneseq
        %v8462 = vshrl.u32 %v8461, 7
        %v8463 = vsub.s32 %v8460, %v8462
        %v8464 = vrot.slane %v8450, %v8463
        %v8465 = vcombine.low %v8457, %v8464
        %v8466 = vcombine.low %v8312, %v8314
        %v8467 = vcombine.low %v8435, %v8437
        %v8469 = vunpack.c.l.s4 1983009808
        %v8470 = vunpack.c.0.s8 %v8469
        %v8471 = vlaneseq
        %v8472 = vshrl.u32 %v8471, 7
        %v8473 = vsub.s32 %v8470, %v8472
        %v8474 = vrot.slane %v8466, %v8473
        %v8476 = vunpack.c.l.s4 1983009808
        %v8477 = vunpack.c.0.s8 %v8476
        %v8478 = vlaneseq
        %v8479 = vshrl.u32 %v8478, 7
        %v8480 = vsub.s32 %v8477, %v8479
        %v8481 = vrot.slane %v8467, %v8480
        %v8482 = vcombine.low %v8474, %v8481
        %v8485 = vadd.f32 %v5604, %v8465
        %v8486 = vadd.f32 %v5605, %v8482
        %v8495 = vcombine.low %v5311, %v5313
        %v8496 = vcombine.low %v5352, %v5354
        %v8498 = vunpack.c.l.s4 1983009808
        %v8499 = vunpack.c.0.s8 %v8498
        %v8500 = vlaneseq
        %v8501 = vshrl.u32 %v8500, 7
        %v8502 = vsub.s32 %v8499, %v8501
        %v8503 = vrot.slane %v8495, %v8502
        %v8505 = vunpack.c.l.s4 1983009808
        %v8506 = vunpack.c.0.s8 %v8505
        %v8507 = vlaneseq
        %v8508 = vshrl.u32 %v8507, 7
        %v8509 = vsub.s32 %v8506, %v8508
        %v8510 = vrot.slane %v8496, %v8509
        %v8511 = vcombine.low %v8503, %v8510
        %v8512 = vcombine.low %v5393, %v5395
        %v8513 = vcombine.low %v5434, %v5436
        %v8515 = vunpack.c.l.s4 1983009808
        %v8516 = vunpack.c.0.s8 %v8515
        %v8517 = vlaneseq
        %v8518 = vshrl.u32 %v8517, 7
        %v8519 = vsub.s32 %v8516, %v8518
        %v8520 = vrot.slane %v8512, %v8519
        %v8522 = vunpack.c.l.s4 1983009808
        %v8523 = vunpack.c.0.s8 %v8522
        %v8524 = vlaneseq
        %v8525 = vshrl.u32 %v8524, 7
        %v8526 = vsub.s32 %v8523, %v8525
        %v8527 = vrot.slane %v8513, %v8526
        %v8528 = vcombine.low %v8520, %v8527
        %v8531 = vadd.f32 %v8485, %v8511
        %v8532 = vadd.f32 %v8486, %v8528
        %v8533 = vld [vmem:[#allocation4] sm:$0x3]
        %v8534 = vpack.c.bf16 %v8533, %v8533
        %v8535 = vld [vmem:[#allocation21] sm:$0xff]
        %v8536 = vld [vmem:[#allocation21 + $0x8] sm:$0xff]
        %v8537 = vld [vmem:[#allocation21 + $0x10] sm:$0xff]
        %v8538 = vld [vmem:[#allocation21 + $0x18] sm:$0xff]
        %v8539 = vld [vmem:[#allocation21 + $0x20] sm:$0xff]
        %v8540 = vld [vmem:[#allocation21 + $0x28] sm:$0xff]
        %v8541 = vld [vmem:[#allocation21 + $0x30] sm:$0xff]
        %v8542 = vld [vmem:[#allocation21 + $0x38] sm:$0xff]
        %v8543 = vld [vmem:[#allocation21 + $0x40] sm:$0xff]
        %v8544 = vld [vmem:[#allocation21 + $0x48] sm:$0xff]
        %v8545 = vld [vmem:[#allocation21 + $0x50] sm:$0xff]
        %v8546 = vld [vmem:[#allocation21 + $0x58] sm:$0xff]
        %v8547 = vld [vmem:[#allocation21 + $0x60] sm:$0xff]
        %v8548 = vld [vmem:[#allocation21 + $0x68] sm:$0xff]
        %v8549 = vld [vmem:[#allocation21 + $0x70] sm:$0xff]
        %v8550 = vld [vmem:[#allocation21 + $0x78] sm:$0xff]
        %v8551 = vld [vmem:[#allocation21 + $0x80] sm:$0xff]
        %v8552 = vld [vmem:[#allocation21 + $0x88] sm:$0xff]
        %v8553 = vld [vmem:[#allocation21 + $0x90] sm:$0xff]
        %v8554 = vld [vmem:[#allocation21 + $0x98] sm:$0xff]
        %v8555 = vld [vmem:[#allocation21 + $0xa0] sm:$0xff]
        %v8556 = vld [vmem:[#allocation21 + $0xa8] sm:$0xff]
        %v8557 = vld [vmem:[#allocation21 + $0xb0] sm:$0xff]
        %v8558 = vld [vmem:[#allocation21 + $0xb8] sm:$0xff]
        %v8559 = vld [vmem:[#allocation21 + $0xc0] sm:$0xff]
        %v8560 = vld [vmem:[#allocation21 + $0xc8] sm:$0xff]
        %v8561 = vld [vmem:[#allocation21 + $0xd0] sm:$0xff]
        %v8562 = vld [vmem:[#allocation21 + $0xd8] sm:$0xff]
        %v8563 = vld [vmem:[#allocation21 + $0xe0] sm:$0xff]
        %v8564 = vld [vmem:[#allocation21 + $0xe8] sm:$0xff]
        %v8565 = vld [vmem:[#allocation21 + $0xf0] sm:$0xff]
        %v8566 = vld [vmem:[#allocation21 + $0xf8] sm:$0xff]
        %v8599 = vunpack.c.l.b16 %v8535
        %v8600 = vunpack.c.h.b16 %v8535
        %v8601 = vunpack.c.l.b16 %v8536
        %v8602 = vunpack.c.h.b16 %v8536
        %v8603 = vunpack.c.l.b16 %v8537
        %v8604 = vunpack.c.h.b16 %v8537
        %v8605 = vunpack.c.l.b16 %v8538
        %v8606 = vunpack.c.h.b16 %v8538
        %v8607 = vunpack.c.l.b16 %v8539
        %v8608 = vunpack.c.h.b16 %v8539
        %v8609 = vunpack.c.l.b16 %v8540
        %v8610 = vunpack.c.h.b16 %v8540
        %v8611 = vunpack.c.l.b16 %v8541
        %v8612 = vunpack.c.h.b16 %v8541
        %v8613 = vunpack.c.l.b16 %v8542
        %v8614 = vunpack.c.h.b16 %v8542
        %v8615 = vunpack.c.l.b16 %v8543
        %v8616 = vunpack.c.h.b16 %v8543
        %v8617 = vunpack.c.l.b16 %v8544
        %v8618 = vunpack.c.h.b16 %v8544
        %v8619 = vunpack.c.l.b16 %v8545
        %v8620 = vunpack.c.h.b16 %v8545
        %v8621 = vunpack.c.l.b16 %v8546
        %v8622 = vunpack.c.h.b16 %v8546
        %v8623 = vunpack.c.l.b16 %v8547
        %v8624 = vunpack.c.h.b16 %v8547
        %v8625 = vunpack.c.l.b16 %v8548
        %v8626 = vunpack.c.h.b16 %v8548
        %v8627 = vunpack.c.l.b16 %v8549
        %v8628 = vunpack.c.h.b16 %v8549
        %v8629 = vunpack.c.l.b16 %v8550
        %v8630 = vunpack.c.h.b16 %v8550
        %v8631 = vunpack.c.l.b16 %v8551
        %v8632 = vunpack.c.h.b16 %v8551
        %v8633 = vunpack.c.l.b16 %v8552
        %v8634 = vunpack.c.h.b16 %v8552
        %v8635 = vunpack.c.l.b16 %v8553
        %v8636 = vunpack.c.h.b16 %v8553
        %v8637 = vunpack.c.l.b16 %v8554
        %v8638 = vunpack.c.h.b16 %v8554
        %v8639 = vunpack.c.l.b16 %v8555
        %v8640 = vunpack.c.h.b16 %v8555
        %v8641 = vunpack.c.l.b16 %v8556
        %v8642 = vunpack.c.h.b16 %v8556
        %v8643 = vunpack.c.l.b16 %v8557
        %v8644 = vunpack.c.h.b16 %v8557
        %v8645 = vunpack.c.l.b16 %v8558
        %v8646 = vunpack.c.h.b16 %v8558
        %v8647 = vunpack.c.l.b16 %v8559
        %v8648 = vunpack.c.h.b16 %v8559
        %v8649 = vunpack.c.l.b16 %v8560
        %v8650 = vunpack.c.h.b16 %v8560
        %v8651 = vunpack.c.l.b16 %v8561
        %v8652 = vunpack.c.h.b16 %v8561
        %v8653 = vunpack.c.l.b16 %v8562
        %v8654 = vunpack.c.h.b16 %v8562
        %v8655 = vunpack.c.l.b16 %v8563
        %v8656 = vunpack.c.h.b16 %v8563
        %v8657 = vunpack.c.l.b16 %v8564
        %v8658 = vunpack.c.h.b16 %v8564
        %v8659 = vunpack.c.l.b16 %v8565
        %v8660 = vunpack.c.h.b16 %v8565
        %v8661 = vunpack.c.l.b16 %v8566
        %v8662 = vunpack.c.h.b16 %v8566
        %v8663 = vpack.c.b16 %v8603, %v8599
        %v8664 = vpack.c.b16 %v8604, %v8600
        %v8665 = vpack.c.b16 %v8605, %v8601
        %v8666 = vpack.c.b16 %v8606, %v8602
        %v8667 = vpack.c.b16 %v8611, %v8607
        %v8668 = vpack.c.b16 %v8612, %v8608
        %v8669 = vpack.c.b16 %v8613, %v8609
        %v8670 = vpack.c.b16 %v8614, %v8610
        %v8671 = vpack.c.b16 %v8619, %v8615
        %v8672 = vpack.c.b16 %v8620, %v8616
        %v8673 = vpack.c.b16 %v8621, %v8617
        %v8674 = vpack.c.b16 %v8622, %v8618
        %v8675 = vpack.c.b16 %v8627, %v8623
        %v8676 = vpack.c.b16 %v8628, %v8624
        %v8677 = vpack.c.b16 %v8629, %v8625
        %v8678 = vpack.c.b16 %v8630, %v8626
        %v8679 = vpack.c.b16 %v8635, %v8631
        %v8680 = vpack.c.b16 %v8636, %v8632
        %v8681 = vpack.c.b16 %v8637, %v8633
        %v8682 = vpack.c.b16 %v8638, %v8634
        %v8683 = vpack.c.b16 %v8643, %v8639
        %v8684 = vpack.c.b16 %v8644, %v8640
        %v8685 = vpack.c.b16 %v8645, %v8641
        %v8686 = vpack.c.b16 %v8646, %v8642
        %v8687 = vpack.c.b16 %v8651, %v8647
        %v8688 = vpack.c.b16 %v8652, %v8648
        %v8689 = vpack.c.b16 %v8653, %v8649
        %v8690 = vpack.c.b16 %v8654, %v8650
        %v8691 = vpack.c.b16 %v8659, %v8655
        %v8692 = vpack.c.b16 %v8660, %v8656
        %v8693 = vpack.c.b16 %v8661, %v8657
        %v8694 = vpack.c.b16 %v8662, %v8658
        %8727 = vmatprep.subr.bf16.mxu0 %v8692
        %8728 = vmatpush1.bf16.msra.mxu0 %v8691
        %8729 = vmatprep.subr.bf16.mxu0 %v8688
        %8730 = vmatpush1.bf16.msra.mxu0 %v8687
        %8731 = vmatprep.subr.bf16.mxu0 %v8684
        %8732 = vmatpush1.bf16.msra.mxu0 %v8683
        %8733 = vmatprep.subr.bf16.mxu0 %v8680
        %8734 = vmatpush1.bf16.msra.mxu0 %v8679
        %8735 = vmatprep.subr.bf16.mxu0 %v8676
        %8736 = vmatpush1.bf16.msra.mxu0 %v8675
        %8737 = vmatprep.subr.bf16.mxu0 %v8672
        %8738 = vmatpush1.bf16.msra.mxu0 %v8671
        %8739 = vmatprep.subr.bf16.mxu0 %v8668
        %8740 = vmatpush1.bf16.msra.mxu0 %v8667
        %8741 = vmatprep.subr.bf16.mxu0 %v8664
        %8742 = vmatpush1.bf16.msra.mxu0 %v8663
        %8743 = vmatprep.subr.bf16.mxu0 0
        %8744 = vmatpush2.bf16.msra.mxu0 0
        %8745 = vmatprep.subr.bf16.mxu0 0
        %8746 = vmatpush2.bf16.msra.mxu0 0
        %8747 = vmatprep.subr.bf16.mxu0 0
        %8748 = vmatpush2.bf16.msra.mxu0 0
        %8749 = vmatprep.subr.bf16.mxu0 0
        %8750 = vmatpush2.bf16.msra.mxu0 0
        %8751 = vmatprep.subr.bf16.mxu0 0
        %8752 = vmatpush2.bf16.msra.mxu0 0
        %8753 = vmatprep.subr.bf16.mxu0 0
        %8754 = vmatpush2.bf16.msra.mxu0 0
        %8755 = vmatprep.subr.bf16.mxu0 0
        %8756 = vmatpush2.bf16.msra.mxu0 0
        %8757 = vmatprep.subr.bf16.mxu0 0
        %8758 = vmatpush2.bf16.msra.mxu0 0
        %8759 = vmatprep.mubr.bf16.mxu0 0
        %8760 = vmatmul.mubr.bf16.gmra.mxu0 %v8534
        %v8761 = vpop.f32.mrf.mxu0
        %v8762 = vadd.f32 0.0, %v8761
        %v8763 = vpop.f32.mrf.mxu0
        %v8764 = vadd.f32 0.0, %v8763
        %v8765 = vpop.f32.mrf.mxu0
        %v8766 = vpop.f32.mrf.mxu0
        %8767 = vdwg.mxu0
        %8768 = vmatprep.subr.bf16.mxu0 %v8694
        %8769 = vmatpush1.bf16.msra.mxu0 %v8693
        %8770 = vmatprep.subr.bf16.mxu0 %v8690
        %8771 = vmatpush1.bf16.msra.mxu0 %v8689
        %8772 = vmatprep.subr.bf16.mxu0 %v8686
        %8773 = vmatpush1.bf16.msra.mxu0 %v8685
        %8774 = vmatprep.subr.bf16.mxu0 %v8682
        %8775 = vmatpush1.bf16.msra.mxu0 %v8681
        %8776 = vmatprep.subr.bf16.mxu0 %v8678
        %8777 = vmatpush1.bf16.msra.mxu0 %v8677
        %8778 = vmatprep.subr.bf16.mxu0 %v8674
        %8779 = vmatpush1.bf16.msra.mxu0 %v8673
        %8780 = vmatprep.subr.bf16.mxu0 %v8670
        %8781 = vmatpush1.bf16.msra.mxu0 %v8669
        %8782 = vmatprep.subr.bf16.mxu0 %v8666
        %8783 = vmatpush1.bf16.msra.mxu0 %v8665
        %8784 = vmatprep.subr.bf16.mxu0 0
        %8785 = vmatpush2.bf16.msra.mxu0 0
        %8786 = vmatprep.subr.bf16.mxu0 0
        %8787 = vmatpush2.bf16.msra.mxu0 0
        %8788 = vmatprep.subr.bf16.mxu0 0
        %8789 = vmatpush2.bf16.msra.mxu0 0
        %8790 = vmatprep.subr.bf16.mxu0 0
        %8791 = vmatpush2.bf16.msra.mxu0 0
        %8792 = vmatprep.subr.bf16.mxu0 0
        %8793 = vmatpush2.bf16.msra.mxu0 0
        %8794 = vmatprep.subr.bf16.mxu0 0
        %8795 = vmatpush2.bf16.msra.mxu0 0
        %8796 = vmatprep.subr.bf16.mxu0 0
        %8797 = vmatpush2.bf16.msra.mxu0 0
        %8798 = vmatprep.subr.bf16.mxu0 0
        %8799 = vmatpush2.bf16.msra.mxu0 0
        %8800 = vmatprep.mubr.bf16.mxu0 0
        %8801 = vmatmul.mubr.bf16.gmra.mxu0 %v8534
        %v8802 = vpop.f32.mrf.mxu0
        %v8803 = vadd.f32 0.0, %v8802
        %v8804 = vpop.f32.mrf.mxu0
        %v8805 = vadd.f32 0.0, %v8804
        %v8806 = vpop.f32.mrf.mxu0
        %v8807 = vpop.f32.mrf.mxu0
        %8808 = vdwg.mxu0
        %v8813 = vcombine.low %v8762, %v8764
        %v8814 = vcombine.low %v8803, %v8805
        %v8816 = vunpack.c.l.s4 1983009808
        %v8817 = vunpack.c.0.s8 %v8816
        %v8818 = vlaneseq
        %v8819 = vshrl.u32 %v8818, 7
        %v8820 = vsub.s32 %v8817, %v8819
        %v8821 = vrot.slane %v8813, %v8820
        %v8823 = vunpack.c.l.s4 1983009808
        %v8824 = vunpack.c.0.s8 %v8823
        %v8825 = vlaneseq
        %v8826 = vshrl.u32 %v8825, 7
        %v8827 = vsub.s32 %v8824, %v8826
        %v8828 = vrot.slane %v8814, %v8827
        %v8829 = vcombine.low %v8821, %v8828
        %v8831 = vadd.f32 %v8531, %v8829
        %v8832 = vxor.u32 %v8831, 2147483648
        %v8833 = vmul.f32 %v8832, 1.442695
        %v8834 = vpow.pop %v8833
        %v8835 = vadd.f32 %v8834, 1.0
        %v8836 = vrcp.pop %v8835
        %v8837 = vmul.f32 1.0, %v8836
        %v8839 = vrot.slane %v8831, 2
        %v8841 = vxor.u32 %v8839, 2147483648
        %v8842 = vmul.f32 %v8841, 1.442695
        %v8843 = vpow.pop %v8842
        %v8844 = vadd.f32 %v8843, 1.0
        %v8845 = vrcp.pop %v8844
        %v8846 = vmul.f32 1.0, %v8845
        %v8847 = vrot.slane %v8831, 4
        %v8849 = vtanh.pop %v8847
        %v8850 = vrot.slane %v8831, 6
        %v8852 = vxor.u32 %v8850, 2147483648
        %v8853 = vmul.f32 %v8852, 1.442695
        %v8854 = vpow.pop %v8853
        %v8855 = vadd.f32 %v8854, 1.0
        %v8856 = vrcp.pop %v8855
        %v8857 = vmul.f32 1.0, %v8856
        %v8858 = vld [vmem:[#allocation5] sm:$0x3]
        %v8859 = vmul.f32 %v8846, %v8858
        %v8860 = vmul.f32 %v8837, %v8849
        %v8861 = vadd.f32 %v8859, %v8860
        %v8862 = vtanh.pop %v8861
        %v8863 = vmul.f32 %v8857, %v8862
        %8864 = vst [vmem:[#allocation5] sm:$0x3] %v8861
        %8865 = vst [vmem:[#allocation4] sm:$0x3] %v8863
        %v8866 = vld [vmem:[#allocation6] sm:$0x3]
        %v8867 = vpack.c.bf16 %v8866, %v8866
        %v8868 = vld [vmem:[#allocation22] sm:$0xff]
        %v8869 = vld [vmem:[#allocation22 + $0x8] sm:$0xff]
        %v8870 = vld [vmem:[#allocation22 + $0x10] sm:$0xff]
        %v8871 = vld [vmem:[#allocation22 + $0x18] sm:$0xff]
        %v8872 = vld [vmem:[#allocation22 + $0x20] sm:$0xff]
        %v8873 = vld [vmem:[#allocation22 + $0x28] sm:$0xff]
        %v8874 = vld [vmem:[#allocation22 + $0x30] sm:$0xff]
        %v8875 = vld [vmem:[#allocation22 + $0x38] sm:$0xff]
        %v8876 = vld [vmem:[#allocation22 + $0x40] sm:$0xff]
        %v8877 = vld [vmem:[#allocation22 + $0x48] sm:$0xff]
        %v8878 = vld [vmem:[#allocation22 + $0x50] sm:$0xff]
        %v8879 = vld [vmem:[#allocation22 + $0x58] sm:$0xff]
        %v8880 = vld [vmem:[#allocation22 + $0x60] sm:$0xff]
        %v8881 = vld [vmem:[#allocation22 + $0x68] sm:$0xff]
        %v8882 = vld [vmem:[#allocation22 + $0x70] sm:$0xff]
        %v8883 = vld [vmem:[#allocation22 + $0x78] sm:$0xff]
        %v8884 = vld [vmem:[#allocation22 + $0x80] sm:$0xff]
        %v8885 = vld [vmem:[#allocation22 + $0x88] sm:$0xff]
        %v8886 = vld [vmem:[#allocation22 + $0x90] sm:$0xff]
        %v8887 = vld [vmem:[#allocation22 + $0x98] sm:$0xff]
        %v8888 = vld [vmem:[#allocation22 + $0xa0] sm:$0xff]
        %v8889 = vld [vmem:[#allocation22 + $0xa8] sm:$0xff]
        %v8890 = vld [vmem:[#allocation22 + $0xb0] sm:$0xff]
        %v8891 = vld [vmem:[#allocation22 + $0xb8] sm:$0xff]
        %v8892 = vld [vmem:[#allocation22 + $0xc0] sm:$0xff]
        %v8893 = vld [vmem:[#allocation22 + $0xc8] sm:$0xff]
        %v8894 = vld [vmem:[#allocation22 + $0xd0] sm:$0xff]
        %v8895 = vld [vmem:[#allocation22 + $0xd8] sm:$0xff]
        %v8896 = vld [vmem:[#allocation22 + $0xe0] sm:$0xff]
        %v8897 = vld [vmem:[#allocation22 + $0xe8] sm:$0xff]
        %v8898 = vld [vmem:[#allocation22 + $0xf0] sm:$0xff]
        %v8899 = vld [vmem:[#allocation22 + $0xf8] sm:$0xff]
        %v8932 = vunpack.c.l.b16 %v8868
        %v8933 = vunpack.c.h.b16 %v8868
        %v8934 = vunpack.c.l.b16 %v8869
        %v8935 = vunpack.c.h.b16 %v8869
        %v8936 = vunpack.c.l.b16 %v8870
        %v8937 = vunpack.c.h.b16 %v8870
        %v8938 = vunpack.c.l.b16 %v8871
        %v8939 = vunpack.c.h.b16 %v8871
        %v8940 = vunpack.c.l.b16 %v8872
        %v8941 = vunpack.c.h.b16 %v8872
        %v8942 = vunpack.c.l.b16 %v8873
        %v8943 = vunpack.c.h.b16 %v8873
        %v8944 = vunpack.c.l.b16 %v8874
        %v8945 = vunpack.c.h.b16 %v8874
        %v8946 = vunpack.c.l.b16 %v8875
        %v8947 = vunpack.c.h.b16 %v8875
        %v8948 = vunpack.c.l.b16 %v8876
        %v8949 = vunpack.c.h.b16 %v8876
        %v8950 = vunpack.c.l.b16 %v8877
        %v8951 = vunpack.c.h.b16 %v8877
        %v8952 = vunpack.c.l.b16 %v8878
        %v8953 = vunpack.c.h.b16 %v8878
        %v8954 = vunpack.c.l.b16 %v8879
        %v8955 = vunpack.c.h.b16 %v8879
        %v8956 = vunpack.c.l.b16 %v8880
        %v8957 = vunpack.c.h.b16 %v8880
        %v8958 = vunpack.c.l.b16 %v8881
        %v8959 = vunpack.c.h.b16 %v8881
        %v8960 = vunpack.c.l.b16 %v8882
        %v8961 = vunpack.c.h.b16 %v8882
        %v8962 = vunpack.c.l.b16 %v8883
        %v8963 = vunpack.c.h.b16 %v8883
        %v8964 = vunpack.c.l.b16 %v8884
        %v8965 = vunpack.c.h.b16 %v8884
        %v8966 = vunpack.c.l.b16 %v8885
        %v8967 = vunpack.c.h.b16 %v8885
        %v8968 = vunpack.c.l.b16 %v8886
        %v8969 = vunpack.c.h.b16 %v8886
        %v8970 = vunpack.c.l.b16 %v8887
        %v8971 = vunpack.c.h.b16 %v8887
        %v8972 = vunpack.c.l.b16 %v8888
        %v8973 = vunpack.c.h.b16 %v8888
        %v8974 = vunpack.c.l.b16 %v8889
        %v8975 = vunpack.c.h.b16 %v8889
        %v8976 = vunpack.c.l.b16 %v8890
        %v8977 = vunpack.c.h.b16 %v8890
        %v8978 = vunpack.c.l.b16 %v8891
        %v8979 = vunpack.c.h.b16 %v8891
        %v8980 = vunpack.c.l.b16 %v8892
        %v8981 = vunpack.c.h.b16 %v8892
        %v8982 = vunpack.c.l.b16 %v8893
        %v8983 = vunpack.c.h.b16 %v8893
        %v8984 = vunpack.c.l.b16 %v8894
        %v8985 = vunpack.c.h.b16 %v8894
        %v8986 = vunpack.c.l.b16 %v8895
        %v8987 = vunpack.c.h.b16 %v8895
        %v8988 = vunpack.c.l.b16 %v8896
        %v8989 = vunpack.c.h.b16 %v8896
        %v8990 = vunpack.c.l.b16 %v8897
        %v8991 = vunpack.c.h.b16 %v8897
        %v8992 = vunpack.c.l.b16 %v8898
        %v8993 = vunpack.c.h.b16 %v8898
        %v8994 = vunpack.c.l.b16 %v8899
        %v8995 = vunpack.c.h.b16 %v8899
        %v8996 = vpack.c.b16 %v8936, %v8932
        %v8997 = vpack.c.b16 %v8937, %v8933
        %v8998 = vpack.c.b16 %v8938, %v8934
        %v8999 = vpack.c.b16 %v8939, %v8935
        %v9000 = vpack.c.b16 %v8944, %v8940
        %v9001 = vpack.c.b16 %v8945, %v8941
        %v9002 = vpack.c.b16 %v8946, %v8942
        %v9003 = vpack.c.b16 %v8947, %v8943
        %v9004 = vpack.c.b16 %v8952, %v8948
        %v9005 = vpack.c.b16 %v8953, %v8949
        %v9006 = vpack.c.b16 %v8954, %v8950
        %v9007 = vpack.c.b16 %v8955, %v8951
        %v9008 = vpack.c.b16 %v8960, %v8956
        %v9009 = vpack.c.b16 %v8961, %v8957
        %v9010 = vpack.c.b16 %v8962, %v8958
        %v9011 = vpack.c.b16 %v8963, %v8959
        %v9012 = vpack.c.b16 %v8968, %v8964
        %v9013 = vpack.c.b16 %v8969, %v8965
        %v9014 = vpack.c.b16 %v8970, %v8966
        %v9015 = vpack.c.b16 %v8971, %v8967
        %v9016 = vpack.c.b16 %v8976, %v8972
        %v9017 = vpack.c.b16 %v8977, %v8973
        %v9018 = vpack.c.b16 %v8978, %v8974
        %v9019 = vpack.c.b16 %v8979, %v8975
        %v9020 = vpack.c.b16 %v8984, %v8980
        %v9021 = vpack.c.b16 %v8985, %v8981
        %v9022 = vpack.c.b16 %v8986, %v8982
        %v9023 = vpack.c.b16 %v8987, %v8983
        %v9024 = vpack.c.b16 %v8992, %v8988
        %v9025 = vpack.c.b16 %v8993, %v8989
        %v9026 = vpack.c.b16 %v8994, %v8990
        %v9027 = vpack.c.b16 %v8995, %v8991
        %9060 = vmatprep.subr.bf16.mxu0 %v9025
        %9061 = vmatpush1.bf16.msra.mxu0 %v9024
        %9062 = vmatprep.subr.bf16.mxu0 %v9021
        %9063 = vmatpush1.bf16.msra.mxu0 %v9020
        %9064 = vmatprep.subr.bf16.mxu0 %v9017
        %9065 = vmatpush1.bf16.msra.mxu0 %v9016
        %9066 = vmatprep.subr.bf16.mxu0 %v9013
        %9067 = vmatpush1.bf16.msra.mxu0 %v9012
        %9068 = vmatprep.subr.bf16.mxu0 %v9009
        %9069 = vmatpush1.bf16.msra.mxu0 %v9008
        %9070 = vmatprep.subr.bf16.mxu0 %v9005
        %9071 = vmatpush1.bf16.msra.mxu0 %v9004
        %9072 = vmatprep.subr.bf16.mxu0 %v9001
        %9073 = vmatpush1.bf16.msra.mxu0 %v9000
        %9074 = vmatprep.subr.bf16.mxu0 %v8997
        %9075 = vmatpush1.bf16.msra.mxu0 %v8996
        %9076 = vmatprep.subr.bf16.mxu0 0
        %9077 = vmatpush2.bf16.msra.mxu0 0
        %9078 = vmatprep.subr.bf16.mxu0 0
        %9079 = vmatpush2.bf16.msra.mxu0 0
        %9080 = vmatprep.subr.bf16.mxu0 0
        %9081 = vmatpush2.bf16.msra.mxu0 0
        %9082 = vmatprep.subr.bf16.mxu0 0
        %9083 = vmatpush2.bf16.msra.mxu0 0
        %9084 = vmatprep.subr.bf16.mxu0 0
        %9085 = vmatpush2.bf16.msra.mxu0 0
        %9086 = vmatprep.subr.bf16.mxu0 0
        %9087 = vmatpush2.bf16.msra.mxu0 0
        %9088 = vmatprep.subr.bf16.mxu0 0
        %9089 = vmatpush2.bf16.msra.mxu0 0
        %9090 = vmatprep.subr.bf16.mxu0 0
        %9091 = vmatpush2.bf16.msra.mxu0 0
        %9092 = vmatprep.mubr.bf16.mxu0 0
        %9093 = vmatmul.mubr.bf16.gmra.mxu0 %v8867
        %v9094 = vpop.f32.mrf.mxu0
        %v9095 = vadd.f32 0.0, %v9094
        %v9096 = vpop.f32.mrf.mxu0
        %v9097 = vadd.f32 0.0, %v9096
        %v9098 = vpop.f32.mrf.mxu0
        %v9099 = vpop.f32.mrf.mxu0
        %9100 = vdwg.mxu0
        %9101 = vmatprep.subr.bf16.mxu0 %v9027
        %9102 = vmatpush1.bf16.msra.mxu0 %v9026
        %9103 = vmatprep.subr.bf16.mxu0 %v9023
        %9104 = vmatpush1.bf16.msra.mxu0 %v9022
        %9105 = vmatprep.subr.bf16.mxu0 %v9019
        %9106 = vmatpush1.bf16.msra.mxu0 %v9018
        %9107 = vmatprep.subr.bf16.mxu0 %v9015
        %9108 = vmatpush1.bf16.msra.mxu0 %v9014
        %9109 = vmatprep.subr.bf16.mxu0 %v9011
        %9110 = vmatpush1.bf16.msra.mxu0 %v9010
        %9111 = vmatprep.subr.bf16.mxu0 %v9007
        %9112 = vmatpush1.bf16.msra.mxu0 %v9006
        %9113 = vmatprep.subr.bf16.mxu0 %v9003
        %9114 = vmatpush1.bf16.msra.mxu0 %v9002
        %9115 = vmatprep.subr.bf16.mxu0 %v8999
        %9116 = vmatpush1.bf16.msra.mxu0 %v8998
        %9117 = vmatprep.subr.bf16.mxu0 0
        %9118 = vmatpush2.bf16.msra.mxu0 0
        %9119 = vmatprep.subr.bf16.mxu0 0
        %9120 = vmatpush2.bf16.msra.mxu0 0
        %9121 = vmatprep.subr.bf16.mxu0 0
        %9122 = vmatpush2.bf16.msra.mxu0 0
        %9123 = vmatprep.subr.bf16.mxu0 0
        %9124 = vmatpush2.bf16.msra.mxu0 0
        %9125 = vmatprep.subr.bf16.mxu0 0
        %9126 = vmatpush2.bf16.msra.mxu0 0
        %9127 = vmatprep.subr.bf16.mxu0 0
        %9128 = vmatpush2.bf16.msra.mxu0 0
        %9129 = vmatprep.subr.bf16.mxu0 0
        %9130 = vmatpush2.bf16.msra.mxu0 0
        %9131 = vmatprep.subr.bf16.mxu0 0
        %9132 = vmatpush2.bf16.msra.mxu0 0
        %9133 = vmatprep.mubr.bf16.mxu0 0
        %9134 = vmatmul.mubr.bf16.gmra.mxu0 %v8867
        %v9135 = vpop.f32.mrf.mxu0
        %v9136 = vadd.f32 0.0, %v9135
        %v9137 = vpop.f32.mrf.mxu0
        %v9138 = vadd.f32 0.0, %v9137
        %v9139 = vpop.f32.mrf.mxu0
        %v9140 = vpop.f32.mrf.mxu0
        %9141 = vdwg.mxu0
        %v9146 = vcombine.low %v9095, %v9097
        %v9147 = vcombine.low %v9136, %v9138
        %v9149 = vunpack.c.l.s4 1983009808
        %v9150 = vunpack.c.0.s8 %v9149
        %v9151 = vlaneseq
        %v9152 = vshrl.u32 %v9151, 7
        %v9153 = vsub.s32 %v9150, %v9152
        %v9154 = vrot.slane %v9146, %v9153
        %v9156 = vunpack.c.l.s4 1983009808
        %v9157 = vunpack.c.0.s8 %v9156
        %v9158 = vlaneseq
        %v9159 = vshrl.u32 %v9158, 7
        %v9160 = vsub.s32 %v9157, %v9159
        %v9161 = vrot.slane %v9147, %v9160
        %v9162 = vcombine.low %v9154, %v9161
        %v9164 = vadd.f32 %v8532, %v9162
        %v9165 = vxor.u32 %v9164, 2147483648
        %v9166 = vmul.f32 %v9165, 1.442695
        %v9167 = vpow.pop %v9166
        %v9168 = vadd.f32 %v9167, 1.0
        %v9169 = vrcp.pop %v9168
        %v9170 = vmul.f32 1.0, %v9169
        %v9172 = vrot.slane %v9164, 2
        %v9174 = vxor.u32 %v9172, 2147483648
        %v9175 = vmul.f32 %v9174, 1.442695
        %v9176 = vpow.pop %v9175
        %v9177 = vadd.f32 %v9176, 1.0
        %v9178 = vrcp.pop %v9177
        %v9179 = vmul.f32 1.0, %v9178
        %v9180 = vrot.slane %v9164, 4
        %v9182 = vtanh.pop %v9180
        %v9183 = vrot.slane %v9164, 6
        %v9185 = vxor.u32 %v9183, 2147483648
        %v9186 = vmul.f32 %v9185, 1.442695
        %v9187 = vpow.pop %v9186
        %v9188 = vadd.f32 %v9187, 1.0
        %v9189 = vrcp.pop %v9188
        %v9190 = vmul.f32 1.0, %v9189
        %v9191 = vld [vmem:[#allocation7] sm:$0x3]
        %v9192 = vmul.f32 %v9179, %v9191
        %v9193 = vmul.f32 %v9170, %v9182
        %v9194 = vadd.f32 %v9192, %v9193
        %v9195 = vtanh.pop %v9194
        %v9196 = vmul.f32 %v9190, %v9195
        %9197 = vst [vmem:[#allocation7] sm:$0x3] %v9194
        %9198 = vst [vmem:[#allocation6] sm:$0x3] %v9196
        %v9199 = vpack.c.bf16 %v8863, %v8863
        %v9200 = vld [vmem:[%s8] sm:$0xf]
        %v9201 = vld [vmem:[%s8 + $0x4] sm:$0xf]
        %v9202 = vld [vmem:[%s8 + $0x8] sm:$0xf]
        %v9203 = vld [vmem:[%s8 + $0xc] sm:$0xf]
        %v9204 = vld [vmem:[%s8 + $0x10] sm:$0xf]
        %v9205 = vld [vmem:[%s8 + $0x14] sm:$0xf]
        %v9206 = vld [vmem:[%s8 + $0x18] sm:$0xf]
        %v9207 = vld [vmem:[%s8 + $0x1c] sm:$0xf]
        %v9208 = vld [vmem:[%s8 + $0x20] sm:$0xf]
        %v9209 = vld [vmem:[%s8 + $0x24] sm:$0xf]
        %v9210 = vld [vmem:[%s8 + $0x28] sm:$0xf]
        %v9211 = vld [vmem:[%s8 + $0x2c] sm:$0xf]
        %v9212 = vld [vmem:[%s8 + $0x30] sm:$0xf]
        %v9213 = vld [vmem:[%s8 + $0x34] sm:$0xf]
        %v9214 = vld [vmem:[%s8 + $0x38] sm:$0xf]
        %v9215 = vld [vmem:[%s8 + $0x3c] sm:$0xf]
        %v9216 = vld [vmem:[#allocation24] sm:$0x1]
        %v9218 = vlaneseq
        %v9219 = vshrl.u32 %v9218, 7
        %v9220 = vsub.s32 0, %v9219
        %v9221 = vrot.slane %v9216, %v9220
        %v9239 = vunpack.c.l.b16 %v9200
        %v9240 = vunpack.c.l.b16 %v9201
        %v9241 = vunpack.c.l.b16 %v9202
        %v9242 = vunpack.c.l.b16 %v9203
        %v9243 = vunpack.c.l.b16 %v9204
        %v9244 = vunpack.c.l.b16 %v9205
        %v9245 = vunpack.c.l.b16 %v9206
        %v9246 = vunpack.c.l.b16 %v9207
        %v9247 = vunpack.c.l.b16 %v9208
        %v9248 = vunpack.c.l.b16 %v9209
        %v9249 = vunpack.c.l.b16 %v9210
        %v9250 = vunpack.c.l.b16 %v9211
        %v9251 = vunpack.c.l.b16 %v9212
        %v9252 = vunpack.c.l.b16 %v9213
        %v9253 = vunpack.c.l.b16 %v9214
        %v9254 = vunpack.c.l.b16 %v9215
        %v9255 = vpack.c.b16 %v9240, %v9239
        %v9256 = vpack.c.b16 %v9242, %v9241
        %v9257 = vpack.c.b16 %v9244, %v9243
        %v9258 = vpack.c.b16 %v9246, %v9245
        %v9259 = vpack.c.b16 %v9248, %v9247
        %v9260 = vpack.c.b16 %v9250, %v9249
        %v9261 = vpack.c.b16 %v9252, %v9251
        %v9262 = vpack.c.b16 %v9254, %v9253
        %9271 = vmatprep.subr.bf16.mxu0 0
        %9272 = vmatpush1.bf16.msra.mxu0 %v9262
        %9273 = vmatprep.subr.bf16.mxu0 0
        %9274 = vmatpush1.bf16.msra.mxu0 %v9261
        %9275 = vmatprep.subr.bf16.mxu0 0
        %9276 = vmatpush1.bf16.msra.mxu0 %v9260
        %9277 = vmatprep.subr.bf16.mxu0 0
        %9278 = vmatpush1.bf16.msra.mxu0 %v9259
        %9279 = vmatprep.subr.bf16.mxu0 0
        %9280 = vmatpush1.bf16.msra.mxu0 %v9258
        %9281 = vmatprep.subr.bf16.mxu0 0
        %9282 = vmatpush1.bf16.msra.mxu0 %v9257
        %9283 = vmatprep.subr.bf16.mxu0 0
        %9284 = vmatpush1.bf16.msra.mxu0 %v9256
        %9285 = vmatprep.subr.bf16.mxu0 0
        %9286 = vmatpush1.bf16.msra.mxu0 %v9255
        %9287 = vmatprep.subr.bf16.mxu0 0
        %9288 = vmatpush2.bf16.msra.mxu0 0
        %9289 = vmatprep.subr.bf16.mxu0 0
        %9290 = vmatpush2.bf16.msra.mxu0 0
        %9291 = vmatprep.subr.bf16.mxu0 0
        %9292 = vmatpush2.bf16.msra.mxu0 0
        %9293 = vmatprep.subr.bf16.mxu0 0
        %9294 = vmatpush2.bf16.msra.mxu0 0
        %9295 = vmatprep.subr.bf16.mxu0 0
        %9296 = vmatpush2.bf16.msra.mxu0 0
        %9297 = vmatprep.subr.bf16.mxu0 0
        %9298 = vmatpush2.bf16.msra.mxu0 0
        %9299 = vmatprep.subr.bf16.mxu0 0
        %9300 = vmatpush2.bf16.msra.mxu0 0
        %9301 = vmatprep.subr.bf16.mxu0 0
        %9302 = vmatpush2.bf16.msra.mxu0 0
        %9303 = vmatprep.mubr.bf16.mxu0 0
        %9304 = vmatmul.mubr.bf16.gmra.mxu0 %v9199
        %v9305 = vpop.f32.mrf.mxu0
        %v9306 = vadd.f32 %v9221, %v9305
        %v9307 = vpop.f32.mrf.mxu0
        %v9308 = vpop.f32.mrf.mxu0
        %v9309 = vpop.f32.mrf.mxu0
        %9310 = vdwg.mxu0
        %v9311 = vmax.f32 %v9306, 0.0
        %v9312 = vpack.c.bf16 %v9196, %v9196
        %v9313 = vld [vmem:[%s10] sm:$0xf]
        %v9314 = vld [vmem:[%s10 + $0x4] sm:$0xf]
        %v9315 = vld [vmem:[%s10 + $0x8] sm:$0xf]
        %v9316 = vld [vmem:[%s10 + $0xc] sm:$0xf]
        %v9317 = vld [vmem:[%s10 + $0x10] sm:$0xf]
        %v9318 = vld [vmem:[%s10 + $0x14] sm:$0xf]
        %v9319 = vld [vmem:[%s10 + $0x18] sm:$0xf]
        %v9320 = vld [vmem:[%s10 + $0x1c] sm:$0xf]
        %v9321 = vld [vmem:[%s10 + $0x20] sm:$0xf]
        %v9322 = vld [vmem:[%s10 + $0x24] sm:$0xf]
        %v9323 = vld [vmem:[%s10 + $0x28] sm:$0xf]
        %v9324 = vld [vmem:[%s10 + $0x2c] sm:$0xf]
        %v9325 = vld [vmem:[%s10 + $0x30] sm:$0xf]
        %v9326 = vld [vmem:[%s10 + $0x34] sm:$0xf]
        %v9327 = vld [vmem:[%s10 + $0x38] sm:$0xf]
        %v9328 = vld [vmem:[%s10 + $0x3c] sm:$0xf]
        %v9329 = vld [vmem:[#allocation25] sm:$0x1]
        %v9331 = vlaneseq
        %v9332 = vshrl.u32 %v9331, 7
        %v9333 = vsub.s32 0, %v9332
        %v9334 = vrot.slane %v9329, %v9333
        %v9352 = vunpack.c.l.b16 %v9313
        %v9353 = vunpack.c.l.b16 %v9314
        %v9354 = vunpack.c.l.b16 %v9315
        %v9355 = vunpack.c.l.b16 %v9316
        %v9356 = vunpack.c.l.b16 %v9317
        %v9357 = vunpack.c.l.b16 %v9318
        %v9358 = vunpack.c.l.b16 %v9319
        %v9359 = vunpack.c.l.b16 %v9320
        %v9360 = vunpack.c.l.b16 %v9321
        %v9361 = vunpack.c.l.b16 %v9322
        %v9362 = vunpack.c.l.b16 %v9323
        %v9363 = vunpack.c.l.b16 %v9324
        %v9364 = vunpack.c.l.b16 %v9325
        %v9365 = vunpack.c.l.b16 %v9326
        %v9366 = vunpack.c.l.b16 %v9327
        %v9367 = vunpack.c.l.b16 %v9328
        %v9368 = vpack.c.b16 %v9353, %v9352
        %v9369 = vpack.c.b16 %v9355, %v9354
        %v9370 = vpack.c.b16 %v9357, %v9356
        %v9371 = vpack.c.b16 %v9359, %v9358
        %v9372 = vpack.c.b16 %v9361, %v9360
        %v9373 = vpack.c.b16 %v9363, %v9362
        %v9374 = vpack.c.b16 %v9365, %v9364
        %v9375 = vpack.c.b16 %v9367, %v9366
        %9384 = vmatprep.subr.bf16.mxu0 0
        %9385 = vmatpush1.bf16.msra.mxu0 %v9375
        %9386 = vmatprep.subr.bf16.mxu0 0
        %9387 = vmatpush1.bf16.msra.mxu0 %v9374
        %9388 = vmatprep.subr.bf16.mxu0 0
        %9389 = vmatpush1.bf16.msra.mxu0 %v9373
        %9390 = vmatprep.subr.bf16.mxu0 0
        %9391 = vmatpush1.bf16.msra.mxu0 %v9372
        %9392 = vmatprep.subr.bf16.mxu0 0
        %9393 = vmatpush1.bf16.msra.mxu0 %v9371
        %9394 = vmatprep.subr.bf16.mxu0 0
        %9395 = vmatpush1.bf16.msra.mxu0 %v9370
        %9396 = vmatprep.subr.bf16.mxu0 0
        %9397 = vmatpush1.bf16.msra.mxu0 %v9369
        %9398 = vmatprep.subr.bf16.mxu0 0
        %9399 = vmatpush1.bf16.msra.mxu0 %v9368
        %9400 = vmatprep.subr.bf16.mxu0 0
        %9401 = vmatpush2.bf16.msra.mxu0 0
        %9402 = vmatprep.subr.bf16.mxu0 0
        %9403 = vmatpush2.bf16.msra.mxu0 0
        %9404 = vmatprep.subr.bf16.mxu0 0
        %9405 = vmatpush2.bf16.msra.mxu0 0
        %9406 = vmatprep.subr.bf16.mxu0 0
        %9407 = vmatpush2.bf16.msra.mxu0 0
        %9408 = vmatprep.subr.bf16.mxu0 0
        %9409 = vmatpush2.bf16.msra.mxu0 0
        %9410 = vmatprep.subr.bf16.mxu0 0
        %9411 = vmatpush2.bf16.msra.mxu0 0
        %9412 = vmatprep.subr.bf16.mxu0 0
        %9413 = vmatpush2.bf16.msra.mxu0 0
        %9414 = vmatprep.subr.bf16.mxu0 0
        %9415 = vmatpush2.bf16.msra.mxu0 0
        %9416 = vmatprep.mubr.bf16.mxu0 0
        %9417 = vmatmul.mubr.bf16.gmra.mxu0 %v9312
        %v9418 = vpop.f32.mrf.mxu0
        %v9419 = vadd.f32 %v9334, %v9418
        %v9420 = vpop.f32.mrf.mxu0
        %v9421 = vpop.f32.mrf.mxu0
        %v9422 = vpop.f32.mrf.mxu0
        %9423 = vdwg.mxu0
        %v9424 = vmax.f32 %v9419, 0.0
        %vm9425 = vcmask 254976
        %9426 = vst.msk [vmem:[%s766] sm:$0x3] %vm9425, %v9311
        %9427 = vst.msk [vmem:[%s773] sm:$0x3] %vm9425, %v9424
        %v9428 = vmul.f32 %v9424, 0.5
        %v9429 = vmul.f32 %v9428, 1.442695
        %v9430 = vpow.pop %v9429
        %v9431 = vld [vmem:[%s668] sm:$0x3]
        %v9432 = vmul.f32 %v9431, %v9430
        %v9433 = vadd.f32 %v9432, %v9311
        %v9434 = vpack.c.bf16 %v9433, %v9433
        %v9435 = vld [vmem:[#allocation27] sm:$0xff]
        %v9436 = vld [vmem:[#allocation27 + $0x8] sm:$0xff]
        %v9437 = vld [vmem:[#allocation27 + $0x10] sm:$0xff]
        %v9438 = vld [vmem:[#allocation27 + $0x18] sm:$0xff]
        %v9439 = vld [vmem:[#allocation27 + $0x20] sm:$0xff]
        %v9440 = vld [vmem:[#allocation27 + $0x28] sm:$0xff]
        %v9441 = vld [vmem:[#allocation27 + $0x30] sm:$0xff]
        %v9442 = vld [vmem:[#allocation27 + $0x38] sm:$0xff]
        %v9443 = vld [vmem:[#allocation27 + $0x40] sm:$0xff]
        %v9444 = vld [vmem:[#allocation27 + $0x48] sm:$0xff]
        %v9445 = vld [vmem:[#allocation27 + $0x50] sm:$0xff]
        %v9446 = vld [vmem:[#allocation27 + $0x58] sm:$0xff]
        %v9447 = vld [vmem:[#allocation27 + $0x60] sm:$0xff]
        %v9448 = vld [vmem:[#allocation27 + $0x68] sm:$0xff]
        %v9449 = vld [vmem:[#allocation27 + $0x70] sm:$0xff]
        %v9450 = vld [vmem:[#allocation27 + $0x78] sm:$0xff]
        %v9451 = vld [vmem:[#allocation28] sm:$0xff]
        %v9453 = vlaneseq
        %v9454 = vshrl.u32 %v9453, 7
        %v9455 = vsub.s32 0, %v9454
        %v9456 = vrot.slane %v9451, %v9455
        %v9457 = vlaneseq
        %v9458 = vshrl.u32 %v9457, 7
        %v9459 = vsub.s32 1, %v9458
        %v9460 = vrot.slane %v9451, %v9459
        %v9461 = vlaneseq
        %v9462 = vshrl.u32 %v9461, 7
        %v9463 = vsub.s32 2, %v9462
        %v9464 = vrot.slane %v9451, %v9463
        %v9465 = vlaneseq
        %v9466 = vshrl.u32 %v9465, 7
        %v9467 = vsub.s32 3, %v9466
        %v9468 = vrot.slane %v9451, %v9467
        %v9469 = vlaneseq
        %v9470 = vshrl.u32 %v9469, 7
        %v9471 = vsub.s32 4, %v9470
        %v9472 = vrot.slane %v9451, %v9471
        %v9473 = vlaneseq
        %v9474 = vshrl.u32 %v9473, 7
        %v9475 = vsub.s32 5, %v9474
        %v9476 = vrot.slane %v9451, %v9475
        %v9477 = vlaneseq
        %v9478 = vshrl.u32 %v9477, 7
        %v9479 = vsub.s32 6, %v9478
        %v9480 = vrot.slane %v9451, %v9479
        %v9481 = vlaneseq
        %v9482 = vshrl.u32 %v9481, 7
        %v9483 = vsub.s32 7, %v9482
        %v9484 = vrot.slane %v9451, %v9483
        %v9509 = vunpack.c.l.b16 %v9435
        %v9510 = vunpack.c.h.b16 %v9435
        %v9511 = vunpack.c.l.b16 %v9436
        %v9512 = vunpack.c.h.b16 %v9436
        %v9513 = vunpack.c.l.b16 %v9437
        %v9514 = vunpack.c.h.b16 %v9437
        %v9515 = vunpack.c.l.b16 %v9438
        %v9516 = vunpack.c.h.b16 %v9438
        %v9517 = vunpack.c.l.b16 %v9439
        %v9518 = vunpack.c.h.b16 %v9439
        %v9519 = vunpack.c.l.b16 %v9440
        %v9520 = vunpack.c.h.b16 %v9440
        %v9521 = vunpack.c.l.b16 %v9441
        %v9522 = vunpack.c.h.b16 %v9441
        %v9523 = vunpack.c.l.b16 %v9442
        %v9524 = vunpack.c.h.b16 %v9442
        %v9525 = vunpack.c.l.b16 %v9443
        %v9526 = vunpack.c.h.b16 %v9443
        %v9527 = vunpack.c.l.b16 %v9444
        %v9528 = vunpack.c.h.b16 %v9444
        %v9529 = vunpack.c.l.b16 %v9445
        %v9530 = vunpack.c.h.b16 %v9445
        %v9531 = vunpack.c.l.b16 %v9446
        %v9532 = vunpack.c.h.b16 %v9446
        %v9533 = vunpack.c.l.b16 %v9447
        %v9534 = vunpack.c.h.b16 %v9447
        %v9535 = vunpack.c.l.b16 %v9448
        %v9536 = vunpack.c.h.b16 %v9448
        %v9537 = vunpack.c.l.b16 %v9449
        %v9538 = vunpack.c.h.b16 %v9449
        %v9539 = vunpack.c.l.b16 %v9450
        %v9540 = vunpack.c.h.b16 %v9450
        %v9541 = vpack.c.b16 %v9517, %v9509
        %v9542 = vpack.c.b16 %v9518, %v9510
        %v9543 = vpack.c.b16 %v9519, %v9511
        %v9544 = vpack.c.b16 %v9520, %v9512
        %v9545 = vpack.c.b16 %v9521, %v9513
        %v9546 = vpack.c.b16 %v9522, %v9514
        %v9547 = vpack.c.b16 %v9523, %v9515
        %v9548 = vpack.c.b16 %v9524, %v9516
        %v9549 = vpack.c.b16 %v9533, %v9525
        %v9550 = vpack.c.b16 %v9534, %v9526
        %v9551 = vpack.c.b16 %v9535, %v9527
        %v9552 = vpack.c.b16 %v9536, %v9528
        %v9553 = vpack.c.b16 %v9537, %v9529
        %v9554 = vpack.c.b16 %v9538, %v9530
        %v9555 = vpack.c.b16 %v9539, %v9531
        %v9556 = vpack.c.b16 %v9540, %v9532
        %vm9573 = vcmask 261120
        %v9575 = vsel %vm9573, %v9434, 0
        %9577 = vmatprep.subr.bf16.mxu0 0
        %9578 = vmatpush1.bf16.msra.mxu0 0
        %9579 = vmatprep.subr.bf16.mxu0 0
        %9580 = vmatpush1.bf16.msra.mxu0 0
        %9581 = vmatprep.subr.bf16.mxu0 0
        %9582 = vmatpush1.bf16.msra.mxu0 0
        %9583 = vmatprep.subr.bf16.mxu0 0
        %9584 = vmatpush1.bf16.msra.mxu0 0
        %9585 = vmatprep.subr.bf16.mxu0 0
        %9586 = vmatpush1.bf16.msra.mxu0 0
        %9587 = vmatprep.subr.bf16.mxu0 0
        %9588 = vmatpush1.bf16.msra.mxu0 0
        %9589 = vmatprep.subr.bf16.mxu0 %v9550
        %9590 = vmatpush1.bf16.msra.mxu0 %v9549
        %9591 = vmatprep.subr.bf16.mxu0 %v9542
        %9592 = vmatpush1.bf16.msra.mxu0 %v9541
        %9593 = vmatprep.subr.bf16.mxu0 0
        %9594 = vmatpush2.bf16.msra.mxu0 0
        %9595 = vmatprep.subr.bf16.mxu0 0
        %9596 = vmatpush2.bf16.msra.mxu0 0
        %9597 = vmatprep.subr.bf16.mxu0 0
        %9598 = vmatpush2.bf16.msra.mxu0 0
        %9599 = vmatprep.subr.bf16.mxu0 0
        %9600 = vmatpush2.bf16.msra.mxu0 0
        %9601 = vmatprep.subr.bf16.mxu0 0
        %9602 = vmatpush2.bf16.msra.mxu0 0
        %9603 = vmatprep.subr.bf16.mxu0 0
        %9604 = vmatpush2.bf16.msra.mxu0 0
        %9605 = vmatprep.subr.bf16.mxu0 0
        %9606 = vmatpush2.bf16.msra.mxu0 0
        %9607 = vmatprep.subr.bf16.mxu0 0
        %9608 = vmatpush2.bf16.msra.mxu0 0
        %9609 = vmatprep.mubr.bf16.mxu0 0
        %9610 = vmatmul.mubr.bf16.gmra.mxu0 %v9575
        %v9611 = vpop.f32.mrf.mxu0
        %v9612 = vadd.f32 %v9456, %v9611
        %v9613 = vpop.f32.mrf.mxu0
        %v9614 = vadd.f32 %v9460, %v9613
        %v9615 = vpop.f32.mrf.mxu0
        %v9616 = vpop.f32.mrf.mxu0
        %9617 = vdwg.mxu0
        %9618 = vmatprep.subr.bf16.mxu0 0
        %9619 = vmatpush1.bf16.msra.mxu0 0
        %9620 = vmatprep.subr.bf16.mxu0 0
        %9621 = vmatpush1.bf16.msra.mxu0 0
        %9622 = vmatprep.subr.bf16.mxu0 0
        %9623 = vmatpush1.bf16.msra.mxu0 0
        %9624 = vmatprep.subr.bf16.mxu0 0
        %9625 = vmatpush1.bf16.msra.mxu0 0
        %9626 = vmatprep.subr.bf16.mxu0 0
        %9627 = vmatpush1.bf16.msra.mxu0 0
        %9628 = vmatprep.subr.bf16.mxu0 0
        %9629 = vmatpush1.bf16.msra.mxu0 0
        %9630 = vmatprep.subr.bf16.mxu0 %v9552
        %9631 = vmatpush1.bf16.msra.mxu0 %v9551
        %9632 = vmatprep.subr.bf16.mxu0 %v9544
        %9633 = vmatpush1.bf16.msra.mxu0 %v9543
        %9634 = vmatprep.subr.bf16.mxu0 0
        %9635 = vmatpush2.bf16.msra.mxu0 0
        %9636 = vmatprep.subr.bf16.mxu0 0
        %9637 = vmatpush2.bf16.msra.mxu0 0
        %9638 = vmatprep.subr.bf16.mxu0 0
        %9639 = vmatpush2.bf16.msra.mxu0 0
        %9640 = vmatprep.subr.bf16.mxu0 0
        %9641 = vmatpush2.bf16.msra.mxu0 0
        %9642 = vmatprep.subr.bf16.mxu0 0
        %9643 = vmatpush2.bf16.msra.mxu0 0
        %9644 = vmatprep.subr.bf16.mxu0 0
        %9645 = vmatpush2.bf16.msra.mxu0 0
        %9646 = vmatprep.subr.bf16.mxu0 0
        %9647 = vmatpush2.bf16.msra.mxu0 0
        %9648 = vmatprep.subr.bf16.mxu0 0
        %9649 = vmatpush2.bf16.msra.mxu0 0
        %9650 = vmatprep.mubr.bf16.mxu0 0
        %9651 = vmatmul.mubr.bf16.gmra.mxu0 %v9575
        %v9652 = vpop.f32.mrf.mxu0
        %v9653 = vadd.f32 %v9464, %v9652
        %v9654 = vpop.f32.mrf.mxu0
        %v9655 = vadd.f32 %v9468, %v9654
        %v9656 = vpop.f32.mrf.mxu0
        %v9657 = vpop.f32.mrf.mxu0
        %9658 = vdwg.mxu0
        %9659 = vmatprep.subr.bf16.mxu0 0
        %9660 = vmatpush1.bf16.msra.mxu0 0
        %9661 = vmatprep.subr.bf16.mxu0 0
        %9662 = vmatpush1.bf16.msra.mxu0 0
        %9663 = vmatprep.subr.bf16.mxu0 0
        %9664 = vmatpush1.bf16.msra.mxu0 0
        %9665 = vmatprep.subr.bf16.mxu0 0
        %9666 = vmatpush1.bf16.msra.mxu0 0
        %9667 = vmatprep.subr.bf16.mxu0 0
        %9668 = vmatpush1.bf16.msra.mxu0 0
        %9669 = vmatprep.subr.bf16.mxu0 0
        %9670 = vmatpush1.bf16.msra.mxu0 0
        %9671 = vmatprep.subr.bf16.mxu0 %v9554
        %9672 = vmatpush1.bf16.msra.mxu0 %v9553
        %9673 = vmatprep.subr.bf16.mxu0 %v9546
        %9674 = vmatpush1.bf16.msra.mxu0 %v9545
        %9675 = vmatprep.subr.bf16.mxu0 0
        %9676 = vmatpush2.bf16.msra.mxu0 0
        %9677 = vmatprep.subr.bf16.mxu0 0
        %9678 = vmatpush2.bf16.msra.mxu0 0
        %9679 = vmatprep.subr.bf16.mxu0 0
        %9680 = vmatpush2.bf16.msra.mxu0 0
        %9681 = vmatprep.subr.bf16.mxu0 0
        %9682 = vmatpush2.bf16.msra.mxu0 0
        %9683 = vmatprep.subr.bf16.mxu0 0
        %9684 = vmatpush2.bf16.msra.mxu0 0
        %9685 = vmatprep.subr.bf16.mxu0 0
        %9686 = vmatpush2.bf16.msra.mxu0 0
        %9687 = vmatprep.subr.bf16.mxu0 0
        %9688 = vmatpush2.bf16.msra.mxu0 0
        %9689 = vmatprep.subr.bf16.mxu0 0
        %9690 = vmatpush2.bf16.msra.mxu0 0
        %9691 = vmatprep.mubr.bf16.mxu0 0
        %9692 = vmatmul.mubr.bf16.gmra.mxu0 %v9575
        %v9693 = vpop.f32.mrf.mxu0
        %v9694 = vadd.f32 %v9472, %v9693
        %v9695 = vpop.f32.mrf.mxu0
        %v9696 = vadd.f32 %v9476, %v9695
        %v9697 = vpop.f32.mrf.mxu0
        %v9698 = vpop.f32.mrf.mxu0
        %9699 = vdwg.mxu0
        %9700 = vmatprep.subr.bf16.mxu0 0
        %9701 = vmatpush1.bf16.msra.mxu0 0
        %9702 = vmatprep.subr.bf16.mxu0 0
        %9703 = vmatpush1.bf16.msra.mxu0 0
        %9704 = vmatprep.subr.bf16.mxu0 0
        %9705 = vmatpush1.bf16.msra.mxu0 0
        %9706 = vmatprep.subr.bf16.mxu0 0
        %9707 = vmatpush1.bf16.msra.mxu0 0
        %9708 = vmatprep.subr.bf16.mxu0 0
        %9709 = vmatpush1.bf16.msra.mxu0 0
        %9710 = vmatprep.subr.bf16.mxu0 0
        %9711 = vmatpush1.bf16.msra.mxu0 0
        %9712 = vmatprep.subr.bf16.mxu0 %v9556
        %9713 = vmatpush1.bf16.msra.mxu0 %v9555
        %9714 = vmatprep.subr.bf16.mxu0 %v9548
        %9715 = vmatpush1.bf16.msra.mxu0 %v9547
        %9716 = vmatprep.subr.bf16.mxu0 0
        %9717 = vmatpush2.bf16.msra.mxu0 0
        %9718 = vmatprep.subr.bf16.mxu0 0
        %9719 = vmatpush2.bf16.msra.mxu0 0
        %9720 = vmatprep.subr.bf16.mxu0 0
        %9721 = vmatpush2.bf16.msra.mxu0 0
        %9722 = vmatprep.subr.bf16.mxu0 0
        %9723 = vmatpush2.bf16.msra.mxu0 0
        %9724 = vmatprep.subr.bf16.mxu0 0
        %9725 = vmatpush2.bf16.msra.mxu0 0
        %9726 = vmatprep.subr.bf16.mxu0 0
        %9727 = vmatpush2.bf16.msra.mxu0 0
        %9728 = vmatprep.subr.bf16.mxu0 0
        %9729 = vmatpush2.bf16.msra.mxu0 0
        %9730 = vmatprep.subr.bf16.mxu0 0
        %9731 = vmatpush2.bf16.msra.mxu0 0
        %9732 = vmatprep.mubr.bf16.mxu0 0
        %9733 = vmatmul.mubr.bf16.gmra.mxu0 %v9575
        %v9734 = vpop.f32.mrf.mxu0
        %v9735 = vadd.f32 %v9480, %v9734
        %v9736 = vpop.f32.mrf.mxu0
        %v9737 = vadd.f32 %v9484, %v9736
        %v9738 = vpop.f32.mrf.mxu0
        %v9739 = vpop.f32.mrf.mxu0
        %9740 = vdwg.mxu0
        %v9741 = vadd.f32 %v9612, %v5475
        %v9742 = vadd.f32 %v9614, %v5477
        %v9743 = vadd.f32 %v9653, %v5516
        %v9744 = vadd.f32 %v9655, %v5518
        %v9745 = vadd.f32 %v9694, %v5557
        %v9746 = vadd.f32 %v9696, %v5559
        %v9747 = vadd.f32 %v9735, %v5598
        %v9748 = vadd.f32 %v9737, %v5600
        %v9749 = vxor.u32 %v9741, 2147483648
        %v9750 = vxor.u32 %v9742, 2147483648
        %v9751 = vmul.f32 %v9749, 1.442695
        %v9752 = vpow.pop %v9751
        %v9753 = vmul.f32 %v9750, 1.442695
        %v9754 = vpow.pop %v9753
        %v9755 = vadd.f32 %v9752, 1.0
        %v9756 = vadd.f32 %v9754, 1.0
        %v9757 = vrcp.pop %v9755
        %v9758 = vmul.f32 1.0, %v9757
        %v9759 = vrcp.pop %v9756
        %v9760 = vmul.f32 1.0, %v9759
        %v9761 = vxor.u32 %v9743, 2147483648
        %v9762 = vxor.u32 %v9744, 2147483648
        %v9763 = vmul.f32 %v9761, 1.442695
        %v9764 = vpow.pop %v9763
        %v9765 = vmul.f32 %v9762, 1.442695
        %v9766 = vpow.pop %v9765
        %v9767 = vadd.f32 %v9764, 1.0
        %v9768 = vadd.f32 %v9766, 1.0
        %v9769 = vrcp.pop %v9767
        %v9770 = vmul.f32 1.0, %v9769
        %v9771 = vrcp.pop %v9768
        %v9772 = vmul.f32 1.0, %v9771
        %v9773 = vtanh.pop %v9745
        %v9774 = vtanh.pop %v9746
        %v9775 = vxor.u32 %v9747, 2147483648
        %v9776 = vxor.u32 %v9748, 2147483648
        %v9777 = vmul.f32 %v9775, 1.442695
        %v9778 = vpow.pop %v9777
        %v9779 = vmul.f32 %v9776, 1.442695
        %v9780 = vpow.pop %v9779
        %v9781 = vadd.f32 %v9778, 1.0
        %v9782 = vadd.f32 %v9780, 1.0
        %v9783 = vrcp.pop %v9781
        %v9784 = vmul.f32 1.0, %v9783
        %v9785 = vrcp.pop %v9782
        %v9786 = vmul.f32 1.0, %v9785
        %v9787 = vld [vmem:[#allocation9] sm:$0xf]
        %v9790 = vunpack.c.l.s4 1983009808
        %v9791 = vunpack.c.0.s8 %v9790
        %v9792 = vlaneseq
        %v9793 = vshrl.u32 %v9792, 7
        %v9794 = vsub.s32 %v9791, %v9793
        %v9795 = vrot.slane %v9787, %v9794
        %v9796 = vcombine.high %v9795, %v9795
        %v9799 = vmul.f32 %v9770, %v9795
        %v9800 = vmul.f32 %v9772, %v9796
        %v9801 = vmul.f32 %v9758, %v9773
        %v9802 = vmul.f32 %v9760, %v9774
        %v9803 = vadd.f32 %v9799, %v9801
        %v9804 = vadd.f32 %v9800, %v9802
        %v9805 = vtanh.pop %v9803
        %v9806 = vtanh.pop %v9804
        %v9807 = vmul.f32 %v9784, %v9805
        %v9808 = vmul.f32 %v9786, %v9806
        %v9811 = vcombine.low %v9803, %v9804
        %v9813 = vunpack.c.l.s4 1983009808
        %v9814 = vunpack.c.0.s8 %v9813
        %v9815 = vlaneseq
        %v9816 = vshrl.u32 %v9815, 7
        %v9817 = vsub.s32 %v9814, %v9816
        %v9818 = vrot.slane %v9811, %v9817
        %9820 = vst [vmem:[#allocation9] sm:$0xf] %v9818
        %v9823 = vcombine.low %v9807, %v9808
        %v9825 = vunpack.c.l.s4 1983009808
        %v9826 = vunpack.c.0.s8 %v9825
        %v9827 = vlaneseq
        %v9828 = vshrl.u32 %v9827, 7
        %v9829 = vsub.s32 %v9826, %v9828
        %v9830 = vrot.slane %v9823, %v9829
        %9832 = vst [vmem:[#allocation8] sm:$0xf] %v9830
        %v9833 = vpack.c.bf16 %v9807, %v9807
        %v9834 = vpack.c.bf16 %v9808, %v9808
        %v9835 = vld [vmem:[#allocation30] sm:$0xff]
        %v9836 = vld [vmem:[#allocation30 + $0x8] sm:$0xff]
        %v9837 = vld [vmem:[#allocation30 + $0x10] sm:$0xff]
        %v9838 = vld [vmem:[#allocation30 + $0x18] sm:$0xff]
        %v9839 = vld [vmem:[#allocation30 + $0x20] sm:$0xff]
        %v9840 = vld [vmem:[#allocation30 + $0x28] sm:$0xff]
        %v9841 = vld [vmem:[#allocation30 + $0x30] sm:$0xff]
        %v9842 = vld [vmem:[#allocation30 + $0x38] sm:$0xff]
        %v9843 = vld [vmem:[#allocation30 + $0x40] sm:$0xff]
        %v9844 = vld [vmem:[#allocation30 + $0x48] sm:$0xff]
        %v9845 = vld [vmem:[#allocation30 + $0x50] sm:$0xff]
        %v9846 = vld [vmem:[#allocation30 + $0x58] sm:$0xff]
        %v9847 = vld [vmem:[#allocation30 + $0x60] sm:$0xff]
        %v9848 = vld [vmem:[#allocation30 + $0x68] sm:$0xff]
        %v9849 = vld [vmem:[#allocation30 + $0x70] sm:$0xff]
        %v9850 = vld [vmem:[#allocation30 + $0x78] sm:$0xff]
        %v9851 = vld [vmem:[#allocation30 + $0x80] sm:$0xff]
        %v9852 = vld [vmem:[#allocation30 + $0x88] sm:$0xff]
        %v9853 = vld [vmem:[#allocation30 + $0x90] sm:$0xff]
        %v9854 = vld [vmem:[#allocation30 + $0x98] sm:$0xff]
        %v9855 = vld [vmem:[#allocation30 + $0xa0] sm:$0xff]
        %v9856 = vld [vmem:[#allocation30 + $0xa8] sm:$0xff]
        %v9857 = vld [vmem:[#allocation30 + $0xb0] sm:$0xff]
        %v9858 = vld [vmem:[#allocation30 + $0xb8] sm:$0xff]
        %v9859 = vld [vmem:[#allocation30 + $0xc0] sm:$0xff]
        %v9860 = vld [vmem:[#allocation30 + $0xc8] sm:$0xff]
        %v9861 = vld [vmem:[#allocation30 + $0xd0] sm:$0xff]
        %v9862 = vld [vmem:[#allocation30 + $0xd8] sm:$0xff]
        %v9863 = vld [vmem:[#allocation30 + $0xe0] sm:$0xff]
        %v9864 = vld [vmem:[#allocation30 + $0xe8] sm:$0xff]
        %v9865 = vld [vmem:[#allocation30 + $0xf0] sm:$0xff]
        %v9866 = vld [vmem:[#allocation30 + $0xf8] sm:$0xff]
        %v9867 = vld [vmem:[#allocation30 + $0x100] sm:$0xff]
        %v9868 = vld [vmem:[#allocation30 + $0x108] sm:$0xff]
        %v9869 = vld [vmem:[#allocation30 + $0x110] sm:$0xff]
        %v9870 = vld [vmem:[#allocation30 + $0x118] sm:$0xff]
        %v9871 = vld [vmem:[#allocation30 + $0x120] sm:$0xff]
        %v9872 = vld [vmem:[#allocation30 + $0x128] sm:$0xff]
        %v9873 = vld [vmem:[#allocation30 + $0x130] sm:$0xff]
        %v9874 = vld [vmem:[#allocation30 + $0x138] sm:$0xff]
        %v9875 = vld [vmem:[#allocation30 + $0x140] sm:$0xff]
        %v9876 = vld [vmem:[#allocation30 + $0x148] sm:$0xff]
        %v9877 = vld [vmem:[#allocation30 + $0x150] sm:$0xff]
        %v9878 = vld [vmem:[#allocation30 + $0x158] sm:$0xff]
        %v9879 = vld [vmem:[#allocation30 + $0x160] sm:$0xff]
        %v9880 = vld [vmem:[#allocation30 + $0x168] sm:$0xff]
        %v9881 = vld [vmem:[#allocation30 + $0x170] sm:$0xff]
        %v9882 = vld [vmem:[#allocation30 + $0x178] sm:$0xff]
        %v9883 = vld [vmem:[#allocation30 + $0x180] sm:$0xff]
        %v9884 = vld [vmem:[#allocation30 + $0x188] sm:$0xff]
        %v9885 = vld [vmem:[#allocation30 + $0x190] sm:$0xff]
        %v9886 = vld [vmem:[#allocation30 + $0x198] sm:$0xff]
        %v9887 = vld [vmem:[#allocation30 + $0x1a0] sm:$0xff]
        %v9888 = vld [vmem:[#allocation30 + $0x1a8] sm:$0xff]
        %v9889 = vld [vmem:[#allocation30 + $0x1b0] sm:$0xff]
        %v9890 = vld [vmem:[#allocation30 + $0x1b8] sm:$0xff]
        %v9891 = vld [vmem:[#allocation30 + $0x1c0] sm:$0xff]
        %v9892 = vld [vmem:[#allocation30 + $0x1c8] sm:$0xff]
        %v9893 = vld [vmem:[#allocation30 + $0x1d0] sm:$0xff]
        %v9894 = vld [vmem:[#allocation30 + $0x1d8] sm:$0xff]
        %v9895 = vld [vmem:[#allocation30 + $0x1e0] sm:$0xff]
        %v9896 = vld [vmem:[#allocation30 + $0x1e8] sm:$0xff]
        %v9897 = vld [vmem:[#allocation30 + $0x1f0] sm:$0xff]
        %v9898 = vld [vmem:[#allocation30 + $0x1f8] sm:$0xff]
        %v9899 = vld [vmem:[#allocation30 + $0x200] sm:$0xff]
        %v9900 = vld [vmem:[#allocation30 + $0x208] sm:$0xff]
        %v9901 = vld [vmem:[#allocation30 + $0x210] sm:$0xff]
        %v9902 = vld [vmem:[#allocation30 + $0x218] sm:$0xff]
        %v9903 = vld [vmem:[#allocation30 + $0x220] sm:$0xff]
        %v9904 = vld [vmem:[#allocation30 + $0x228] sm:$0xff]
        %v9905 = vld [vmem:[#allocation30 + $0x230] sm:$0xff]
        %v9906 = vld [vmem:[#allocation30 + $0x238] sm:$0xff]
        %v9907 = vld [vmem:[#allocation30 + $0x240] sm:$0xff]
        %v9908 = vld [vmem:[#allocation30 + $0x248] sm:$0xff]
        %v9909 = vld [vmem:[#allocation30 + $0x250] sm:$0xff]
        %v9910 = vld [vmem:[#allocation30 + $0x258] sm:$0xff]
        %v9911 = vld [vmem:[#allocation30 + $0x260] sm:$0xff]
        %v9912 = vld [vmem:[#allocation30 + $0x268] sm:$0xff]
        %v9913 = vld [vmem:[#allocation30 + $0x270] sm:$0xff]
        %v9914 = vld [vmem:[#allocation30 + $0x278] sm:$0xff]
        %v9915 = vld [vmem:[#allocation30 + $0x280] sm:$0xff]
        %v9916 = vld [vmem:[#allocation30 + $0x288] sm:$0xff]
        %v9917 = vld [vmem:[#allocation30 + $0x290] sm:$0xff]
        %v9918 = vld [vmem:[#allocation30 + $0x298] sm:$0xff]
        %v9919 = vld [vmem:[#allocation30 + $0x2a0] sm:$0xff]
        %v9920 = vld [vmem:[#allocation30 + $0x2a8] sm:$0xff]
        %v9921 = vld [vmem:[#allocation30 + $0x2b0] sm:$0xff]
        %v9922 = vld [vmem:[#allocation30 + $0x2b8] sm:$0xff]
        %v9923 = vld [vmem:[#allocation30 + $0x2c0] sm:$0xff]
        %v9924 = vld [vmem:[#allocation30 + $0x2c8] sm:$0xff]
        %v9925 = vld [vmem:[#allocation30 + $0x2d0] sm:$0xff]
        %v9926 = vld [vmem:[#allocation30 + $0x2d8] sm:$0xff]
        %v9927 = vld [vmem:[#allocation30 + $0x2e0] sm:$0xff]
        %v9928 = vld [vmem:[#allocation30 + $0x2e8] sm:$0xff]
        %v9929 = vld [vmem:[#allocation30 + $0x2f0] sm:$0xff]
        %v9930 = vld [vmem:[#allocation30 + $0x2f8] sm:$0xff]
        %v10027 = vunpack.c.l.b16 %v9835
        %v10028 = vunpack.c.h.b16 %v9835
        %v10029 = vunpack.c.l.b16 %v9836
        %v10030 = vunpack.c.h.b16 %v9836
        %v10031 = vunpack.c.l.b16 %v9837
        %v10032 = vunpack.c.h.b16 %v9837
        %v10033 = vunpack.c.l.b16 %v9838
        %v10034 = vunpack.c.h.b16 %v9838
        %v10035 = vunpack.c.l.b16 %v9839
        %v10036 = vunpack.c.h.b16 %v9839
        %v10037 = vunpack.c.l.b16 %v9840
        %v10038 = vunpack.c.h.b16 %v9840
        %v10039 = vunpack.c.l.b16 %v9841
        %v10040 = vunpack.c.h.b16 %v9841
        %v10041 = vunpack.c.l.b16 %v9842
        %v10042 = vunpack.c.h.b16 %v9842
        %v10043 = vunpack.c.l.b16 %v9843
        %v10044 = vunpack.c.h.b16 %v9843
        %v10045 = vunpack.c.l.b16 %v9844
        %v10046 = vunpack.c.h.b16 %v9844
        %v10047 = vunpack.c.l.b16 %v9845
        %v10048 = vunpack.c.h.b16 %v9845
        %v10049 = vunpack.c.l.b16 %v9846
        %v10050 = vunpack.c.h.b16 %v9846
        %v10051 = vunpack.c.l.b16 %v9847
        %v10052 = vunpack.c.h.b16 %v9847
        %v10053 = vunpack.c.l.b16 %v9848
        %v10054 = vunpack.c.h.b16 %v9848
        %v10055 = vunpack.c.l.b16 %v9849
        %v10056 = vunpack.c.h.b16 %v9849
        %v10057 = vunpack.c.l.b16 %v9850
        %v10058 = vunpack.c.h.b16 %v9850
        %v10059 = vunpack.c.l.b16 %v9851
        %v10060 = vunpack.c.h.b16 %v9851
        %v10061 = vunpack.c.l.b16 %v9852
        %v10062 = vunpack.c.h.b16 %v9852
        %v10063 = vunpack.c.l.b16 %v9853
        %v10064 = vunpack.c.h.b16 %v9853
        %v10065 = vunpack.c.l.b16 %v9854
        %v10066 = vunpack.c.h.b16 %v9854
        %v10067 = vunpack.c.l.b16 %v9855
        %v10068 = vunpack.c.h.b16 %v9855
        %v10069 = vunpack.c.l.b16 %v9856
        %v10070 = vunpack.c.h.b16 %v9856
        %v10071 = vunpack.c.l.b16 %v9857
        %v10072 = vunpack.c.h.b16 %v9857
        %v10073 = vunpack.c.l.b16 %v9858
        %v10074 = vunpack.c.h.b16 %v9858
        %v10075 = vunpack.c.l.b16 %v9859
        %v10076 = vunpack.c.h.b16 %v9859
        %v10077 = vunpack.c.l.b16 %v9860
        %v10078 = vunpack.c.h.b16 %v9860
        %v10079 = vunpack.c.l.b16 %v9861
        %v10080 = vunpack.c.h.b16 %v9861
        %v10081 = vunpack.c.l.b16 %v9862
        %v10082 = vunpack.c.h.b16 %v9862
        %v10083 = vunpack.c.l.b16 %v9863
        %v10084 = vunpack.c.h.b16 %v9863
        %v10085 = vunpack.c.l.b16 %v9864
        %v10086 = vunpack.c.h.b16 %v9864
        %v10087 = vunpack.c.l.b16 %v9865
        %v10088 = vunpack.c.h.b16 %v9865
        %v10089 = vunpack.c.l.b16 %v9866
        %v10090 = vunpack.c.h.b16 %v9866
        %v10091 = vunpack.c.l.b16 %v9867
        %v10092 = vunpack.c.h.b16 %v9867
        %v10093 = vunpack.c.l.b16 %v9868
        %v10094 = vunpack.c.h.b16 %v9868
        %v10095 = vunpack.c.l.b16 %v9869
        %v10096 = vunpack.c.h.b16 %v9869
        %v10097 = vunpack.c.l.b16 %v9870
        %v10098 = vunpack.c.h.b16 %v9870
        %v10099 = vunpack.c.l.b16 %v9871
        %v10100 = vunpack.c.h.b16 %v9871
        %v10101 = vunpack.c.l.b16 %v9872
        %v10102 = vunpack.c.h.b16 %v9872
        %v10103 = vunpack.c.l.b16 %v9873
        %v10104 = vunpack.c.h.b16 %v9873
        %v10105 = vunpack.c.l.b16 %v9874
        %v10106 = vunpack.c.h.b16 %v9874
        %v10107 = vunpack.c.l.b16 %v9875
        %v10108 = vunpack.c.h.b16 %v9875
        %v10109 = vunpack.c.l.b16 %v9876
        %v10110 = vunpack.c.h.b16 %v9876
        %v10111 = vunpack.c.l.b16 %v9877
        %v10112 = vunpack.c.h.b16 %v9877
        %v10113 = vunpack.c.l.b16 %v9878
        %v10114 = vunpack.c.h.b16 %v9878
        %v10115 = vunpack.c.l.b16 %v9879
        %v10116 = vunpack.c.h.b16 %v9879
        %v10117 = vunpack.c.l.b16 %v9880
        %v10118 = vunpack.c.h.b16 %v9880
        %v10119 = vunpack.c.l.b16 %v9881
        %v10120 = vunpack.c.h.b16 %v9881
        %v10121 = vunpack.c.l.b16 %v9882
        %v10122 = vunpack.c.h.b16 %v9882
        %v10123 = vunpack.c.l.b16 %v9883
        %v10124 = vunpack.c.h.b16 %v9883
        %v10125 = vunpack.c.l.b16 %v9884
        %v10126 = vunpack.c.h.b16 %v9884
        %v10127 = vunpack.c.l.b16 %v9885
        %v10128 = vunpack.c.h.b16 %v9885
        %v10129 = vunpack.c.l.b16 %v9886
        %v10130 = vunpack.c.h.b16 %v9886
        %v10131 = vunpack.c.l.b16 %v9887
        %v10132 = vunpack.c.h.b16 %v9887
        %v10133 = vunpack.c.l.b16 %v9888
        %v10134 = vunpack.c.h.b16 %v9888
        %v10135 = vunpack.c.l.b16 %v9889
        %v10136 = vunpack.c.h.b16 %v9889
        %v10137 = vunpack.c.l.b16 %v9890
        %v10138 = vunpack.c.h.b16 %v9890
        %v10139 = vunpack.c.l.b16 %v9891
        %v10140 = vunpack.c.h.b16 %v9891
        %v10141 = vunpack.c.l.b16 %v9892
        %v10142 = vunpack.c.h.b16 %v9892
        %v10143 = vunpack.c.l.b16 %v9893
        %v10144 = vunpack.c.h.b16 %v9893
        %v10145 = vunpack.c.l.b16 %v9894
        %v10146 = vunpack.c.h.b16 %v9894
        %v10147 = vunpack.c.l.b16 %v9895
        %v10148 = vunpack.c.h.b16 %v9895
        %v10149 = vunpack.c.l.b16 %v9896
        %v10150 = vunpack.c.h.b16 %v9896
        %v10151 = vunpack.c.l.b16 %v9897
        %v10152 = vunpack.c.h.b16 %v9897
        %v10153 = vunpack.c.l.b16 %v9898
        %v10154 = vunpack.c.h.b16 %v9898
        %v10155 = vunpack.c.l.b16 %v9899
        %v10156 = vunpack.c.h.b16 %v9899
        %v10157 = vunpack.c.l.b16 %v9900
        %v10158 = vunpack.c.h.b16 %v9900
        %v10159 = vunpack.c.l.b16 %v9901
        %v10160 = vunpack.c.h.b16 %v9901
        %v10161 = vunpack.c.l.b16 %v9902
        %v10162 = vunpack.c.h.b16 %v9902
        %v10163 = vunpack.c.l.b16 %v9903
        %v10164 = vunpack.c.h.b16 %v9903
        %v10165 = vunpack.c.l.b16 %v9904
        %v10166 = vunpack.c.h.b16 %v9904
        %v10167 = vunpack.c.l.b16 %v9905
        %v10168 = vunpack.c.h.b16 %v9905
        %v10169 = vunpack.c.l.b16 %v9906
        %v10170 = vunpack.c.h.b16 %v9906
        %v10171 = vunpack.c.l.b16 %v9907
        %v10172 = vunpack.c.h.b16 %v9907
        %v10173 = vunpack.c.l.b16 %v9908
        %v10174 = vunpack.c.h.b16 %v9908
        %v10175 = vunpack.c.l.b16 %v9909
        %v10176 = vunpack.c.h.b16 %v9909
        %v10177 = vunpack.c.l.b16 %v9910
        %v10178 = vunpack.c.h.b16 %v9910
        %v10179 = vunpack.c.l.b16 %v9911
        %v10180 = vunpack.c.h.b16 %v9911
        %v10181 = vunpack.c.l.b16 %v9912
        %v10182 = vunpack.c.h.b16 %v9912
        %v10183 = vunpack.c.l.b16 %v9913
        %v10184 = vunpack.c.h.b16 %v9913
        %v10185 = vunpack.c.l.b16 %v9914
        %v10186 = vunpack.c.h.b16 %v9914
        %v10187 = vunpack.c.l.b16 %v9915
        %v10188 = vunpack.c.h.b16 %v9915
        %v10189 = vunpack.c.l.b16 %v9916
        %v10190 = vunpack.c.h.b16 %v9916
        %v10191 = vunpack.c.l.b16 %v9917
        %v10192 = vunpack.c.h.b16 %v9917
        %v10193 = vunpack.c.l.b16 %v9918
        %v10194 = vunpack.c.h.b16 %v9918
        %v10195 = vunpack.c.l.b16 %v9919
        %v10196 = vunpack.c.h.b16 %v9919
        %v10197 = vunpack.c.l.b16 %v9920
        %v10198 = vunpack.c.h.b16 %v9920
        %v10199 = vunpack.c.l.b16 %v9921
        %v10200 = vunpack.c.h.b16 %v9921
        %v10201 = vunpack.c.l.b16 %v9922
        %v10202 = vunpack.c.h.b16 %v9922
        %v10203 = vunpack.c.l.b16 %v9923
        %v10204 = vunpack.c.h.b16 %v9923
        %v10205 = vunpack.c.l.b16 %v9924
        %v10206 = vunpack.c.h.b16 %v9924
        %v10207 = vunpack.c.l.b16 %v9925
        %v10208 = vunpack.c.h.b16 %v9925
        %v10209 = vunpack.c.l.b16 %v9926
        %v10210 = vunpack.c.h.b16 %v9926
        %v10211 = vunpack.c.l.b16 %v9927
        %v10212 = vunpack.c.h.b16 %v9927
        %v10213 = vunpack.c.l.b16 %v9928
        %v10214 = vunpack.c.h.b16 %v9928
        %v10215 = vunpack.c.l.b16 %v9929
        %v10216 = vunpack.c.h.b16 %v9929
        %v10217 = vunpack.c.l.b16 %v9930
        %v10218 = vunpack.c.h.b16 %v9930
        %v10219 = vpack.c.b16 %v10033, %v10027
        %v10220 = vpack.c.b16 %v10034, %v10028
        %v10221 = vpack.c.b16 %v10035, %v10029
        %v10222 = vpack.c.b16 %v10036, %v10030
        %v10223 = vpack.c.b16 %v10037, %v10031
        %v10224 = vpack.c.b16 %v10038, %v10032
        %v10225 = vpack.c.b16 %v10045, %v10039
        %v10226 = vpack.c.b16 %v10046, %v10040
        %v10227 = vpack.c.b16 %v10047, %v10041
        %v10228 = vpack.c.b16 %v10048, %v10042
        %v10229 = vpack.c.b16 %v10049, %v10043
        %v10230 = vpack.c.b16 %v10050, %v10044
        %v10231 = vpack.c.b16 %v10057, %v10051
        %v10232 = vpack.c.b16 %v10058, %v10052
        %v10233 = vpack.c.b16 %v10059, %v10053
        %v10234 = vpack.c.b16 %v10060, %v10054
        %v10235 = vpack.c.b16 %v10061, %v10055
        %v10236 = vpack.c.b16 %v10062, %v10056
        %v10237 = vpack.c.b16 %v10069, %v10063
        %v10238 = vpack.c.b16 %v10070, %v10064
        %v10239 = vpack.c.b16 %v10071, %v10065
        %v10240 = vpack.c.b16 %v10072, %v10066
        %v10241 = vpack.c.b16 %v10073, %v10067
        %v10242 = vpack.c.b16 %v10074, %v10068
        %v10243 = vpack.c.b16 %v10081, %v10075
        %v10244 = vpack.c.b16 %v10082, %v10076
        %v10245 = vpack.c.b16 %v10083, %v10077
        %v10246 = vpack.c.b16 %v10084, %v10078
        %v10247 = vpack.c.b16 %v10085, %v10079
        %v10248 = vpack.c.b16 %v10086, %v10080
        %v10249 = vpack.c.b16 %v10093, %v10087
        %v10250 = vpack.c.b16 %v10094, %v10088
        %v10251 = vpack.c.b16 %v10095, %v10089
        %v10252 = vpack.c.b16 %v10096, %v10090
        %v10253 = vpack.c.b16 %v10097, %v10091
        %v10254 = vpack.c.b16 %v10098, %v10092
        %v10255 = vpack.c.b16 %v10105, %v10099
        %v10256 = vpack.c.b16 %v10106, %v10100
        %v10257 = vpack.c.b16 %v10107, %v10101
        %v10258 = vpack.c.b16 %v10108, %v10102
        %v10259 = vpack.c.b16 %v10109, %v10103
        %v10260 = vpack.c.b16 %v10110, %v10104
        %v10261 = vpack.c.b16 %v10117, %v10111
        %v10262 = vpack.c.b16 %v10118, %v10112
        %v10263 = vpack.c.b16 %v10119, %v10113
        %v10264 = vpack.c.b16 %v10120, %v10114
        %v10265 = vpack.c.b16 %v10121, %v10115
        %v10266 = vpack.c.b16 %v10122, %v10116
        %v10267 = vpack.c.b16 %v10129, %v10123
        %v10268 = vpack.c.b16 %v10130, %v10124
        %v10269 = vpack.c.b16 %v10131, %v10125
        %v10270 = vpack.c.b16 %v10132, %v10126
        %v10271 = vpack.c.b16 %v10133, %v10127
        %v10272 = vpack.c.b16 %v10134, %v10128
        %v10273 = vpack.c.b16 %v10141, %v10135
        %v10274 = vpack.c.b16 %v10142, %v10136
        %v10275 = vpack.c.b16 %v10143, %v10137
        %v10276 = vpack.c.b16 %v10144, %v10138
        %v10277 = vpack.c.b16 %v10145, %v10139
        %v10278 = vpack.c.b16 %v10146, %v10140
        %v10279 = vpack.c.b16 %v10153, %v10147
        %v10280 = vpack.c.b16 %v10154, %v10148
        %v10281 = vpack.c.b16 %v10155, %v10149
        %v10282 = vpack.c.b16 %v10156, %v10150
        %v10283 = vpack.c.b16 %v10157, %v10151
        %v10284 = vpack.c.b16 %v10158, %v10152
        %v10285 = vpack.c.b16 %v10165, %v10159
        %v10286 = vpack.c.b16 %v10166, %v10160
        %v10287 = vpack.c.b16 %v10167, %v10161
        %v10288 = vpack.c.b16 %v10168, %v10162
        %v10289 = vpack.c.b16 %v10169, %v10163
        %v10290 = vpack.c.b16 %v10170, %v10164
        %v10291 = vpack.c.b16 %v10177, %v10171
        %v10292 = vpack.c.b16 %v10178, %v10172
        %v10293 = vpack.c.b16 %v10179, %v10173
        %v10294 = vpack.c.b16 %v10180, %v10174
        %v10295 = vpack.c.b16 %v10181, %v10175
        %v10296 = vpack.c.b16 %v10182, %v10176
        %v10297 = vpack.c.b16 %v10189, %v10183
        %v10298 = vpack.c.b16 %v10190, %v10184
        %v10299 = vpack.c.b16 %v10191, %v10185
        %v10300 = vpack.c.b16 %v10192, %v10186
        %v10301 = vpack.c.b16 %v10193, %v10187
        %v10302 = vpack.c.b16 %v10194, %v10188
        %v10303 = vpack.c.b16 %v10201, %v10195
        %v10304 = vpack.c.b16 %v10202, %v10196
        %v10305 = vpack.c.b16 %v10203, %v10197
        %v10306 = vpack.c.b16 %v10204, %v10198
        %v10307 = vpack.c.b16 %v10205, %v10199
        %v10308 = vpack.c.b16 %v10206, %v10200
        %v10309 = vpack.c.b16 %v10213, %v10207
        %v10310 = vpack.c.b16 %v10214, %v10208
        %v10311 = vpack.c.b16 %v10215, %v10209
        %v10312 = vpack.c.b16 %v10216, %v10210
        %v10313 = vpack.c.b16 %v10217, %v10211
        %v10314 = vpack.c.b16 %v10218, %v10212
        %10411 = vmatprep.subr.bf16.mxu0 %v10262
        %10412 = vmatpush1.bf16.msra.mxu0 %v10261
        %10413 = vmatprep.subr.bf16.mxu0 %v10256
        %10414 = vmatpush1.bf16.msra.mxu0 %v10255
        %10415 = vmatprep.subr.bf16.mxu0 %v10250
        %10416 = vmatpush1.bf16.msra.mxu0 %v10249
        %10417 = vmatprep.subr.bf16.mxu0 %v10244
        %10418 = vmatpush1.bf16.msra.mxu0 %v10243
        %10419 = vmatprep.subr.bf16.mxu0 %v10238
        %10420 = vmatpush1.bf16.msra.mxu0 %v10237
        %10421 = vmatprep.subr.bf16.mxu0 %v10232
        %10422 = vmatpush1.bf16.msra.mxu0 %v10231
        %10423 = vmatprep.subr.bf16.mxu0 %v10226
        %10424 = vmatpush1.bf16.msra.mxu0 %v10225
        %10425 = vmatprep.subr.bf16.mxu0 %v10220
        %10426 = vmatpush1.bf16.msra.mxu0 %v10219
        %10427 = vmatprep.subr.bf16.mxu0 %v10310
        %10428 = vmatpush2.bf16.msra.mxu0 %v10309
        %10429 = vmatprep.subr.bf16.mxu0 %v10304
        %10430 = vmatpush2.bf16.msra.mxu0 %v10303
        %10431 = vmatprep.subr.bf16.mxu0 %v10298
        %10432 = vmatpush2.bf16.msra.mxu0 %v10297
        %10433 = vmatprep.subr.bf16.mxu0 %v10292
        %10434 = vmatpush2.bf16.msra.mxu0 %v10291
        %10435 = vmatprep.subr.bf16.mxu0 %v10286
        %10436 = vmatpush2.bf16.msra.mxu0 %v10285
        %10437 = vmatprep.subr.bf16.mxu0 %v10280
        %10438 = vmatpush2.bf16.msra.mxu0 %v10279
        %10439 = vmatprep.subr.bf16.mxu0 %v10274
        %10440 = vmatpush2.bf16.msra.mxu0 %v10273
        %10441 = vmatprep.subr.bf16.mxu0 %v10268
        %10442 = vmatpush2.bf16.msra.mxu0 %v10267
        %10443 = vmatprep.mubr.bf16.mxu0 %v9834
        %10444 = vmatmul.mubr.bf16.gmra.mxu0 %v9833
        %v10445 = vpop.f32.mrf.mxu0
        %v10446 = vadd.f32 0.0, %v10445
        %v10447 = vpop.f32.mrf.mxu0
        %v10448 = vadd.f32 0.0, %v10447
        %v10449 = vpop.f32.mrf.mxu0
        %v10450 = vpop.f32.mrf.mxu0
        %10451 = vdwg.mxu0
        %10452 = vmatprep.subr.bf16.mxu0 %v10264
        %10453 = vmatpush1.bf16.msra.mxu0 %v10263
        %10454 = vmatprep.subr.bf16.mxu0 %v10258
        %10455 = vmatpush1.bf16.msra.mxu0 %v10257
        %10456 = vmatprep.subr.bf16.mxu0 %v10252
        %10457 = vmatpush1.bf16.msra.mxu0 %v10251
        %10458 = vmatprep.subr.bf16.mxu0 %v10246
        %10459 = vmatpush1.bf16.msra.mxu0 %v10245
        %10460 = vmatprep.subr.bf16.mxu0 %v10240
        %10461 = vmatpush1.bf16.msra.mxu0 %v10239
        %10462 = vmatprep.subr.bf16.mxu0 %v10234
        %10463 = vmatpush1.bf16.msra.mxu0 %v10233
        %10464 = vmatprep.subr.bf16.mxu0 %v10228
        %10465 = vmatpush1.bf16.msra.mxu0 %v10227
        %10466 = vmatprep.subr.bf16.mxu0 %v10222
        %10467 = vmatpush1.bf16.msra.mxu0 %v10221
        %10468 = vmatprep.subr.bf16.mxu0 %v10312
        %10469 = vmatpush2.bf16.msra.mxu0 %v10311
        %10470 = vmatprep.subr.bf16.mxu0 %v10306
        %10471 = vmatpush2.bf16.msra.mxu0 %v10305
        %10472 = vmatprep.subr.bf16.mxu0 %v10300
        %10473 = vmatpush2.bf16.msra.mxu0 %v10299
        %10474 = vmatprep.subr.bf16.mxu0 %v10294
        %10475 = vmatpush2.bf16.msra.mxu0 %v10293
        %10476 = vmatprep.subr.bf16.mxu0 %v10288
        %10477 = vmatpush2.bf16.msra.mxu0 %v10287
        %10478 = vmatprep.subr.bf16.mxu0 %v10282
        %10479 = vmatpush2.bf16.msra.mxu0 %v10281
        %10480 = vmatprep.subr.bf16.mxu0 %v10276
        %10481 = vmatpush2.bf16.msra.mxu0 %v10275
        %10482 = vmatprep.subr.bf16.mxu0 %v10270
        %10483 = vmatpush2.bf16.msra.mxu0 %v10269
        %10484 = vmatprep.mubr.bf16.mxu0 %v9834
        %10485 = vmatmul.mubr.bf16.gmra.mxu0 %v9833
        %v10486 = vpop.f32.mrf.mxu0
        %v10487 = vadd.f32 0.0, %v10486
        %v10488 = vpop.f32.mrf.mxu0
        %v10489 = vadd.f32 0.0, %v10488
        %v10490 = vpop.f32.mrf.mxu0
        %v10491 = vpop.f32.mrf.mxu0
        %10492 = vdwg.mxu0
        %10493 = vmatprep.subr.bf16.mxu0 %v10266
        %10494 = vmatpush1.bf16.msra.mxu0 %v10265
        %10495 = vmatprep.subr.bf16.mxu0 %v10260
        %10496 = vmatpush1.bf16.msra.mxu0 %v10259
        %10497 = vmatprep.subr.bf16.mxu0 %v10254
        %10498 = vmatpush1.bf16.msra.mxu0 %v10253
        %10499 = vmatprep.subr.bf16.mxu0 %v10248
        %10500 = vmatpush1.bf16.msra.mxu0 %v10247
        %10501 = vmatprep.subr.bf16.mxu0 %v10242
        %10502 = vmatpush1.bf16.msra.mxu0 %v10241
        %10503 = vmatprep.subr.bf16.mxu0 %v10236
        %10504 = vmatpush1.bf16.msra.mxu0 %v10235
        %10505 = vmatprep.subr.bf16.mxu0 %v10230
        %10506 = vmatpush1.bf16.msra.mxu0 %v10229
        %10507 = vmatprep.subr.bf16.mxu0 %v10224
        %10508 = vmatpush1.bf16.msra.mxu0 %v10223
        %10509 = vmatprep.subr.bf16.mxu0 %v10314
        %10510 = vmatpush2.bf16.msra.mxu0 %v10313
        %10511 = vmatprep.subr.bf16.mxu0 %v10308
        %10512 = vmatpush2.bf16.msra.mxu0 %v10307
        %10513 = vmatprep.subr.bf16.mxu0 %v10302
        %10514 = vmatpush2.bf16.msra.mxu0 %v10301
        %10515 = vmatprep.subr.bf16.mxu0 %v10296
        %10516 = vmatpush2.bf16.msra.mxu0 %v10295
        %10517 = vmatprep.subr.bf16.mxu0 %v10290
        %10518 = vmatpush2.bf16.msra.mxu0 %v10289
        %10519 = vmatprep.subr.bf16.mxu0 %v10284
        %10520 = vmatpush2.bf16.msra.mxu0 %v10283
        %10521 = vmatprep.subr.bf16.mxu0 %v10278
        %10522 = vmatpush2.bf16.msra.mxu0 %v10277
        %10523 = vmatprep.subr.bf16.mxu0 %v10272
        %10524 = vmatpush2.bf16.msra.mxu0 %v10271
        %10525 = vmatprep.mubr.bf16.mxu0 %v9834
        %10526 = vmatmul.mubr.bf16.gmra.mxu0 %v9833
        %v10527 = vpop.f32.mrf.mxu0
        %v10528 = vadd.f32 0.0, %v10527
        %v10529 = vpop.f32.mrf.mxu0
        %v10530 = vadd.f32 0.0, %v10529
        %v10531 = vpop.f32.mrf.mxu0
        %v10532 = vpop.f32.mrf.mxu0
        %10533 = vdwg.mxu0
        %v10540 = vcombine.low %v10446, %v10448
        %v10541 = vcombine.low %v10487, %v10489
        %v10543 = vunpack.c.l.s4 1983009808
        %v10544 = vunpack.c.0.s8 %v10543
        %v10545 = vlaneseq
        %v10546 = vshrl.u32 %v10545, 7
        %v10547 = vsub.s32 %v10544, %v10546
        %v10548 = vrot.slane %v10540, %v10547
        %v10550 = vunpack.c.l.s4 1983009808
        %v10551 = vunpack.c.0.s8 %v10550
        %v10552 = vlaneseq
        %v10553 = vshrl.u32 %v10552, 7
        %v10554 = vsub.s32 %v10551, %v10553
        %v10555 = vrot.slane %v10541, %v10554
        %v10556 = vcombine.low %v10548, %v10555
        %v10557 = vcombine.low %v10528, %v10530
        %v10559 = vunpack.c.l.s4 1983009808
        %v10560 = vunpack.c.0.s8 %v10559
        %v10561 = vlaneseq
        %v10562 = vshrl.u32 %v10561, 7
        %v10563 = vsub.s32 %v10560, %v10562
        %v10564 = vrot.slane %v10557, %v10563
        %v10567 = vadd.f32 %v3712, %v10556
        %v10568 = vadd.f32 %v3713, %v10564
        %v10569 = vld [vmem:[#allocation31] sm:$0x3f]
        %v10571 = vlaneseq
        %v10572 = vshrl.u32 %v10571, 7
        %v10573 = vsub.s32 0, %v10572
        %v10574 = vrot.slane %v10569, %v10573
        %v10575 = vlaneseq
        %v10576 = vshrl.u32 %v10575, 7
        %v10577 = vsub.s32 1, %v10576
        %v10578 = vrot.slane %v10569, %v10577
        %v10579 = vlaneseq
        %v10580 = vshrl.u32 %v10579, 7
        %v10581 = vsub.s32 2, %v10580
        %v10582 = vrot.slane %v10569, %v10581
        %v10583 = vlaneseq
        %v10584 = vshrl.u32 %v10583, 7
        %v10585 = vsub.s32 3, %v10584
        %v10586 = vrot.slane %v10569, %v10585
        %v10587 = vlaneseq
        %v10588 = vshrl.u32 %v10587, 7
        %v10589 = vsub.s32 4, %v10588
        %v10590 = vrot.slane %v10569, %v10589
        %v10591 = vlaneseq
        %v10592 = vshrl.u32 %v10591, 7
        %v10593 = vsub.s32 5, %v10592
        %v10594 = vrot.slane %v10569, %v10593
        %v10595 = vcombine.low %v10574, %v10578
        %v10596 = vcombine.low %v10582, %v10586
        %v10598 = vunpack.c.l.s4 1983009808
        %v10599 = vunpack.c.0.s8 %v10598
        %v10600 = vlaneseq
        %v10601 = vshrl.u32 %v10600, 7
        %v10602 = vsub.s32 %v10599, %v10601
        %v10603 = vrot.slane %v10595, %v10602
        %v10605 = vunpack.c.l.s4 1983009808
        %v10606 = vunpack.c.0.s8 %v10605
        %v10607 = vlaneseq
        %v10608 = vshrl.u32 %v10607, 7
        %v10609 = vsub.s32 %v10606, %v10608
        %v10610 = vrot.slane %v10596, %v10609
        %v10611 = vcombine.low %v10603, %v10610
        %v10612 = vcombine.low %v10590, %v10594
        %v10614 = vunpack.c.l.s4 1983009808
        %v10615 = vunpack.c.0.s8 %v10614
        %v10616 = vlaneseq
        %v10617 = vshrl.u32 %v10616, 7
        %v10618 = vsub.s32 %v10615, %v10617
        %v10619 = vrot.slane %v10612, %v10618
        %v10622 = vadd.f32 %v10567, %v10611
        %v10623 = vadd.f32 %v10568, %v10619
        %10624 = vst [vmem:[#allocation3] sm:$0xff] %v10622
        %10625 = vst [vmem:[#allocation3 + $0x8] sm:$0xf] %v10623
        %p10626 = scmp.eq.s32.totalorder %s44, 3
        // Predicated region
        $region145: #{tpu_custom_call.1} parent=83 // pred_check
          %p10627 = pneg %p10626
        $region146: #{tpu_custom_call.1} parent=83 // pred_check_branch
          %10629 = sbr.rel (%p10627) target = $region148
        $region147: #{tpu_custom_call.1} parent=83 // pred_region
          %v10630 = vxor.u32 %v10622, 2147483648
          %v10631 = vxor.u32 %v10623, 2147483648
          %v10632 = vmul.f32 %v10630, 1.442695
          %v10633 = vpow.pop %v10632
          %v10634 = vmul.f32 %v10631, 1.442695
          %v10635 = vpow.pop %v10634
          %v10636 = vadd.f32 %v10633, 1.0
          %v10637 = vadd.f32 %v10635, 1.0
          %v10638 = vrcp.pop %v10636
          %v10639 = vmul.f32 1.0, %v10638
          %v10640 = vrcp.pop %v10637
          %v10641 = vmul.f32 1.0, %v10640
          %10642 = vst [vmem:[#allocation33] sm:$0xff] %v10639
          %10643 = vst [vmem:[#allocation33 + $0x8] sm:$0xf] %v10641
        $region148: #{tpu_custom_call.1} parent=83 // pred_fallthru
          _
        %s10644 = sand.u32 %s44, 1
        %s10645 = scalar_lea.sflag [#allocation35], %s10644
        %s10646 = sand.u32 %s414, 1
        %s10647 = smul.addr %s10646, 2
        %s10648 = scalar_lea.vmem [#allocation34], %s10647
        %s10649 = sand.u32 %s44, 1
        %s10650 = scalar_lea.sflag [#allocation35], %s10649
        %s10651 = sand.u32 %s440, 1
        %s10652 = smul.addr %s10651, 2
        %s10653 = scalar_lea.vmem [#allocation36], %s10652
        // Predicated region
        $region149: #{tpu_custom_call.1} parent=83 // pred_check
          %p10654 = pneg %p398
        $region150: #{tpu_custom_call.1} parent=83 // pred_check_branch
          %10656 = sbr.rel (%p10654) target = $region152
        $region151: #{tpu_custom_call.1} parent=83 // pred_region
          %s10658 = ssub.s32 192, 192
          %10659 = vsyncadd [#allocation12], %s10658
          %s10661 = sshll.u32 [#allocation33], 4
          %s10662 = int_to_ptr.vmem [resolvable:$true] %s10661
          %10664 = dma.vmem_to_hbm [thread:$0]  %s10662, 192, %s16, [#allocation12]
        $region152: #{tpu_custom_call.1} parent=83 // pred_fallthru
          _
        // Predicated region
        $region153: #{tpu_custom_call.1} parent=83 // pred_check
          %p10665 = pneg %p424
        $region154: #{tpu_custom_call.1} parent=83 // pred_check_branch
          %10667 = sbr.rel (%p10665) target = $region156
        $region155: #{tpu_custom_call.1} parent=83 // pred_region
          %s10669 = ssub.s32 32, 32
          %10670 = vsyncadd %s10645, %s10669
          %s10671 = smul.addr %s44, 32
          %s10672 = scalar_lea.hbm %s17, %s10671
          %s10674 = sshll.u32 %s10648, 4
          %s10675 = int_to_ptr.vmem [resolvable:$true] %s10674
          %10677 = dma.vmem_to_hbm [thread:$0]  %s10675, 32, %s10672, %s10645
        $region156: #{tpu_custom_call.1} parent=83 // pred_fallthru
          _
        // Predicated region
        $region157: #{tpu_custom_call.1} parent=83 // pred_check
          %p10678 = pneg %p450
        $region158: #{tpu_custom_call.1} parent=83 // pred_check_branch
          %10680 = sbr.rel (%p10678) target = $region160
        $region159: #{tpu_custom_call.1} parent=83 // pred_region
          %s10682 = ssub.s32 32, 32
          %10683 = vsyncadd %s10650, %s10682
          %s10684 = smul.addr %s44, 32
          %s10685 = scalar_lea.hbm %s18, %s10684
          %s10687 = sshll.u32 %s10653, 4
          %s10688 = int_to_ptr.vmem [resolvable:$true] %s10687
          %10690 = dma.vmem_to_hbm [thread:$0]  %s10688, 32, %s10685, %s10650
        $region160: #{tpu_custom_call.1} parent=83 // pred_fallthru
          _
        // Predicated region
        $region161: #{tpu_custom_call.1} parent=83 // pred_check
          %p10691 = pneg %p398
        $region162: #{tpu_custom_call.1} parent=83 // pred_check_branch
          %10693 = sbr.rel (%p10691) target = $region164
        $region163: #{tpu_custom_call.1} parent=83 // pred_region
          %10694 = dma.done [#allocation12], 192
        $region164: #{tpu_custom_call.1} parent=83 // pred_fallthru
          _
      $region84: #{tpu_custom_call.1} parent=5 // pred_fallthru
        _
      %p10695 = scmp.le.s32.totalorder 2, %s39
      // Predicated region
      $region165: #{tpu_custom_call.1} parent=5 // pred_check
        %p10696 = pneg %p10695
      $region166: #{tpu_custom_call.1} parent=5 // pred_check_branch
        %10698 = sbr.rel (%p10696) target = $region168
      $region167: #{tpu_custom_call.1} parent=5 // pred_region
        %s10699 = ssub.s32 %s39, 2
        // Predicated region
        $region169: #{tpu_custom_call.1} parent=167 // pred_check
          %p10700 = pneg %p430
        $region170: #{tpu_custom_call.1} parent=167 // pred_check_branch
          %10702 = sbr.rel (%p10700) target = $region172
        $region171: #{tpu_custom_call.1} parent=167 // pred_region
          %s10703 = sand.u32 %s45, 1
          %s10704 = scalar_lea.sflag [#allocation35], %s10703
          %s10705 = sand.u32 %s415, 1
          %s10706 = smul.addr %s10705, 2
          %s10707 = scalar_lea.vmem [#allocation34], %s10706
          %10708 = dma.done %s10704, 32
        $region172: #{tpu_custom_call.1} parent=167 // pred_fallthru
          _
        // Predicated region
        $region173: #{tpu_custom_call.1} parent=167 // pred_check
          %p10709 = pneg %p456
        $region174: #{tpu_custom_call.1} parent=167 // pred_check_branch
          %10711 = sbr.rel (%p10709) target = $region176
        $region175: #{tpu_custom_call.1} parent=167 // pred_region
          %s10712 = sand.u32 %s45, 1
          %s10713 = scalar_lea.sflag [#allocation35], %s10712
          %s10714 = sand.u32 %s441, 1
          %s10715 = smul.addr %s10714, 2
          %s10716 = scalar_lea.vmem [#allocation36], %s10715
          %10717 = dma.done %s10713, 32
        $region176: #{tpu_custom_call.1} parent=167 // pred_fallthru
          _
      $region168: #{tpu_custom_call.1} parent=5 // pred_fallthru
        _
    $region6: #{tpu_custom_call.1} parent=1 // loop_footer
      %s43 = sadd.s32 1, %s39
    $region7: #{tpu_custom_call.1} parent=1 // loop_footer_branch
      %38 = sbr.rel target = $region3
    $region8: #{tpu_custom_call.1} parent=1 // loop_exit
      _
    %10718 = vsyncpa [#allocation11], 1
    %s10719 = scalar_lea.sflag [#allocation11], 1
    %10720 = vsyncpa %s10719, 1
    %10721 = vsyncpa [#allocation14], 1
    %s10722 = scalar_lea.sflag [#allocation14], 1
    %10723 = vsyncpa %s10722, 1
    %10724 = vsyncpa [#allocation17], 1
    %10725 = vsyncpa [#allocation20], 1
    %10726 = vsyncpa [#allocation23], 1
    %10727 = vsyncpa [#allocation26], 1
    %10728 = vsyncpa [#allocation29], 1
    %10729 = vsyncpa [#allocation32], 1
    %10730 = vsyncpa [#allocation12], 1
    %s10731 = scalar_lea.sflag [#allocation12], 1
    %10732 = vsyncpa %s10731, 1
    %10733 = vsyncpa [#allocation35], 1
    %s10734 = scalar_lea.sflag [#allocation35], 1
    %10735 = vsyncpa %s10734, 1

</llo_original>
